<compile_context>
chip_gen: v5e
topology: v5e:2x2
jax: 0.10.0
libtpu: 0.0.40
codegen_flags: <defaults>
</compile_context>

<pallas_src>
import jax
import jax.numpy as jnp
from jax import lax
from jax.experimental import pallas as pl
from jax.experimental.pallas import tpu as pltpu


# -----------------------------------------------------------------------------
# Kernel 1: fused grouped/depthwise 3x3 conv for q, k, v with folded BatchNorm.
# One grid step = one batch element; all output channels of all three
# projections are produced per step.  stride 1, padding 1, no bias.
#   q, k: Conv2d(C, C//2, 3, groups=C//2)  -> 2 input channels per out channel
#   v   : Conv2d(C, C,    3, groups=C)     -> depthwise
# -----------------------------------------------------------------------------
def _qkv_conv_kernel(x_ref, wq_ref, wk_ref, wv_ref, bq_ref, bk_ref, bv_ref,
                     q_ref, k_ref, v_ref):
    # x_ref: (1, Cin, H+2, W+2) VMEM
    # wq_ref/wk_ref: (Cq*2*9,) SMEM, wv_ref: (Cin*9,) SMEM  (BN scale folded in)
    # bq_ref/bk_ref: (Cq,) SMEM, bv_ref: (Cin,) SMEM        (folded BN shifts)
    # q_ref/k_ref: (1, Cq, H, W) VMEM, v_ref: (1, Cin, H, W) VMEM
    Cin = x_ref.shape[1]
    H = q_ref.shape[2]
    W = q_ref.shape[3]

    acc_q = None
    acc_k = None
    for ci in range(Cin):
        # The 9 shifted (H, W) windows of this input channel are reused by the
        # v projection and by the q/k projections -> sliced once.
        win = [x_ref[0, ci, dy:dy + H, dx:dx + W]
               for dy in range(3) for dx in range(3)]

        # depthwise v projection: output channel == ci.
        acc_v = win[0] * wv_ref[ci * 9]
        for t in range(1, 9):
            acc_v = acc_v + win[t] * wv_ref[ci * 9 + t]
        v_ref[0, ci] = acc_v + bv_ref[ci]

        # grouped q/k projections: output channel oc = ci // 2 consumes input
        # channels {2*oc, 2*oc + 1}; weight layout is (oc, j, ky, kx) flattened.
        base = (ci // 2) * 18 + (ci % 2) * 9
        aq = win[0] * wq_ref[base]
        ak = win[0] * wk_ref[base]
        for t in range(1, 9):
            aq = aq + win[t] * wq_ref[base + t]
            ak = ak + win[t] * wk_ref[base + t]
        if ci % 2 == 0:
            acc_q = aq
            acc_k = ak
        else:
            oc = ci // 2
            q_ref[0, oc] = acc_q + aq + bq_ref[oc]
            k_ref[0, oc] = acc_k + ak + bk_ref[oc]


def qkv_conv_bn(x, params):
    """q/k/v grouped 3x3 conv with eval-mode BN folded.  One pallas_call."""
    N, Cin, H, W = x.shape
    assert Cin % 2 == 0
    Cq = Cin // 2
    # TODO(synk): replace the wrapper-side pad with in-kernel halo handling at
    # production sizes (here it is an 81 KB copy).
    xp = jnp.pad(x, ((0, 0), (0, 0), (1, 1), (1, 1)))

    out_shape = (jax.ShapeDtypeStruct((N, Cq, H, W), jnp.float32),
                 jax.ShapeDtypeStruct((N, Cq, H, W), jnp.float32),
                 jax.ShapeDtypeStruct((N, Cin, H, W), jnp.float32))
    return pl.pallas_call(
        _qkv_conv_kernel,
        out_shape=out_shape,
        grid=(N,),
        in_specs=[
            pl.BlockSpec((1, Cin, H + 2, W + 2), lambda n: (n, 0, 0, 0)),
            pl.BlockSpec(memory_space=pltpu.MemorySpace.SMEM),  # wq (folded)
            pl.BlockSpec(memory_space=pltpu.MemorySpace.SMEM),  # wk (folded)
            pl.BlockSpec(memory_space=pltpu.MemorySpace.SMEM),  # wv (folded)
            pl.BlockSpec(memory_space=pltpu.MemorySpace.SMEM),  # bq shift
            pl.BlockSpec(memory_space=pltpu.MemorySpace.SMEM),  # bk shift
            pl.BlockSpec(memory_space=pltpu.MemorySpace.SMEM),  # bv shift
        ],
        out_specs=(
            pl.BlockSpec((1, Cq, H, W), lambda n: (n, 0, 0, 0)),
            pl.BlockSpec((1, Cq, H, W), lambda n: (n, 0, 0, 0)),
            pl.BlockSpec((1, Cin, H, W), lambda n: (n, 0, 0, 0)),
        ),
        compiler_params=pltpu.CompilerParams(
            dimension_semantics=("parallel",)),
    )(xp, params['wq_fold'], params['wk_fold'], params['wv_fold'],
      params['bq_fold'], params['bk_fold'], params['bv_fold'])


# -----------------------------------------------------------------------------
# Kernel 2: axial attention core, B_blk rows per grid step.
#   logits = bn_similarity-folded(qk + 0.1*qr + 0.1*kr), softmax over j,
#   out[b, gc, i] = scale_sv[gc]*sv + 0.1*scale_sve[gc]*sve + shift[gc]
# -----------------------------------------------------------------------------
def _axial_attn_kernel(qT_ref, k_ref, v_ref, qe_ref, keT_ref, ve_ref,
                       simp_ref, outp_ref, o_ref):
    # qT_ref: (Bblk, G, H, cq)   k_ref: (Bblk, G, cq, H)   v_ref: (Bblk, G, cv, H)
    # qe_ref/keT_ref: (cq, H, H) VMEM   ve_ref: (cv, H, H) VMEM
    # simp_ref (SMEM): (4, G) = [scale_qk, 0.1*scale_qr, 0.1*scale_kr, shift_sum]
    # outp_ref (VMEM): (3, C, 1) = [scale_sv, 0.1*scale_sve, shift_sum] per ch.
    # o_ref: (Bblk, C, H)
    Bblk, G, H, cq = qT_ref.shape
    cv = v_ref.shape[2]

    qe = qe_ref[...]            # (cq, H, H)
    keT = keT_ref[...]          # (cq, H, H)  keT[c, i, j] = k_emb[c, j, i]
    ve = ve_ref[...]            # (cv, H, H)
    outp = outp_ref[...]        # (3, C, 1)

    for g in range(G):
        qgT = qT_ref[:, g]      # (Bblk, H, cq): qgT[b, i, c] = q[b, g, c, i]
        kg = k_ref[:, g]        # (Bblk, cq, H)
        vg = v_ref[:, g]        # (Bblk, cv, H)

        # qk / qr / kr as 2-term unrolled VPU FMAs (cq == 2; tiny-K, keep off
        # the MXU per the v6e guidance).  All tiles are (Bblk, H, H).
        q_cols = [qgT[:, :, c:c + 1] for c in range(cq)]   # (Bblk, H, 1)
        k_rows = [kg[:, c:c + 1, :] for c in range(cq)]    # (Bblk, 1, H)
        qk = q_cols[0] * k_rows[0]
        qr = q_cols[0] * qe[0][None]
        kr = k_rows[0] * keT[0][None]
        for c in range(1, cq):
            qk = qk + q_cols[c] * k_rows[c]
            qr = qr + q_cols[c] * qe[c][None]
            kr = kr + k_rows[c] * keT[c][None]

        # bn_similarity folded per group (0.1 factors pre-folded into rows 1,2).
        logits = (simp_ref[0, g] * qk + simp_ref[1, g] * qr
                  + simp_ref[2, g] * kr + simp_ref[3, g])

        # softmax over j; reciprocal on the EUP.
        m = jnp.max(logits, axis=-1, keepdims=True)
        e = jnp.exp(logits - m)
        s = jnp.sum(e, axis=-1, keepdims=True)
        p = e * pl.reciprocal(s, approx=True)               # (Bblk, H, H)

        # sv[b, c, i] = sum_j v[b, c, j] p[b, i, j]  -> batched MXU matmul, K=H.
        sv = lax.dot_general(
            vg, p, dimension_numbers=(((2,), (2,)), ((0,), (0,))),
            preferred_element_type=jnp.float32)              # (Bblk, cv, H)
        # sve[b, c, i] = sum_j p[b, i, j] ve[c, i, j]  -> one VPU mult + lane
        # reduction instead of cv narrow reductions.
        sve = jnp.sum(p[:, None, :, :] * ve[None, :, :, :], axis=-1)

        # bn_output folded per channel, applied as a vectorized multiply; one
        # wide store per group (full lane extent of the block).
        sl = slice(g * cv, (g + 1) * cv)
        o_ref[:, sl, :] = (outp[0, sl][None] * sv
                           + outp[1, sl][None] * sve
                           + outp[2, sl][None])


def axial_attention_core(qT, k_r, v_r, q_emb, k_emb_T, v_emb, sim_params,
                         out_params):
    B, G, H, cq = qT.shape
    cv = v_r.shape[2]
    C = G * cv
    n_blk = 2 if B % 2 == 0 else 1    # even grid extent -> both v7x TCs busy
    bblk = B // n_blk
    return pl.pallas_call(
        _axial_attn_kernel,
        out_shape=jax.ShapeDtypeStruct((B, C, H), jnp.float32),
        grid=(n_blk,),
        in_specs=[
            pl.BlockSpec((bblk, G, H, cq), lambda b: (b, 0, 0, 0)),
            pl.BlockSpec((bblk, G, cq, H), lambda b: (b, 0, 0, 0)),
            pl.BlockSpec((bblk, G, cv, H), lambda b: (b, 0, 0, 0)),
            pl.BlockSpec((cq, H, H), lambda b: (0, 0, 0)),
            pl.BlockSpec((cq, H, H), lambda b: (0, 0, 0)),
            pl.BlockSpec((cv, H, H), lambda b: (0, 0, 0)),
            pl.BlockSpec(memory_space=pltpu.MemorySpace.SMEM),
            pl.BlockSpec((3, C, 1), lambda b: (0, 0, 0)),
        ],
        out_specs=pl.BlockSpec((bblk, C, H), lambda b: (b, 0, 0)),
        compiler_params=pltpu.CompilerParams(
            dimension_semantics=("parallel",)),
    )(qT, k_r, v_r, q_emb, k_emb_T, v_emb, sim_params, out_params)


# -----------------------------------------------------------------------------
# Parameters (deterministic, synthetic) and glue.
# -----------------------------------------------------------------------------
def _bn_fold(k, n):
    k1, k2, k3, k4 = jax.random.split(k, 4)
    gamma = 1.0 + 0.1 * jax.random.normal(k1, (n,), jnp.float32)
    beta = 0.1 * jax.random.normal(k2, (n,), jnp.float32)
    mean = 0.1 * jax.random.normal(k3, (n,), jnp.float32)
    var = 1.0 + 0.1 * jnp.abs(jax.random.normal(k4, (n,), jnp.float32))
    scale = gamma / jnp.sqrt(var + 1e-5)
    shift = beta - mean * scale
    return scale, shift


def make_params(key, C, G, K):
    gp = C // G                       # group_planes (out_planes == in_planes)
    keys = jax.random.split(key, 9)
    wq = 0.3 * jax.random.normal(keys[0], (C // 2, 2, 3, 3), jnp.float32)
    wk = 0.3 * jax.random.normal(keys[1], (C // 2, 2, 3, 3), jnp.float32)
    wv = 0.3 * jax.random.normal(keys[2], (C, 1, 3, 3), jnp.float32)
    bnq = _bn_fold(keys[3], C // 2)
    bnk = _bn_fold(keys[4], C // 2)
    bnv = _bn_fold(keys[5], C)
    relative = jax.random.normal(keys[6], (2 * gp, 2 * K - 1), jnp.float32)
    relative = relative * (1.0 / jnp.sqrt(jnp.float32(gp)))
    sim_scale, sim_shift = _bn_fold(keys[7], 3 * G)
    out_scale, out_shift = _bn_fold(keys[8], 2 * C)

    # relative positional embedding table: all_emb[c, i, j] = relative[c, i-j+K-1]
    rel_idx = (jnp.arange(K)[:, None] - jnp.arange(K)[None, :]) + K - 1
    all_emb = relative[:, rel_idx]                       # (2*gp, K, K)
    q_emb = all_emb[: gp // 2]
    k_emb = all_emb[gp // 2: gp]
    v_emb = all_emb[gp:]
    k_emb_T = jnp.transpose(k_emb, (0, 2, 1))

    # ---- parameters folded for the Pallas kernels ----------------------------
    wq_fold = (wq * bnq[0][:, None, None, None]).reshape(-1)
    wk_fold = (wk * bnk[0][:, None, None, None]).reshape(-1)
    wv_fold = (wv * bnv[0][:, None, None, None]).reshape(-1)
    # f_qr = f_kr = 0.1 folded into the bn_similarity scales; shifts summed
    # (they are constant per (b, g) and cancel in the softmax, kept for fidelity).
    sim_params = jnp.stack(
        [sim_scale[:G], 0.1 * sim_scale[G:2 * G], 0.1 * sim_scale[2 * G:],
         sim_shift[:G] + sim_shift[G:2 * G] + sim_shift[2 * G:]], axis=0)
    # f_sv = 1.0 / f_sve = 0.1 folded into the bn_output scales; pair summed.
    out_params = jnp.stack(
        [out_scale[0::2], 0.1 * out_scale[1::2],
         out_shift[0::2] + out_shift[1::2]], axis=0)[:, :, None]

    return dict(groups=G, kernel_size=K, wq=wq, wk=wk, wv=wv,
                bnq=bnq, bnk=bnk, bnv=bnv,
                wq_fold=wq_fold, wk_fold=wk_fold, wv_fold=wv_fold,
                bq_fold=bnq[1], bk_fold=bnk[1], bv_fold=bnv[1],
                q_emb=q_emb, k_emb=k_emb, k_emb_T=k_emb_T, v_emb=v_emb,
                sim_params=sim_params, out_params=out_params,
                sim_scale=sim_scale, sim_shift=sim_shift,
                out_scale=out_scale, out_shift=out_shift)


def forward(x, params):
    """Pallas implementation of Axialattention_conv.forward (width=False, stride=1)."""
    N, C, H, W = x.shape
    G = params['groups']
    assert H == params['kernel_size']

    q, k, v = qkv_conv_bn(x, params)          # one fused pallas_call, BN folded

    cq = C // (2 * G)
    cv = C // G
    # Raw row-major reinterpretations, matching torch's `.view` on contiguous
    # NCHW tensors (free bitcasts in XLA).
    q_r = q.reshape(N * W, G, cq, H)
    k_r = k.reshape(N * W, G, cq, H)
    v_r = v.reshape(N * W, G, cv, H)
    # TODO(synk): the qT transpose stays in the wrapper (an ~8 KB op); writing
    # q pre-transposed from the conv kernel would require strided scatter
    # stores because of the raw-view channel/height scrambling above.
    qT = jnp.transpose(q_r, (0, 1, 3, 2))      # (N*W, G, H, cq)

    out = axial_attention_core(qT, k_r, v_r, params['q_emb'],
                               params['k_emb_T'], params['v_emb'],
                               params['sim_params'], params['out_params'])
    # out: (N*W, C, H) with out[b, gc, i]; bring back to NCHW.
    out = out.reshape(N, W, C, H)
    return jnp.transpose(out, (0, 2, 3, 1))    # (N, C, H, W)


# -----------------------------------------------------------------------------
# Pure-JAX reference mirroring the PyTorch forward (for verification).
# -----------------------------------------------------------------------------
def reference_forward(x, params):
    N, C, H, W = x.shape
    G = params['groups']
    cq = C // (2 * G)
    cv = C // G
    hi = lax.Precision.HIGHEST

    def conv_bn(w, bn, groups):
        y = lax.conv_general_dilated(
            x, w, (1, 1), ((1, 1), (1, 1)),
            dimension_numbers=('NCHW', 'OIHW', 'NCHW'),
            feature_group_count=groups, precision=hi)
        scale, shift = bn
        return y * scale[None, :, None, None] + shift[None, :, None, None]

    q = conv_bn(params['wq'], params['bnq'], C // 2)
    k = conv_bn(params['wk'], params['bnk'], C // 2)
    v = conv_bn(params['wv'], params['bnv'], C)

    q_r = q.reshape(N * W, G, cq, H)
    k_r = k.reshape(N * W, G, cq, H)
    v_r = v.reshape(N * W, G, cv, H)

    qr = jnp.einsum('bgci,cij->bgij', q_r, params['q_emb'], precision=hi)
    kr = jnp.einsum('bgci,cij->bgij', k_r, params['k_emb'],
                    precision=hi).transpose(0, 1, 3, 2)
    qk = jnp.einsum('bgci,bgcj->bgij', q_r, k_r, precision=hi)
    qr = qr * 0.1
    kr = kr * 0.1
    stacked = jnp.concatenate([qk, qr, kr], axis=1)
    stacked = (stacked * params['sim_scale'][None, :, None, None]
               + params['sim_shift'][None, :, None, None])
    stacked = stacked.reshape(N * W, 3, G, H, H).sum(axis=1)
    sim = jax.nn.softmax(stacked, axis=3)
    sv = jnp.einsum('bgij,bgcj->bgci', sim, v_r, precision=hi)
    sve = jnp.einsum('bgij,cij->bgci', sim, params['v_emb'], precision=hi)
    sv = sv * 1.0
    sve = sve * 0.1
    so = jnp.concatenate([sv, sve], axis=-1).reshape(N * W, 2 * C, H)
    so = (so * params['out_scale'][None, :, None]
          + params['out_shift'][None, :, None])
    out = so.reshape(N, W, C, 2, H).sum(axis=-2)
    return jnp.transpose(out, (0, 2, 3, 1))


if __name__ == "__main__":
    key = jax.random.PRNGKey(0)
    kx, kp = jax.random.split(key)
    N, C, H, W = 2, 16, 16, 16          # kernel_size must equal H; in==out planes
    G = 4
    params = make_params(kp, C=C, G=G, K=H)
    x = jax.random.normal(kx, (N, C, H, W), dtype=jnp.float32)

    out = forward(x, params)
    out = jax.block_until_ready(out)

    ref = reference_forward(x, params)
    assert out.shape == (N, C, H, W)
    # Tolerance covers the MXU f32 multi-pass matmul and the approximate EUP
    # reciprocal used for the softmax normalization.
    if bool(jnp.allclose(out, ref, rtol=1e-2, atol=1e-2)):
        print("KERNEL_OK")
    else:
        print("KERNEL_MISMATCH max_abs_err=",
              float(jnp.max(jnp.abs(out - ref))))
</pallas_src>

<mosaic_0001>
module attributes {stable_mosaic.version = 11 : i64} {
  func.func @_qkv_conv_kernel(%arg0: i32, %arg1: memref<1x16x18x18xf32, #tpu.memory_space<vmem>>, %arg2: memref<144xf32, #tpu.memory_space<smem>>, %arg3: memref<144xf32, #tpu.memory_space<smem>>, %arg4: memref<144xf32, #tpu.memory_space<smem>>, %arg5: memref<8xf32, #tpu.memory_space<smem>>, %arg6: memref<8xf32, #tpu.memory_space<smem>>, %arg7: memref<16xf32, #tpu.memory_space<smem>>, %arg8: memref<1x8x16x16xf32, #tpu.memory_space<vmem>>, %arg9: memref<1x8x16x16xf32, #tpu.memory_space<vmem>>, %arg10: memref<1x16x16x16xf32, #tpu.memory_space<vmem>>) attributes {dimension_semantics = [#tpu.dimension_semantics<parallel>], iteration_bounds = array<i64: 2>, scalar_prefetch = 0 : i64, scratch_operands = 0 : i64, tpu.core_type = #tpu.core_type<tc>, window_params = [{transform_indices = @transform_0, window_bounds = array<i64: 1, 16, 18, 18>}, {transform_indices = @transform_1, window_bounds = array<i64: 144>}, {transform_indices = @transform_2, window_bounds = array<i64: 144>}, {transform_indices = @transform_3, window_bounds = array<i64: 144>}, {transform_indices = @transform_4, window_bounds = array<i64: 8>}, {transform_indices = @transform_5, window_bounds = array<i64: 8>}, {transform_indices = @transform_6, window_bounds = array<i64: 16>}, {transform_indices = @transform_7, window_bounds = array<i64: 1, 8, 16, 16>}, {transform_indices = @transform_8, window_bounds = array<i64: 1, 8, 16, 16>}, {transform_indices = @transform_9, window_bounds = array<i64: 1, 16, 16, 16>}]} {
    %c0 = arith.constant 0 : index
    %c0_0 = arith.constant 0 : index
    %c0_1 = arith.constant 0 : index
    %c0_2 = arith.constant 0 : index
    %0 = vector.load %arg1[%c0, %c0_0, %c0_1, %c0_2] : memref<1x16x18x18xf32, #tpu.memory_space<vmem>>, vector<1x1x16x16xf32>
    %1 = vector.shape_cast %0 : vector<1x1x16x16xf32> to vector<16x16xf32>
    %c0_3 = arith.constant 0 : index
    %c0_4 = arith.constant 0 : index
    %c0_5 = arith.constant 0 : index
    %c1 = arith.constant 1 : index
    %2 = vector.load %arg1[%c0_3, %c0_4, %c0_5, %c1] : memref<1x16x18x18xf32, #tpu.memory_space<vmem>>, vector<1x1x16x16xf32>
    %3 = vector.shape_cast %2 : vector<1x1x16x16xf32> to vector<16x16xf32>
    %c0_6 = arith.constant 0 : index
    %c0_7 = arith.constant 0 : index
    %c0_8 = arith.constant 0 : index
    %c2 = arith.constant 2 : index
    %4 = vector.load %arg1[%c0_6, %c0_7, %c0_8, %c2] : memref<1x16x18x18xf32, #tpu.memory_space<vmem>>, vector<1x1x16x16xf32>
    %5 = vector.shape_cast %4 : vector<1x1x16x16xf32> to vector<16x16xf32>
    %c0_9 = arith.constant 0 : index
    %c0_10 = arith.constant 0 : index
    %c1_11 = arith.constant 1 : index
    %c0_12 = arith.constant 0 : index
    %6 = vector.load %arg1[%c0_9, %c0_10, %c1_11, %c0_12] : memref<1x16x18x18xf32, #tpu.memory_space<vmem>>, vector<1x1x16x16xf32>
    %7 = vector.shape_cast %6 : vector<1x1x16x16xf32> to vector<16x16xf32>
    %c0_13 = arith.constant 0 : index
    %c0_14 = arith.constant 0 : index
    %c1_15 = arith.constant 1 : index
    %c1_16 = arith.constant 1 : index
    %8 = vector.load %arg1[%c0_13, %c0_14, %c1_15, %c1_16] : memref<1x16x18x18xf32, #tpu.memory_space<vmem>>, vector<1x1x16x16xf32>
    %9 = vector.shape_cast %8 : vector<1x1x16x16xf32> to vector<16x16xf32>
    %c0_17 = arith.constant 0 : index
    %c0_18 = arith.constant 0 : index
    %c1_19 = arith.constant 1 : index
    %c2_20 = arith.constant 2 : index
    %10 = vector.load %arg1[%c0_17, %c0_18, %c1_19, %c2_20] : memref<1x16x18x18xf32, #tpu.memory_space<vmem>>, vector<1x1x16x16xf32>
    %11 = vector.shape_cast %10 : vector<1x1x16x16xf32> to vector<16x16xf32>
    %c0_21 = arith.constant 0 : index
    %c0_22 = arith.constant 0 : index
    %c2_23 = arith.constant 2 : index
    %c0_24 = arith.constant 0 : index
    %12 = vector.load %arg1[%c0_21, %c0_22, %c2_23, %c0_24] : memref<1x16x18x18xf32, #tpu.memory_space<vmem>>, vector<1x1x16x16xf32>
    %13 = vector.shape_cast %12 : vector<1x1x16x16xf32> to vector<16x16xf32>
    %c0_25 = arith.constant 0 : index
    %c0_26 = arith.constant 0 : index
    %c2_27 = arith.constant 2 : index
    %c1_28 = arith.constant 1 : index
    %14 = vector.load %arg1[%c0_25, %c0_26, %c2_27, %c1_28] : memref<1x16x18x18xf32, #tpu.memory_space<vmem>>, vector<1x1x16x16xf32>
    %15 = vector.shape_cast %14 : vector<1x1x16x16xf32> to vector<16x16xf32>
    %c0_29 = arith.constant 0 : index
    %c0_30 = arith.constant 0 : index
    %c2_31 = arith.constant 2 : index
    %c2_32 = arith.constant 2 : index
    %16 = vector.load %arg1[%c0_29, %c0_30, %c2_31, %c2_32] : memref<1x16x18x18xf32, #tpu.memory_space<vmem>>, vector<1x1x16x16xf32>
    %17 = vector.shape_cast %16 : vector<1x1x16x16xf32> to vector<16x16xf32>
    %c0_33 = arith.constant 0 : index
    %18 = memref.load %arg4[%c0_33] : memref<144xf32, #tpu.memory_space<smem>>
    %19 = vector.broadcast %18 : f32 to vector<16x16xf32>
    %20 = arith.mulf %1, %19 : vector<16x16xf32>
    %c1_34 = arith.constant 1 : index
    %21 = memref.load %arg4[%c1_34] : memref<144xf32, #tpu.memory_space<smem>>
    %22 = vector.broadcast %21 : f32 to vector<16x16xf32>
    %23 = arith.mulf %3, %22 : vector<16x16xf32>
    %24 = arith.addf %20, %23 : vector<16x16xf32>
    %c2_35 = arith.constant 2 : index
    %25 = memref.load %arg4[%c2_35] : memref<144xf32, #tpu.memory_space<smem>>
    %26 = vector.broadcast %25 : f32 to vector<16x16xf32>
    %27 = arith.mulf %5, %26 : vector<16x16xf32>
    %28 = arith.addf %24, %27 : vector<16x16xf32>
    %c3 = arith.constant 3 : index
    %29 = memref.load %arg4[%c3] : memref<144xf32, #tpu.memory_space<smem>>
    %30 = vector.broadcast %29 : f32 to vector<16x16xf32>
    %31 = arith.mulf %7, %30 : vector<16x16xf32>
    %32 = arith.addf %28, %31 : vector<16x16xf32>
    %c4 = arith.constant 4 : index
    %33 = memref.load %arg4[%c4] : memref<144xf32, #tpu.memory_space<smem>>
    %34 = vector.broadcast %33 : f32 to vector<16x16xf32>
    %35 = arith.mulf %9, %34 : vector<16x16xf32>
    %36 = arith.addf %32, %35 : vector<16x16xf32>
    %c5 = arith.constant 5 : index
    %37 = memref.load %arg4[%c5] : memref<144xf32, #tpu.memory_space<smem>>
    %38 = vector.broadcast %37 : f32 to vector<16x16xf32>
    %39 = arith.mulf %11, %38 : vector<16x16xf32>
    %40 = arith.addf %36, %39 : vector<16x16xf32>
    %c6 = arith.constant 6 : index
    %41 = memref.load %arg4[%c6] : memref<144xf32, #tpu.memory_space<smem>>
    %42 = vector.broadcast %41 : f32 to vector<16x16xf32>
    %43 = arith.mulf %13, %42 : vector<16x16xf32>
    %44 = arith.addf %40, %43 : vector<16x16xf32>
    %c7 = arith.constant 7 : index
    %45 = memref.load %arg4[%c7] : memref<144xf32, #tpu.memory_space<smem>>
    %46 = vector.broadcast %45 : f32 to vector<16x16xf32>
    %47 = arith.mulf %15, %46 : vector<16x16xf32>
    %48 = arith.addf %44, %47 : vector<16x16xf32>
    %c8 = arith.constant 8 : index
    %49 = memref.load %arg4[%c8] : memref<144xf32, #tpu.memory_space<smem>>
    %50 = vector.broadcast %49 : f32 to vector<16x16xf32>
    %51 = arith.mulf %17, %50 : vector<16x16xf32>
    %52 = arith.addf %48, %51 : vector<16x16xf32>
    %c0_36 = arith.constant 0 : index
    %53 = memref.load %arg7[%c0_36] : memref<16xf32, #tpu.memory_space<smem>>
    %54 = vector.broadcast %53 : f32 to vector<16x16xf32>
    %55 = arith.addf %52, %54 : vector<16x16xf32>
    %c0_37 = arith.constant 0 : index
    %c0_38 = arith.constant 0 : index
    %c0_39 = arith.constant 0 : index
    %c0_40 = arith.constant 0 : index
    %56 = vector.load %arg10[%c0_37, %c0_38, %c0_39, %c0_40] : memref<1x16x16x16xf32, #tpu.memory_space<vmem>>, vector<1x1x16x16xf32>
    %57 = vector.shape_cast %56 : vector<1x1x16x16xf32> to vector<16x16xf32>
    %58 = vector.shape_cast %55 : vector<16x16xf32> to vector<1x1x16x16xf32>
    tpu.vector_store %arg10[%c0_37, %c0_38, %c0_39, %c0_40], %58 {strides = array<i32>} : memref<1x16x16x16xf32, #tpu.memory_space<vmem>>, vector<1x1x16x16xf32>,
    %c0_41 = arith.constant 0 : index
    %59 = memref.load %arg2[%c0_41] : memref<144xf32, #tpu.memory_space<smem>>
    %60 = vector.broadcast %59 : f32 to vector<16x16xf32>
    %61 = arith.mulf %1, %60 : vector<16x16xf32>
    %c0_42 = arith.constant 0 : index
    %62 = memref.load %arg3[%c0_42] : memref<144xf32, #tpu.memory_space<smem>>
    %63 = vector.broadcast %62 : f32 to vector<16x16xf32>
    %64 = arith.mulf %1, %63 : vector<16x16xf32>
    %c1_43 = arith.constant 1 : index
    %65 = memref.load %arg2[%c1_43] : memref<144xf32, #tpu.memory_space<smem>>
    %66 = vector.broadcast %65 : f32 to vector<16x16xf32>
    %67 = arith.mulf %3, %66 : vector<16x16xf32>
    %68 = arith.addf %61, %67 : vector<16x16xf32>
    %c1_44 = arith.constant 1 : index
    %69 = memref.load %arg3[%c1_44] : memref<144xf32, #tpu.memory_space<smem>>
    %70 = vector.broadcast %69 : f32 to vector<16x16xf32>
    %71 = arith.mulf %3, %70 : vector<16x16xf32>
    %72 = arith.addf %64, %71 : vector<16x16xf32>
    %c2_45 = arith.constant 2 : index
    %73 = memref.load %arg2[%c2_45] : memref<144xf32, #tpu.memory_space<smem>>
    %74 = vector.broadcast %73 : f32 to vector<16x16xf32>
    %75 = arith.mulf %5, %74 : vector<16x16xf32>
    %76 = arith.addf %68, %75 : vector<16x16xf32>
    %c2_46 = arith.constant 2 : index
    %77 = memref.load %arg3[%c2_46] : memref<144xf32, #tpu.memory_space<smem>>
    %78 = vector.broadcast %77 : f32 to vector<16x16xf32>
    %79 = arith.mulf %5, %78 : vector<16x16xf32>
    %80 = arith.addf %72, %79 : vector<16x16xf32>
    %c3_47 = arith.constant 3 : index
    %81 = memref.load %arg2[%c3_47] : memref<144xf32, #tpu.memory_space<smem>>
    %82 = vector.broadcast %81 : f32 to vector<16x16xf32>
    %83 = arith.mulf %7, %82 : vector<16x16xf32>
    %84 = arith.addf %76, %83 : vector<16x16xf32>
    %c3_48 = arith.constant 3 : index
    %85 = memref.load %arg3[%c3_48] : memref<144xf32, #tpu.memory_space<smem>>
    %86 = vector.broadcast %85 : f32 to vector<16x16xf32>
    %87 = arith.mulf %7, %86 : vector<16x16xf32>
    %88 = arith.addf %80, %87 : vector<16x16xf32>
    %c4_49 = arith.constant 4 : index
    %89 = memref.load %arg2[%c4_49] : memref<144xf32, #tpu.memory_space<smem>>
    %90 = vector.broadcast %89 : f32 to vector<16x16xf32>
    %91 = arith.mulf %9, %90 : vector<16x16xf32>
    %92 = arith.addf %84, %91 : vector<16x16xf32>
    %c4_50 = arith.constant 4 : index
    %93 = memref.load %arg3[%c4_50] : memref<144xf32, #tpu.memory_space<smem>>
    %94 = vector.broadcast %93 : f32 to vector<16x16xf32>
    %95 = arith.mulf %9, %94 : vector<16x16xf32>
    %96 = arith.addf %88, %95 : vector<16x16xf32>
    %c5_51 = arith.constant 5 : index
    %97 = memref.load %arg2[%c5_51] : memref<144xf32, #tpu.memory_space<smem>>
    %98 = vector.broadcast %97 : f32 to vector<16x16xf32>
    %99 = arith.mulf %11, %98 : vector<16x16xf32>
    %100 = arith.addf %92, %99 : vector<16x16xf32>
    %c5_52 = arith.constant 5 : index
    %101 = memref.load %arg3[%c5_52] : memref<144xf32, #tpu.memory_space<smem>>
    %102 = vector.broadcast %101 : f32 to vector<16x16xf32>
    %103 = arith.mulf %11, %102 : vector<16x16xf32>
    %104 = arith.addf %96, %103 : vector<16x16xf32>
    %c6_53 = arith.constant 6 : index
    %105 = memref.load %arg2[%c6_53] : memref<144xf32, #tpu.memory_space<smem>>
    %106 = vector.broadcast %105 : f32 to vector<16x16xf32>
    %107 = arith.mulf %13, %106 : vector<16x16xf32>
    %108 = arith.addf %100, %107 : vector<16x16xf32>
    %c6_54 = arith.constant 6 : index
    %109 = memref.load %arg3[%c6_54] : memref<144xf32, #tpu.memory_space<smem>>
    %110 = vector.broadcast %109 : f32 to vector<16x16xf32>
    %111 = arith.mulf %13, %110 : vector<16x16xf32>
    %112 = arith.addf %104, %111 : vector<16x16xf32>
    %c7_55 = arith.constant 7 : index
    %113 = memref.load %arg2[%c7_55] : memref<144xf32, #tpu.memory_space<smem>>
    %114 = vector.broadcast %113 : f32 to vector<16x16xf32>
    %115 = arith.mulf %15, %114 : vector<16x16xf32>
    %116 = arith.addf %108, %115 : vector<16x16xf32>
    %c7_56 = arith.constant 7 : index
    %117 = memref.load %arg3[%c7_56] : memref<144xf32, #tpu.memory_space<smem>>
    %118 = vector.broadcast %117 : f32 to vector<16x16xf32>
    %119 = arith.mulf %15, %118 : vector<16x16xf32>
    %120 = arith.addf %112, %119 : vector<16x16xf32>
    %c8_57 = arith.constant 8 : index
    %121 = memref.load %arg2[%c8_57] : memref<144xf32, #tpu.memory_space<smem>>
    %122 = vector.broadcast %121 : f32 to vector<16x16xf32>
    %123 = arith.mulf %17, %122 : vector<16x16xf32>
    %124 = arith.addf %116, %123 : vector<16x16xf32>
    %c8_58 = arith.constant 8 : index
    %125 = memref.load %arg3[%c8_58] : memref<144xf32, #tpu.memory_space<smem>>
    %126 = vector.broadcast %125 : f32 to vector<16x16xf32>
    %127 = arith.mulf %17, %126 : vector<16x16xf32>
    %128 = arith.addf %120, %127 : vector<16x16xf32>
    %c0_59 = arith.constant 0 : index
    %c1_60 = arith.constant 1 : index
    %c0_61 = arith.constant 0 : index
    %c0_62 = arith.constant 0 : index
    %129 = vector.load %arg1[%c0_59, %c1_60, %c0_61, %c0_62] : memref<1x16x18x18xf32, #tpu.memory_space<vmem>>, vector<1x1x16x16xf32>
    %130 = vector.shape_cast %129 : vector<1x1x16x16xf32> to vector<16x16xf32>
    %c0_63 = arith.constant 0 : index
    %c1_64 = arith.constant 1 : index
    %c0_65 = arith.constant 0 : index
    %c1_66 = arith.constant 1 : index
    %131 = vector.load %arg1[%c0_63, %c1_64, %c0_65, %c1_66] : memref<1x16x18x18xf32, #tpu.memory_space<vmem>>, vector<1x1x16x16xf32>
    %132 = vector.shape_cast %131 : vector<1x1x16x16xf32> to vector<16x16xf32>
    %c0_67 = arith.constant 0 : index
    %c1_68 = arith.constant 1 : index
    %c0_69 = arith.constant 0 : index
    %c2_70 = arith.constant 2 : index
    %133 = vector.load %arg1[%c0_67, %c1_68, %c0_69, %c2_70] : memref<1x16x18x18xf32, #tpu.memory_space<vmem>>, vector<1x1x16x16xf32>
    %134 = vector.shape_cast %133 : vector<1x1x16x16xf32> to vector<16x16xf32>
    %c0_71 = arith.constant 0 : index
    %c1_72 = arith.constant 1 : index
    %c1_73 = arith.constant 1 : index
    %c0_74 = arith.constant 0 : index
    %135 = vector.load %arg1[%c0_71, %c1_72, %c1_73, %c0_74] : memref<1x16x18x18xf32, #tpu.memory_space<vmem>>, vector<1x1x16x16xf32>
    %136 = vector.shape_cast %135 : vector<1x1x16x16xf32> to vector<16x16xf32>
    %c0_75 = arith.constant 0 : index
    %c1_76 = arith.constant 1 : index
    %c1_77 = arith.constant 1 : index
    %c1_78 = arith.constant 1 : index
    %137 = vector.load %arg1[%c0_75, %c1_76, %c1_77, %c1_78] : memref<1x16x18x18xf32, #tpu.memory_space<vmem>>, vector<1x1x16x16xf32>
    %138 = vector.shape_cast %137 : vector<1x1x16x16xf32> to vector<16x16xf32>
    %c0_79 = arith.constant 0 : index
    %c1_80 = arith.constant 1 : index
    %c1_81 = arith.constant 1 : index
    %c2_82 = arith.constant 2 : index
    %139 = vector.load %arg1[%c0_79, %c1_80, %c1_81, %c2_82] : memref<1x16x18x18xf32, #tpu.memory_space<vmem>>, vector<1x1x16x16xf32>
    %140 = vector.shape_cast %139 : vector<1x1x16x16xf32> to vector<16x16xf32>
    %c0_83 = arith.constant 0 : index
    %c1_84 = arith.constant 1 : index
    %c2_85 = arith.constant 2 : index
    %c0_86 = arith.constant 0 : index
    %141 = vector.load %arg1[%c0_83, %c1_84, %c2_85, %c0_86] : memref<1x16x18x18xf32, #tpu.memory_space<vmem>>, vector<1x1x16x16xf32>
    %142 = vector.shape_cast %141 : vector<1x1x16x16xf32> to vector<16x16xf32>
    %c0_87 = arith.constant 0 : index
    %c1_88 = arith.constant 1 : index
    %c2_89 = arith.constant 2 : index
    %c1_90 = arith.constant 1 : index
    %143 = vector.load %arg1[%c0_87, %c1_88, %c2_89, %c1_90] : memref<1x16x18x18xf32, #tpu.memory_space<vmem>>, vector<1x1x16x16xf32>
    %144 = vector.shape_cast %143 : vector<1x1x16x16xf32> to vector<16x16xf32>
    %c0_91 = arith.constant 0 : index
    %c1_92 = arith.constant 1 : index
    %c2_93 = arith.constant 2 : index
    %c2_94 = arith.constant 2 : index
    %145 = vector.load %arg1[%c0_91, %c1_92, %c2_93, %c2_94] : memref<1x16x18x18xf32, #tpu.memory_space<vmem>>, vector<1x1x16x16xf32>
    %146 = vector.shape_cast %145 : vector<1x1x16x16xf32> to vector<16x16xf32>
    %c9 = arith.constant 9 : index
    %147 = memref.load %arg4[%c9] : memref<144xf32, #tpu.memory_space<smem>>
    %148 = vector.broadcast %147 : f32 to vector<16x16xf32>
    %149 = arith.mulf %130, %148 : vector<16x16xf32>
    %c10 = arith.constant 10 : index
    %150 = memref.load %arg4[%c10] : memref<144xf32, #tpu.memory_space<smem>>
    %151 = vector.broadcast %150 : f32 to vector<16x16xf32>
    %152 = arith.mulf %132, %151 : vector<16x16xf32>
    %153 = arith.addf %149, %152 : vector<16x16xf32>
    %c11 = arith.constant 11 : index
    %154 = memref.load %arg4[%c11] : memref<144xf32, #tpu.memory_space<smem>>
    %155 = vector.broadcast %154 : f32 to vector<16x16xf32>
    %156 = arith.mulf %134, %155 : vector<16x16xf32>
    %157 = arith.addf %153, %156 : vector<16x16xf32>
    %c12 = arith.constant 12 : index
    %158 = memref.load %arg4[%c12] : memref<144xf32, #tpu.memory_space<smem>>
    %159 = vector.broadcast %158 : f32 to vector<16x16xf32>
    %160 = arith.mulf %136, %159 : vector<16x16xf32>
    %161 = arith.addf %157, %160 : vector<16x16xf32>
    %c13 = arith.constant 13 : index
    %162 = memref.load %arg4[%c13] : memref<144xf32, #tpu.memory_space<smem>>
    %163 = vector.broadcast %162 : f32 to vector<16x16xf32>
    %164 = arith.mulf %138, %163 : vector<16x16xf32>
    %165 = arith.addf %161, %164 : vector<16x16xf32>
    %c14 = arith.constant 14 : index
    %166 = memref.load %arg4[%c14] : memref<144xf32, #tpu.memory_space<smem>>
    %167 = vector.broadcast %166 : f32 to vector<16x16xf32>
    %168 = arith.mulf %140, %167 : vector<16x16xf32>
    %169 = arith.addf %165, %168 : vector<16x16xf32>
    %c15 = arith.constant 15 : index
    %170 = memref.load %arg4[%c15] : memref<144xf32, #tpu.memory_space<smem>>
    %171 = vector.broadcast %170 : f32 to vector<16x16xf32>
    %172 = arith.mulf %142, %171 : vector<16x16xf32>
    %173 = arith.addf %169, %172 : vector<16x16xf32>
    %c16 = arith.constant 16 : index
    %174 = memref.load %arg4[%c16] : memref<144xf32, #tpu.memory_space<smem>>
    %175 = vector.broadcast %174 : f32 to vector<16x16xf32>
    %176 = arith.mulf %144, %175 : vector<16x16xf32>
    %177 = arith.addf %173, %176 : vector<16x16xf32>
    %c17 = arith.constant 17 : index
    %178 = memref.load %arg4[%c17] : memref<144xf32, #tpu.memory_space<smem>>
    %179 = vector.broadcast %178 : f32 to vector<16x16xf32>
    %180 = arith.mulf %146, %179 : vector<16x16xf32>
    %181 = arith.addf %177, %180 : vector<16x16xf32>
    %c1_95 = arith.constant 1 : index
    %182 = memref.load %arg7[%c1_95] : memref<16xf32, #tpu.memory_space<smem>>
    %183 = vector.broadcast %182 : f32 to vector<16x16xf32>
    %184 = arith.addf %181, %183 : vector<16x16xf32>
    %c0_96 = arith.constant 0 : index
    %c1_97 = arith.constant 1 : index
    %c0_98 = arith.constant 0 : index
    %c0_99 = arith.constant 0 : index
    %185 = vector.load %arg10[%c0_96, %c1_97, %c0_98, %c0_99] : memref<1x16x16x16xf32, #tpu.memory_space<vmem>>, vector<1x1x16x16xf32>
    %186 = vector.shape_cast %185 : vector<1x1x16x16xf32> to vector<16x16xf32>
    %187 = vector.shape_cast %184 : vector<16x16xf32> to vector<1x1x16x16xf32>
    tpu.vector_store %arg10[%c0_96, %c1_97, %c0_98, %c0_99], %187 {strides = array<i32>} : memref<1x16x16x16xf32, #tpu.memory_space<vmem>>, vector<1x1x16x16xf32>,
    %c9_100 = arith.constant 9 : index
    %188 = memref.load %arg2[%c9_100] : memref<144xf32, #tpu.memory_space<smem>>
    %189 = vector.broadcast %188 : f32 to vector<16x16xf32>
    %190 = arith.mulf %130, %189 : vector<16x16xf32>
    %c9_101 = arith.constant 9 : index
    %191 = memref.load %arg3[%c9_101] : memref<144xf32, #tpu.memory_space<smem>>
    %192 = vector.broadcast %191 : f32 to vector<16x16xf32>
    %193 = arith.mulf %130, %192 : vector<16x16xf32>
    %c10_102 = arith.constant 10 : index
    %194 = memref.load %arg2[%c10_102] : memref<144xf32, #tpu.memory_space<smem>>
    %195 = vector.broadcast %194 : f32 to vector<16x16xf32>
    %196 = arith.mulf %132, %195 : vector<16x16xf32>
    %197 = arith.addf %190, %196 : vector<16x16xf32>
    %c10_103 = arith.constant 10 : index
    %198 = memref.load %arg3[%c10_103] : memref<144xf32, #tpu.memory_space<smem>>
    %199 = vector.broadcast %198 : f32 to vector<16x16xf32>
    %200 = arith.mulf %132, %199 : vector<16x16xf32>
    %201 = arith.addf %193, %200 : vector<16x16xf32>
    %c11_104 = arith.constant 11 : index
    %202 = memref.load %arg2[%c11_104] : memref<144xf32, #tpu.memory_space<smem>>
    %203 = vector.broadcast %202 : f32 to vector<16x16xf32>
    %204 = arith.mulf %134, %203 : vector<16x16xf32>
    %205 = arith.addf %197, %204 : vector<16x16xf32>
    %c11_105 = arith.constant 11 : index
    %206 = memref.load %arg3[%c11_105] : memref<144xf32, #tpu.memory_space<smem>>
    %207 = vector.broadcast %206 : f32 to vector<16x16xf32>
    %208 = arith.mulf %134, %207 : vector<16x16xf32>
    %209 = arith.addf %201, %208 : vector<16x16xf32>
    %c12_106 = arith.constant 12 : index
    %210 = memref.load %arg2[%c12_106] : memref<144xf32, #tpu.memory_space<smem>>
    %211 = vector.broadcast %210 : f32 to vector<16x16xf32>
    %212 = arith.mulf %136, %211 : vector<16x16xf32>
    %213 = arith.addf %205, %212 : vector<16x16xf32>
    %c12_107 = arith.constant 12 : index
    %214 = memref.load %arg3[%c12_107] : memref<144xf32, #tpu.memory_space<smem>>
    %215 = vector.broadcast %214 : f32 to vector<16x16xf32>
    %216 = arith.mulf %136, %215 : vector<16x16xf32>
    %217 = arith.addf %209, %216 : vector<16x16xf32>
    %c13_108 = arith.constant 13 : index
    %218 = memref.load %arg2[%c13_108] : memref<144xf32, #tpu.memory_space<smem>>
    %219 = vector.broadcast %218 : f32 to vector<16x16xf32>
    %220 = arith.mulf %138, %219 : vector<16x16xf32>
    %221 = arith.addf %213, %220 : vector<16x16xf32>
    %c13_109 = arith.constant 13 : index
    %222 = memref.load %arg3[%c13_109] : memref<144xf32, #tpu.memory_space<smem>>
    %223 = vector.broadcast %222 : f32 to vector<16x16xf32>
    %224 = arith.mulf %138, %223 : vector<16x16xf32>
    %225 = arith.addf %217, %224 : vector<16x16xf32>
    %c14_110 = arith.constant 14 : index
    %226 = memref.load %arg2[%c14_110] : memref<144xf32, #tpu.memory_space<smem>>
    %227 = vector.broadcast %226 : f32 to vector<16x16xf32>
    %228 = arith.mulf %140, %227 : vector<16x16xf32>
    %229 = arith.addf %221, %228 : vector<16x16xf32>
    %c14_111 = arith.constant 14 : index
    %230 = memref.load %arg3[%c14_111] : memref<144xf32, #tpu.memory_space<smem>>
    %231 = vector.broadcast %230 : f32 to vector<16x16xf32>
    %232 = arith.mulf %140, %231 : vector<16x16xf32>
    %233 = arith.addf %225, %232 : vector<16x16xf32>
    %c15_112 = arith.constant 15 : index
    %234 = memref.load %arg2[%c15_112] : memref<144xf32, #tpu.memory_space<smem>>
    %235 = vector.broadcast %234 : f32 to vector<16x16xf32>
    %236 = arith.mulf %142, %235 : vector<16x16xf32>
    %237 = arith.addf %229, %236 : vector<16x16xf32>
    %c15_113 = arith.constant 15 : index
    %238 = memref.load %arg3[%c15_113] : memref<144xf32, #tpu.memory_space<smem>>
    %239 = vector.broadcast %238 : f32 to vector<16x16xf32>
    %240 = arith.mulf %142, %239 : vector<16x16xf32>
    %241 = arith.addf %233, %240 : vector<16x16xf32>
    %c16_114 = arith.constant 16 : index
    %242 = memref.load %arg2[%c16_114] : memref<144xf32, #tpu.memory_space<smem>>
    %243 = vector.broadcast %242 : f32 to vector<16x16xf32>
    %244 = arith.mulf %144, %243 : vector<16x16xf32>
    %245 = arith.addf %237, %244 : vector<16x16xf32>
    %c16_115 = arith.constant 16 : index
    %246 = memref.load %arg3[%c16_115] : memref<144xf32, #tpu.memory_space<smem>>
    %247 = vector.broadcast %246 : f32 to vector<16x16xf32>
    %248 = arith.mulf %144, %247 : vector<16x16xf32>
    %249 = arith.addf %241, %248 : vector<16x16xf32>
    %c17_116 = arith.constant 17 : index
    %250 = memref.load %arg2[%c17_116] : memref<144xf32, #tpu.memory_space<smem>>
    %251 = vector.broadcast %250 : f32 to vector<16x16xf32>
    %252 = arith.mulf %146, %251 : vector<16x16xf32>
    %253 = arith.addf %245, %252 : vector<16x16xf32>
    %c17_117 = arith.constant 17 : index
    %254 = memref.load %arg3[%c17_117] : memref<144xf32, #tpu.memory_space<smem>>
    %255 = vector.broadcast %254 : f32 to vector<16x16xf32>
    %256 = arith.mulf %146, %255 : vector<16x16xf32>
    %257 = arith.addf %249, %256 : vector<16x16xf32>
    %258 = arith.addf %124, %253 : vector<16x16xf32>
    %c0_118 = arith.constant 0 : index
    %259 = memref.load %arg5[%c0_118] : memref<8xf32, #tpu.memory_space<smem>>
    %260 = vector.broadcast %259 : f32 to vector<16x16xf32>
    %261 = arith.addf %258, %260 : vector<16x16xf32>
    %c0_119 = arith.constant 0 : index
    %c0_120 = arith.constant 0 : index
    %c0_121 = arith.constant 0 : index
    %c0_122 = arith.constant 0 : index
    %262 = vector.load %arg8[%c0_119, %c0_120, %c0_121, %c0_122] : memref<1x8x16x16xf32, #tpu.memory_space<vmem>>, vector<1x1x16x16xf32>
    %263 = vector.shape_cast %262 : vector<1x1x16x16xf32> to vector<16x16xf32>
    %264 = vector.shape_cast %261 : vector<16x16xf32> to vector<1x1x16x16xf32>
    tpu.vector_store %arg8[%c0_119, %c0_120, %c0_121, %c0_122], %264 {strides = array<i32>} : memref<1x8x16x16xf32, #tpu.memory_space<vmem>>, vector<1x1x16x16xf32>,
    %265 = arith.addf %128, %257 : vector<16x16xf32>
    %c0_123 = arith.constant 0 : index
    %266 = memref.load %arg6[%c0_123] : memref<8xf32, #tpu.memory_space<smem>>
    %267 = vector.broadcast %266 : f32 to vector<16x16xf32>
    %268 = arith.addf %265, %267 : vector<16x16xf32>
    %c0_124 = arith.constant 0 : index
    %c0_125 = arith.constant 0 : index
    %c0_126 = arith.constant 0 : index
    %c0_127 = arith.constant 0 : index
    %269 = vector.load %arg9[%c0_124, %c0_125, %c0_126, %c0_127] : memref<1x8x16x16xf32, #tpu.memory_space<vmem>>, vector<1x1x16x16xf32>
    %270 = vector.shape_cast %269 : vector<1x1x16x16xf32> to vector<16x16xf32>
    %271 = vector.shape_cast %268 : vector<16x16xf32> to vector<1x1x16x16xf32>
    tpu.vector_store %arg9[%c0_124, %c0_125, %c0_126, %c0_127], %271 {strides = array<i32>} : memref<1x8x16x16xf32, #tpu.memory_space<vmem>>, vector<1x1x16x16xf32>,
    %c0_128 = arith.constant 0 : index
    %c2_129 = arith.constant 2 : index
    %c0_130 = arith.constant 0 : index
    %c0_131 = arith.constant 0 : index
    %272 = vector.load %arg1[%c0_128, %c2_129, %c0_130, %c0_131] : memref<1x16x18x18xf32, #tpu.memory_space<vmem>>, vector<1x1x16x16xf32>
    %273 = vector.shape_cast %272 : vector<1x1x16x16xf32> to vector<16x16xf32>
    %c0_132 = arith.constant 0 : index
    %c2_133 = arith.constant 2 : index
    %c0_134 = arith.constant 0 : index
    %c1_135 = arith.constant 1 : index
    %274 = vector.load %arg1[%c0_132, %c2_133, %c0_134, %c1_135] : memref<1x16x18x18xf32, #tpu.memory_space<vmem>>, vector<1x1x16x16xf32>
    %275 = vector.shape_cast %274 : vector<1x1x16x16xf32> to vector<16x16xf32>
    %c0_136 = arith.constant 0 : index
    %c2_137 = arith.constant 2 : index
    %c0_138 = arith.constant 0 : index
    %c2_139 = arith.constant 2 : index
    %276 = vector.load %arg1[%c0_136, %c2_137, %c0_138, %c2_139] : memref<1x16x18x18xf32, #tpu.memory_space<vmem>>, vector<1x1x16x16xf32>
    %277 = vector.shape_cast %276 : vector<1x1x16x16xf32> to vector<16x16xf32>
    %c0_140 = arith.constant 0 : index
    %c2_141 = arith.constant 2 : index
    %c1_142 = arith.constant 1 : index
    %c0_143 = arith.constant 0 : index
    %278 = vector.load %arg1[%c0_140, %c2_141, %c1_142, %c0_143] : memref<1x16x18x18xf32, #tpu.memory_space<vmem>>, vector<1x1x16x16xf32>
    %279 = vector.shape_cast %278 : vector<1x1x16x16xf32> to vector<16x16xf32>
    %c0_144 = arith.constant 0 : index
    %c2_145 = arith.constant 2 : index
    %c1_146 = arith.constant 1 : index
    %c1_147 = arith.constant 1 : index
    %280 = vector.load %arg1[%c0_144, %c2_145, %c1_146, %c1_147] : memref<1x16x18x18xf32, #tpu.memory_space<vmem>>, vector<1x1x16x16xf32>
    %281 = vector.shape_cast %280 : vector<1x1x16x16xf32> to vector<16x16xf32>
    %c0_148 = arith.constant 0 : index
    %c2_149 = arith.constant 2 : index
    %c1_150 = arith.constant 1 : index
    %c2_151 = arith.constant 2 : index
    %282 = vector.load %arg1[%c0_148, %c2_149, %c1_150, %c2_151] : memref<1x16x18x18xf32, #tpu.memory_space<vmem>>, vector<1x1x16x16xf32>
    %283 = vector.shape_cast %282 : vector<1x1x16x16xf32> to vector<16x16xf32>
    %c0_152 = arith.constant 0 : index
    %c2_153 = arith.constant 2 : index
    %c2_154 = arith.constant 2 : index
    %c0_155 = arith.constant 0 : index
    %284 = vector.load %arg1[%c0_152, %c2_153, %c2_154, %c0_155] : memref<1x16x18x18xf32, #tpu.memory_space<vmem>>, vector<1x1x16x16xf32>
    %285 = vector.shape_cast %284 : vector<1x1x16x16xf32> to vector<16x16xf32>
    %c0_156 = arith.constant 0 : index
    %c2_157 = arith.constant 2 : index
    %c2_158 = arith.constant 2 : index
    %c1_159 = arith.constant 1 : index
    %286 = vector.load %arg1[%c0_156, %c2_157, %c2_158, %c1_159] : memref<1x16x18x18xf32, #tpu.memory_space<vmem>>, vector<1x1x16x16xf32>
    %287 = vector.shape_cast %286 : vector<1x1x16x16xf32> to vector<16x16xf32>
    %c0_160 = arith.constant 0 : index
    %c2_161 = arith.constant 2 : index
    %c2_162 = arith.constant 2 : index
    %c2_163 = arith.constant 2 : index
    %288 = vector.load %arg1[%c0_160, %c2_161, %c2_162, %c2_163] : memref<1x16x18x18xf32, #tpu.memory_space<vmem>>, vector<1x1x16x16xf32>
    %289 = vector.shape_cast %288 : vector<1x1x16x16xf32> to vector<16x16xf32>
    %c18 = arith.constant 18 : index
    %290 = memref.load %arg4[%c18] : memref<144xf32, #tpu.memory_space<smem>>
    %291 = vector.broadcast %290 : f32 to vector<16x16xf32>
    %292 = arith.mulf %273, %291 : vector<16x16xf32>
    %c19 = arith.constant 19 : index
    %293 = memref.load %arg4[%c19] : memref<144xf32, #tpu.memory_space<smem>>
    %294 = vector.broadcast %293 : f32 to vector<16x16xf32>
    %295 = arith.mulf %275, %294 : vector<16x16xf32>
    %296 = arith.addf %292, %295 : vector<16x16xf32>
    %c20 = arith.constant 20 : index
    %297 = memref.load %arg4[%c20] : memref<144xf32, #tpu.memory_space<smem>>
    %298 = vector.broadcast %297 : f32 to vector<16x16xf32>
    %299 = arith.mulf %277, %298 : vector<16x16xf32>
    %300 = arith.addf %296, %299 : vector<16x16xf32>
    %c21 = arith.constant 21 : index
    %301 = memref.load %arg4[%c21] : memref<144xf32, #tpu.memory_space<smem>>
    %302 = vector.broadcast %301 : f32 to vector<16x16xf32>
    %303 = arith.mulf %279, %302 : vector<16x16xf32>
    %304 = arith.addf %300, %303 : vector<16x16xf32>
    %c22 = arith.constant 22 : index
    %305 = memref.load %arg4[%c22] : memref<144xf32, #tpu.memory_space<smem>>
    %306 = vector.broadcast %305 : f32 to vector<16x16xf32>
    %307 = arith.mulf %281, %306 : vector<16x16xf32>
    %308 = arith.addf %304, %307 : vector<16x16xf32>
    %c23 = arith.constant 23 : index
    %309 = memref.load %arg4[%c23] : memref<144xf32, #tpu.memory_space<smem>>
    %310 = vector.broadcast %309 : f32 to vector<16x16xf32>
    %311 = arith.mulf %283, %310 : vector<16x16xf32>
    %312 = arith.addf %308, %311 : vector<16x16xf32>
    %c24 = arith.constant 24 : index
    %313 = memref.load %arg4[%c24] : memref<144xf32, #tpu.memory_space<smem>>
    %314 = vector.broadcast %313 : f32 to vector<16x16xf32>
    %315 = arith.mulf %285, %314 : vector<16x16xf32>
    %316 = arith.addf %312, %315 : vector<16x16xf32>
    %c25 = arith.constant 25 : index
    %317 = memref.load %arg4[%c25] : memref<144xf32, #tpu.memory_space<smem>>
    %318 = vector.broadcast %317 : f32 to vector<16x16xf32>
    %319 = arith.mulf %287, %318 : vector<16x16xf32>
    %320 = arith.addf %316, %319 : vector<16x16xf32>
    %c26 = arith.constant 26 : index
    %321 = memref.load %arg4[%c26] : memref<144xf32, #tpu.memory_space<smem>>
    %322 = vector.broadcast %321 : f32 to vector<16x16xf32>
    %323 = arith.mulf %289, %322 : vector<16x16xf32>
    %324 = arith.addf %320, %323 : vector<16x16xf32>
    %c2_164 = arith.constant 2 : index
    %325 = memref.load %arg7[%c2_164] : memref<16xf32, #tpu.memory_space<smem>>
    %326 = vector.broadcast %325 : f32 to vector<16x16xf32>
    %327 = arith.addf %324, %326 : vector<16x16xf32>
    %c0_165 = arith.constant 0 : index
    %c2_166 = arith.constant 2 : index
    %c0_167 = arith.constant 0 : index
    %c0_168 = arith.constant 0 : index
    %328 = vector.load %arg10[%c0_165, %c2_166, %c0_167, %c0_168] : memref<1x16x16x16xf32, #tpu.memory_space<vmem>>, vector<1x1x16x16xf32>
    %329 = vector.shape_cast %328 : vector<1x1x16x16xf32> to vector<16x16xf32>
    %330 = vector.shape_cast %327 : vector<16x16xf32> to vector<1x1x16x16xf32>
    tpu.vector_store %arg10[%c0_165, %c2_166, %c0_167, %c0_168], %330 {strides = array<i32>} : memref<1x16x16x16xf32, #tpu.memory_space<vmem>>, vector<1x1x16x16xf32>,
    %c18_169 = arith.constant 18 : index
    %331 = memref.load %arg2[%c18_169] : memref<144xf32, #tpu.memory_space<smem>>
    %332 = vector.broadcast %331 : f32 to vector<16x16xf32>
    %333 = arith.mulf %273, %332 : vector<16x16xf32>
    %c18_170 = arith.constant 18 : index
    %334 = memref.load %arg3[%c18_170] : memref<144xf32, #tpu.memory_space<smem>>
    %335 = vector.broadcast %334 : f32 to vector<16x16xf32>
    %336 = arith.mulf %273, %335 : vector<16x16xf32>
    %c19_171 = arith.constant 19 : index
    %337 = memref.load %arg2[%c19_171] : memref<144xf32, #tpu.memory_space<smem>>
    %338 = vector.broadcast %337 : f32 to vector<16x16xf32>
    %339 = arith.mulf %275, %338 : vector<16x16xf32>
    %340 = arith.addf %333, %339 : vector<16x16xf32>
    %c19_172 = arith.constant 19 : index
    %341 = memref.load %arg3[%c19_172] : memref<144xf32, #tpu.memory_space<smem>>
    %342 = vector.broadcast %341 : f32 to vector<16x16xf32>
    %343 = arith.mulf %275, %342 : vector<16x16xf32>
    %344 = arith.addf %336, %343 : vector<16x16xf32>
    %c20_173 = arith.constant 20 : index
    %345 = memref.load %arg2[%c20_173] : memref<144xf32, #tpu.memory_space<smem>>
    %346 = vector.broadcast %345 : f32 to vector<16x16xf32>
    %347 = arith.mulf %277, %346 : vector<16x16xf32>
    %348 = arith.addf %340, %347 : vector<16x16xf32>
    %c20_174 = arith.constant 20 : index
    %349 = memref.load %arg3[%c20_174] : memref<144xf32, #tpu.memory_space<smem>>
    %350 = vector.broadcast %349 : f32 to vector<16x16xf32>
    %351 = arith.mulf %277, %350 : vector<16x16xf32>
    %352 = arith.addf %344, %351 : vector<16x16xf32>
    %c21_175 = arith.constant 21 : index
    %353 = memref.load %arg2[%c21_175] : memref<144xf32, #tpu.memory_space<smem>>
    %354 = vector.broadcast %353 : f32 to vector<16x16xf32>
    %355 = arith.mulf %279, %354 : vector<16x16xf32>
    %356 = arith.addf %348, %355 : vector<16x16xf32>
    %c21_176 = arith.constant 21 : index
    %357 = memref.load %arg3[%c21_176] : memref<144xf32, #tpu.memory_space<smem>>
    %358 = vector.broadcast %357 : f32 to vector<16x16xf32>
    %359 = arith.mulf %279, %358 : vector<16x16xf32>
    %360 = arith.addf %352, %359 : vector<16x16xf32>
    %c22_177 = arith.constant 22 : index
    %361 = memref.load %arg2[%c22_177] : memref<144xf32, #tpu.memory_space<smem>>
    %362 = vector.broadcast %361 : f32 to vector<16x16xf32>
    %363 = arith.mulf %281, %362 : vector<16x16xf32>
    %364 = arith.addf %356, %363 : vector<16x16xf32>
    %c22_178 = arith.constant 22 : index
    %365 = memref.load %arg3[%c22_178] : memref<144xf32, #tpu.memory_space<smem>>
    %366 = vector.broadcast %365 : f32 to vector<16x16xf32>
    %367 = arith.mulf %281, %366 : vector<16x16xf32>
    %368 = arith.addf %360, %367 : vector<16x16xf32>
    %c23_179 = arith.constant 23 : index
    %369 = memref.load %arg2[%c23_179] : memref<144xf32, #tpu.memory_space<smem>>
    %370 = vector.broadcast %369 : f32 to vector<16x16xf32>
    %371 = arith.mulf %283, %370 : vector<16x16xf32>
    %372 = arith.addf %364, %371 : vector<16x16xf32>
    %c23_180 = arith.constant 23 : index
    %373 = memref.load %arg3[%c23_180] : memref<144xf32, #tpu.memory_space<smem>>
    %374 = vector.broadcast %373 : f32 to vector<16x16xf32>
    %375 = arith.mulf %283, %374 : vector<16x16xf32>
    %376 = arith.addf %368, %375 : vector<16x16xf32>
    %c24_181 = arith.constant 24 : index
    %377 = memref.load %arg2[%c24_181] : memref<144xf32, #tpu.memory_space<smem>>
    %378 = vector.broadcast %377 : f32 to vector<16x16xf32>
    %379 = arith.mulf %285, %378 : vector<16x16xf32>
    %380 = arith.addf %372, %379 : vector<16x16xf32>
    %c24_182 = arith.constant 24 : index
    %381 = memref.load %arg3[%c24_182] : memref<144xf32, #tpu.memory_space<smem>>
    %382 = vector.broadcast %381 : f32 to vector<16x16xf32>
    %383 = arith.mulf %285, %382 : vector<16x16xf32>
    %384 = arith.addf %376, %383 : vector<16x16xf32>
    %c25_183 = arith.constant 25 : index
    %385 = memref.load %arg2[%c25_183] : memref<144xf32, #tpu.memory_space<smem>>
    %386 = vector.broadcast %385 : f32 to vector<16x16xf32>
    %387 = arith.mulf %287, %386 : vector<16x16xf32>
    %388 = arith.addf %380, %387 : vector<16x16xf32>
    %c25_184 = arith.constant 25 : index
    %389 = memref.load %arg3[%c25_184] : memref<144xf32, #tpu.memory_space<smem>>
    %390 = vector.broadcast %389 : f32 to vector<16x16xf32>
    %391 = arith.mulf %287, %390 : vector<16x16xf32>
    %392 = arith.addf %384, %391 : vector<16x16xf32>
    %c26_185 = arith.constant 26 : index
    %393 = memref.load %arg2[%c26_185] : memref<144xf32, #tpu.memory_space<smem>>
    %394 = vector.broadcast %393 : f32 to vector<16x16xf32>
    %395 = arith.mulf %289, %394 : vector<16x16xf32>
    %396 = arith.addf %388, %395 : vector<16x16xf32>
    %c26_186 = arith.constant 26 : index
    %397 = memref.load %arg3[%c26_186] : memref<144xf32, #tpu.memory_space<smem>>
    %398 = vector.broadcast %397 : f32 to vector<16x16xf32>
    %399 = arith.mulf %289, %398 : vector<16x16xf32>
    %400 = arith.addf %392, %399 : vector<16x16xf32>
    %c0_187 = arith.constant 0 : index
    %c3_188 = arith.constant 3 : index
    %c0_189 = arith.constant 0 : index
    %c0_190 = arith.constant 0 : index
    %401 = vector.load %arg1[%c0_187, %c3_188, %c0_189, %c0_190] : memref<1x16x18x18xf32, #tpu.memory_space<vmem>>, vector<1x1x16x16xf32>
    %402 = vector.shape_cast %401 : vector<1x1x16x16xf32> to vector<16x16xf32>
    %c0_191 = arith.constant 0 : index
    %c3_192 = arith.constant 3 : index
    %c0_193 = arith.constant 0 : index
    %c1_194 = arith.constant 1 : index
    %403 = vector.load %arg1[%c0_191, %c3_192, %c0_193, %c1_194] : memref<1x16x18x18xf32, #tpu.memory_space<vmem>>, vector<1x1x16x16xf32>
    %404 = vector.shape_cast %403 : vector<1x1x16x16xf32> to vector<16x16xf32>
    %c0_195 = arith.constant 0 : index
    %c3_196 = arith.constant 3 : index
    %c0_197 = arith.constant 0 : index
    %c2_198 = arith.constant 2 : index
    %405 = vector.load %arg1[%c0_195, %c3_196, %c0_197, %c2_198] : memref<1x16x18x18xf32, #tpu.memory_space<vmem>>, vector<1x1x16x16xf32>
    %406 = vector.shape_cast %405 : vector<1x1x16x16xf32> to vector<16x16xf32>
    %c0_199 = arith.constant 0 : index
    %c3_200 = arith.constant 3 : index
    %c1_201 = arith.constant 1 : index
    %c0_202 = arith.constant 0 : index
    %407 = vector.load %arg1[%c0_199, %c3_200, %c1_201, %c0_202] : memref<1x16x18x18xf32, #tpu.memory_space<vmem>>, vector<1x1x16x16xf32>
    %408 = vector.shape_cast %407 : vector<1x1x16x16xf32> to vector<16x16xf32>
    %c0_203 = arith.constant 0 : index
    %c3_204 = arith.constant 3 : index
    %c1_205 = arith.constant 1 : index
    %c1_206 = arith.constant 1 : index
    %409 = vector.load %arg1[%c0_203, %c3_204, %c1_205, %c1_206] : memref<1x16x18x18xf32, #tpu.memory_space<vmem>>, vector<1x1x16x16xf32>
    %410 = vector.shape_cast %409 : vector<1x1x16x16xf32> to vector<16x16xf32>
    %c0_207 = arith.constant 0 : index
    %c3_208 = arith.constant 3 : index
    %c1_209 = arith.constant 1 : index
    %c2_210 = arith.constant 2 : index
    %411 = vector.load %arg1[%c0_207, %c3_208, %c1_209, %c2_210] : memref<1x16x18x18xf32, #tpu.memory_space<vmem>>, vector<1x1x16x16xf32>
    %412 = vector.shape_cast %411 : vector<1x1x16x16xf32> to vector<16x16xf32>
    %c0_211 = arith.constant 0 : index
    %c3_212 = arith.constant 3 : index
    %c2_213 = arith.constant 2 : index
    %c0_214 = arith.constant 0 : index
    %413 = vector.load %arg1[%c0_211, %c3_212, %c2_213, %c0_214] : memref<1x16x18x18xf32, #tpu.memory_space<vmem>>, vector<1x1x16x16xf32>
    %414 = vector.shape_cast %413 : vector<1x1x16x16xf32> to vector<16x16xf32>
    %c0_215 = arith.constant 0 : index
    %c3_216 = arith.constant 3 : index
    %c2_217 = arith.constant 2 : index
    %c1_218 = arith.constant 1 : index
    %415 = vector.load %arg1[%c0_215, %c3_216, %c2_217, %c1_218] : memref<1x16x18x18xf32, #tpu.memory_space<vmem>>, vector<1x1x16x16xf32>
    %416 = vector.shape_cast %415 : vector<1x1x16x16xf32> to vector<16x16xf32>
    %c0_219 = arith.constant 0 : index
    %c3_220 = arith.constant 3 : index
    %c2_221 = arith.constant 2 : index
    %c2_222 = arith.constant 2 : index
    %417 = vector.load %arg1[%c0_219, %c3_220, %c2_221, %c2_222] : memref<1x16x18x18xf32, #tpu.memory_space<vmem>>, vector<1x1x16x16xf32>
    %418 = vector.shape_cast %417 : vector<1x1x16x16xf32> to vector<16x16xf32>
    %c27 = arith.constant 27 : index
    %419 = memref.load %arg4[%c27] : memref<144xf32, #tpu.memory_space<smem>>
    %420 = vector.broadcast %419 : f32 to vector<16x16xf32>
    %421 = arith.mulf %402, %420 : vector<16x16xf32>
    %c28 = arith.constant 28 : index
    %422 = memref.load %arg4[%c28] : memref<144xf32, #tpu.memory_space<smem>>
    %423 = vector.broadcast %422 : f32 to vector<16x16xf32>
    %424 = arith.mulf %404, %423 : vector<16x16xf32>
    %425 = arith.addf %421, %424 : vector<16x16xf32>
    %c29 = arith.constant 29 : index
    %426 = memref.load %arg4[%c29] : memref<144xf32, #tpu.memory_space<smem>>
    %427 = vector.broadcast %426 : f32 to vector<16x16xf32>
    %428 = arith.mulf %406, %427 : vector<16x16xf32>
    %429 = arith.addf %425, %428 : vector<16x16xf32>
    %c30 = arith.constant 30 : index
    %430 = memref.load %arg4[%c30] : memref<144xf32, #tpu.memory_space<smem>>
    %431 = vector.broadcast %430 : f32 to vector<16x16xf32>
    %432 = arith.mulf %408, %431 : vector<16x16xf32>
    %433 = arith.addf %429, %432 : vector<16x16xf32>
    %c31 = arith.constant 31 : index
    %434 = memref.load %arg4[%c31] : memref<144xf32, #tpu.memory_space<smem>>
    %435 = vector.broadcast %434 : f32 to vector<16x16xf32>
    %436 = arith.mulf %410, %435 : vector<16x16xf32>
    %437 = arith.addf %433, %436 : vector<16x16xf32>
    %c32 = arith.constant 32 : index
    %438 = memref.load %arg4[%c32] : memref<144xf32, #tpu.memory_space<smem>>
    %439 = vector.broadcast %438 : f32 to vector<16x16xf32>
    %440 = arith.mulf %412, %439 : vector<16x16xf32>
    %441 = arith.addf %437, %440 : vector<16x16xf32>
    %c33 = arith.constant 33 : index
    %442 = memref.load %arg4[%c33] : memref<144xf32, #tpu.memory_space<smem>>
    %443 = vector.broadcast %442 : f32 to vector<16x16xf32>
    %444 = arith.mulf %414, %443 : vector<16x16xf32>
    %445 = arith.addf %441, %444 : vector<16x16xf32>
    %c34 = arith.constant 34 : index
    %446 = memref.load %arg4[%c34] : memref<144xf32, #tpu.memory_space<smem>>
    %447 = vector.broadcast %446 : f32 to vector<16x16xf32>
    %448 = arith.mulf %416, %447 : vector<16x16xf32>
    %449 = arith.addf %445, %448 : vector<16x16xf32>
    %c35 = arith.constant 35 : index
    %450 = memref.load %arg4[%c35] : memref<144xf32, #tpu.memory_space<smem>>
    %451 = vector.broadcast %450 : f32 to vector<16x16xf32>
    %452 = arith.mulf %418, %451 : vector<16x16xf32>
    %453 = arith.addf %449, %452 : vector<16x16xf32>
    %c3_223 = arith.constant 3 : index
    %454 = memref.load %arg7[%c3_223] : memref<16xf32, #tpu.memory_space<smem>>
    %455 = vector.broadcast %454 : f32 to vector<16x16xf32>
    %456 = arith.addf %453, %455 : vector<16x16xf32>
    %c0_224 = arith.constant 0 : index
    %c3_225 = arith.constant 3 : index
    %c0_226 = arith.constant 0 : index
    %c0_227 = arith.constant 0 : index
    %457 = vector.load %arg10[%c0_224, %c3_225, %c0_226, %c0_227] : memref<1x16x16x16xf32, #tpu.memory_space<vmem>>, vector<1x1x16x16xf32>
    %458 = vector.shape_cast %457 : vector<1x1x16x16xf32> to vector<16x16xf32>
    %459 = vector.shape_cast %456 : vector<16x16xf32> to vector<1x1x16x16xf32>
    tpu.vector_store %arg10[%c0_224, %c3_225, %c0_226, %c0_227], %459 {strides = array<i32>} : memref<1x16x16x16xf32, #tpu.memory_space<vmem>>, vector<1x1x16x16xf32>,
    %c27_228 = arith.constant 27 : index
    %460 = memref.load %arg2[%c27_228] : memref<144xf32, #tpu.memory_space<smem>>
    %461 = vector.broadcast %460 : f32 to vector<16x16xf32>
    %462 = arith.mulf %402, %461 : vector<16x16xf32>
    %c27_229 = arith.constant 27 : index
    %463 = memref.load %arg3[%c27_229] : memref<144xf32, #tpu.memory_space<smem>>
    %464 = vector.broadcast %463 : f32 to vector<16x16xf32>
    %465 = arith.mulf %402, %464 : vector<16x16xf32>
    %c28_230 = arith.constant 28 : index
    %466 = memref.load %arg2[%c28_230] : memref<144xf32, #tpu.memory_space<smem>>
    %467 = vector.broadcast %466 : f32 to vector<16x16xf32>
    %468 = arith.mulf %404, %467 : vector<16x16xf32>
    %469 = arith.addf %462, %468 : vector<16x16xf32>
    %c28_231 = arith.constant 28 : index
    %470 = memref.load %arg3[%c28_231] : memref<144xf32, #tpu.memory_space<smem>>
    %471 = vector.broadcast %470 : f32 to vector<16x16xf32>
    %472 = arith.mulf %404, %471 : vector<16x16xf32>
    %473 = arith.addf %465, %472 : vector<16x16xf32>
    %c29_232 = arith.constant 29 : index
    %474 = memref.load %arg2[%c29_232] : memref<144xf32, #tpu.memory_space<smem>>
    %475 = vector.broadcast %474 : f32 to vector<16x16xf32>
    %476 = arith.mulf %406, %475 : vector<16x16xf32>
    %477 = arith.addf %469, %476 : vector<16x16xf32>
    %c29_233 = arith.constant 29 : index
    %478 = memref.load %arg3[%c29_233] : memref<144xf32, #tpu.memory_space<smem>>
    %479 = vector.broadcast %478 : f32 to vector<16x16xf32>
    %480 = arith.mulf %406, %479 : vector<16x16xf32>
    %481 = arith.addf %473, %480 : vector<16x16xf32>
    %c30_234 = arith.constant 30 : index
    %482 = memref.load %arg2[%c30_234] : memref<144xf32, #tpu.memory_space<smem>>
    %483 = vector.broadcast %482 : f32 to vector<16x16xf32>
    %484 = arith.mulf %408, %483 : vector<16x16xf32>
    %485 = arith.addf %477, %484 : vector<16x16xf32>
    %c30_235 = arith.constant 30 : index
    %486 = memref.load %arg3[%c30_235] : memref<144xf32, #tpu.memory_space<smem>>
    %487 = vector.broadcast %486 : f32 to vector<16x16xf32>
    %488 = arith.mulf %408, %487 : vector<16x16xf32>
    %489 = arith.addf %481, %488 : vector<16x16xf32>
    %c31_236 = arith.constant 31 : index
    %490 = memref.load %arg2[%c31_236] : memref<144xf32, #tpu.memory_space<smem>>
    %491 = vector.broadcast %490 : f32 to vector<16x16xf32>
    %492 = arith.mulf %410, %491 : vector<16x16xf32>
    %493 = arith.addf %485, %492 : vector<16x16xf32>
    %c31_237 = arith.constant 31 : index
    %494 = memref.load %arg3[%c31_237] : memref<144xf32, #tpu.memory_space<smem>>
    %495 = vector.broadcast %494 : f32 to vector<16x16xf32>
    %496 = arith.mulf %410, %495 : vector<16x16xf32>
    %497 = arith.addf %489, %496 : vector<16x16xf32>
    %c32_238 = arith.constant 32 : index
    %498 = memref.load %arg2[%c32_238] : memref<144xf32, #tpu.memory_space<smem>>
    %499 = vector.broadcast %498 : f32 to vector<16x16xf32>
    %500 = arith.mulf %412, %499 : vector<16x16xf32>
    %501 = arith.addf %493, %500 : vector<16x16xf32>
    %c32_239 = arith.constant 32 : index
    %502 = memref.load %arg3[%c32_239] : memref<144xf32, #tpu.memory_space<smem>>
    %503 = vector.broadcast %502 : f32 to vector<16x16xf32>
    %504 = arith.mulf %412, %503 : vector<16x16xf32>
    %505 = arith.addf %497, %504 : vector<16x16xf32>
    %c33_240 = arith.constant 33 : index
    %506 = memref.load %arg2[%c33_240] : memref<144xf32, #tpu.memory_space<smem>>
    %507 = vector.broadcast %506 : f32 to vector<16x16xf32>
    %508 = arith.mulf %414, %507 : vector<16x16xf32>
    %509 = arith.addf %501, %508 : vector<16x16xf32>
    %c33_241 = arith.constant 33 : index
    %510 = memref.load %arg3[%c33_241] : memref<144xf32, #tpu.memory_space<smem>>
    %511 = vector.broadcast %510 : f32 to vector<16x16xf32>
    %512 = arith.mulf %414, %511 : vector<16x16xf32>
    %513 = arith.addf %505, %512 : vector<16x16xf32>
    %c34_242 = arith.constant 34 : index
    %514 = memref.load %arg2[%c34_242] : memref<144xf32, #tpu.memory_space<smem>>
    %515 = vector.broadcast %514 : f32 to vector<16x16xf32>
    %516 = arith.mulf %416, %515 : vector<16x16xf32>
    %517 = arith.addf %509, %516 : vector<16x16xf32>
    %c34_243 = arith.constant 34 : index
    %518 = memref.load %arg3[%c34_243] : memref<144xf32, #tpu.memory_space<smem>>
    %519 = vector.broadcast %518 : f32 to vector<16x16xf32>
    %520 = arith.mulf %416, %519 : vector<16x16xf32>
    %521 = arith.addf %513, %520 : vector<16x16xf32>
    %c35_244 = arith.constant 35 : index
    %522 = memref.load %arg2[%c35_244] : memref<144xf32, #tpu.memory_space<smem>>
    %523 = vector.broadcast %522 : f32 to vector<16x16xf32>
    %524 = arith.mulf %418, %523 : vector<16x16xf32>
    %525 = arith.addf %517, %524 : vector<16x16xf32>
    %c35_245 = arith.constant 35 : index
    %526 = memref.load %arg3[%c35_245] : memref<144xf32, #tpu.memory_space<smem>>
    %527 = vector.broadcast %526 : f32 to vector<16x16xf32>
    %528 = arith.mulf %418, %527 : vector<16x16xf32>
    %529 = arith.addf %521, %528 : vector<16x16xf32>
    %530 = arith.addf %396, %525 : vector<16x16xf32>
    %c1_246 = arith.constant 1 : index
    %531 = memref.load %arg5[%c1_246] : memref<8xf32, #tpu.memory_space<smem>>
    %532 = vector.broadcast %531 : f32 to vector<16x16xf32>
    %533 = arith.addf %530, %532 : vector<16x16xf32>
    %c0_247 = arith.constant 0 : index
    %c1_248 = arith.constant 1 : index
    %c0_249 = arith.constant 0 : index
    %c0_250 = arith.constant 0 : index
    %534 = vector.load %arg8[%c0_247, %c1_248, %c0_249, %c0_250] : memref<1x8x16x16xf32, #tpu.memory_space<vmem>>, vector<1x1x16x16xf32>
    %535 = vector.shape_cast %534 : vector<1x1x16x16xf32> to vector<16x16xf32>
    %536 = vector.shape_cast %533 : vector<16x16xf32> to vector<1x1x16x16xf32>
    tpu.vector_store %arg8[%c0_247, %c1_248, %c0_249, %c0_250], %536 {strides = array<i32>} : memref<1x8x16x16xf32, #tpu.memory_space<vmem>>, vector<1x1x16x16xf32>,
    %537 = arith.addf %400, %529 : vector<16x16xf32>
    %c1_251 = arith.constant 1 : index
    %538 = memref.load %arg6[%c1_251] : memref<8xf32, #tpu.memory_space<smem>>
    %539 = vector.broadcast %538 : f32 to vector<16x16xf32>
    %540 = arith.addf %537, %539 : vector<16x16xf32>
    %c0_252 = arith.constant 0 : index
    %c1_253 = arith.constant 1 : index
    %c0_254 = arith.constant 0 : index
    %c0_255 = arith.constant 0 : index
    %541 = vector.load %arg9[%c0_252, %c1_253, %c0_254, %c0_255] : memref<1x8x16x16xf32, #tpu.memory_space<vmem>>, vector<1x1x16x16xf32>
    %542 = vector.shape_cast %541 : vector<1x1x16x16xf32> to vector<16x16xf32>
    %543 = vector.shape_cast %540 : vector<16x16xf32> to vector<1x1x16x16xf32>
    tpu.vector_store %arg9[%c0_252, %c1_253, %c0_254, %c0_255], %543 {strides = array<i32>} : memref<1x8x16x16xf32, #tpu.memory_space<vmem>>, vector<1x1x16x16xf32>,
    %c0_256 = arith.constant 0 : index
    %c4_257 = arith.constant 4 : index
    %c0_258 = arith.constant 0 : index
    %c0_259 = arith.constant 0 : index
    %544 = vector.load %arg1[%c0_256, %c4_257, %c0_258, %c0_259] : memref<1x16x18x18xf32, #tpu.memory_space<vmem>>, vector<1x1x16x16xf32>
    %545 = vector.shape_cast %544 : vector<1x1x16x16xf32> to vector<16x16xf32>
    %c0_260 = arith.constant 0 : index
    %c4_261 = arith.constant 4 : index
    %c0_262 = arith.constant 0 : index
    %c1_263 = arith.constant 1 : index
    %546 = vector.load %arg1[%c0_260, %c4_261, %c0_262, %c1_263] : memref<1x16x18x18xf32, #tpu.memory_space<vmem>>, vector<1x1x16x16xf32>
    %547 = vector.shape_cast %546 : vector<1x1x16x16xf32> to vector<16x16xf32>
    %c0_264 = arith.constant 0 : index
    %c4_265 = arith.constant 4 : index
    %c0_266 = arith.constant 0 : index
    %c2_267 = arith.constant 2 : index
    %548 = vector.load %arg1[%c0_264, %c4_265, %c0_266, %c2_267] : memref<1x16x18x18xf32, #tpu.memory_space<vmem>>, vector<1x1x16x16xf32>
    %549 = vector.shape_cast %548 : vector<1x1x16x16xf32> to vector<16x16xf32>
    %c0_268 = arith.constant 0 : index
    %c4_269 = arith.constant 4 : index
    %c1_270 = arith.constant 1 : index
    %c0_271 = arith.constant 0 : index
    %550 = vector.load %arg1[%c0_268, %c4_269, %c1_270, %c0_271] : memref<1x16x18x18xf32, #tpu.memory_space<vmem>>, vector<1x1x16x16xf32>
    %551 = vector.shape_cast %550 : vector<1x1x16x16xf32> to vector<16x16xf32>
    %c0_272 = arith.constant 0 : index
    %c4_273 = arith.constant 4 : index
    %c1_274 = arith.constant 1 : index
    %c1_275 = arith.constant 1 : index
    %552 = vector.load %arg1[%c0_272, %c4_273, %c1_274, %c1_275] : memref<1x16x18x18xf32, #tpu.memory_space<vmem>>, vector<1x1x16x16xf32>
    %553 = vector.shape_cast %552 : vector<1x1x16x16xf32> to vector<16x16xf32>
    %c0_276 = arith.constant 0 : index
    %c4_277 = arith.constant 4 : index
    %c1_278 = arith.constant 1 : index
    %c2_279 = arith.constant 2 : index
    %554 = vector.load %arg1[%c0_276, %c4_277, %c1_278, %c2_279] : memref<1x16x18x18xf32, #tpu.memory_space<vmem>>, vector<1x1x16x16xf32>
    %555 = vector.shape_cast %554 : vector<1x1x16x16xf32> to vector<16x16xf32>
    %c0_280 = arith.constant 0 : index
    %c4_281 = arith.constant 4 : index
    %c2_282 = arith.constant 2 : index
    %c0_283 = arith.constant 0 : index
    %556 = vector.load %arg1[%c0_280, %c4_281, %c2_282, %c0_283] : memref<1x16x18x18xf32, #tpu.memory_space<vmem>>, vector<1x1x16x16xf32>
    %557 = vector.shape_cast %556 : vector<1x1x16x16xf32> to vector<16x16xf32>
    %c0_284 = arith.constant 0 : index
    %c4_285 = arith.constant 4 : index
    %c2_286 = arith.constant 2 : index
    %c1_287 = arith.constant 1 : index
    %558 = vector.load %arg1[%c0_284, %c4_285, %c2_286, %c1_287] : memref<1x16x18x18xf32, #tpu.memory_space<vmem>>, vector<1x1x16x16xf32>
    %559 = vector.shape_cast %558 : vector<1x1x16x16xf32> to vector<16x16xf32>
    %c0_288 = arith.constant 0 : index
    %c4_289 = arith.constant 4 : index
    %c2_290 = arith.constant 2 : index
    %c2_291 = arith.constant 2 : index
    %560 = vector.load %arg1[%c0_288, %c4_289, %c2_290, %c2_291] : memref<1x16x18x18xf32, #tpu.memory_space<vmem>>, vector<1x1x16x16xf32>
    %561 = vector.shape_cast %560 : vector<1x1x16x16xf32> to vector<16x16xf32>
    %c36 = arith.constant 36 : index
    %562 = memref.load %arg4[%c36] : memref<144xf32, #tpu.memory_space<smem>>
    %563 = vector.broadcast %562 : f32 to vector<16x16xf32>
    %564 = arith.mulf %545, %563 : vector<16x16xf32>
    %c37 = arith.constant 37 : index
    %565 = memref.load %arg4[%c37] : memref<144xf32, #tpu.memory_space<smem>>
    %566 = vector.broadcast %565 : f32 to vector<16x16xf32>
    %567 = arith.mulf %547, %566 : vector<16x16xf32>
    %568 = arith.addf %564, %567 : vector<16x16xf32>
    %c38 = arith.constant 38 : index
    %569 = memref.load %arg4[%c38] : memref<144xf32, #tpu.memory_space<smem>>
    %570 = vector.broadcast %569 : f32 to vector<16x16xf32>
    %571 = arith.mulf %549, %570 : vector<16x16xf32>
    %572 = arith.addf %568, %571 : vector<16x16xf32>
    %c39 = arith.constant 39 : index
    %573 = memref.load %arg4[%c39] : memref<144xf32, #tpu.memory_space<smem>>
    %574 = vector.broadcast %573 : f32 to vector<16x16xf32>
    %575 = arith.mulf %551, %574 : vector<16x16xf32>
    %576 = arith.addf %572, %575 : vector<16x16xf32>
    %c40 = arith.constant 40 : index
    %577 = memref.load %arg4[%c40] : memref<144xf32, #tpu.memory_space<smem>>
    %578 = vector.broadcast %577 : f32 to vector<16x16xf32>
    %579 = arith.mulf %553, %578 : vector<16x16xf32>
    %580 = arith.addf %576, %579 : vector<16x16xf32>
    %c41 = arith.constant 41 : index
    %581 = memref.load %arg4[%c41] : memref<144xf32, #tpu.memory_space<smem>>
    %582 = vector.broadcast %581 : f32 to vector<16x16xf32>
    %583 = arith.mulf %555, %582 : vector<16x16xf32>
    %584 = arith.addf %580, %583 : vector<16x16xf32>
    %c42 = arith.constant 42 : index
    %585 = memref.load %arg4[%c42] : memref<144xf32, #tpu.memory_space<smem>>
    %586 = vector.broadcast %585 : f32 to vector<16x16xf32>
    %587 = arith.mulf %557, %586 : vector<16x16xf32>
    %588 = arith.addf %584, %587 : vector<16x16xf32>
    %c43 = arith.constant 43 : index
    %589 = memref.load %arg4[%c43] : memref<144xf32, #tpu.memory_space<smem>>
    %590 = vector.broadcast %589 : f32 to vector<16x16xf32>
    %591 = arith.mulf %559, %590 : vector<16x16xf32>
    %592 = arith.addf %588, %591 : vector<16x16xf32>
    %c44 = arith.constant 44 : index
    %593 = memref.load %arg4[%c44] : memref<144xf32, #tpu.memory_space<smem>>
    %594 = vector.broadcast %593 : f32 to vector<16x16xf32>
    %595 = arith.mulf %561, %594 : vector<16x16xf32>
    %596 = arith.addf %592, %595 : vector<16x16xf32>
    %c4_292 = arith.constant 4 : index
    %597 = memref.load %arg7[%c4_292] : memref<16xf32, #tpu.memory_space<smem>>
    %598 = vector.broadcast %597 : f32 to vector<16x16xf32>
    %599 = arith.addf %596, %598 : vector<16x16xf32>
    %c0_293 = arith.constant 0 : index
    %c4_294 = arith.constant 4 : index
    %c0_295 = arith.constant 0 : index
    %c0_296 = arith.constant 0 : index
    %600 = vector.load %arg10[%c0_293, %c4_294, %c0_295, %c0_296] : memref<1x16x16x16xf32, #tpu.memory_space<vmem>>, vector<1x1x16x16xf32>
    %601 = vector.shape_cast %600 : vector<1x1x16x16xf32> to vector<16x16xf32>
    %602 = vector.shape_cast %599 : vector<16x16xf32> to vector<1x1x16x16xf32>
    tpu.vector_store %arg10[%c0_293, %c4_294, %c0_295, %c0_296], %602 {strides = array<i32>} : memref<1x16x16x16xf32, #tpu.memory_space<vmem>>, vector<1x1x16x16xf32>,
    %c36_297 = arith.constant 36 : index
    %603 = memref.load %arg2[%c36_297] : memref<144xf32, #tpu.memory_space<smem>>
    %604 = vector.broadcast %603 : f32 to vector<16x16xf32>
    %605 = arith.mulf %545, %604 : vector<16x16xf32>
    %c36_298 = arith.constant 36 : index
    %606 = memref.load %arg3[%c36_298] : memref<144xf32, #tpu.memory_space<smem>>
    %607 = vector.broadcast %606 : f32 to vector<16x16xf32>
    %608 = arith.mulf %545, %607 : vector<16x16xf32>
    %c37_299 = arith.constant 37 : index
    %609 = memref.load %arg2[%c37_299] : memref<144xf32, #tpu.memory_space<smem>>
    %610 = vector.broadcast %609 : f32 to vector<16x16xf32>
    %611 = arith.mulf %547, %610 : vector<16x16xf32>
    %612 = arith.addf %605, %611 : vector<16x16xf32>
    %c37_300 = arith.constant 37 : index
    %613 = memref.load %arg3[%c37_300] : memref<144xf32, #tpu.memory_space<smem>>
    %614 = vector.broadcast %613 : f32 to vector<16x16xf32>
    %615 = arith.mulf %547, %614 : vector<16x16xf32>
    %616 = arith.addf %608, %615 : vector<16x16xf32>
    %c38_301 = arith.constant 38 : index
    %617 = memref.load %arg2[%c38_301] : memref<144xf32, #tpu.memory_space<smem>>
    %618 = vector.broadcast %617 : f32 to vector<16x16xf32>
    %619 = arith.mulf %549, %618 : vector<16x16xf32>
    %620 = arith.addf %612, %619 : vector<16x16xf32>
    %c38_302 = arith.constant 38 : index
    %621 = memref.load %arg3[%c38_302] : memref<144xf32, #tpu.memory_space<smem>>
    %622 = vector.broadcast %621 : f32 to vector<16x16xf32>
    %623 = arith.mulf %549, %622 : vector<16x16xf32>
    %624 = arith.addf %616, %623 : vector<16x16xf32>
    %c39_303 = arith.constant 39 : index
    %625 = memref.load %arg2[%c39_303] : memref<144xf32, #tpu.memory_space<smem>>
    %626 = vector.broadcast %625 : f32 to vector<16x16xf32>
    %627 = arith.mulf %551, %626 : vector<16x16xf32>
    %628 = arith.addf %620, %627 : vector<16x16xf32>
    %c39_304 = arith.constant 39 : index
    %629 = memref.load %arg3[%c39_304] : memref<144xf32, #tpu.memory_space<smem>>
    %630 = vector.broadcast %629 : f32 to vector<16x16xf32>
    %631 = arith.mulf %551, %630 : vector<16x16xf32>
    %632 = arith.addf %624, %631 : vector<16x16xf32>
    %c40_305 = arith.constant 40 : index
    %633 = memref.load %arg2[%c40_305] : memref<144xf32, #tpu.memory_space<smem>>
    %634 = vector.broadcast %633 : f32 to vector<16x16xf32>
    %635 = arith.mulf %553, %634 : vector<16x16xf32>
    %636 = arith.addf %628, %635 : vector<16x16xf32>
    %c40_306 = arith.constant 40 : index
    %637 = memref.load %arg3[%c40_306] : memref<144xf32, #tpu.memory_space<smem>>
    %638 = vector.broadcast %637 : f32 to vector<16x16xf32>
    %639 = arith.mulf %553, %638 : vector<16x16xf32>
    %640 = arith.addf %632, %639 : vector<16x16xf32>
    %c41_307 = arith.constant 41 : index
    %641 = memref.load %arg2[%c41_307] : memref<144xf32, #tpu.memory_space<smem>>
    %642 = vector.broadcast %641 : f32 to vector<16x16xf32>
    %643 = arith.mulf %555, %642 : vector<16x16xf32>
    %644 = arith.addf %636, %643 : vector<16x16xf32>
    %c41_308 = arith.constant 41 : index
    %645 = memref.load %arg3[%c41_308] : memref<144xf32, #tpu.memory_space<smem>>
    %646 = vector.broadcast %645 : f32 to vector<16x16xf32>
    %647 = arith.mulf %555, %646 : vector<16x16xf32>
    %648 = arith.addf %640, %647 : vector<16x16xf32>
    %c42_309 = arith.constant 42 : index
    %649 = memref.load %arg2[%c42_309] : memref<144xf32, #tpu.memory_space<smem>>
    %650 = vector.broadcast %649 : f32 to vector<16x16xf32>
    %651 = arith.mulf %557, %650 : vector<16x16xf32>
    %652 = arith.addf %644, %651 : vector<16x16xf32>
    %c42_310 = arith.constant 42 : index
    %653 = memref.load %arg3[%c42_310] : memref<144xf32, #tpu.memory_space<smem>>
    %654 = vector.broadcast %653 : f32 to vector<16x16xf32>
    %655 = arith.mulf %557, %654 : vector<16x16xf32>
    %656 = arith.addf %648, %655 : vector<16x16xf32>
    %c43_311 = arith.constant 43 : index
    %657 = memref.load %arg2[%c43_311] : memref<144xf32, #tpu.memory_space<smem>>
    %658 = vector.broadcast %657 : f32 to vector<16x16xf32>
    %659 = arith.mulf %559, %658 : vector<16x16xf32>
    %660 = arith.addf %652, %659 : vector<16x16xf32>
    %c43_312 = arith.constant 43 : index
    %661 = memref.load %arg3[%c43_312] : memref<144xf32, #tpu.memory_space<smem>>
    %662 = vector.broadcast %661 : f32 to vector<16x16xf32>
    %663 = arith.mulf %559, %662 : vector<16x16xf32>
    %664 = arith.addf %656, %663 : vector<16x16xf32>
    %c44_313 = arith.constant 44 : index
    %665 = memref.load %arg2[%c44_313] : memref<144xf32, #tpu.memory_space<smem>>
    %666 = vector.broadcast %665 : f32 to vector<16x16xf32>
    %667 = arith.mulf %561, %666 : vector<16x16xf32>
    %668 = arith.addf %660, %667 : vector<16x16xf32>
    %c44_314 = arith.constant 44 : index
    %669 = memref.load %arg3[%c44_314] : memref<144xf32, #tpu.memory_space<smem>>
    %670 = vector.broadcast %669 : f32 to vector<16x16xf32>
    %671 = arith.mulf %561, %670 : vector<16x16xf32>
    %672 = arith.addf %664, %671 : vector<16x16xf32>
    %c0_315 = arith.constant 0 : index
    %c5_316 = arith.constant 5 : index
    %c0_317 = arith.constant 0 : index
    %c0_318 = arith.constant 0 : index
    %673 = vector.load %arg1[%c0_315, %c5_316, %c0_317, %c0_318] : memref<1x16x18x18xf32, #tpu.memory_space<vmem>>, vector<1x1x16x16xf32>
    %674 = vector.shape_cast %673 : vector<1x1x16x16xf32> to vector<16x16xf32>
    %c0_319 = arith.constant 0 : index
    %c5_320 = arith.constant 5 : index
    %c0_321 = arith.constant 0 : index
    %c1_322 = arith.constant 1 : index
    %675 = vector.load %arg1[%c0_319, %c5_320, %c0_321, %c1_322] : memref<1x16x18x18xf32, #tpu.memory_space<vmem>>, vector<1x1x16x16xf32>
    %676 = vector.shape_cast %675 : vector<1x1x16x16xf32> to vector<16x16xf32>
    %c0_323 = arith.constant 0 : index
    %c5_324 = arith.constant 5 : index
    %c0_325 = arith.constant 0 : index
    %c2_326 = arith.constant 2 : index
    %677 = vector.load %arg1[%c0_323, %c5_324, %c0_325, %c2_326] : memref<1x16x18x18xf32, #tpu.memory_space<vmem>>, vector<1x1x16x16xf32>
    %678 = vector.shape_cast %677 : vector<1x1x16x16xf32> to vector<16x16xf32>
    %c0_327 = arith.constant 0 : index
    %c5_328 = arith.constant 5 : index
    %c1_329 = arith.constant 1 : index
    %c0_330 = arith.constant 0 : index
    %679 = vector.load %arg1[%c0_327, %c5_328, %c1_329, %c0_330] : memref<1x16x18x18xf32, #tpu.memory_space<vmem>>, vector<1x1x16x16xf32>
    %680 = vector.shape_cast %679 : vector<1x1x16x16xf32> to vector<16x16xf32>
    %c0_331 = arith.constant 0 : index
    %c5_332 = arith.constant 5 : index
    %c1_333 = arith.constant 1 : index
    %c1_334 = arith.constant 1 : index
    %681 = vector.load %arg1[%c0_331, %c5_332, %c1_333, %c1_334] : memref<1x16x18x18xf32, #tpu.memory_space<vmem>>, vector<1x1x16x16xf32>
    %682 = vector.shape_cast %681 : vector<1x1x16x16xf32> to vector<16x16xf32>
    %c0_335 = arith.constant 0 : index
    %c5_336 = arith.constant 5 : index
    %c1_337 = arith.constant 1 : index
    %c2_338 = arith.constant 2 : index
    %683 = vector.load %arg1[%c0_335, %c5_336, %c1_337, %c2_338] : memref<1x16x18x18xf32, #tpu.memory_space<vmem>>, vector<1x1x16x16xf32>
    %684 = vector.shape_cast %683 : vector<1x1x16x16xf32> to vector<16x16xf32>
    %c0_339 = arith.constant 0 : index
    %c5_340 = arith.constant 5 : index
    %c2_341 = arith.constant 2 : index
    %c0_342 = arith.constant 0 : index
    %685 = vector.load %arg1[%c0_339, %c5_340, %c2_341, %c0_342] : memref<1x16x18x18xf32, #tpu.memory_space<vmem>>, vector<1x1x16x16xf32>
    %686 = vector.shape_cast %685 : vector<1x1x16x16xf32> to vector<16x16xf32>
    %c0_343 = arith.constant 0 : index
    %c5_344 = arith.constant 5 : index
    %c2_345 = arith.constant 2 : index
    %c1_346 = arith.constant 1 : index
    %687 = vector.load %arg1[%c0_343, %c5_344, %c2_345, %c1_346] : memref<1x16x18x18xf32, #tpu.memory_space<vmem>>, vector<1x1x16x16xf32>
    %688 = vector.shape_cast %687 : vector<1x1x16x16xf32> to vector<16x16xf32>
    %c0_347 = arith.constant 0 : index
    %c5_348 = arith.constant 5 : index
    %c2_349 = arith.constant 2 : index
    %c2_350 = arith.constant 2 : index
    %689 = vector.load %arg1[%c0_347, %c5_348, %c2_349, %c2_350] : memref<1x16x18x18xf32, #tpu.memory_space<vmem>>, vector<1x1x16x16xf32>
    %690 = vector.shape_cast %689 : vector<1x1x16x16xf32> to vector<16x16xf32>
    %c45 = arith.constant 45 : index
    %691 = memref.load %arg4[%c45] : memref<144xf32, #tpu.memory_space<smem>>
    %692 = vector.broadcast %691 : f32 to vector<16x16xf32>
    %693 = arith.mulf %674, %692 : vector<16x16xf32>
    %c46 = arith.constant 46 : index
    %694 = memref.load %arg4[%c46] : memref<144xf32, #tpu.memory_space<smem>>
    %695 = vector.broadcast %694 : f32 to vector<16x16xf32>
    %696 = arith.mulf %676, %695 : vector<16x16xf32>
    %697 = arith.addf %693, %696 : vector<16x16xf32>
    %c47 = arith.constant 47 : index
    %698 = memref.load %arg4[%c47] : memref<144xf32, #tpu.memory_space<smem>>
    %699 = vector.broadcast %698 : f32 to vector<16x16xf32>
    %700 = arith.mulf %678, %699 : vector<16x16xf32>
    %701 = arith.addf %697, %700 : vector<16x16xf32>
    %c48 = arith.constant 48 : index
    %702 = memref.load %arg4[%c48] : memref<144xf32, #tpu.memory_space<smem>>
    %703 = vector.broadcast %702 : f32 to vector<16x16xf32>
    %704 = arith.mulf %680, %703 : vector<16x16xf32>
    %705 = arith.addf %701, %704 : vector<16x16xf32>
    %c49 = arith.constant 49 : index
    %706 = memref.load %arg4[%c49] : memref<144xf32, #tpu.memory_space<smem>>
    %707 = vector.broadcast %706 : f32 to vector<16x16xf32>
    %708 = arith.mulf %682, %707 : vector<16x16xf32>
    %709 = arith.addf %705, %708 : vector<16x16xf32>
    %c50 = arith.constant 50 : index
    %710 = memref.load %arg4[%c50] : memref<144xf32, #tpu.memory_space<smem>>
    %711 = vector.broadcast %710 : f32 to vector<16x16xf32>
    %712 = arith.mulf %684, %711 : vector<16x16xf32>
    %713 = arith.addf %709, %712 : vector<16x16xf32>
    %c51 = arith.constant 51 : index
    %714 = memref.load %arg4[%c51] : memref<144xf32, #tpu.memory_space<smem>>
    %715 = vector.broadcast %714 : f32 to vector<16x16xf32>
    %716 = arith.mulf %686, %715 : vector<16x16xf32>
    %717 = arith.addf %713, %716 : vector<16x16xf32>
    %c52 = arith.constant 52 : index
    %718 = memref.load %arg4[%c52] : memref<144xf32, #tpu.memory_space<smem>>
    %719 = vector.broadcast %718 : f32 to vector<16x16xf32>
    %720 = arith.mulf %688, %719 : vector<16x16xf32>
    %721 = arith.addf %717, %720 : vector<16x16xf32>
    %c53 = arith.constant 53 : index
    %722 = memref.load %arg4[%c53] : memref<144xf32, #tpu.memory_space<smem>>
    %723 = vector.broadcast %722 : f32 to vector<16x16xf32>
    %724 = arith.mulf %690, %723 : vector<16x16xf32>
    %725 = arith.addf %721, %724 : vector<16x16xf32>
    %c5_351 = arith.constant 5 : index
    %726 = memref.load %arg7[%c5_351] : memref<16xf32, #tpu.memory_space<smem>>
    %727 = vector.broadcast %726 : f32 to vector<16x16xf32>
    %728 = arith.addf %725, %727 : vector<16x16xf32>
    %c0_352 = arith.constant 0 : index
    %c5_353 = arith.constant 5 : index
    %c0_354 = arith.constant 0 : index
    %c0_355 = arith.constant 0 : index
    %729 = vector.load %arg10[%c0_352, %c5_353, %c0_354, %c0_355] : memref<1x16x16x16xf32, #tpu.memory_space<vmem>>, vector<1x1x16x16xf32>
    %730 = vector.shape_cast %729 : vector<1x1x16x16xf32> to vector<16x16xf32>
    %731 = vector.shape_cast %728 : vector<16x16xf32> to vector<1x1x16x16xf32>
    tpu.vector_store %arg10[%c0_352, %c5_353, %c0_354, %c0_355], %731 {strides = array<i32>} : memref<1x16x16x16xf32, #tpu.memory_space<vmem>>, vector<1x1x16x16xf32>,
    %c45_356 = arith.constant 45 : index
    %732 = memref.load %arg2[%c45_356] : memref<144xf32, #tpu.memory_space<smem>>
    %733 = vector.broadcast %732 : f32 to vector<16x16xf32>
    %734 = arith.mulf %674, %733 : vector<16x16xf32>
    %c45_357 = arith.constant 45 : index
    %735 = memref.load %arg3[%c45_357] : memref<144xf32, #tpu.memory_space<smem>>
    %736 = vector.broadcast %735 : f32 to vector<16x16xf32>
    %737 = arith.mulf %674, %736 : vector<16x16xf32>
    %c46_358 = arith.constant 46 : index
    %738 = memref.load %arg2[%c46_358] : memref<144xf32, #tpu.memory_space<smem>>
    %739 = vector.broadcast %738 : f32 to vector<16x16xf32>
    %740 = arith.mulf %676, %739 : vector<16x16xf32>
    %741 = arith.addf %734, %740 : vector<16x16xf32>
    %c46_359 = arith.constant 46 : index
    %742 = memref.load %arg3[%c46_359] : memref<144xf32, #tpu.memory_space<smem>>
    %743 = vector.broadcast %742 : f32 to vector<16x16xf32>
    %744 = arith.mulf %676, %743 : vector<16x16xf32>
    %745 = arith.addf %737, %744 : vector<16x16xf32>
    %c47_360 = arith.constant 47 : index
    %746 = memref.load %arg2[%c47_360] : memref<144xf32, #tpu.memory_space<smem>>
    %747 = vector.broadcast %746 : f32 to vector<16x16xf32>
    %748 = arith.mulf %678, %747 : vector<16x16xf32>
    %749 = arith.addf %741, %748 : vector<16x16xf32>
    %c47_361 = arith.constant 47 : index
    %750 = memref.load %arg3[%c47_361] : memref<144xf32, #tpu.memory_space<smem>>
    %751 = vector.broadcast %750 : f32 to vector<16x16xf32>
    %752 = arith.mulf %678, %751 : vector<16x16xf32>
    %753 = arith.addf %745, %752 : vector<16x16xf32>
    %c48_362 = arith.constant 48 : index
    %754 = memref.load %arg2[%c48_362] : memref<144xf32, #tpu.memory_space<smem>>
    %755 = vector.broadcast %754 : f32 to vector<16x16xf32>
    %756 = arith.mulf %680, %755 : vector<16x16xf32>
    %757 = arith.addf %749, %756 : vector<16x16xf32>
    %c48_363 = arith.constant 48 : index
    %758 = memref.load %arg3[%c48_363] : memref<144xf32, #tpu.memory_space<smem>>
    %759 = vector.broadcast %758 : f32 to vector<16x16xf32>
    %760 = arith.mulf %680, %759 : vector<16x16xf32>
    %761 = arith.addf %753, %760 : vector<16x16xf32>
    %c49_364 = arith.constant 49 : index
    %762 = memref.load %arg2[%c49_364] : memref<144xf32, #tpu.memory_space<smem>>
    %763 = vector.broadcast %762 : f32 to vector<16x16xf32>
    %764 = arith.mulf %682, %763 : vector<16x16xf32>
    %765 = arith.addf %757, %764 : vector<16x16xf32>
    %c49_365 = arith.constant 49 : index
    %766 = memref.load %arg3[%c49_365] : memref<144xf32, #tpu.memory_space<smem>>
    %767 = vector.broadcast %766 : f32 to vector<16x16xf32>
    %768 = arith.mulf %682, %767 : vector<16x16xf32>
    %769 = arith.addf %761, %768 : vector<16x16xf32>
    %c50_366 = arith.constant 50 : index
    %770 = memref.load %arg2[%c50_366] : memref<144xf32, #tpu.memory_space<smem>>
    %771 = vector.broadcast %770 : f32 to vector<16x16xf32>
    %772 = arith.mulf %684, %771 : vector<16x16xf32>
    %773 = arith.addf %765, %772 : vector<16x16xf32>
    %c50_367 = arith.constant 50 : index
    %774 = memref.load %arg3[%c50_367] : memref<144xf32, #tpu.memory_space<smem>>
    %775 = vector.broadcast %774 : f32 to vector<16x16xf32>
    %776 = arith.mulf %684, %775 : vector<16x16xf32>
    %777 = arith.addf %769, %776 : vector<16x16xf32>
    %c51_368 = arith.constant 51 : index
    %778 = memref.load %arg2[%c51_368] : memref<144xf32, #tpu.memory_space<smem>>
    %779 = vector.broadcast %778 : f32 to vector<16x16xf32>
    %780 = arith.mulf %686, %779 : vector<16x16xf32>
    %781 = arith.addf %773, %780 : vector<16x16xf32>
    %c51_369 = arith.constant 51 : index
    %782 = memref.load %arg3[%c51_369] : memref<144xf32, #tpu.memory_space<smem>>
    %783 = vector.broadcast %782 : f32 to vector<16x16xf32>
    %784 = arith.mulf %686, %783 : vector<16x16xf32>
    %785 = arith.addf %777, %784 : vector<16x16xf32>
    %c52_370 = arith.constant 52 : index
    %786 = memref.load %arg2[%c52_370] : memref<144xf32, #tpu.memory_space<smem>>
    %787 = vector.broadcast %786 : f32 to vector<16x16xf32>
    %788 = arith.mulf %688, %787 : vector<16x16xf32>
    %789 = arith.addf %781, %788 : vector<16x16xf32>
    %c52_371 = arith.constant 52 : index
    %790 = memref.load %arg3[%c52_371] : memref<144xf32, #tpu.memory_space<smem>>
    %791 = vector.broadcast %790 : f32 to vector<16x16xf32>
    %792 = arith.mulf %688, %791 : vector<16x16xf32>
    %793 = arith.addf %785, %792 : vector<16x16xf32>
    %c53_372 = arith.constant 53 : index
    %794 = memref.load %arg2[%c53_372] : memref<144xf32, #tpu.memory_space<smem>>
    %795 = vector.broadcast %794 : f32 to vector<16x16xf32>
    %796 = arith.mulf %690, %795 : vector<16x16xf32>
    %797 = arith.addf %789, %796 : vector<16x16xf32>
    %c53_373 = arith.constant 53 : index
    %798 = memref.load %arg3[%c53_373] : memref<144xf32, #tpu.memory_space<smem>>
    %799 = vector.broadcast %798 : f32 to vector<16x16xf32>
    %800 = arith.mulf %690, %799 : vector<16x16xf32>
    %801 = arith.addf %793, %800 : vector<16x16xf32>
    %802 = arith.addf %668, %797 : vector<16x16xf32>
    %c2_374 = arith.constant 2 : index
    %803 = memref.load %arg5[%c2_374] : memref<8xf32, #tpu.memory_space<smem>>
    %804 = vector.broadcast %803 : f32 to vector<16x16xf32>
    %805 = arith.addf %802, %804 : vector<16x16xf32>
    %c0_375 = arith.constant 0 : index
    %c2_376 = arith.constant 2 : index
    %c0_377 = arith.constant 0 : index
    %c0_378 = arith.constant 0 : index
    %806 = vector.load %arg8[%c0_375, %c2_376, %c0_377, %c0_378] : memref<1x8x16x16xf32, #tpu.memory_space<vmem>>, vector<1x1x16x16xf32>
    %807 = vector.shape_cast %806 : vector<1x1x16x16xf32> to vector<16x16xf32>
    %808 = vector.shape_cast %805 : vector<16x16xf32> to vector<1x1x16x16xf32>
    tpu.vector_store %arg8[%c0_375, %c2_376, %c0_377, %c0_378], %808 {strides = array<i32>} : memref<1x8x16x16xf32, #tpu.memory_space<vmem>>, vector<1x1x16x16xf32>,
    %809 = arith.addf %672, %801 : vector<16x16xf32>
    %c2_379 = arith.constant 2 : index
    %810 = memref.load %arg6[%c2_379] : memref<8xf32, #tpu.memory_space<smem>>
    %811 = vector.broadcast %810 : f32 to vector<16x16xf32>
    %812 = arith.addf %809, %811 : vector<16x16xf32>
    %c0_380 = arith.constant 0 : index
    %c2_381 = arith.constant 2 : index
    %c0_382 = arith.constant 0 : index
    %c0_383 = arith.constant 0 : index
    %813 = vector.load %arg9[%c0_380, %c2_381, %c0_382, %c0_383] : memref<1x8x16x16xf32, #tpu.memory_space<vmem>>, vector<1x1x16x16xf32>
    %814 = vector.shape_cast %813 : vector<1x1x16x16xf32> to vector<16x16xf32>
    %815 = vector.shape_cast %812 : vector<16x16xf32> to vector<1x1x16x16xf32>
    tpu.vector_store %arg9[%c0_380, %c2_381, %c0_382, %c0_383], %815 {strides = array<i32>} : memref<1x8x16x16xf32, #tpu.memory_space<vmem>>, vector<1x1x16x16xf32>,
    %c0_384 = arith.constant 0 : index
    %c6_385 = arith.constant 6 : index
    %c0_386 = arith.constant 0 : index
    %c0_387 = arith.constant 0 : index
    %816 = vector.load %arg1[%c0_384, %c6_385, %c0_386, %c0_387] : memref<1x16x18x18xf32, #tpu.memory_space<vmem>>, vector<1x1x16x16xf32>
    %817 = vector.shape_cast %816 : vector<1x1x16x16xf32> to vector<16x16xf32>
    %c0_388 = arith.constant 0 : index
    %c6_389 = arith.constant 6 : index
    %c0_390 = arith.constant 0 : index
    %c1_391 = arith.constant 1 : index
    %818 = vector.load %arg1[%c0_388, %c6_389, %c0_390, %c1_391] : memref<1x16x18x18xf32, #tpu.memory_space<vmem>>, vector<1x1x16x16xf32>
    %819 = vector.shape_cast %818 : vector<1x1x16x16xf32> to vector<16x16xf32>
    %c0_392 = arith.constant 0 : index
    %c6_393 = arith.constant 6 : index
    %c0_394 = arith.constant 0 : index
    %c2_395 = arith.constant 2 : index
    %820 = vector.load %arg1[%c0_392, %c6_393, %c0_394, %c2_395] : memref<1x16x18x18xf32, #tpu.memory_space<vmem>>, vector<1x1x16x16xf32>
    %821 = vector.shape_cast %820 : vector<1x1x16x16xf32> to vector<16x16xf32>
    %c0_396 = arith.constant 0 : index
    %c6_397 = arith.constant 6 : index
    %c1_398 = arith.constant 1 : index
    %c0_399 = arith.constant 0 : index
    %822 = vector.load %arg1[%c0_396, %c6_397, %c1_398, %c0_399] : memref<1x16x18x18xf32, #tpu.memory_space<vmem>>, vector<1x1x16x16xf32>
    %823 = vector.shape_cast %822 : vector<1x1x16x16xf32> to vector<16x16xf32>
    %c0_400 = arith.constant 0 : index
    %c6_401 = arith.constant 6 : index
    %c1_402 = arith.constant 1 : index
    %c1_403 = arith.constant 1 : index
    %824 = vector.load %arg1[%c0_400, %c6_401, %c1_402, %c1_403] : memref<1x16x18x18xf32, #tpu.memory_space<vmem>>, vector<1x1x16x16xf32>
    %825 = vector.shape_cast %824 : vector<1x1x16x16xf32> to vector<16x16xf32>
    %c0_404 = arith.constant 0 : index
    %c6_405 = arith.constant 6 : index
    %c1_406 = arith.constant 1 : index
    %c2_407 = arith.constant 2 : index
    %826 = vector.load %arg1[%c0_404, %c6_405, %c1_406, %c2_407] : memref<1x16x18x18xf32, #tpu.memory_space<vmem>>, vector<1x1x16x16xf32>
    %827 = vector.shape_cast %826 : vector<1x1x16x16xf32> to vector<16x16xf32>
    %c0_408 = arith.constant 0 : index
    %c6_409 = arith.constant 6 : index
    %c2_410 = arith.constant 2 : index
    %c0_411 = arith.constant 0 : index
    %828 = vector.load %arg1[%c0_408, %c6_409, %c2_410, %c0_411] : memref<1x16x18x18xf32, #tpu.memory_space<vmem>>, vector<1x1x16x16xf32>
    %829 = vector.shape_cast %828 : vector<1x1x16x16xf32> to vector<16x16xf32>
    %c0_412 = arith.constant 0 : index
    %c6_413 = arith.constant 6 : index
    %c2_414 = arith.constant 2 : index
    %c1_415 = arith.constant 1 : index
    %830 = vector.load %arg1[%c0_412, %c6_413, %c2_414, %c1_415] : memref<1x16x18x18xf32, #tpu.memory_space<vmem>>, vector<1x1x16x16xf32>
    %831 = vector.shape_cast %830 : vector<1x1x16x16xf32> to vector<16x16xf32>
    %c0_416 = arith.constant 0 : index
    %c6_417 = arith.constant 6 : index
    %c2_418 = arith.constant 2 : index
    %c2_419 = arith.constant 2 : index
    %832 = vector.load %arg1[%c0_416, %c6_417, %c2_418, %c2_419] : memref<1x16x18x18xf32, #tpu.memory_space<vmem>>, vector<1x1x16x16xf32>
    %833 = vector.shape_cast %832 : vector<1x1x16x16xf32> to vector<16x16xf32>
    %c54 = arith.constant 54 : index
    %834 = memref.load %arg4[%c54] : memref<144xf32, #tpu.memory_space<smem>>
    %835 = vector.broadcast %834 : f32 to vector<16x16xf32>
    %836 = arith.mulf %817, %835 : vector<16x16xf32>
    %c55 = arith.constant 55 : index
    %837 = memref.load %arg4[%c55] : memref<144xf32, #tpu.memory_space<smem>>
    %838 = vector.broadcast %837 : f32 to vector<16x16xf32>
    %839 = arith.mulf %819, %838 : vector<16x16xf32>
    %840 = arith.addf %836, %839 : vector<16x16xf32>
    %c56 = arith.constant 56 : index
    %841 = memref.load %arg4[%c56] : memref<144xf32, #tpu.memory_space<smem>>
    %842 = vector.broadcast %841 : f32 to vector<16x16xf32>
    %843 = arith.mulf %821, %842 : vector<16x16xf32>
    %844 = arith.addf %840, %843 : vector<16x16xf32>
    %c57 = arith.constant 57 : index
    %845 = memref.load %arg4[%c57] : memref<144xf32, #tpu.memory_space<smem>>
    %846 = vector.broadcast %845 : f32 to vector<16x16xf32>
    %847 = arith.mulf %823, %846 : vector<16x16xf32>
    %848 = arith.addf %844, %847 : vector<16x16xf32>
    %c58 = arith.constant 58 : index
    %849 = memref.load %arg4[%c58] : memref<144xf32, #tpu.memory_space<smem>>
    %850 = vector.broadcast %849 : f32 to vector<16x16xf32>
    %851 = arith.mulf %825, %850 : vector<16x16xf32>
    %852 = arith.addf %848, %851 : vector<16x16xf32>
    %c59 = arith.constant 59 : index
    %853 = memref.load %arg4[%c59] : memref<144xf32, #tpu.memory_space<smem>>
    %854 = vector.broadcast %853 : f32 to vector<16x16xf32>
    %855 = arith.mulf %827, %854 : vector<16x16xf32>
    %856 = arith.addf %852, %855 : vector<16x16xf32>
    %c60 = arith.constant 60 : index
    %857 = memref.load %arg4[%c60] : memref<144xf32, #tpu.memory_space<smem>>
    %858 = vector.broadcast %857 : f32 to vector<16x16xf32>
    %859 = arith.mulf %829, %858 : vector<16x16xf32>
    %860 = arith.addf %856, %859 : vector<16x16xf32>
    %c61 = arith.constant 61 : index
    %861 = memref.load %arg4[%c61] : memref<144xf32, #tpu.memory_space<smem>>
    %862 = vector.broadcast %861 : f32 to vector<16x16xf32>
    %863 = arith.mulf %831, %862 : vector<16x16xf32>
    %864 = arith.addf %860, %863 : vector<16x16xf32>
    %c62 = arith.constant 62 : index
    %865 = memref.load %arg4[%c62] : memref<144xf32, #tpu.memory_space<smem>>
    %866 = vector.broadcast %865 : f32 to vector<16x16xf32>
    %867 = arith.mulf %833, %866 : vector<16x16xf32>
    %868 = arith.addf %864, %867 : vector<16x16xf32>
    %c6_420 = arith.constant 6 : index
    %869 = memref.load %arg7[%c6_420] : memref<16xf32, #tpu.memory_space<smem>>
    %870 = vector.broadcast %869 : f32 to vector<16x16xf32>
    %871 = arith.addf %868, %870 : vector<16x16xf32>
    %c0_421 = arith.constant 0 : index
    %c6_422 = arith.constant 6 : index
    %c0_423 = arith.constant 0 : index
    %c0_424 = arith.constant 0 : index
    %872 = vector.load %arg10[%c0_421, %c6_422, %c0_423, %c0_424] : memref<1x16x16x16xf32, #tpu.memory_space<vmem>>, vector<1x1x16x16xf32>
    %873 = vector.shape_cast %872 : vector<1x1x16x16xf32> to vector<16x16xf32>
    %874 = vector.shape_cast %871 : vector<16x16xf32> to vector<1x1x16x16xf32>
    tpu.vector_store %arg10[%c0_421, %c6_422, %c0_423, %c0_424], %874 {strides = array<i32>} : memref<1x16x16x16xf32, #tpu.memory_space<vmem>>, vector<1x1x16x16xf32>,
    %c54_425 = arith.constant 54 : index
    %875 = memref.load %arg2[%c54_425] : memref<144xf32, #tpu.memory_space<smem>>
    %876 = vector.broadcast %875 : f32 to vector<16x16xf32>
    %877 = arith.mulf %817, %876 : vector<16x16xf32>
    %c54_426 = arith.constant 54 : index
    %878 = memref.load %arg3[%c54_426] : memref<144xf32, #tpu.memory_space<smem>>
    %879 = vector.broadcast %878 : f32 to vector<16x16xf32>
    %880 = arith.mulf %817, %879 : vector<16x16xf32>
    %c55_427 = arith.constant 55 : index
    %881 = memref.load %arg2[%c55_427] : memref<144xf32, #tpu.memory_space<smem>>
    %882 = vector.broadcast %881 : f32 to vector<16x16xf32>
    %883 = arith.mulf %819, %882 : vector<16x16xf32>
    %884 = arith.addf %877, %883 : vector<16x16xf32>
    %c55_428 = arith.constant 55 : index
    %885 = memref.load %arg3[%c55_428] : memref<144xf32, #tpu.memory_space<smem>>
    %886 = vector.broadcast %885 : f32 to vector<16x16xf32>
    %887 = arith.mulf %819, %886 : vector<16x16xf32>
    %888 = arith.addf %880, %887 : vector<16x16xf32>
    %c56_429 = arith.constant 56 : index
    %889 = memref.load %arg2[%c56_429] : memref<144xf32, #tpu.memory_space<smem>>
    %890 = vector.broadcast %889 : f32 to vector<16x16xf32>
    %891 = arith.mulf %821, %890 : vector<16x16xf32>
    %892 = arith.addf %884, %891 : vector<16x16xf32>
    %c56_430 = arith.constant 56 : index
    %893 = memref.load %arg3[%c56_430] : memref<144xf32, #tpu.memory_space<smem>>
    %894 = vector.broadcast %893 : f32 to vector<16x16xf32>
    %895 = arith.mulf %821, %894 : vector<16x16xf32>
    %896 = arith.addf %888, %895 : vector<16x16xf32>
    %c57_431 = arith.constant 57 : index
    %897 = memref.load %arg2[%c57_431] : memref<144xf32, #tpu.memory_space<smem>>
    %898 = vector.broadcast %897 : f32 to vector<16x16xf32>
    %899 = arith.mulf %823, %898 : vector<16x16xf32>
    %900 = arith.addf %892, %899 : vector<16x16xf32>
    %c57_432 = arith.constant 57 : index
    %901 = memref.load %arg3[%c57_432] : memref<144xf32, #tpu.memory_space<smem>>
    %902 = vector.broadcast %901 : f32 to vector<16x16xf32>
    %903 = arith.mulf %823, %902 : vector<16x16xf32>
    %904 = arith.addf %896, %903 : vector<16x16xf32>
    %c58_433 = arith.constant 58 : index
    %905 = memref.load %arg2[%c58_433] : memref<144xf32, #tpu.memory_space<smem>>
    %906 = vector.broadcast %905 : f32 to vector<16x16xf32>
    %907 = arith.mulf %825, %906 : vector<16x16xf32>
    %908 = arith.addf %900, %907 : vector<16x16xf32>
    %c58_434 = arith.constant 58 : index
    %909 = memref.load %arg3[%c58_434] : memref<144xf32, #tpu.memory_space<smem>>
    %910 = vector.broadcast %909 : f32 to vector<16x16xf32>
    %911 = arith.mulf %825, %910 : vector<16x16xf32>
    %912 = arith.addf %904, %911 : vector<16x16xf32>
    %c59_435 = arith.constant 59 : index
    %913 = memref.load %arg2[%c59_435] : memref<144xf32, #tpu.memory_space<smem>>
    %914 = vector.broadcast %913 : f32 to vector<16x16xf32>
    %915 = arith.mulf %827, %914 : vector<16x16xf32>
    %916 = arith.addf %908, %915 : vector<16x16xf32>
    %c59_436 = arith.constant 59 : index
    %917 = memref.load %arg3[%c59_436] : memref<144xf32, #tpu.memory_space<smem>>
    %918 = vector.broadcast %917 : f32 to vector<16x16xf32>
    %919 = arith.mulf %827, %918 : vector<16x16xf32>
    %920 = arith.addf %912, %919 : vector<16x16xf32>
    %c60_437 = arith.constant 60 : index
    %921 = memref.load %arg2[%c60_437] : memref<144xf32, #tpu.memory_space<smem>>
    %922 = vector.broadcast %921 : f32 to vector<16x16xf32>
    %923 = arith.mulf %829, %922 : vector<16x16xf32>
    %924 = arith.addf %916, %923 : vector<16x16xf32>
    %c60_438 = arith.constant 60 : index
    %925 = memref.load %arg3[%c60_438] : memref<144xf32, #tpu.memory_space<smem>>
    %926 = vector.broadcast %925 : f32 to vector<16x16xf32>
    %927 = arith.mulf %829, %926 : vector<16x16xf32>
    %928 = arith.addf %920, %927 : vector<16x16xf32>
    %c61_439 = arith.constant 61 : index
    %929 = memref.load %arg2[%c61_439] : memref<144xf32, #tpu.memory_space<smem>>
    %930 = vector.broadcast %929 : f32 to vector<16x16xf32>
    %931 = arith.mulf %831, %930 : vector<16x16xf32>
    %932 = arith.addf %924, %931 : vector<16x16xf32>
    %c61_440 = arith.constant 61 : index
    %933 = memref.load %arg3[%c61_440] : memref<144xf32, #tpu.memory_space<smem>>
    %934 = vector.broadcast %933 : f32 to vector<16x16xf32>
    %935 = arith.mulf %831, %934 : vector<16x16xf32>
    %936 = arith.addf %928, %935 : vector<16x16xf32>
    %c62_441 = arith.constant 62 : index
    %937 = memref.load %arg2[%c62_441] : memref<144xf32, #tpu.memory_space<smem>>
    %938 = vector.broadcast %937 : f32 to vector<16x16xf32>
    %939 = arith.mulf %833, %938 : vector<16x16xf32>
    %940 = arith.addf %932, %939 : vector<16x16xf32>
    %c62_442 = arith.constant 62 : index
    %941 = memref.load %arg3[%c62_442] : memref<144xf32, #tpu.memory_space<smem>>
    %942 = vector.broadcast %941 : f32 to vector<16x16xf32>
    %943 = arith.mulf %833, %942 : vector<16x16xf32>
    %944 = arith.addf %936, %943 : vector<16x16xf32>
    %c0_443 = arith.constant 0 : index
    %c7_444 = arith.constant 7 : index
    %c0_445 = arith.constant 0 : index
    %c0_446 = arith.constant 0 : index
    %945 = vector.load %arg1[%c0_443, %c7_444, %c0_445, %c0_446] : memref<1x16x18x18xf32, #tpu.memory_space<vmem>>, vector<1x1x16x16xf32>
    %946 = vector.shape_cast %945 : vector<1x1x16x16xf32> to vector<16x16xf32>
    %c0_447 = arith.constant 0 : index
    %c7_448 = arith.constant 7 : index
    %c0_449 = arith.constant 0 : index
    %c1_450 = arith.constant 1 : index
    %947 = vector.load %arg1[%c0_447, %c7_448, %c0_449, %c1_450] : memref<1x16x18x18xf32, #tpu.memory_space<vmem>>, vector<1x1x16x16xf32>
    %948 = vector.shape_cast %947 : vector<1x1x16x16xf32> to vector<16x16xf32>
    %c0_451 = arith.constant 0 : index
    %c7_452 = arith.constant 7 : index
    %c0_453 = arith.constant 0 : index
    %c2_454 = arith.constant 2 : index
    %949 = vector.load %arg1[%c0_451, %c7_452, %c0_453, %c2_454] : memref<1x16x18x18xf32, #tpu.memory_space<vmem>>, vector<1x1x16x16xf32>
    %950 = vector.shape_cast %949 : vector<1x1x16x16xf32> to vector<16x16xf32>
    %c0_455 = arith.constant 0 : index
    %c7_456 = arith.constant 7 : index
    %c1_457 = arith.constant 1 : index
    %c0_458 = arith.constant 0 : index
    %951 = vector.load %arg1[%c0_455, %c7_456, %c1_457, %c0_458] : memref<1x16x18x18xf32, #tpu.memory_space<vmem>>, vector<1x1x16x16xf32>
    %952 = vector.shape_cast %951 : vector<1x1x16x16xf32> to vector<16x16xf32>
    %c0_459 = arith.constant 0 : index
    %c7_460 = arith.constant 7 : index
    %c1_461 = arith.constant 1 : index
    %c1_462 = arith.constant 1 : index
    %953 = vector.load %arg1[%c0_459, %c7_460, %c1_461, %c1_462] : memref<1x16x18x18xf32, #tpu.memory_space<vmem>>, vector<1x1x16x16xf32>
    %954 = vector.shape_cast %953 : vector<1x1x16x16xf32> to vector<16x16xf32>
    %c0_463 = arith.constant 0 : index
    %c7_464 = arith.constant 7 : index
    %c1_465 = arith.constant 1 : index
    %c2_466 = arith.constant 2 : index
    %955 = vector.load %arg1[%c0_463, %c7_464, %c1_465, %c2_466] : memref<1x16x18x18xf32, #tpu.memory_space<vmem>>, vector<1x1x16x16xf32>
    %956 = vector.shape_cast %955 : vector<1x1x16x16xf32> to vector<16x16xf32>
    %c0_467 = arith.constant 0 : index
    %c7_468 = arith.constant 7 : index
    %c2_469 = arith.constant 2 : index
    %c0_470 = arith.constant 0 : index
    %957 = vector.load %arg1[%c0_467, %c7_468, %c2_469, %c0_470] : memref<1x16x18x18xf32, #tpu.memory_space<vmem>>, vector<1x1x16x16xf32>
    %958 = vector.shape_cast %957 : vector<1x1x16x16xf32> to vector<16x16xf32>
    %c0_471 = arith.constant 0 : index
    %c7_472 = arith.constant 7 : index
    %c2_473 = arith.constant 2 : index
    %c1_474 = arith.constant 1 : index
    %959 = vector.load %arg1[%c0_471, %c7_472, %c2_473, %c1_474] : memref<1x16x18x18xf32, #tpu.memory_space<vmem>>, vector<1x1x16x16xf32>
    %960 = vector.shape_cast %959 : vector<1x1x16x16xf32> to vector<16x16xf32>
    %c0_475 = arith.constant 0 : index
    %c7_476 = arith.constant 7 : index
    %c2_477 = arith.constant 2 : index
    %c2_478 = arith.constant 2 : index
    %961 = vector.load %arg1[%c0_475, %c7_476, %c2_477, %c2_478] : memref<1x16x18x18xf32, #tpu.memory_space<vmem>>, vector<1x1x16x16xf32>
    %962 = vector.shape_cast %961 : vector<1x1x16x16xf32> to vector<16x16xf32>
    %c63 = arith.constant 63 : index
    %963 = memref.load %arg4[%c63] : memref<144xf32, #tpu.memory_space<smem>>
    %964 = vector.broadcast %963 : f32 to vector<16x16xf32>
    %965 = arith.mulf %946, %964 : vector<16x16xf32>
    %c64 = arith.constant 64 : index
    %966 = memref.load %arg4[%c64] : memref<144xf32, #tpu.memory_space<smem>>
    %967 = vector.broadcast %966 : f32 to vector<16x16xf32>
    %968 = arith.mulf %948, %967 : vector<16x16xf32>
    %969 = arith.addf %965, %968 : vector<16x16xf32>
    %c65 = arith.constant 65 : index
    %970 = memref.load %arg4[%c65] : memref<144xf32, #tpu.memory_space<smem>>
    %971 = vector.broadcast %970 : f32 to vector<16x16xf32>
    %972 = arith.mulf %950, %971 : vector<16x16xf32>
    %973 = arith.addf %969, %972 : vector<16x16xf32>
    %c66 = arith.constant 66 : index
    %974 = memref.load %arg4[%c66] : memref<144xf32, #tpu.memory_space<smem>>
    %975 = vector.broadcast %974 : f32 to vector<16x16xf32>
    %976 = arith.mulf %952, %975 : vector<16x16xf32>
    %977 = arith.addf %973, %976 : vector<16x16xf32>
    %c67 = arith.constant 67 : index
    %978 = memref.load %arg4[%c67] : memref<144xf32, #tpu.memory_space<smem>>
    %979 = vector.broadcast %978 : f32 to vector<16x16xf32>
    %980 = arith.mulf %954, %979 : vector<16x16xf32>
    %981 = arith.addf %977, %980 : vector<16x16xf32>
    %c68 = arith.constant 68 : index
    %982 = memref.load %arg4[%c68] : memref<144xf32, #tpu.memory_space<smem>>
    %983 = vector.broadcast %982 : f32 to vector<16x16xf32>
    %984 = arith.mulf %956, %983 : vector<16x16xf32>
    %985 = arith.addf %981, %984 : vector<16x16xf32>
    %c69 = arith.constant 69 : index
    %986 = memref.load %arg4[%c69] : memref<144xf32, #tpu.memory_space<smem>>
    %987 = vector.broadcast %986 : f32 to vector<16x16xf32>
    %988 = arith.mulf %958, %987 : vector<16x16xf32>
    %989 = arith.addf %985, %988 : vector<16x16xf32>
    %c70 = arith.constant 70 : index
    %990 = memref.load %arg4[%c70] : memref<144xf32, #tpu.memory_space<smem>>
    %991 = vector.broadcast %990 : f32 to vector<16x16xf32>
    %992 = arith.mulf %960, %991 : vector<16x16xf32>
    %993 = arith.addf %989, %992 : vector<16x16xf32>
    %c71 = arith.constant 71 : index
    %994 = memref.load %arg4[%c71] : memref<144xf32, #tpu.memory_space<smem>>
    %995 = vector.broadcast %994 : f32 to vector<16x16xf32>
    %996 = arith.mulf %962, %995 : vector<16x16xf32>
    %997 = arith.addf %993, %996 : vector<16x16xf32>
    %c7_479 = arith.constant 7 : index
    %998 = memref.load %arg7[%c7_479] : memref<16xf32, #tpu.memory_space<smem>>
    %999 = vector.broadcast %998 : f32 to vector<16x16xf32>
    %1000 = arith.addf %997, %999 : vector<16x16xf32>
    %c0_480 = arith.constant 0 : index
    %c7_481 = arith.constant 7 : index
    %c0_482 = arith.constant 0 : index
    %c0_483 = arith.constant 0 : index
    %1001 = vector.load %arg10[%c0_480, %c7_481, %c0_482, %c0_483] : memref<1x16x16x16xf32, #tpu.memory_space<vmem>>, vector<1x1x16x16xf32>
    %1002 = vector.shape_cast %1001 : vector<1x1x16x16xf32> to vector<16x16xf32>
    %1003 = vector.shape_cast %1000 : vector<16x16xf32> to vector<1x1x16x16xf32>
    tpu.vector_store %arg10[%c0_480, %c7_481, %c0_482, %c0_483], %1003 {strides = array<i32>} : memref<1x16x16x16xf32, #tpu.memory_space<vmem>>, vector<1x1x16x16xf32>,
    %c63_484 = arith.constant 63 : index
    %1004 = memref.load %arg2[%c63_484] : memref<144xf32, #tpu.memory_space<smem>>
    %1005 = vector.broadcast %1004 : f32 to vector<16x16xf32>
    %1006 = arith.mulf %946, %1005 : vector<16x16xf32>
    %c63_485 = arith.constant 63 : index
    %1007 = memref.load %arg3[%c63_485] : memref<144xf32, #tpu.memory_space<smem>>
    %1008 = vector.broadcast %1007 : f32 to vector<16x16xf32>
    %1009 = arith.mulf %946, %1008 : vector<16x16xf32>
    %c64_486 = arith.constant 64 : index
    %1010 = memref.load %arg2[%c64_486] : memref<144xf32, #tpu.memory_space<smem>>
    %1011 = vector.broadcast %1010 : f32 to vector<16x16xf32>
    %1012 = arith.mulf %948, %1011 : vector<16x16xf32>
    %1013 = arith.addf %1006, %1012 : vector<16x16xf32>
    %c64_487 = arith.constant 64 : index
    %1014 = memref.load %arg3[%c64_487] : memref<144xf32, #tpu.memory_space<smem>>
    %1015 = vector.broadcast %1014 : f32 to vector<16x16xf32>
    %1016 = arith.mulf %948, %1015 : vector<16x16xf32>
    %1017 = arith.addf %1009, %1016 : vector<16x16xf32>
    %c65_488 = arith.constant 65 : index
    %1018 = memref.load %arg2[%c65_488] : memref<144xf32, #tpu.memory_space<smem>>
    %1019 = vector.broadcast %1018 : f32 to vector<16x16xf32>
    %1020 = arith.mulf %950, %1019 : vector<16x16xf32>
    %1021 = arith.addf %1013, %1020 : vector<16x16xf32>
    %c65_489 = arith.constant 65 : index
    %1022 = memref.load %arg3[%c65_489] : memref<144xf32, #tpu.memory_space<smem>>
    %1023 = vector.broadcast %1022 : f32 to vector<16x16xf32>
    %1024 = arith.mulf %950, %1023 : vector<16x16xf32>
    %1025 = arith.addf %1017, %1024 : vector<16x16xf32>
    %c66_490 = arith.constant 66 : index
    %1026 = memref.load %arg2[%c66_490] : memref<144xf32, #tpu.memory_space<smem>>
    %1027 = vector.broadcast %1026 : f32 to vector<16x16xf32>
    %1028 = arith.mulf %952, %1027 : vector<16x16xf32>
    %1029 = arith.addf %1021, %1028 : vector<16x16xf32>
    %c66_491 = arith.constant 66 : index
    %1030 = memref.load %arg3[%c66_491] : memref<144xf32, #tpu.memory_space<smem>>
    %1031 = vector.broadcast %1030 : f32 to vector<16x16xf32>
    %1032 = arith.mulf %952, %1031 : vector<16x16xf32>
    %1033 = arith.addf %1025, %1032 : vector<16x16xf32>
    %c67_492 = arith.constant 67 : index
    %1034 = memref.load %arg2[%c67_492] : memref<144xf32, #tpu.memory_space<smem>>
    %1035 = vector.broadcast %1034 : f32 to vector<16x16xf32>
    %1036 = arith.mulf %954, %1035 : vector<16x16xf32>
    %1037 = arith.addf %1029, %1036 : vector<16x16xf32>
    %c67_493 = arith.constant 67 : index
    %1038 = memref.load %arg3[%c67_493] : memref<144xf32, #tpu.memory_space<smem>>
    %1039 = vector.broadcast %1038 : f32 to vector<16x16xf32>
    %1040 = arith.mulf %954, %1039 : vector<16x16xf32>
    %1041 = arith.addf %1033, %1040 : vector<16x16xf32>
    %c68_494 = arith.constant 68 : index
    %1042 = memref.load %arg2[%c68_494] : memref<144xf32, #tpu.memory_space<smem>>
    %1043 = vector.broadcast %1042 : f32 to vector<16x16xf32>
    %1044 = arith.mulf %956, %1043 : vector<16x16xf32>
    %1045 = arith.addf %1037, %1044 : vector<16x16xf32>
    %c68_495 = arith.constant 68 : index
    %1046 = memref.load %arg3[%c68_495] : memref<144xf32, #tpu.memory_space<smem>>
    %1047 = vector.broadcast %1046 : f32 to vector<16x16xf32>
    %1048 = arith.mulf %956, %1047 : vector<16x16xf32>
    %1049 = arith.addf %1041, %1048 : vector<16x16xf32>
    %c69_496 = arith.constant 69 : index
    %1050 = memref.load %arg2[%c69_496] : memref<144xf32, #tpu.memory_space<smem>>
    %1051 = vector.broadcast %1050 : f32 to vector<16x16xf32>
    %1052 = arith.mulf %958, %1051 : vector<16x16xf32>
    %1053 = arith.addf %1045, %1052 : vector<16x16xf32>
    %c69_497 = arith.constant 69 : index
    %1054 = memref.load %arg3[%c69_497] : memref<144xf32, #tpu.memory_space<smem>>
    %1055 = vector.broadcast %1054 : f32 to vector<16x16xf32>
    %1056 = arith.mulf %958, %1055 : vector<16x16xf32>
    %1057 = arith.addf %1049, %1056 : vector<16x16xf32>
    %c70_498 = arith.constant 70 : index
    %1058 = memref.load %arg2[%c70_498] : memref<144xf32, #tpu.memory_space<smem>>
    %1059 = vector.broadcast %1058 : f32 to vector<16x16xf32>
    %1060 = arith.mulf %960, %1059 : vector<16x16xf32>
    %1061 = arith.addf %1053, %1060 : vector<16x16xf32>
    %c70_499 = arith.constant 70 : index
    %1062 = memref.load %arg3[%c70_499] : memref<144xf32, #tpu.memory_space<smem>>
    %1063 = vector.broadcast %1062 : f32 to vector<16x16xf32>
    %1064 = arith.mulf %960, %1063 : vector<16x16xf32>
    %1065 = arith.addf %1057, %1064 : vector<16x16xf32>
    %c71_500 = arith.constant 71 : index
    %1066 = memref.load %arg2[%c71_500] : memref<144xf32, #tpu.memory_space<smem>>
    %1067 = vector.broadcast %1066 : f32 to vector<16x16xf32>
    %1068 = arith.mulf %962, %1067 : vector<16x16xf32>
    %1069 = arith.addf %1061, %1068 : vector<16x16xf32>
    %c71_501 = arith.constant 71 : index
    %1070 = memref.load %arg3[%c71_501] : memref<144xf32, #tpu.memory_space<smem>>
    %1071 = vector.broadcast %1070 : f32 to vector<16x16xf32>
    %1072 = arith.mulf %962, %1071 : vector<16x16xf32>
    %1073 = arith.addf %1065, %1072 : vector<16x16xf32>
    %1074 = arith.addf %940, %1069 : vector<16x16xf32>
    %c3_502 = arith.constant 3 : index
    %1075 = memref.load %arg5[%c3_502] : memref<8xf32, #tpu.memory_space<smem>>
    %1076 = vector.broadcast %1075 : f32 to vector<16x16xf32>
    %1077 = arith.addf %1074, %1076 : vector<16x16xf32>
    %c0_503 = arith.constant 0 : index
    %c3_504 = arith.constant 3 : index
    %c0_505 = arith.constant 0 : index
    %c0_506 = arith.constant 0 : index
    %1078 = vector.load %arg8[%c0_503, %c3_504, %c0_505, %c0_506] : memref<1x8x16x16xf32, #tpu.memory_space<vmem>>, vector<1x1x16x16xf32>
    %1079 = vector.shape_cast %1078 : vector<1x1x16x16xf32> to vector<16x16xf32>
    %1080 = vector.shape_cast %1077 : vector<16x16xf32> to vector<1x1x16x16xf32>
    tpu.vector_store %arg8[%c0_503, %c3_504, %c0_505, %c0_506], %1080 {strides = array<i32>} : memref<1x8x16x16xf32, #tpu.memory_space<vmem>>, vector<1x1x16x16xf32>,
    %1081 = arith.addf %944, %1073 : vector<16x16xf32>
    %c3_507 = arith.constant 3 : index
    %1082 = memref.load %arg6[%c3_507] : memref<8xf32, #tpu.memory_space<smem>>
    %1083 = vector.broadcast %1082 : f32 to vector<16x16xf32>
    %1084 = arith.addf %1081, %1083 : vector<16x16xf32>
    %c0_508 = arith.constant 0 : index
    %c3_509 = arith.constant 3 : index
    %c0_510 = arith.constant 0 : index
    %c0_511 = arith.constant 0 : index
    %1085 = vector.load %arg9[%c0_508, %c3_509, %c0_510, %c0_511] : memref<1x8x16x16xf32, #tpu.memory_space<vmem>>, vector<1x1x16x16xf32>
    %1086 = vector.shape_cast %1085 : vector<1x1x16x16xf32> to vector<16x16xf32>
    %1087 = vector.shape_cast %1084 : vector<16x16xf32> to vector<1x1x16x16xf32>
    tpu.vector_store %arg9[%c0_508, %c3_509, %c0_510, %c0_511], %1087 {strides = array<i32>} : memref<1x8x16x16xf32, #tpu.memory_space<vmem>>, vector<1x1x16x16xf32>,
    %c0_512 = arith.constant 0 : index
    %c8_513 = arith.constant 8 : index
    %c0_514 = arith.constant 0 : index
    %c0_515 = arith.constant 0 : index
    %1088 = vector.load %arg1[%c0_512, %c8_513, %c0_514, %c0_515] : memref<1x16x18x18xf32, #tpu.memory_space<vmem>>, vector<1x1x16x16xf32>
    %1089 = vector.shape_cast %1088 : vector<1x1x16x16xf32> to vector<16x16xf32>
    %c0_516 = arith.constant 0 : index
    %c8_517 = arith.constant 8 : index
    %c0_518 = arith.constant 0 : index
    %c1_519 = arith.constant 1 : index
    %1090 = vector.load %arg1[%c0_516, %c8_517, %c0_518, %c1_519] : memref<1x16x18x18xf32, #tpu.memory_space<vmem>>, vector<1x1x16x16xf32>
    %1091 = vector.shape_cast %1090 : vector<1x1x16x16xf32> to vector<16x16xf32>
    %c0_520 = arith.constant 0 : index
    %c8_521 = arith.constant 8 : index
    %c0_522 = arith.constant 0 : index
    %c2_523 = arith.constant 2 : index
    %1092 = vector.load %arg1[%c0_520, %c8_521, %c0_522, %c2_523] : memref<1x16x18x18xf32, #tpu.memory_space<vmem>>, vector<1x1x16x16xf32>
    %1093 = vector.shape_cast %1092 : vector<1x1x16x16xf32> to vector<16x16xf32>
    %c0_524 = arith.constant 0 : index
    %c8_525 = arith.constant 8 : index
    %c1_526 = arith.constant 1 : index
    %c0_527 = arith.constant 0 : index
    %1094 = vector.load %arg1[%c0_524, %c8_525, %c1_526, %c0_527] : memref<1x16x18x18xf32, #tpu.memory_space<vmem>>, vector<1x1x16x16xf32>
    %1095 = vector.shape_cast %1094 : vector<1x1x16x16xf32> to vector<16x16xf32>
    %c0_528 = arith.constant 0 : index
    %c8_529 = arith.constant 8 : index
    %c1_530 = arith.constant 1 : index
    %c1_531 = arith.constant 1 : index
    %1096 = vector.load %arg1[%c0_528, %c8_529, %c1_530, %c1_531] : memref<1x16x18x18xf32, #tpu.memory_space<vmem>>, vector<1x1x16x16xf32>
    %1097 = vector.shape_cast %1096 : vector<1x1x16x16xf32> to vector<16x16xf32>
    %c0_532 = arith.constant 0 : index
    %c8_533 = arith.constant 8 : index
    %c1_534 = arith.constant 1 : index
    %c2_535 = arith.constant 2 : index
    %1098 = vector.load %arg1[%c0_532, %c8_533, %c1_534, %c2_535] : memref<1x16x18x18xf32, #tpu.memory_space<vmem>>, vector<1x1x16x16xf32>
    %1099 = vector.shape_cast %1098 : vector<1x1x16x16xf32> to vector<16x16xf32>
    %c0_536 = arith.constant 0 : index
    %c8_537 = arith.constant 8 : index
    %c2_538 = arith.constant 2 : index
    %c0_539 = arith.constant 0 : index
    %1100 = vector.load %arg1[%c0_536, %c8_537, %c2_538, %c0_539] : memref<1x16x18x18xf32, #tpu.memory_space<vmem>>, vector<1x1x16x16xf32>
    %1101 = vector.shape_cast %1100 : vector<1x1x16x16xf32> to vector<16x16xf32>
    %c0_540 = arith.constant 0 : index
    %c8_541 = arith.constant 8 : index
    %c2_542 = arith.constant 2 : index
    %c1_543 = arith.constant 1 : index
    %1102 = vector.load %arg1[%c0_540, %c8_541, %c2_542, %c1_543] : memref<1x16x18x18xf32, #tpu.memory_space<vmem>>, vector<1x1x16x16xf32>
    %1103 = vector.shape_cast %1102 : vector<1x1x16x16xf32> to vector<16x16xf32>
    %c0_544 = arith.constant 0 : index
    %c8_545 = arith.constant 8 : index
    %c2_546 = arith.constant 2 : index
    %c2_547 = arith.constant 2 : index
    %1104 = vector.load %arg1[%c0_544, %c8_545, %c2_546, %c2_547] : memref<1x16x18x18xf32, #tpu.memory_space<vmem>>, vector<1x1x16x16xf32>
    %1105 = vector.shape_cast %1104 : vector<1x1x16x16xf32> to vector<16x16xf32>
    %c72 = arith.constant 72 : index
    %1106 = memref.load %arg4[%c72] : memref<144xf32, #tpu.memory_space<smem>>
    %1107 = vector.broadcast %1106 : f32 to vector<16x16xf32>
    %1108 = arith.mulf %1089, %1107 : vector<16x16xf32>
    %c73 = arith.constant 73 : index
    %1109 = memref.load %arg4[%c73] : memref<144xf32, #tpu.memory_space<smem>>
    %1110 = vector.broadcast %1109 : f32 to vector<16x16xf32>
    %1111 = arith.mulf %1091, %1110 : vector<16x16xf32>
    %1112 = arith.addf %1108, %1111 : vector<16x16xf32>
    %c74 = arith.constant 74 : index
    %1113 = memref.load %arg4[%c74] : memref<144xf32, #tpu.memory_space<smem>>
    %1114 = vector.broadcast %1113 : f32 to vector<16x16xf32>
    %1115 = arith.mulf %1093, %1114 : vector<16x16xf32>
    %1116 = arith.addf %1112, %1115 : vector<16x16xf32>
    %c75 = arith.constant 75 : index
    %1117 = memref.load %arg4[%c75] : memref<144xf32, #tpu.memory_space<smem>>
    %1118 = vector.broadcast %1117 : f32 to vector<16x16xf32>
    %1119 = arith.mulf %1095, %1118 : vector<16x16xf32>
    %1120 = arith.addf %1116, %1119 : vector<16x16xf32>
    %c76 = arith.constant 76 : index
    %1121 = memref.load %arg4[%c76] : memref<144xf32, #tpu.memory_space<smem>>
    %1122 = vector.broadcast %1121 : f32 to vector<16x16xf32>
    %1123 = arith.mulf %1097, %1122 : vector<16x16xf32>
    %1124 = arith.addf %1120, %1123 : vector<16x16xf32>
    %c77 = arith.constant 77 : index
    %1125 = memref.load %arg4[%c77] : memref<144xf32, #tpu.memory_space<smem>>
    %1126 = vector.broadcast %1125 : f32 to vector<16x16xf32>
    %1127 = arith.mulf %1099, %1126 : vector<16x16xf32>
    %1128 = arith.addf %1124, %1127 : vector<16x16xf32>
    %c78 = arith.constant 78 : index
    %1129 = memref.load %arg4[%c78] : memref<144xf32, #tpu.memory_space<smem>>
    %1130 = vector.broadcast %1129 : f32 to vector<16x16xf32>
    %1131 = arith.mulf %1101, %1130 : vector<16x16xf32>
    %1132 = arith.addf %1128, %1131 : vector<16x16xf32>
    %c79 = arith.constant 79 : index
    %1133 = memref.load %arg4[%c79] : memref<144xf32, #tpu.memory_space<smem>>
    %1134 = vector.broadcast %1133 : f32 to vector<16x16xf32>
    %1135 = arith.mulf %1103, %1134 : vector<16x16xf32>
    %1136 = arith.addf %1132, %1135 : vector<16x16xf32>
    %c80 = arith.constant 80 : index
    %1137 = memref.load %arg4[%c80] : memref<144xf32, #tpu.memory_space<smem>>
    %1138 = vector.broadcast %1137 : f32 to vector<16x16xf32>
    %1139 = arith.mulf %1105, %1138 : vector<16x16xf32>
    %1140 = arith.addf %1136, %1139 : vector<16x16xf32>
    %c8_548 = arith.constant 8 : index
    %1141 = memref.load %arg7[%c8_548] : memref<16xf32, #tpu.memory_space<smem>>
    %1142 = vector.broadcast %1141 : f32 to vector<16x16xf32>
    %1143 = arith.addf %1140, %1142 : vector<16x16xf32>
    %c0_549 = arith.constant 0 : index
    %c8_550 = arith.constant 8 : index
    %c0_551 = arith.constant 0 : index
    %c0_552 = arith.constant 0 : index
    %1144 = vector.load %arg10[%c0_549, %c8_550, %c0_551, %c0_552] : memref<1x16x16x16xf32, #tpu.memory_space<vmem>>, vector<1x1x16x16xf32>
    %1145 = vector.shape_cast %1144 : vector<1x1x16x16xf32> to vector<16x16xf32>
    %1146 = vector.shape_cast %1143 : vector<16x16xf32> to vector<1x1x16x16xf32>
    tpu.vector_store %arg10[%c0_549, %c8_550, %c0_551, %c0_552], %1146 {strides = array<i32>} : memref<1x16x16x16xf32, #tpu.memory_space<vmem>>, vector<1x1x16x16xf32>,
    %c72_553 = arith.constant 72 : index
    %1147 = memref.load %arg2[%c72_553] : memref<144xf32, #tpu.memory_space<smem>>
    %1148 = vector.broadcast %1147 : f32 to vector<16x16xf32>
    %1149 = arith.mulf %1089, %1148 : vector<16x16xf32>
    %c72_554 = arith.constant 72 : index
    %1150 = memref.load %arg3[%c72_554] : memref<144xf32, #tpu.memory_space<smem>>
    %1151 = vector.broadcast %1150 : f32 to vector<16x16xf32>
    %1152 = arith.mulf %1089, %1151 : vector<16x16xf32>
    %c73_555 = arith.constant 73 : index
    %1153 = memref.load %arg2[%c73_555] : memref<144xf32, #tpu.memory_space<smem>>
    %1154 = vector.broadcast %1153 : f32 to vector<16x16xf32>
    %1155 = arith.mulf %1091, %1154 : vector<16x16xf32>
    %1156 = arith.addf %1149, %1155 : vector<16x16xf32>
    %c73_556 = arith.constant 73 : index
    %1157 = memref.load %arg3[%c73_556] : memref<144xf32, #tpu.memory_space<smem>>
    %1158 = vector.broadcast %1157 : f32 to vector<16x16xf32>
    %1159 = arith.mulf %1091, %1158 : vector<16x16xf32>
    %1160 = arith.addf %1152, %1159 : vector<16x16xf32>
    %c74_557 = arith.constant 74 : index
    %1161 = memref.load %arg2[%c74_557] : memref<144xf32, #tpu.memory_space<smem>>
    %1162 = vector.broadcast %1161 : f32 to vector<16x16xf32>
    %1163 = arith.mulf %1093, %1162 : vector<16x16xf32>
    %1164 = arith.addf %1156, %1163 : vector<16x16xf32>
    %c74_558 = arith.constant 74 : index
    %1165 = memref.load %arg3[%c74_558] : memref<144xf32, #tpu.memory_space<smem>>
    %1166 = vector.broadcast %1165 : f32 to vector<16x16xf32>
    %1167 = arith.mulf %1093, %1166 : vector<16x16xf32>
    %1168 = arith.addf %1160, %1167 : vector<16x16xf32>
    %c75_559 = arith.constant 75 : index
    %1169 = memref.load %arg2[%c75_559] : memref<144xf32, #tpu.memory_space<smem>>
    %1170 = vector.broadcast %1169 : f32 to vector<16x16xf32>
    %1171 = arith.mulf %1095, %1170 : vector<16x16xf32>
    %1172 = arith.addf %1164, %1171 : vector<16x16xf32>
    %c75_560 = arith.constant 75 : index
    %1173 = memref.load %arg3[%c75_560] : memref<144xf32, #tpu.memory_space<smem>>
    %1174 = vector.broadcast %1173 : f32 to vector<16x16xf32>
    %1175 = arith.mulf %1095, %1174 : vector<16x16xf32>
    %1176 = arith.addf %1168, %1175 : vector<16x16xf32>
    %c76_561 = arith.constant 76 : index
    %1177 = memref.load %arg2[%c76_561] : memref<144xf32, #tpu.memory_space<smem>>
    %1178 = vector.broadcast %1177 : f32 to vector<16x16xf32>
    %1179 = arith.mulf %1097, %1178 : vector<16x16xf32>
    %1180 = arith.addf %1172, %1179 : vector<16x16xf32>
    %c76_562 = arith.constant 76 : index
    %1181 = memref.load %arg3[%c76_562] : memref<144xf32, #tpu.memory_space<smem>>
    %1182 = vector.broadcast %1181 : f32 to vector<16x16xf32>
    %1183 = arith.mulf %1097, %1182 : vector<16x16xf32>
    %1184 = arith.addf %1176, %1183 : vector<16x16xf32>
    %c77_563 = arith.constant 77 : index
    %1185 = memref.load %arg2[%c77_563] : memref<144xf32, #tpu.memory_space<smem>>
    %1186 = vector.broadcast %1185 : f32 to vector<16x16xf32>
    %1187 = arith.mulf %1099, %1186 : vector<16x16xf32>
    %1188 = arith.addf %1180, %1187 : vector<16x16xf32>
    %c77_564 = arith.constant 77 : index
    %1189 = memref.load %arg3[%c77_564] : memref<144xf32, #tpu.memory_space<smem>>
    %1190 = vector.broadcast %1189 : f32 to vector<16x16xf32>
    %1191 = arith.mulf %1099, %1190 : vector<16x16xf32>
    %1192 = arith.addf %1184, %1191 : vector<16x16xf32>
    %c78_565 = arith.constant 78 : index
    %1193 = memref.load %arg2[%c78_565] : memref<144xf32, #tpu.memory_space<smem>>
    %1194 = vector.broadcast %1193 : f32 to vector<16x16xf32>
    %1195 = arith.mulf %1101, %1194 : vector<16x16xf32>
    %1196 = arith.addf %1188, %1195 : vector<16x16xf32>
    %c78_566 = arith.constant 78 : index
    %1197 = memref.load %arg3[%c78_566] : memref<144xf32, #tpu.memory_space<smem>>
    %1198 = vector.broadcast %1197 : f32 to vector<16x16xf32>
    %1199 = arith.mulf %1101, %1198 : vector<16x16xf32>
    %1200 = arith.addf %1192, %1199 : vector<16x16xf32>
    %c79_567 = arith.constant 79 : index
    %1201 = memref.load %arg2[%c79_567] : memref<144xf32, #tpu.memory_space<smem>>
    %1202 = vector.broadcast %1201 : f32 to vector<16x16xf32>
    %1203 = arith.mulf %1103, %1202 : vector<16x16xf32>
    %1204 = arith.addf %1196, %1203 : vector<16x16xf32>
    %c79_568 = arith.constant 79 : index
    %1205 = memref.load %arg3[%c79_568] : memref<144xf32, #tpu.memory_space<smem>>
    %1206 = vector.broadcast %1205 : f32 to vector<16x16xf32>
    %1207 = arith.mulf %1103, %1206 : vector<16x16xf32>
    %1208 = arith.addf %1200, %1207 : vector<16x16xf32>
    %c80_569 = arith.constant 80 : index
    %1209 = memref.load %arg2[%c80_569] : memref<144xf32, #tpu.memory_space<smem>>
    %1210 = vector.broadcast %1209 : f32 to vector<16x16xf32>
    %1211 = arith.mulf %1105, %1210 : vector<16x16xf32>
    %1212 = arith.addf %1204, %1211 : vector<16x16xf32>
    %c80_570 = arith.constant 80 : index
    %1213 = memref.load %arg3[%c80_570] : memref<144xf32, #tpu.memory_space<smem>>
    %1214 = vector.broadcast %1213 : f32 to vector<16x16xf32>
    %1215 = arith.mulf %1105, %1214 : vector<16x16xf32>
    %1216 = arith.addf %1208, %1215 : vector<16x16xf32>
    %c0_571 = arith.constant 0 : index
    %c9_572 = arith.constant 9 : index
    %c0_573 = arith.constant 0 : index
    %c0_574 = arith.constant 0 : index
    %1217 = vector.load %arg1[%c0_571, %c9_572, %c0_573, %c0_574] : memref<1x16x18x18xf32, #tpu.memory_space<vmem>>, vector<1x1x16x16xf32>
    %1218 = vector.shape_cast %1217 : vector<1x1x16x16xf32> to vector<16x16xf32>
    %c0_575 = arith.constant 0 : index
    %c9_576 = arith.constant 9 : index
    %c0_577 = arith.constant 0 : index
    %c1_578 = arith.constant 1 : index
    %1219 = vector.load %arg1[%c0_575, %c9_576, %c0_577, %c1_578] : memref<1x16x18x18xf32, #tpu.memory_space<vmem>>, vector<1x1x16x16xf32>
    %1220 = vector.shape_cast %1219 : vector<1x1x16x16xf32> to vector<16x16xf32>
    %c0_579 = arith.constant 0 : index
    %c9_580 = arith.constant 9 : index
    %c0_581 = arith.constant 0 : index
    %c2_582 = arith.constant 2 : index
    %1221 = vector.load %arg1[%c0_579, %c9_580, %c0_581, %c2_582] : memref<1x16x18x18xf32, #tpu.memory_space<vmem>>, vector<1x1x16x16xf32>
    %1222 = vector.shape_cast %1221 : vector<1x1x16x16xf32> to vector<16x16xf32>
    %c0_583 = arith.constant 0 : index
    %c9_584 = arith.constant 9 : index
    %c1_585 = arith.constant 1 : index
    %c0_586 = arith.constant 0 : index
    %1223 = vector.load %arg1[%c0_583, %c9_584, %c1_585, %c0_586] : memref<1x16x18x18xf32, #tpu.memory_space<vmem>>, vector<1x1x16x16xf32>
    %1224 = vector.shape_cast %1223 : vector<1x1x16x16xf32> to vector<16x16xf32>
    %c0_587 = arith.constant 0 : index
    %c9_588 = arith.constant 9 : index
    %c1_589 = arith.constant 1 : index
    %c1_590 = arith.constant 1 : index
    %1225 = vector.load %arg1[%c0_587, %c9_588, %c1_589, %c1_590] : memref<1x16x18x18xf32, #tpu.memory_space<vmem>>, vector<1x1x16x16xf32>
    %1226 = vector.shape_cast %1225 : vector<1x1x16x16xf32> to vector<16x16xf32>
    %c0_591 = arith.constant 0 : index
    %c9_592 = arith.constant 9 : index
    %c1_593 = arith.constant 1 : index
    %c2_594 = arith.constant 2 : index
    %1227 = vector.load %arg1[%c0_591, %c9_592, %c1_593, %c2_594] : memref<1x16x18x18xf32, #tpu.memory_space<vmem>>, vector<1x1x16x16xf32>
    %1228 = vector.shape_cast %1227 : vector<1x1x16x16xf32> to vector<16x16xf32>
    %c0_595 = arith.constant 0 : index
    %c9_596 = arith.constant 9 : index
    %c2_597 = arith.constant 2 : index
    %c0_598 = arith.constant 0 : index
    %1229 = vector.load %arg1[%c0_595, %c9_596, %c2_597, %c0_598] : memref<1x16x18x18xf32, #tpu.memory_space<vmem>>, vector<1x1x16x16xf32>
    %1230 = vector.shape_cast %1229 : vector<1x1x16x16xf32> to vector<16x16xf32>
    %c0_599 = arith.constant 0 : index
    %c9_600 = arith.constant 9 : index
    %c2_601 = arith.constant 2 : index
    %c1_602 = arith.constant 1 : index
    %1231 = vector.load %arg1[%c0_599, %c9_600, %c2_601, %c1_602] : memref<1x16x18x18xf32, #tpu.memory_space<vmem>>, vector<1x1x16x16xf32>
    %1232 = vector.shape_cast %1231 : vector<1x1x16x16xf32> to vector<16x16xf32>
    %c0_603 = arith.constant 0 : index
    %c9_604 = arith.constant 9 : index
    %c2_605 = arith.constant 2 : index
    %c2_606 = arith.constant 2 : index
    %1233 = vector.load %arg1[%c0_603, %c9_604, %c2_605, %c2_606] : memref<1x16x18x18xf32, #tpu.memory_space<vmem>>, vector<1x1x16x16xf32>
    %1234 = vector.shape_cast %1233 : vector<1x1x16x16xf32> to vector<16x16xf32>
    %c81 = arith.constant 81 : index
    %1235 = memref.load %arg4[%c81] : memref<144xf32, #tpu.memory_space<smem>>
    %1236 = vector.broadcast %1235 : f32 to vector<16x16xf32>
    %1237 = arith.mulf %1218, %1236 : vector<16x16xf32>
    %c82 = arith.constant 82 : index
    %1238 = memref.load %arg4[%c82] : memref<144xf32, #tpu.memory_space<smem>>
    %1239 = vector.broadcast %1238 : f32 to vector<16x16xf32>
    %1240 = arith.mulf %1220, %1239 : vector<16x16xf32>
    %1241 = arith.addf %1237, %1240 : vector<16x16xf32>
    %c83 = arith.constant 83 : index
    %1242 = memref.load %arg4[%c83] : memref<144xf32, #tpu.memory_space<smem>>
    %1243 = vector.broadcast %1242 : f32 to vector<16x16xf32>
    %1244 = arith.mulf %1222, %1243 : vector<16x16xf32>
    %1245 = arith.addf %1241, %1244 : vector<16x16xf32>
    %c84 = arith.constant 84 : index
    %1246 = memref.load %arg4[%c84] : memref<144xf32, #tpu.memory_space<smem>>
    %1247 = vector.broadcast %1246 : f32 to vector<16x16xf32>
    %1248 = arith.mulf %1224, %1247 : vector<16x16xf32>
    %1249 = arith.addf %1245, %1248 : vector<16x16xf32>
    %c85 = arith.constant 85 : index
    %1250 = memref.load %arg4[%c85] : memref<144xf32, #tpu.memory_space<smem>>
    %1251 = vector.broadcast %1250 : f32 to vector<16x16xf32>
    %1252 = arith.mulf %1226, %1251 : vector<16x16xf32>
    %1253 = arith.addf %1249, %1252 : vector<16x16xf32>
    %c86 = arith.constant 86 : index
    %1254 = memref.load %arg4[%c86] : memref<144xf32, #tpu.memory_space<smem>>
    %1255 = vector.broadcast %1254 : f32 to vector<16x16xf32>
    %1256 = arith.mulf %1228, %1255 : vector<16x16xf32>
    %1257 = arith.addf %1253, %1256 : vector<16x16xf32>
    %c87 = arith.constant 87 : index
    %1258 = memref.load %arg4[%c87] : memref<144xf32, #tpu.memory_space<smem>>
    %1259 = vector.broadcast %1258 : f32 to vector<16x16xf32>
    %1260 = arith.mulf %1230, %1259 : vector<16x16xf32>
    %1261 = arith.addf %1257, %1260 : vector<16x16xf32>
    %c88 = arith.constant 88 : index
    %1262 = memref.load %arg4[%c88] : memref<144xf32, #tpu.memory_space<smem>>
    %1263 = vector.broadcast %1262 : f32 to vector<16x16xf32>
    %1264 = arith.mulf %1232, %1263 : vector<16x16xf32>
    %1265 = arith.addf %1261, %1264 : vector<16x16xf32>
    %c89 = arith.constant 89 : index
    %1266 = memref.load %arg4[%c89] : memref<144xf32, #tpu.memory_space<smem>>
    %1267 = vector.broadcast %1266 : f32 to vector<16x16xf32>
    %1268 = arith.mulf %1234, %1267 : vector<16x16xf32>
    %1269 = arith.addf %1265, %1268 : vector<16x16xf32>
    %c9_607 = arith.constant 9 : index
    %1270 = memref.load %arg7[%c9_607] : memref<16xf32, #tpu.memory_space<smem>>
    %1271 = vector.broadcast %1270 : f32 to vector<16x16xf32>
    %1272 = arith.addf %1269, %1271 : vector<16x16xf32>
    %c0_608 = arith.constant 0 : index
    %c9_609 = arith.constant 9 : index
    %c0_610 = arith.constant 0 : index
    %c0_611 = arith.constant 0 : index
    %1273 = vector.load %arg10[%c0_608, %c9_609, %c0_610, %c0_611] : memref<1x16x16x16xf32, #tpu.memory_space<vmem>>, vector<1x1x16x16xf32>
    %1274 = vector.shape_cast %1273 : vector<1x1x16x16xf32> to vector<16x16xf32>
    %1275 = vector.shape_cast %1272 : vector<16x16xf32> to vector<1x1x16x16xf32>
    tpu.vector_store %arg10[%c0_608, %c9_609, %c0_610, %c0_611], %1275 {strides = array<i32>} : memref<1x16x16x16xf32, #tpu.memory_space<vmem>>, vector<1x1x16x16xf32>,
    %c81_612 = arith.constant 81 : index
    %1276 = memref.load %arg2[%c81_612] : memref<144xf32, #tpu.memory_space<smem>>
    %1277 = vector.broadcast %1276 : f32 to vector<16x16xf32>
    %1278 = arith.mulf %1218, %1277 : vector<16x16xf32>
    %c81_613 = arith.constant 81 : index
    %1279 = memref.load %arg3[%c81_613] : memref<144xf32, #tpu.memory_space<smem>>
    %1280 = vector.broadcast %1279 : f32 to vector<16x16xf32>
    %1281 = arith.mulf %1218, %1280 : vector<16x16xf32>
    %c82_614 = arith.constant 82 : index
    %1282 = memref.load %arg2[%c82_614] : memref<144xf32, #tpu.memory_space<smem>>
    %1283 = vector.broadcast %1282 : f32 to vector<16x16xf32>
    %1284 = arith.mulf %1220, %1283 : vector<16x16xf32>
    %1285 = arith.addf %1278, %1284 : vector<16x16xf32>
    %c82_615 = arith.constant 82 : index
    %1286 = memref.load %arg3[%c82_615] : memref<144xf32, #tpu.memory_space<smem>>
    %1287 = vector.broadcast %1286 : f32 to vector<16x16xf32>
    %1288 = arith.mulf %1220, %1287 : vector<16x16xf32>
    %1289 = arith.addf %1281, %1288 : vector<16x16xf32>
    %c83_616 = arith.constant 83 : index
    %1290 = memref.load %arg2[%c83_616] : memref<144xf32, #tpu.memory_space<smem>>
    %1291 = vector.broadcast %1290 : f32 to vector<16x16xf32>
    %1292 = arith.mulf %1222, %1291 : vector<16x16xf32>
    %1293 = arith.addf %1285, %1292 : vector<16x16xf32>
    %c83_617 = arith.constant 83 : index
    %1294 = memref.load %arg3[%c83_617] : memref<144xf32, #tpu.memory_space<smem>>
    %1295 = vector.broadcast %1294 : f32 to vector<16x16xf32>
    %1296 = arith.mulf %1222, %1295 : vector<16x16xf32>
    %1297 = arith.addf %1289, %1296 : vector<16x16xf32>
    %c84_618 = arith.constant 84 : index
    %1298 = memref.load %arg2[%c84_618] : memref<144xf32, #tpu.memory_space<smem>>
    %1299 = vector.broadcast %1298 : f32 to vector<16x16xf32>
    %1300 = arith.mulf %1224, %1299 : vector<16x16xf32>
    %1301 = arith.addf %1293, %1300 : vector<16x16xf32>
    %c84_619 = arith.constant 84 : index
    %1302 = memref.load %arg3[%c84_619] : memref<144xf32, #tpu.memory_space<smem>>
    %1303 = vector.broadcast %1302 : f32 to vector<16x16xf32>
    %1304 = arith.mulf %1224, %1303 : vector<16x16xf32>
    %1305 = arith.addf %1297, %1304 : vector<16x16xf32>
    %c85_620 = arith.constant 85 : index
    %1306 = memref.load %arg2[%c85_620] : memref<144xf32, #tpu.memory_space<smem>>
    %1307 = vector.broadcast %1306 : f32 to vector<16x16xf32>
    %1308 = arith.mulf %1226, %1307 : vector<16x16xf32>
    %1309 = arith.addf %1301, %1308 : vector<16x16xf32>
    %c85_621 = arith.constant 85 : index
    %1310 = memref.load %arg3[%c85_621] : memref<144xf32, #tpu.memory_space<smem>>
    %1311 = vector.broadcast %1310 : f32 to vector<16x16xf32>
    %1312 = arith.mulf %1226, %1311 : vector<16x16xf32>
    %1313 = arith.addf %1305, %1312 : vector<16x16xf32>
    %c86_622 = arith.constant 86 : index
    %1314 = memref.load %arg2[%c86_622] : memref<144xf32, #tpu.memory_space<smem>>
    %1315 = vector.broadcast %1314 : f32 to vector<16x16xf32>
    %1316 = arith.mulf %1228, %1315 : vector<16x16xf32>
    %1317 = arith.addf %1309, %1316 : vector<16x16xf32>
    %c86_623 = arith.constant 86 : index
    %1318 = memref.load %arg3[%c86_623] : memref<144xf32, #tpu.memory_space<smem>>
    %1319 = vector.broadcast %1318 : f32 to vector<16x16xf32>
    %1320 = arith.mulf %1228, %1319 : vector<16x16xf32>
    %1321 = arith.addf %1313, %1320 : vector<16x16xf32>
    %c87_624 = arith.constant 87 : index
    %1322 = memref.load %arg2[%c87_624] : memref<144xf32, #tpu.memory_space<smem>>
    %1323 = vector.broadcast %1322 : f32 to vector<16x16xf32>
    %1324 = arith.mulf %1230, %1323 : vector<16x16xf32>
    %1325 = arith.addf %1317, %1324 : vector<16x16xf32>
    %c87_625 = arith.constant 87 : index
    %1326 = memref.load %arg3[%c87_625] : memref<144xf32, #tpu.memory_space<smem>>
    %1327 = vector.broadcast %1326 : f32 to vector<16x16xf32>
    %1328 = arith.mulf %1230, %1327 : vector<16x16xf32>
    %1329 = arith.addf %1321, %1328 : vector<16x16xf32>
    %c88_626 = arith.constant 88 : index
    %1330 = memref.load %arg2[%c88_626] : memref<144xf32, #tpu.memory_space<smem>>
    %1331 = vector.broadcast %1330 : f32 to vector<16x16xf32>
    %1332 = arith.mulf %1232, %1331 : vector<16x16xf32>
    %1333 = arith.addf %1325, %1332 : vector<16x16xf32>
    %c88_627 = arith.constant 88 : index
    %1334 = memref.load %arg3[%c88_627] : memref<144xf32, #tpu.memory_space<smem>>
    %1335 = vector.broadcast %1334 : f32 to vector<16x16xf32>
    %1336 = arith.mulf %1232, %1335 : vector<16x16xf32>
    %1337 = arith.addf %1329, %1336 : vector<16x16xf32>
    %c89_628 = arith.constant 89 : index
    %1338 = memref.load %arg2[%c89_628] : memref<144xf32, #tpu.memory_space<smem>>
    %1339 = vector.broadcast %1338 : f32 to vector<16x16xf32>
    %1340 = arith.mulf %1234, %1339 : vector<16x16xf32>
    %1341 = arith.addf %1333, %1340 : vector<16x16xf32>
    %c89_629 = arith.constant 89 : index
    %1342 = memref.load %arg3[%c89_629] : memref<144xf32, #tpu.memory_space<smem>>
    %1343 = vector.broadcast %1342 : f32 to vector<16x16xf32>
    %1344 = arith.mulf %1234, %1343 : vector<16x16xf32>
    %1345 = arith.addf %1337, %1344 : vector<16x16xf32>
    %1346 = arith.addf %1212, %1341 : vector<16x16xf32>
    %c4_630 = arith.constant 4 : index
    %1347 = memref.load %arg5[%c4_630] : memref<8xf32, #tpu.memory_space<smem>>
    %1348 = vector.broadcast %1347 : f32 to vector<16x16xf32>
    %1349 = arith.addf %1346, %1348 : vector<16x16xf32>
    %c0_631 = arith.constant 0 : index
    %c4_632 = arith.constant 4 : index
    %c0_633 = arith.constant 0 : index
    %c0_634 = arith.constant 0 : index
    %1350 = vector.load %arg8[%c0_631, %c4_632, %c0_633, %c0_634] : memref<1x8x16x16xf32, #tpu.memory_space<vmem>>, vector<1x1x16x16xf32>
    %1351 = vector.shape_cast %1350 : vector<1x1x16x16xf32> to vector<16x16xf32>
    %1352 = vector.shape_cast %1349 : vector<16x16xf32> to vector<1x1x16x16xf32>
    tpu.vector_store %arg8[%c0_631, %c4_632, %c0_633, %c0_634], %1352 {strides = array<i32>} : memref<1x8x16x16xf32, #tpu.memory_space<vmem>>, vector<1x1x16x16xf32>,
    %1353 = arith.addf %1216, %1345 : vector<16x16xf32>
    %c4_635 = arith.constant 4 : index
    %1354 = memref.load %arg6[%c4_635] : memref<8xf32, #tpu.memory_space<smem>>
    %1355 = vector.broadcast %1354 : f32 to vector<16x16xf32>
    %1356 = arith.addf %1353, %1355 : vector<16x16xf32>
    %c0_636 = arith.constant 0 : index
    %c4_637 = arith.constant 4 : index
    %c0_638 = arith.constant 0 : index
    %c0_639 = arith.constant 0 : index
    %1357 = vector.load %arg9[%c0_636, %c4_637, %c0_638, %c0_639] : memref<1x8x16x16xf32, #tpu.memory_space<vmem>>, vector<1x1x16x16xf32>
    %1358 = vector.shape_cast %1357 : vector<1x1x16x16xf32> to vector<16x16xf32>
    %1359 = vector.shape_cast %1356 : vector<16x16xf32> to vector<1x1x16x16xf32>
    tpu.vector_store %arg9[%c0_636, %c4_637, %c0_638, %c0_639], %1359 {strides = array<i32>} : memref<1x8x16x16xf32, #tpu.memory_space<vmem>>, vector<1x1x16x16xf32>,
    %c0_640 = arith.constant 0 : index
    %c10_641 = arith.constant 10 : index
    %c0_642 = arith.constant 0 : index
    %c0_643 = arith.constant 0 : index
    %1360 = vector.load %arg1[%c0_640, %c10_641, %c0_642, %c0_643] : memref<1x16x18x18xf32, #tpu.memory_space<vmem>>, vector<1x1x16x16xf32>
    %1361 = vector.shape_cast %1360 : vector<1x1x16x16xf32> to vector<16x16xf32>
    %c0_644 = arith.constant 0 : index
    %c10_645 = arith.constant 10 : index
    %c0_646 = arith.constant 0 : index
    %c1_647 = arith.constant 1 : index
    %1362 = vector.load %arg1[%c0_644, %c10_645, %c0_646, %c1_647] : memref<1x16x18x18xf32, #tpu.memory_space<vmem>>, vector<1x1x16x16xf32>
    %1363 = vector.shape_cast %1362 : vector<1x1x16x16xf32> to vector<16x16xf32>
    %c0_648 = arith.constant 0 : index
    %c10_649 = arith.constant 10 : index
    %c0_650 = arith.constant 0 : index
    %c2_651 = arith.constant 2 : index
    %1364 = vector.load %arg1[%c0_648, %c10_649, %c0_650, %c2_651] : memref<1x16x18x18xf32, #tpu.memory_space<vmem>>, vector<1x1x16x16xf32>
    %1365 = vector.shape_cast %1364 : vector<1x1x16x16xf32> to vector<16x16xf32>
    %c0_652 = arith.constant 0 : index
    %c10_653 = arith.constant 10 : index
    %c1_654 = arith.constant 1 : index
    %c0_655 = arith.constant 0 : index
    %1366 = vector.load %arg1[%c0_652, %c10_653, %c1_654, %c0_655] : memref<1x16x18x18xf32, #tpu.memory_space<vmem>>, vector<1x1x16x16xf32>
    %1367 = vector.shape_cast %1366 : vector<1x1x16x16xf32> to vector<16x16xf32>
    %c0_656 = arith.constant 0 : index
    %c10_657 = arith.constant 10 : index
    %c1_658 = arith.constant 1 : index
    %c1_659 = arith.constant 1 : index
    %1368 = vector.load %arg1[%c0_656, %c10_657, %c1_658, %c1_659] : memref<1x16x18x18xf32, #tpu.memory_space<vmem>>, vector<1x1x16x16xf32>
    %1369 = vector.shape_cast %1368 : vector<1x1x16x16xf32> to vector<16x16xf32>
    %c0_660 = arith.constant 0 : index
    %c10_661 = arith.constant 10 : index
    %c1_662 = arith.constant 1 : index
    %c2_663 = arith.constant 2 : index
    %1370 = vector.load %arg1[%c0_660, %c10_661, %c1_662, %c2_663] : memref<1x16x18x18xf32, #tpu.memory_space<vmem>>, vector<1x1x16x16xf32>
    %1371 = vector.shape_cast %1370 : vector<1x1x16x16xf32> to vector<16x16xf32>
    %c0_664 = arith.constant 0 : index
    %c10_665 = arith.constant 10 : index
    %c2_666 = arith.constant 2 : index
    %c0_667 = arith.constant 0 : index
    %1372 = vector.load %arg1[%c0_664, %c10_665, %c2_666, %c0_667] : memref<1x16x18x18xf32, #tpu.memory_space<vmem>>, vector<1x1x16x16xf32>
    %1373 = vector.shape_cast %1372 : vector<1x1x16x16xf32> to vector<16x16xf32>
    %c0_668 = arith.constant 0 : index
    %c10_669 = arith.constant 10 : index
    %c2_670 = arith.constant 2 : index
    %c1_671 = arith.constant 1 : index
    %1374 = vector.load %arg1[%c0_668, %c10_669, %c2_670, %c1_671] : memref<1x16x18x18xf32, #tpu.memory_space<vmem>>, vector<1x1x16x16xf32>
    %1375 = vector.shape_cast %1374 : vector<1x1x16x16xf32> to vector<16x16xf32>
    %c0_672 = arith.constant 0 : index
    %c10_673 = arith.constant 10 : index
    %c2_674 = arith.constant 2 : index
    %c2_675 = arith.constant 2 : index
    %1376 = vector.load %arg1[%c0_672, %c10_673, %c2_674, %c2_675] : memref<1x16x18x18xf32, #tpu.memory_space<vmem>>, vector<1x1x16x16xf32>
    %1377 = vector.shape_cast %1376 : vector<1x1x16x16xf32> to vector<16x16xf32>
    %c90 = arith.constant 90 : index
    %1378 = memref.load %arg4[%c90] : memref<144xf32, #tpu.memory_space<smem>>
    %1379 = vector.broadcast %1378 : f32 to vector<16x16xf32>
    %1380 = arith.mulf %1361, %1379 : vector<16x16xf32>
    %c91 = arith.constant 91 : index
    %1381 = memref.load %arg4[%c91] : memref<144xf32, #tpu.memory_space<smem>>
    %1382 = vector.broadcast %1381 : f32 to vector<16x16xf32>
    %1383 = arith.mulf %1363, %1382 : vector<16x16xf32>
    %1384 = arith.addf %1380, %1383 : vector<16x16xf32>
    %c92 = arith.constant 92 : index
    %1385 = memref.load %arg4[%c92] : memref<144xf32, #tpu.memory_space<smem>>
    %1386 = vector.broadcast %1385 : f32 to vector<16x16xf32>
    %1387 = arith.mulf %1365, %1386 : vector<16x16xf32>
    %1388 = arith.addf %1384, %1387 : vector<16x16xf32>
    %c93 = arith.constant 93 : index
    %1389 = memref.load %arg4[%c93] : memref<144xf32, #tpu.memory_space<smem>>
    %1390 = vector.broadcast %1389 : f32 to vector<16x16xf32>
    %1391 = arith.mulf %1367, %1390 : vector<16x16xf32>
    %1392 = arith.addf %1388, %1391 : vector<16x16xf32>
    %c94 = arith.constant 94 : index
    %1393 = memref.load %arg4[%c94] : memref<144xf32, #tpu.memory_space<smem>>
    %1394 = vector.broadcast %1393 : f32 to vector<16x16xf32>
    %1395 = arith.mulf %1369, %1394 : vector<16x16xf32>
    %1396 = arith.addf %1392, %1395 : vector<16x16xf32>
    %c95 = arith.constant 95 : index
    %1397 = memref.load %arg4[%c95] : memref<144xf32, #tpu.memory_space<smem>>
    %1398 = vector.broadcast %1397 : f32 to vector<16x16xf32>
    %1399 = arith.mulf %1371, %1398 : vector<16x16xf32>
    %1400 = arith.addf %1396, %1399 : vector<16x16xf32>
    %c96 = arith.constant 96 : index
    %1401 = memref.load %arg4[%c96] : memref<144xf32, #tpu.memory_space<smem>>
    %1402 = vector.broadcast %1401 : f32 to vector<16x16xf32>
    %1403 = arith.mulf %1373, %1402 : vector<16x16xf32>
    %1404 = arith.addf %1400, %1403 : vector<16x16xf32>
    %c97 = arith.constant 97 : index
    %1405 = memref.load %arg4[%c97] : memref<144xf32, #tpu.memory_space<smem>>
    %1406 = vector.broadcast %1405 : f32 to vector<16x16xf32>
    %1407 = arith.mulf %1375, %1406 : vector<16x16xf32>
    %1408 = arith.addf %1404, %1407 : vector<16x16xf32>
    %c98 = arith.constant 98 : index
    %1409 = memref.load %arg4[%c98] : memref<144xf32, #tpu.memory_space<smem>>
    %1410 = vector.broadcast %1409 : f32 to vector<16x16xf32>
    %1411 = arith.mulf %1377, %1410 : vector<16x16xf32>
    %1412 = arith.addf %1408, %1411 : vector<16x16xf32>
    %c10_676 = arith.constant 10 : index
    %1413 = memref.load %arg7[%c10_676] : memref<16xf32, #tpu.memory_space<smem>>
    %1414 = vector.broadcast %1413 : f32 to vector<16x16xf32>
    %1415 = arith.addf %1412, %1414 : vector<16x16xf32>
    %c0_677 = arith.constant 0 : index
    %c10_678 = arith.constant 10 : index
    %c0_679 = arith.constant 0 : index
    %c0_680 = arith.constant 0 : index
    %1416 = vector.load %arg10[%c0_677, %c10_678, %c0_679, %c0_680] : memref<1x16x16x16xf32, #tpu.memory_space<vmem>>, vector<1x1x16x16xf32>
    %1417 = vector.shape_cast %1416 : vector<1x1x16x16xf32> to vector<16x16xf32>
    %1418 = vector.shape_cast %1415 : vector<16x16xf32> to vector<1x1x16x16xf32>
    tpu.vector_store %arg10[%c0_677, %c10_678, %c0_679, %c0_680], %1418 {strides = array<i32>} : memref<1x16x16x16xf32, #tpu.memory_space<vmem>>, vector<1x1x16x16xf32>,
    %c90_681 = arith.constant 90 : index
    %1419 = memref.load %arg2[%c90_681] : memref<144xf32, #tpu.memory_space<smem>>
    %1420 = vector.broadcast %1419 : f32 to vector<16x16xf32>
    %1421 = arith.mulf %1361, %1420 : vector<16x16xf32>
    %c90_682 = arith.constant 90 : index
    %1422 = memref.load %arg3[%c90_682] : memref<144xf32, #tpu.memory_space<smem>>
    %1423 = vector.broadcast %1422 : f32 to vector<16x16xf32>
    %1424 = arith.mulf %1361, %1423 : vector<16x16xf32>
    %c91_683 = arith.constant 91 : index
    %1425 = memref.load %arg2[%c91_683] : memref<144xf32, #tpu.memory_space<smem>>
    %1426 = vector.broadcast %1425 : f32 to vector<16x16xf32>
    %1427 = arith.mulf %1363, %1426 : vector<16x16xf32>
    %1428 = arith.addf %1421, %1427 : vector<16x16xf32>
    %c91_684 = arith.constant 91 : index
    %1429 = memref.load %arg3[%c91_684] : memref<144xf32, #tpu.memory_space<smem>>
    %1430 = vector.broadcast %1429 : f32 to vector<16x16xf32>
    %1431 = arith.mulf %1363, %1430 : vector<16x16xf32>
    %1432 = arith.addf %1424, %1431 : vector<16x16xf32>
    %c92_685 = arith.constant 92 : index
    %1433 = memref.load %arg2[%c92_685] : memref<144xf32, #tpu.memory_space<smem>>
    %1434 = vector.broadcast %1433 : f32 to vector<16x16xf32>
    %1435 = arith.mulf %1365, %1434 : vector<16x16xf32>
    %1436 = arith.addf %1428, %1435 : vector<16x16xf32>
    %c92_686 = arith.constant 92 : index
    %1437 = memref.load %arg3[%c92_686] : memref<144xf32, #tpu.memory_space<smem>>
    %1438 = vector.broadcast %1437 : f32 to vector<16x16xf32>
    %1439 = arith.mulf %1365, %1438 : vector<16x16xf32>
    %1440 = arith.addf %1432, %1439 : vector<16x16xf32>
    %c93_687 = arith.constant 93 : index
    %1441 = memref.load %arg2[%c93_687] : memref<144xf32, #tpu.memory_space<smem>>
    %1442 = vector.broadcast %1441 : f32 to vector<16x16xf32>
    %1443 = arith.mulf %1367, %1442 : vector<16x16xf32>
    %1444 = arith.addf %1436, %1443 : vector<16x16xf32>
    %c93_688 = arith.constant 93 : index
    %1445 = memref.load %arg3[%c93_688] : memref<144xf32, #tpu.memory_space<smem>>
    %1446 = vector.broadcast %1445 : f32 to vector<16x16xf32>
    %1447 = arith.mulf %1367, %1446 : vector<16x16xf32>
    %1448 = arith.addf %1440, %1447 : vector<16x16xf32>
    %c94_689 = arith.constant 94 : index
    %1449 = memref.load %arg2[%c94_689] : memref<144xf32, #tpu.memory_space<smem>>
    %1450 = vector.broadcast %1449 : f32 to vector<16x16xf32>
    %1451 = arith.mulf %1369, %1450 : vector<16x16xf32>
    %1452 = arith.addf %1444, %1451 : vector<16x16xf32>
    %c94_690 = arith.constant 94 : index
    %1453 = memref.load %arg3[%c94_690] : memref<144xf32, #tpu.memory_space<smem>>
    %1454 = vector.broadcast %1453 : f32 to vector<16x16xf32>
    %1455 = arith.mulf %1369, %1454 : vector<16x16xf32>
    %1456 = arith.addf %1448, %1455 : vector<16x16xf32>
    %c95_691 = arith.constant 95 : index
    %1457 = memref.load %arg2[%c95_691] : memref<144xf32, #tpu.memory_space<smem>>
    %1458 = vector.broadcast %1457 : f32 to vector<16x16xf32>
    %1459 = arith.mulf %1371, %1458 : vector<16x16xf32>
    %1460 = arith.addf %1452, %1459 : vector<16x16xf32>
    %c95_692 = arith.constant 95 : index
    %1461 = memref.load %arg3[%c95_692] : memref<144xf32, #tpu.memory_space<smem>>
    %1462 = vector.broadcast %1461 : f32 to vector<16x16xf32>
    %1463 = arith.mulf %1371, %1462 : vector<16x16xf32>
    %1464 = arith.addf %1456, %1463 : vector<16x16xf32>
    %c96_693 = arith.constant 96 : index
    %1465 = memref.load %arg2[%c96_693] : memref<144xf32, #tpu.memory_space<smem>>
    %1466 = vector.broadcast %1465 : f32 to vector<16x16xf32>
    %1467 = arith.mulf %1373, %1466 : vector<16x16xf32>
    %1468 = arith.addf %1460, %1467 : vector<16x16xf32>
    %c96_694 = arith.constant 96 : index
    %1469 = memref.load %arg3[%c96_694] : memref<144xf32, #tpu.memory_space<smem>>
    %1470 = vector.broadcast %1469 : f32 to vector<16x16xf32>
    %1471 = arith.mulf %1373, %1470 : vector<16x16xf32>
    %1472 = arith.addf %1464, %1471 : vector<16x16xf32>
    %c97_695 = arith.constant 97 : index
    %1473 = memref.load %arg2[%c97_695] : memref<144xf32, #tpu.memory_space<smem>>
    %1474 = vector.broadcast %1473 : f32 to vector<16x16xf32>
    %1475 = arith.mulf %1375, %1474 : vector<16x16xf32>
    %1476 = arith.addf %1468, %1475 : vector<16x16xf32>
    %c97_696 = arith.constant 97 : index
    %1477 = memref.load %arg3[%c97_696] : memref<144xf32, #tpu.memory_space<smem>>
    %1478 = vector.broadcast %1477 : f32 to vector<16x16xf32>
    %1479 = arith.mulf %1375, %1478 : vector<16x16xf32>
    %1480 = arith.addf %1472, %1479 : vector<16x16xf32>
    %c98_697 = arith.constant 98 : index
    %1481 = memref.load %arg2[%c98_697] : memref<144xf32, #tpu.memory_space<smem>>
    %1482 = vector.broadcast %1481 : f32 to vector<16x16xf32>
    %1483 = arith.mulf %1377, %1482 : vector<16x16xf32>
    %1484 = arith.addf %1476, %1483 : vector<16x16xf32>
    %c98_698 = arith.constant 98 : index
    %1485 = memref.load %arg3[%c98_698] : memref<144xf32, #tpu.memory_space<smem>>
    %1486 = vector.broadcast %1485 : f32 to vector<16x16xf32>
    %1487 = arith.mulf %1377, %1486 : vector<16x16xf32>
    %1488 = arith.addf %1480, %1487 : vector<16x16xf32>
    %c0_699 = arith.constant 0 : index
    %c11_700 = arith.constant 11 : index
    %c0_701 = arith.constant 0 : index
    %c0_702 = arith.constant 0 : index
    %1489 = vector.load %arg1[%c0_699, %c11_700, %c0_701, %c0_702] : memref<1x16x18x18xf32, #tpu.memory_space<vmem>>, vector<1x1x16x16xf32>
    %1490 = vector.shape_cast %1489 : vector<1x1x16x16xf32> to vector<16x16xf32>
    %c0_703 = arith.constant 0 : index
    %c11_704 = arith.constant 11 : index
    %c0_705 = arith.constant 0 : index
    %c1_706 = arith.constant 1 : index
    %1491 = vector.load %arg1[%c0_703, %c11_704, %c0_705, %c1_706] : memref<1x16x18x18xf32, #tpu.memory_space<vmem>>, vector<1x1x16x16xf32>
    %1492 = vector.shape_cast %1491 : vector<1x1x16x16xf32> to vector<16x16xf32>
    %c0_707 = arith.constant 0 : index
    %c11_708 = arith.constant 11 : index
    %c0_709 = arith.constant 0 : index
    %c2_710 = arith.constant 2 : index
    %1493 = vector.load %arg1[%c0_707, %c11_708, %c0_709, %c2_710] : memref<1x16x18x18xf32, #tpu.memory_space<vmem>>, vector<1x1x16x16xf32>
    %1494 = vector.shape_cast %1493 : vector<1x1x16x16xf32> to vector<16x16xf32>
    %c0_711 = arith.constant 0 : index
    %c11_712 = arith.constant 11 : index
    %c1_713 = arith.constant 1 : index
    %c0_714 = arith.constant 0 : index
    %1495 = vector.load %arg1[%c0_711, %c11_712, %c1_713, %c0_714] : memref<1x16x18x18xf32, #tpu.memory_space<vmem>>, vector<1x1x16x16xf32>
    %1496 = vector.shape_cast %1495 : vector<1x1x16x16xf32> to vector<16x16xf32>
    %c0_715 = arith.constant 0 : index
    %c11_716 = arith.constant 11 : index
    %c1_717 = arith.constant 1 : index
    %c1_718 = arith.constant 1 : index
    %1497 = vector.load %arg1[%c0_715, %c11_716, %c1_717, %c1_718] : memref<1x16x18x18xf32, #tpu.memory_space<vmem>>, vector<1x1x16x16xf32>
    %1498 = vector.shape_cast %1497 : vector<1x1x16x16xf32> to vector<16x16xf32>
    %c0_719 = arith.constant 0 : index
    %c11_720 = arith.constant 11 : index
    %c1_721 = arith.constant 1 : index
    %c2_722 = arith.constant 2 : index
    %1499 = vector.load %arg1[%c0_719, %c11_720, %c1_721, %c2_722] : memref<1x16x18x18xf32, #tpu.memory_space<vmem>>, vector<1x1x16x16xf32>
    %1500 = vector.shape_cast %1499 : vector<1x1x16x16xf32> to vector<16x16xf32>
    %c0_723 = arith.constant 0 : index
    %c11_724 = arith.constant 11 : index
    %c2_725 = arith.constant 2 : index
    %c0_726 = arith.constant 0 : index
    %1501 = vector.load %arg1[%c0_723, %c11_724, %c2_725, %c0_726] : memref<1x16x18x18xf32, #tpu.memory_space<vmem>>, vector<1x1x16x16xf32>
    %1502 = vector.shape_cast %1501 : vector<1x1x16x16xf32> to vector<16x16xf32>
    %c0_727 = arith.constant 0 : index
    %c11_728 = arith.constant 11 : index
    %c2_729 = arith.constant 2 : index
    %c1_730 = arith.constant 1 : index
    %1503 = vector.load %arg1[%c0_727, %c11_728, %c2_729, %c1_730] : memref<1x16x18x18xf32, #tpu.memory_space<vmem>>, vector<1x1x16x16xf32>
    %1504 = vector.shape_cast %1503 : vector<1x1x16x16xf32> to vector<16x16xf32>
    %c0_731 = arith.constant 0 : index
    %c11_732 = arith.constant 11 : index
    %c2_733 = arith.constant 2 : index
    %c2_734 = arith.constant 2 : index
    %1505 = vector.load %arg1[%c0_731, %c11_732, %c2_733, %c2_734] : memref<1x16x18x18xf32, #tpu.memory_space<vmem>>, vector<1x1x16x16xf32>
    %1506 = vector.shape_cast %1505 : vector<1x1x16x16xf32> to vector<16x16xf32>
    %c99 = arith.constant 99 : index
    %1507 = memref.load %arg4[%c99] : memref<144xf32, #tpu.memory_space<smem>>
    %1508 = vector.broadcast %1507 : f32 to vector<16x16xf32>
    %1509 = arith.mulf %1490, %1508 : vector<16x16xf32>
    %c100 = arith.constant 100 : index
    %1510 = memref.load %arg4[%c100] : memref<144xf32, #tpu.memory_space<smem>>
    %1511 = vector.broadcast %1510 : f32 to vector<16x16xf32>
    %1512 = arith.mulf %1492, %1511 : vector<16x16xf32>
    %1513 = arith.addf %1509, %1512 : vector<16x16xf32>
    %c101 = arith.constant 101 : index
    %1514 = memref.load %arg4[%c101] : memref<144xf32, #tpu.memory_space<smem>>
    %1515 = vector.broadcast %1514 : f32 to vector<16x16xf32>
    %1516 = arith.mulf %1494, %1515 : vector<16x16xf32>
    %1517 = arith.addf %1513, %1516 : vector<16x16xf32>
    %c102 = arith.constant 102 : index
    %1518 = memref.load %arg4[%c102] : memref<144xf32, #tpu.memory_space<smem>>
    %1519 = vector.broadcast %1518 : f32 to vector<16x16xf32>
    %1520 = arith.mulf %1496, %1519 : vector<16x16xf32>
    %1521 = arith.addf %1517, %1520 : vector<16x16xf32>
    %c103 = arith.constant 103 : index
    %1522 = memref.load %arg4[%c103] : memref<144xf32, #tpu.memory_space<smem>>
    %1523 = vector.broadcast %1522 : f32 to vector<16x16xf32>
    %1524 = arith.mulf %1498, %1523 : vector<16x16xf32>
    %1525 = arith.addf %1521, %1524 : vector<16x16xf32>
    %c104 = arith.constant 104 : index
    %1526 = memref.load %arg4[%c104] : memref<144xf32, #tpu.memory_space<smem>>
    %1527 = vector.broadcast %1526 : f32 to vector<16x16xf32>
    %1528 = arith.mulf %1500, %1527 : vector<16x16xf32>
    %1529 = arith.addf %1525, %1528 : vector<16x16xf32>
    %c105 = arith.constant 105 : index
    %1530 = memref.load %arg4[%c105] : memref<144xf32, #tpu.memory_space<smem>>
    %1531 = vector.broadcast %1530 : f32 to vector<16x16xf32>
    %1532 = arith.mulf %1502, %1531 : vector<16x16xf32>
    %1533 = arith.addf %1529, %1532 : vector<16x16xf32>
    %c106 = arith.constant 106 : index
    %1534 = memref.load %arg4[%c106] : memref<144xf32, #tpu.memory_space<smem>>
    %1535 = vector.broadcast %1534 : f32 to vector<16x16xf32>
    %1536 = arith.mulf %1504, %1535 : vector<16x16xf32>
    %1537 = arith.addf %1533, %1536 : vector<16x16xf32>
    %c107 = arith.constant 107 : index
    %1538 = memref.load %arg4[%c107] : memref<144xf32, #tpu.memory_space<smem>>
    %1539 = vector.broadcast %1538 : f32 to vector<16x16xf32>
    %1540 = arith.mulf %1506, %1539 : vector<16x16xf32>
    %1541 = arith.addf %1537, %1540 : vector<16x16xf32>
    %c11_735 = arith.constant 11 : index
    %1542 = memref.load %arg7[%c11_735] : memref<16xf32, #tpu.memory_space<smem>>
    %1543 = vector.broadcast %1542 : f32 to vector<16x16xf32>
    %1544 = arith.addf %1541, %1543 : vector<16x16xf32>
    %c0_736 = arith.constant 0 : index
    %c11_737 = arith.constant 11 : index
    %c0_738 = arith.constant 0 : index
    %c0_739 = arith.constant 0 : index
    %1545 = vector.load %arg10[%c0_736, %c11_737, %c0_738, %c0_739] : memref<1x16x16x16xf32, #tpu.memory_space<vmem>>, vector<1x1x16x16xf32>
    %1546 = vector.shape_cast %1545 : vector<1x1x16x16xf32> to vector<16x16xf32>
    %1547 = vector.shape_cast %1544 : vector<16x16xf32> to vector<1x1x16x16xf32>
    tpu.vector_store %arg10[%c0_736, %c11_737, %c0_738, %c0_739], %1547 {strides = array<i32>} : memref<1x16x16x16xf32, #tpu.memory_space<vmem>>, vector<1x1x16x16xf32>,
    %c99_740 = arith.constant 99 : index
    %1548 = memref.load %arg2[%c99_740] : memref<144xf32, #tpu.memory_space<smem>>
    %1549 = vector.broadcast %1548 : f32 to vector<16x16xf32>
    %1550 = arith.mulf %1490, %1549 : vector<16x16xf32>
    %c99_741 = arith.constant 99 : index
    %1551 = memref.load %arg3[%c99_741] : memref<144xf32, #tpu.memory_space<smem>>
    %1552 = vector.broadcast %1551 : f32 to vector<16x16xf32>
    %1553 = arith.mulf %1490, %1552 : vector<16x16xf32>
    %c100_742 = arith.constant 100 : index
    %1554 = memref.load %arg2[%c100_742] : memref<144xf32, #tpu.memory_space<smem>>
    %1555 = vector.broadcast %1554 : f32 to vector<16x16xf32>
    %1556 = arith.mulf %1492, %1555 : vector<16x16xf32>
    %1557 = arith.addf %1550, %1556 : vector<16x16xf32>
    %c100_743 = arith.constant 100 : index
    %1558 = memref.load %arg3[%c100_743] : memref<144xf32, #tpu.memory_space<smem>>
    %1559 = vector.broadcast %1558 : f32 to vector<16x16xf32>
    %1560 = arith.mulf %1492, %1559 : vector<16x16xf32>
    %1561 = arith.addf %1553, %1560 : vector<16x16xf32>
    %c101_744 = arith.constant 101 : index
    %1562 = memref.load %arg2[%c101_744] : memref<144xf32, #tpu.memory_space<smem>>
    %1563 = vector.broadcast %1562 : f32 to vector<16x16xf32>
    %1564 = arith.mulf %1494, %1563 : vector<16x16xf32>
    %1565 = arith.addf %1557, %1564 : vector<16x16xf32>
    %c101_745 = arith.constant 101 : index
    %1566 = memref.load %arg3[%c101_745] : memref<144xf32, #tpu.memory_space<smem>>
    %1567 = vector.broadcast %1566 : f32 to vector<16x16xf32>
    %1568 = arith.mulf %1494, %1567 : vector<16x16xf32>
    %1569 = arith.addf %1561, %1568 : vector<16x16xf32>
    %c102_746 = arith.constant 102 : index
    %1570 = memref.load %arg2[%c102_746] : memref<144xf32, #tpu.memory_space<smem>>
    %1571 = vector.broadcast %1570 : f32 to vector<16x16xf32>
    %1572 = arith.mulf %1496, %1571 : vector<16x16xf32>
    %1573 = arith.addf %1565, %1572 : vector<16x16xf32>
    %c102_747 = arith.constant 102 : index
    %1574 = memref.load %arg3[%c102_747] : memref<144xf32, #tpu.memory_space<smem>>
    %1575 = vector.broadcast %1574 : f32 to vector<16x16xf32>
    %1576 = arith.mulf %1496, %1575 : vector<16x16xf32>
    %1577 = arith.addf %1569, %1576 : vector<16x16xf32>
    %c103_748 = arith.constant 103 : index
    %1578 = memref.load %arg2[%c103_748] : memref<144xf32, #tpu.memory_space<smem>>
    %1579 = vector.broadcast %1578 : f32 to vector<16x16xf32>
    %1580 = arith.mulf %1498, %1579 : vector<16x16xf32>
    %1581 = arith.addf %1573, %1580 : vector<16x16xf32>
    %c103_749 = arith.constant 103 : index
    %1582 = memref.load %arg3[%c103_749] : memref<144xf32, #tpu.memory_space<smem>>
    %1583 = vector.broadcast %1582 : f32 to vector<16x16xf32>
    %1584 = arith.mulf %1498, %1583 : vector<16x16xf32>
    %1585 = arith.addf %1577, %1584 : vector<16x16xf32>
    %c104_750 = arith.constant 104 : index
    %1586 = memref.load %arg2[%c104_750] : memref<144xf32, #tpu.memory_space<smem>>
    %1587 = vector.broadcast %1586 : f32 to vector<16x16xf32>
    %1588 = arith.mulf %1500, %1587 : vector<16x16xf32>
    %1589 = arith.addf %1581, %1588 : vector<16x16xf32>
    %c104_751 = arith.constant 104 : index
    %1590 = memref.load %arg3[%c104_751] : memref<144xf32, #tpu.memory_space<smem>>
    %1591 = vector.broadcast %1590 : f32 to vector<16x16xf32>
    %1592 = arith.mulf %1500, %1591 : vector<16x16xf32>
    %1593 = arith.addf %1585, %1592 : vector<16x16xf32>
    %c105_752 = arith.constant 105 : index
    %1594 = memref.load %arg2[%c105_752] : memref<144xf32, #tpu.memory_space<smem>>
    %1595 = vector.broadcast %1594 : f32 to vector<16x16xf32>
    %1596 = arith.mulf %1502, %1595 : vector<16x16xf32>
    %1597 = arith.addf %1589, %1596 : vector<16x16xf32>
    %c105_753 = arith.constant 105 : index
    %1598 = memref.load %arg3[%c105_753] : memref<144xf32, #tpu.memory_space<smem>>
    %1599 = vector.broadcast %1598 : f32 to vector<16x16xf32>
    %1600 = arith.mulf %1502, %1599 : vector<16x16xf32>
    %1601 = arith.addf %1593, %1600 : vector<16x16xf32>
    %c106_754 = arith.constant 106 : index
    %1602 = memref.load %arg2[%c106_754] : memref<144xf32, #tpu.memory_space<smem>>
    %1603 = vector.broadcast %1602 : f32 to vector<16x16xf32>
    %1604 = arith.mulf %1504, %1603 : vector<16x16xf32>
    %1605 = arith.addf %1597, %1604 : vector<16x16xf32>
    %c106_755 = arith.constant 106 : index
    %1606 = memref.load %arg3[%c106_755] : memref<144xf32, #tpu.memory_space<smem>>
    %1607 = vector.broadcast %1606 : f32 to vector<16x16xf32>
    %1608 = arith.mulf %1504, %1607 : vector<16x16xf32>
    %1609 = arith.addf %1601, %1608 : vector<16x16xf32>
    %c107_756 = arith.constant 107 : index
    %1610 = memref.load %arg2[%c107_756] : memref<144xf32, #tpu.memory_space<smem>>
    %1611 = vector.broadcast %1610 : f32 to vector<16x16xf32>
    %1612 = arith.mulf %1506, %1611 : vector<16x16xf32>
    %1613 = arith.addf %1605, %1612 : vector<16x16xf32>
    %c107_757 = arith.constant 107 : index
    %1614 = memref.load %arg3[%c107_757] : memref<144xf32, #tpu.memory_space<smem>>
    %1615 = vector.broadcast %1614 : f32 to vector<16x16xf32>
    %1616 = arith.mulf %1506, %1615 : vector<16x16xf32>
    %1617 = arith.addf %1609, %1616 : vector<16x16xf32>
    %1618 = arith.addf %1484, %1613 : vector<16x16xf32>
    %c5_758 = arith.constant 5 : index
    %1619 = memref.load %arg5[%c5_758] : memref<8xf32, #tpu.memory_space<smem>>
    %1620 = vector.broadcast %1619 : f32 to vector<16x16xf32>
    %1621 = arith.addf %1618, %1620 : vector<16x16xf32>
    %c0_759 = arith.constant 0 : index
    %c5_760 = arith.constant 5 : index
    %c0_761 = arith.constant 0 : index
    %c0_762 = arith.constant 0 : index
    %1622 = vector.load %arg8[%c0_759, %c5_760, %c0_761, %c0_762] : memref<1x8x16x16xf32, #tpu.memory_space<vmem>>, vector<1x1x16x16xf32>
    %1623 = vector.shape_cast %1622 : vector<1x1x16x16xf32> to vector<16x16xf32>
    %1624 = vector.shape_cast %1621 : vector<16x16xf32> to vector<1x1x16x16xf32>
    tpu.vector_store %arg8[%c0_759, %c5_760, %c0_761, %c0_762], %1624 {strides = array<i32>} : memref<1x8x16x16xf32, #tpu.memory_space<vmem>>, vector<1x1x16x16xf32>,
    %1625 = arith.addf %1488, %1617 : vector<16x16xf32>
    %c5_763 = arith.constant 5 : index
    %1626 = memref.load %arg6[%c5_763] : memref<8xf32, #tpu.memory_space<smem>>
    %1627 = vector.broadcast %1626 : f32 to vector<16x16xf32>
    %1628 = arith.addf %1625, %1627 : vector<16x16xf32>
    %c0_764 = arith.constant 0 : index
    %c5_765 = arith.constant 5 : index
    %c0_766 = arith.constant 0 : index
    %c0_767 = arith.constant 0 : index
    %1629 = vector.load %arg9[%c0_764, %c5_765, %c0_766, %c0_767] : memref<1x8x16x16xf32, #tpu.memory_space<vmem>>, vector<1x1x16x16xf32>
    %1630 = vector.shape_cast %1629 : vector<1x1x16x16xf32> to vector<16x16xf32>
    %1631 = vector.shape_cast %1628 : vector<16x16xf32> to vector<1x1x16x16xf32>
    tpu.vector_store %arg9[%c0_764, %c5_765, %c0_766, %c0_767], %1631 {strides = array<i32>} : memref<1x8x16x16xf32, #tpu.memory_space<vmem>>, vector<1x1x16x16xf32>,
    %c0_768 = arith.constant 0 : index
    %c12_769 = arith.constant 12 : index
    %c0_770 = arith.constant 0 : index
    %c0_771 = arith.constant 0 : index
    %1632 = vector.load %arg1[%c0_768, %c12_769, %c0_770, %c0_771] : memref<1x16x18x18xf32, #tpu.memory_space<vmem>>, vector<1x1x16x16xf32>
    %1633 = vector.shape_cast %1632 : vector<1x1x16x16xf32> to vector<16x16xf32>
    %c0_772 = arith.constant 0 : index
    %c12_773 = arith.constant 12 : index
    %c0_774 = arith.constant 0 : index
    %c1_775 = arith.constant 1 : index
    %1634 = vector.load %arg1[%c0_772, %c12_773, %c0_774, %c1_775] : memref<1x16x18x18xf32, #tpu.memory_space<vmem>>, vector<1x1x16x16xf32>
    %1635 = vector.shape_cast %1634 : vector<1x1x16x16xf32> to vector<16x16xf32>
    %c0_776 = arith.constant 0 : index
    %c12_777 = arith.constant 12 : index
    %c0_778 = arith.constant 0 : index
    %c2_779 = arith.constant 2 : index
    %1636 = vector.load %arg1[%c0_776, %c12_777, %c0_778, %c2_779] : memref<1x16x18x18xf32, #tpu.memory_space<vmem>>, vector<1x1x16x16xf32>
    %1637 = vector.shape_cast %1636 : vector<1x1x16x16xf32> to vector<16x16xf32>
    %c0_780 = arith.constant 0 : index
    %c12_781 = arith.constant 12 : index
    %c1_782 = arith.constant 1 : index
    %c0_783 = arith.constant 0 : index
    %1638 = vector.load %arg1[%c0_780, %c12_781, %c1_782, %c0_783] : memref<1x16x18x18xf32, #tpu.memory_space<vmem>>, vector<1x1x16x16xf32>
    %1639 = vector.shape_cast %1638 : vector<1x1x16x16xf32> to vector<16x16xf32>
    %c0_784 = arith.constant 0 : index
    %c12_785 = arith.constant 12 : index
    %c1_786 = arith.constant 1 : index
    %c1_787 = arith.constant 1 : index
    %1640 = vector.load %arg1[%c0_784, %c12_785, %c1_786, %c1_787] : memref<1x16x18x18xf32, #tpu.memory_space<vmem>>, vector<1x1x16x16xf32>
    %1641 = vector.shape_cast %1640 : vector<1x1x16x16xf32> to vector<16x16xf32>
    %c0_788 = arith.constant 0 : index
    %c12_789 = arith.constant 12 : index
    %c1_790 = arith.constant 1 : index
    %c2_791 = arith.constant 2 : index
    %1642 = vector.load %arg1[%c0_788, %c12_789, %c1_790, %c2_791] : memref<1x16x18x18xf32, #tpu.memory_space<vmem>>, vector<1x1x16x16xf32>
    %1643 = vector.shape_cast %1642 : vector<1x1x16x16xf32> to vector<16x16xf32>
    %c0_792 = arith.constant 0 : index
    %c12_793 = arith.constant 12 : index
    %c2_794 = arith.constant 2 : index
    %c0_795 = arith.constant 0 : index
    %1644 = vector.load %arg1[%c0_792, %c12_793, %c2_794, %c0_795] : memref<1x16x18x18xf32, #tpu.memory_space<vmem>>, vector<1x1x16x16xf32>
    %1645 = vector.shape_cast %1644 : vector<1x1x16x16xf32> to vector<16x16xf32>
    %c0_796 = arith.constant 0 : index
    %c12_797 = arith.constant 12 : index
    %c2_798 = arith.constant 2 : index
    %c1_799 = arith.constant 1 : index
    %1646 = vector.load %arg1[%c0_796, %c12_797, %c2_798, %c1_799] : memref<1x16x18x18xf32, #tpu.memory_space<vmem>>, vector<1x1x16x16xf32>
    %1647 = vector.shape_cast %1646 : vector<1x1x16x16xf32> to vector<16x16xf32>
    %c0_800 = arith.constant 0 : index
    %c12_801 = arith.constant 12 : index
    %c2_802 = arith.constant 2 : index
    %c2_803 = arith.constant 2 : index
    %1648 = vector.load %arg1[%c0_800, %c12_801, %c2_802, %c2_803] : memref<1x16x18x18xf32, #tpu.memory_space<vmem>>, vector<1x1x16x16xf32>
    %1649 = vector.shape_cast %1648 : vector<1x1x16x16xf32> to vector<16x16xf32>
    %c108 = arith.constant 108 : index
    %1650 = memref.load %arg4[%c108] : memref<144xf32, #tpu.memory_space<smem>>
    %1651 = vector.broadcast %1650 : f32 to vector<16x16xf32>
    %1652 = arith.mulf %1633, %1651 : vector<16x16xf32>
    %c109 = arith.constant 109 : index
    %1653 = memref.load %arg4[%c109] : memref<144xf32, #tpu.memory_space<smem>>
    %1654 = vector.broadcast %1653 : f32 to vector<16x16xf32>
    %1655 = arith.mulf %1635, %1654 : vector<16x16xf32>
    %1656 = arith.addf %1652, %1655 : vector<16x16xf32>
    %c110 = arith.constant 110 : index
    %1657 = memref.load %arg4[%c110] : memref<144xf32, #tpu.memory_space<smem>>
    %1658 = vector.broadcast %1657 : f32 to vector<16x16xf32>
    %1659 = arith.mulf %1637, %1658 : vector<16x16xf32>
    %1660 = arith.addf %1656, %1659 : vector<16x16xf32>
    %c111 = arith.constant 111 : index
    %1661 = memref.load %arg4[%c111] : memref<144xf32, #tpu.memory_space<smem>>
    %1662 = vector.broadcast %1661 : f32 to vector<16x16xf32>
    %1663 = arith.mulf %1639, %1662 : vector<16x16xf32>
    %1664 = arith.addf %1660, %1663 : vector<16x16xf32>
    %c112 = arith.constant 112 : index
    %1665 = memref.load %arg4[%c112] : memref<144xf32, #tpu.memory_space<smem>>
    %1666 = vector.broadcast %1665 : f32 to vector<16x16xf32>
    %1667 = arith.mulf %1641, %1666 : vector<16x16xf32>
    %1668 = arith.addf %1664, %1667 : vector<16x16xf32>
    %c113 = arith.constant 113 : index
    %1669 = memref.load %arg4[%c113] : memref<144xf32, #tpu.memory_space<smem>>
    %1670 = vector.broadcast %1669 : f32 to vector<16x16xf32>
    %1671 = arith.mulf %1643, %1670 : vector<16x16xf32>
    %1672 = arith.addf %1668, %1671 : vector<16x16xf32>
    %c114 = arith.constant 114 : index
    %1673 = memref.load %arg4[%c114] : memref<144xf32, #tpu.memory_space<smem>>
    %1674 = vector.broadcast %1673 : f32 to vector<16x16xf32>
    %1675 = arith.mulf %1645, %1674 : vector<16x16xf32>
    %1676 = arith.addf %1672, %1675 : vector<16x16xf32>
    %c115 = arith.constant 115 : index
    %1677 = memref.load %arg4[%c115] : memref<144xf32, #tpu.memory_space<smem>>
    %1678 = vector.broadcast %1677 : f32 to vector<16x16xf32>
    %1679 = arith.mulf %1647, %1678 : vector<16x16xf32>
    %1680 = arith.addf %1676, %1679 : vector<16x16xf32>
    %c116 = arith.constant 116 : index
    %1681 = memref.load %arg4[%c116] : memref<144xf32, #tpu.memory_space<smem>>
    %1682 = vector.broadcast %1681 : f32 to vector<16x16xf32>
    %1683 = arith.mulf %1649, %1682 : vector<16x16xf32>
    %1684 = arith.addf %1680, %1683 : vector<16x16xf32>
    %c12_804 = arith.constant 12 : index
    %1685 = memref.load %arg7[%c12_804] : memref<16xf32, #tpu.memory_space<smem>>
    %1686 = vector.broadcast %1685 : f32 to vector<16x16xf32>
    %1687 = arith.addf %1684, %1686 : vector<16x16xf32>
    %c0_805 = arith.constant 0 : index
    %c12_806 = arith.constant 12 : index
    %c0_807 = arith.constant 0 : index
    %c0_808 = arith.constant 0 : index
    %1688 = vector.load %arg10[%c0_805, %c12_806, %c0_807, %c0_808] : memref<1x16x16x16xf32, #tpu.memory_space<vmem>>, vector<1x1x16x16xf32>
    %1689 = vector.shape_cast %1688 : vector<1x1x16x16xf32> to vector<16x16xf32>
    %1690 = vector.shape_cast %1687 : vector<16x16xf32> to vector<1x1x16x16xf32>
    tpu.vector_store %arg10[%c0_805, %c12_806, %c0_807, %c0_808], %1690 {strides = array<i32>} : memref<1x16x16x16xf32, #tpu.memory_space<vmem>>, vector<1x1x16x16xf32>,
    %c108_809 = arith.constant 108 : index
    %1691 = memref.load %arg2[%c108_809] : memref<144xf32, #tpu.memory_space<smem>>
    %1692 = vector.broadcast %1691 : f32 to vector<16x16xf32>
    %1693 = arith.mulf %1633, %1692 : vector<16x16xf32>
    %c108_810 = arith.constant 108 : index
    %1694 = memref.load %arg3[%c108_810] : memref<144xf32, #tpu.memory_space<smem>>
    %1695 = vector.broadcast %1694 : f32 to vector<16x16xf32>
    %1696 = arith.mulf %1633, %1695 : vector<16x16xf32>
    %c109_811 = arith.constant 109 : index
    %1697 = memref.load %arg2[%c109_811] : memref<144xf32, #tpu.memory_space<smem>>
    %1698 = vector.broadcast %1697 : f32 to vector<16x16xf32>
    %1699 = arith.mulf %1635, %1698 : vector<16x16xf32>
    %1700 = arith.addf %1693, %1699 : vector<16x16xf32>
    %c109_812 = arith.constant 109 : index
    %1701 = memref.load %arg3[%c109_812] : memref<144xf32, #tpu.memory_space<smem>>
    %1702 = vector.broadcast %1701 : f32 to vector<16x16xf32>
    %1703 = arith.mulf %1635, %1702 : vector<16x16xf32>
    %1704 = arith.addf %1696, %1703 : vector<16x16xf32>
    %c110_813 = arith.constant 110 : index
    %1705 = memref.load %arg2[%c110_813] : memref<144xf32, #tpu.memory_space<smem>>
    %1706 = vector.broadcast %1705 : f32 to vector<16x16xf32>
    %1707 = arith.mulf %1637, %1706 : vector<16x16xf32>
    %1708 = arith.addf %1700, %1707 : vector<16x16xf32>
    %c110_814 = arith.constant 110 : index
    %1709 = memref.load %arg3[%c110_814] : memref<144xf32, #tpu.memory_space<smem>>
    %1710 = vector.broadcast %1709 : f32 to vector<16x16xf32>
    %1711 = arith.mulf %1637, %1710 : vector<16x16xf32>
    %1712 = arith.addf %1704, %1711 : vector<16x16xf32>
    %c111_815 = arith.constant 111 : index
    %1713 = memref.load %arg2[%c111_815] : memref<144xf32, #tpu.memory_space<smem>>
    %1714 = vector.broadcast %1713 : f32 to vector<16x16xf32>
    %1715 = arith.mulf %1639, %1714 : vector<16x16xf32>
    %1716 = arith.addf %1708, %1715 : vector<16x16xf32>
    %c111_816 = arith.constant 111 : index
    %1717 = memref.load %arg3[%c111_816] : memref<144xf32, #tpu.memory_space<smem>>
    %1718 = vector.broadcast %1717 : f32 to vector<16x16xf32>
    %1719 = arith.mulf %1639, %1718 : vector<16x16xf32>
    %1720 = arith.addf %1712, %1719 : vector<16x16xf32>
    %c112_817 = arith.constant 112 : index
    %1721 = memref.load %arg2[%c112_817] : memref<144xf32, #tpu.memory_space<smem>>
    %1722 = vector.broadcast %1721 : f32 to vector<16x16xf32>
    %1723 = arith.mulf %1641, %1722 : vector<16x16xf32>
    %1724 = arith.addf %1716, %1723 : vector<16x16xf32>
    %c112_818 = arith.constant 112 : index
    %1725 = memref.load %arg3[%c112_818] : memref<144xf32, #tpu.memory_space<smem>>
    %1726 = vector.broadcast %1725 : f32 to vector<16x16xf32>
    %1727 = arith.mulf %1641, %1726 : vector<16x16xf32>
    %1728 = arith.addf %1720, %1727 : vector<16x16xf32>
    %c113_819 = arith.constant 113 : index
    %1729 = memref.load %arg2[%c113_819] : memref<144xf32, #tpu.memory_space<smem>>
    %1730 = vector.broadcast %1729 : f32 to vector<16x16xf32>
    %1731 = arith.mulf %1643, %1730 : vector<16x16xf32>
    %1732 = arith.addf %1724, %1731 : vector<16x16xf32>
    %c113_820 = arith.constant 113 : index
    %1733 = memref.load %arg3[%c113_820] : memref<144xf32, #tpu.memory_space<smem>>
    %1734 = vector.broadcast %1733 : f32 to vector<16x16xf32>
    %1735 = arith.mulf %1643, %1734 : vector<16x16xf32>
    %1736 = arith.addf %1728, %1735 : vector<16x16xf32>
    %c114_821 = arith.constant 114 : index
    %1737 = memref.load %arg2[%c114_821] : memref<144xf32, #tpu.memory_space<smem>>
    %1738 = vector.broadcast %1737 : f32 to vector<16x16xf32>
    %1739 = arith.mulf %1645, %1738 : vector<16x16xf32>
    %1740 = arith.addf %1732, %1739 : vector<16x16xf32>
    %c114_822 = arith.constant 114 : index
    %1741 = memref.load %arg3[%c114_822] : memref<144xf32, #tpu.memory_space<smem>>
    %1742 = vector.broadcast %1741 : f32 to vector<16x16xf32>
    %1743 = arith.mulf %1645, %1742 : vector<16x16xf32>
    %1744 = arith.addf %1736, %1743 : vector<16x16xf32>
    %c115_823 = arith.constant 115 : index
    %1745 = memref.load %arg2[%c115_823] : memref<144xf32, #tpu.memory_space<smem>>
    %1746 = vector.broadcast %1745 : f32 to vector<16x16xf32>
    %1747 = arith.mulf %1647, %1746 : vector<16x16xf32>
    %1748 = arith.addf %1740, %1747 : vector<16x16xf32>
    %c115_824 = arith.constant 115 : index
    %1749 = memref.load %arg3[%c115_824] : memref<144xf32, #tpu.memory_space<smem>>
    %1750 = vector.broadcast %1749 : f32 to vector<16x16xf32>
    %1751 = arith.mulf %1647, %1750 : vector<16x16xf32>
    %1752 = arith.addf %1744, %1751 : vector<16x16xf32>
    %c116_825 = arith.constant 116 : index
    %1753 = memref.load %arg2[%c116_825] : memref<144xf32, #tpu.memory_space<smem>>
    %1754 = vector.broadcast %1753 : f32 to vector<16x16xf32>
    %1755 = arith.mulf %1649, %1754 : vector<16x16xf32>
    %1756 = arith.addf %1748, %1755 : vector<16x16xf32>
    %c116_826 = arith.constant 116 : index
    %1757 = memref.load %arg3[%c116_826] : memref<144xf32, #tpu.memory_space<smem>>
    %1758 = vector.broadcast %1757 : f32 to vector<16x16xf32>
    %1759 = arith.mulf %1649, %1758 : vector<16x16xf32>
    %1760 = arith.addf %1752, %1759 : vector<16x16xf32>
    %c0_827 = arith.constant 0 : index
    %c13_828 = arith.constant 13 : index
    %c0_829 = arith.constant 0 : index
    %c0_830 = arith.constant 0 : index
    %1761 = vector.load %arg1[%c0_827, %c13_828, %c0_829, %c0_830] : memref<1x16x18x18xf32, #tpu.memory_space<vmem>>, vector<1x1x16x16xf32>
    %1762 = vector.shape_cast %1761 : vector<1x1x16x16xf32> to vector<16x16xf32>
    %c0_831 = arith.constant 0 : index
    %c13_832 = arith.constant 13 : index
    %c0_833 = arith.constant 0 : index
    %c1_834 = arith.constant 1 : index
    %1763 = vector.load %arg1[%c0_831, %c13_832, %c0_833, %c1_834] : memref<1x16x18x18xf32, #tpu.memory_space<vmem>>, vector<1x1x16x16xf32>
    %1764 = vector.shape_cast %1763 : vector<1x1x16x16xf32> to vector<16x16xf32>
    %c0_835 = arith.constant 0 : index
    %c13_836 = arith.constant 13 : index
    %c0_837 = arith.constant 0 : index
    %c2_838 = arith.constant 2 : index
    %1765 = vector.load %arg1[%c0_835, %c13_836, %c0_837, %c2_838] : memref<1x16x18x18xf32, #tpu.memory_space<vmem>>, vector<1x1x16x16xf32>
    %1766 = vector.shape_cast %1765 : vector<1x1x16x16xf32> to vector<16x16xf32>
    %c0_839 = arith.constant 0 : index
    %c13_840 = arith.constant 13 : index
    %c1_841 = arith.constant 1 : index
    %c0_842 = arith.constant 0 : index
    %1767 = vector.load %arg1[%c0_839, %c13_840, %c1_841, %c0_842] : memref<1x16x18x18xf32, #tpu.memory_space<vmem>>, vector<1x1x16x16xf32>
    %1768 = vector.shape_cast %1767 : vector<1x1x16x16xf32> to vector<16x16xf32>
    %c0_843 = arith.constant 0 : index
    %c13_844 = arith.constant 13 : index
    %c1_845 = arith.constant 1 : index
    %c1_846 = arith.constant 1 : index
    %1769 = vector.load %arg1[%c0_843, %c13_844, %c1_845, %c1_846] : memref<1x16x18x18xf32, #tpu.memory_space<vmem>>, vector<1x1x16x16xf32>
    %1770 = vector.shape_cast %1769 : vector<1x1x16x16xf32> to vector<16x16xf32>
    %c0_847 = arith.constant 0 : index
    %c13_848 = arith.constant 13 : index
    %c1_849 = arith.constant 1 : index
    %c2_850 = arith.constant 2 : index
    %1771 = vector.load %arg1[%c0_847, %c13_848, %c1_849, %c2_850] : memref<1x16x18x18xf32, #tpu.memory_space<vmem>>, vector<1x1x16x16xf32>
    %1772 = vector.shape_cast %1771 : vector<1x1x16x16xf32> to vector<16x16xf32>
    %c0_851 = arith.constant 0 : index
    %c13_852 = arith.constant 13 : index
    %c2_853 = arith.constant 2 : index
    %c0_854 = arith.constant 0 : index
    %1773 = vector.load %arg1[%c0_851, %c13_852, %c2_853, %c0_854] : memref<1x16x18x18xf32, #tpu.memory_space<vmem>>, vector<1x1x16x16xf32>
    %1774 = vector.shape_cast %1773 : vector<1x1x16x16xf32> to vector<16x16xf32>
    %c0_855 = arith.constant 0 : index
    %c13_856 = arith.constant 13 : index
    %c2_857 = arith.constant 2 : index
    %c1_858 = arith.constant 1 : index
    %1775 = vector.load %arg1[%c0_855, %c13_856, %c2_857, %c1_858] : memref<1x16x18x18xf32, #tpu.memory_space<vmem>>, vector<1x1x16x16xf32>
    %1776 = vector.shape_cast %1775 : vector<1x1x16x16xf32> to vector<16x16xf32>
    %c0_859 = arith.constant 0 : index
    %c13_860 = arith.constant 13 : index
    %c2_861 = arith.constant 2 : index
    %c2_862 = arith.constant 2 : index
    %1777 = vector.load %arg1[%c0_859, %c13_860, %c2_861, %c2_862] : memref<1x16x18x18xf32, #tpu.memory_space<vmem>>, vector<1x1x16x16xf32>
    %1778 = vector.shape_cast %1777 : vector<1x1x16x16xf32> to vector<16x16xf32>
    %c117 = arith.constant 117 : index
    %1779 = memref.load %arg4[%c117] : memref<144xf32, #tpu.memory_space<smem>>
    %1780 = vector.broadcast %1779 : f32 to vector<16x16xf32>
    %1781 = arith.mulf %1762, %1780 : vector<16x16xf32>
    %c118 = arith.constant 118 : index
    %1782 = memref.load %arg4[%c118] : memref<144xf32, #tpu.memory_space<smem>>
    %1783 = vector.broadcast %1782 : f32 to vector<16x16xf32>
    %1784 = arith.mulf %1764, %1783 : vector<16x16xf32>
    %1785 = arith.addf %1781, %1784 : vector<16x16xf32>
    %c119 = arith.constant 119 : index
    %1786 = memref.load %arg4[%c119] : memref<144xf32, #tpu.memory_space<smem>>
    %1787 = vector.broadcast %1786 : f32 to vector<16x16xf32>
    %1788 = arith.mulf %1766, %1787 : vector<16x16xf32>
    %1789 = arith.addf %1785, %1788 : vector<16x16xf32>
    %c120 = arith.constant 120 : index
    %1790 = memref.load %arg4[%c120] : memref<144xf32, #tpu.memory_space<smem>>
    %1791 = vector.broadcast %1790 : f32 to vector<16x16xf32>
    %1792 = arith.mulf %1768, %1791 : vector<16x16xf32>
    %1793 = arith.addf %1789, %1792 : vector<16x16xf32>
    %c121 = arith.constant 121 : index
    %1794 = memref.load %arg4[%c121] : memref<144xf32, #tpu.memory_space<smem>>
    %1795 = vector.broadcast %1794 : f32 to vector<16x16xf32>
    %1796 = arith.mulf %1770, %1795 : vector<16x16xf32>
    %1797 = arith.addf %1793, %1796 : vector<16x16xf32>
    %c122 = arith.constant 122 : index
    %1798 = memref.load %arg4[%c122] : memref<144xf32, #tpu.memory_space<smem>>
    %1799 = vector.broadcast %1798 : f32 to vector<16x16xf32>
    %1800 = arith.mulf %1772, %1799 : vector<16x16xf32>
    %1801 = arith.addf %1797, %1800 : vector<16x16xf32>
    %c123 = arith.constant 123 : index
    %1802 = memref.load %arg4[%c123] : memref<144xf32, #tpu.memory_space<smem>>
    %1803 = vector.broadcast %1802 : f32 to vector<16x16xf32>
    %1804 = arith.mulf %1774, %1803 : vector<16x16xf32>
    %1805 = arith.addf %1801, %1804 : vector<16x16xf32>
    %c124 = arith.constant 124 : index
    %1806 = memref.load %arg4[%c124] : memref<144xf32, #tpu.memory_space<smem>>
    %1807 = vector.broadcast %1806 : f32 to vector<16x16xf32>
    %1808 = arith.mulf %1776, %1807 : vector<16x16xf32>
    %1809 = arith.addf %1805, %1808 : vector<16x16xf32>
    %c125 = arith.constant 125 : index
    %1810 = memref.load %arg4[%c125] : memref<144xf32, #tpu.memory_space<smem>>
    %1811 = vector.broadcast %1810 : f32 to vector<16x16xf32>
    %1812 = arith.mulf %1778, %1811 : vector<16x16xf32>
    %1813 = arith.addf %1809, %1812 : vector<16x16xf32>
    %c13_863 = arith.constant 13 : index
    %1814 = memref.load %arg7[%c13_863] : memref<16xf32, #tpu.memory_space<smem>>
    %1815 = vector.broadcast %1814 : f32 to vector<16x16xf32>
    %1816 = arith.addf %1813, %1815 : vector<16x16xf32>
    %c0_864 = arith.constant 0 : index
    %c13_865 = arith.constant 13 : index
    %c0_866 = arith.constant 0 : index
    %c0_867 = arith.constant 0 : index
    %1817 = vector.load %arg10[%c0_864, %c13_865, %c0_866, %c0_867] : memref<1x16x16x16xf32, #tpu.memory_space<vmem>>, vector<1x1x16x16xf32>
    %1818 = vector.shape_cast %1817 : vector<1x1x16x16xf32> to vector<16x16xf32>
    %1819 = vector.shape_cast %1816 : vector<16x16xf32> to vector<1x1x16x16xf32>
    tpu.vector_store %arg10[%c0_864, %c13_865, %c0_866, %c0_867], %1819 {strides = array<i32>} : memref<1x16x16x16xf32, #tpu.memory_space<vmem>>, vector<1x1x16x16xf32>,
    %c117_868 = arith.constant 117 : index
    %1820 = memref.load %arg2[%c117_868] : memref<144xf32, #tpu.memory_space<smem>>
    %1821 = vector.broadcast %1820 : f32 to vector<16x16xf32>
    %1822 = arith.mulf %1762, %1821 : vector<16x16xf32>
    %c117_869 = arith.constant 117 : index
    %1823 = memref.load %arg3[%c117_869] : memref<144xf32, #tpu.memory_space<smem>>
    %1824 = vector.broadcast %1823 : f32 to vector<16x16xf32>
    %1825 = arith.mulf %1762, %1824 : vector<16x16xf32>
    %c118_870 = arith.constant 118 : index
    %1826 = memref.load %arg2[%c118_870] : memref<144xf32, #tpu.memory_space<smem>>
    %1827 = vector.broadcast %1826 : f32 to vector<16x16xf32>
    %1828 = arith.mulf %1764, %1827 : vector<16x16xf32>
    %1829 = arith.addf %1822, %1828 : vector<16x16xf32>
    %c118_871 = arith.constant 118 : index
    %1830 = memref.load %arg3[%c118_871] : memref<144xf32, #tpu.memory_space<smem>>
    %1831 = vector.broadcast %1830 : f32 to vector<16x16xf32>
    %1832 = arith.mulf %1764, %1831 : vector<16x16xf32>
    %1833 = arith.addf %1825, %1832 : vector<16x16xf32>
    %c119_872 = arith.constant 119 : index
    %1834 = memref.load %arg2[%c119_872] : memref<144xf32, #tpu.memory_space<smem>>
    %1835 = vector.broadcast %1834 : f32 to vector<16x16xf32>
    %1836 = arith.mulf %1766, %1835 : vector<16x16xf32>
    %1837 = arith.addf %1829, %1836 : vector<16x16xf32>
    %c119_873 = arith.constant 119 : index
    %1838 = memref.load %arg3[%c119_873] : memref<144xf32, #tpu.memory_space<smem>>
    %1839 = vector.broadcast %1838 : f32 to vector<16x16xf32>
    %1840 = arith.mulf %1766, %1839 : vector<16x16xf32>
    %1841 = arith.addf %1833, %1840 : vector<16x16xf32>
    %c120_874 = arith.constant 120 : index
    %1842 = memref.load %arg2[%c120_874] : memref<144xf32, #tpu.memory_space<smem>>
    %1843 = vector.broadcast %1842 : f32 to vector<16x16xf32>
    %1844 = arith.mulf %1768, %1843 : vector<16x16xf32>
    %1845 = arith.addf %1837, %1844 : vector<16x16xf32>
    %c120_875 = arith.constant 120 : index
    %1846 = memref.load %arg3[%c120_875] : memref<144xf32, #tpu.memory_space<smem>>
    %1847 = vector.broadcast %1846 : f32 to vector<16x16xf32>
    %1848 = arith.mulf %1768, %1847 : vector<16x16xf32>
    %1849 = arith.addf %1841, %1848 : vector<16x16xf32>
    %c121_876 = arith.constant 121 : index
    %1850 = memref.load %arg2[%c121_876] : memref<144xf32, #tpu.memory_space<smem>>
    %1851 = vector.broadcast %1850 : f32 to vector<16x16xf32>
    %1852 = arith.mulf %1770, %1851 : vector<16x16xf32>
    %1853 = arith.addf %1845, %1852 : vector<16x16xf32>
    %c121_877 = arith.constant 121 : index
    %1854 = memref.load %arg3[%c121_877] : memref<144xf32, #tpu.memory_space<smem>>
    %1855 = vector.broadcast %1854 : f32 to vector<16x16xf32>
    %1856 = arith.mulf %1770, %1855 : vector<16x16xf32>
    %1857 = arith.addf %1849, %1856 : vector<16x16xf32>
    %c122_878 = arith.constant 122 : index
    %1858 = memref.load %arg2[%c122_878] : memref<144xf32, #tpu.memory_space<smem>>
    %1859 = vector.broadcast %1858 : f32 to vector<16x16xf32>
    %1860 = arith.mulf %1772, %1859 : vector<16x16xf32>
    %1861 = arith.addf %1853, %1860 : vector<16x16xf32>
    %c122_879 = arith.constant 122 : index
    %1862 = memref.load %arg3[%c122_879] : memref<144xf32, #tpu.memory_space<smem>>
    %1863 = vector.broadcast %1862 : f32 to vector<16x16xf32>
    %1864 = arith.mulf %1772, %1863 : vector<16x16xf32>
    %1865 = arith.addf %1857, %1864 : vector<16x16xf32>
    %c123_880 = arith.constant 123 : index
    %1866 = memref.load %arg2[%c123_880] : memref<144xf32, #tpu.memory_space<smem>>
    %1867 = vector.broadcast %1866 : f32 to vector<16x16xf32>
    %1868 = arith.mulf %1774, %1867 : vector<16x16xf32>
    %1869 = arith.addf %1861, %1868 : vector<16x16xf32>
    %c123_881 = arith.constant 123 : index
    %1870 = memref.load %arg3[%c123_881] : memref<144xf32, #tpu.memory_space<smem>>
    %1871 = vector.broadcast %1870 : f32 to vector<16x16xf32>
    %1872 = arith.mulf %1774, %1871 : vector<16x16xf32>
    %1873 = arith.addf %1865, %1872 : vector<16x16xf32>
    %c124_882 = arith.constant 124 : index
    %1874 = memref.load %arg2[%c124_882] : memref<144xf32, #tpu.memory_space<smem>>
    %1875 = vector.broadcast %1874 : f32 to vector<16x16xf32>
    %1876 = arith.mulf %1776, %1875 : vector<16x16xf32>
    %1877 = arith.addf %1869, %1876 : vector<16x16xf32>
    %c124_883 = arith.constant 124 : index
    %1878 = memref.load %arg3[%c124_883] : memref<144xf32, #tpu.memory_space<smem>>
    %1879 = vector.broadcast %1878 : f32 to vector<16x16xf32>
    %1880 = arith.mulf %1776, %1879 : vector<16x16xf32>
    %1881 = arith.addf %1873, %1880 : vector<16x16xf32>
    %c125_884 = arith.constant 125 : index
    %1882 = memref.load %arg2[%c125_884] : memref<144xf32, #tpu.memory_space<smem>>
    %1883 = vector.broadcast %1882 : f32 to vector<16x16xf32>
    %1884 = arith.mulf %1778, %1883 : vector<16x16xf32>
    %1885 = arith.addf %1877, %1884 : vector<16x16xf32>
    %c125_885 = arith.constant 125 : index
    %1886 = memref.load %arg3[%c125_885] : memref<144xf32, #tpu.memory_space<smem>>
    %1887 = vector.broadcast %1886 : f32 to vector<16x16xf32>
    %1888 = arith.mulf %1778, %1887 : vector<16x16xf32>
    %1889 = arith.addf %1881, %1888 : vector<16x16xf32>
    %1890 = arith.addf %1756, %1885 : vector<16x16xf32>
    %c6_886 = arith.constant 6 : index
    %1891 = memref.load %arg5[%c6_886] : memref<8xf32, #tpu.memory_space<smem>>
    %1892 = vector.broadcast %1891 : f32 to vector<16x16xf32>
    %1893 = arith.addf %1890, %1892 : vector<16x16xf32>
    %c0_887 = arith.constant 0 : index
    %c6_888 = arith.constant 6 : index
    %c0_889 = arith.constant 0 : index
    %c0_890 = arith.constant 0 : index
    %1894 = vector.load %arg8[%c0_887, %c6_888, %c0_889, %c0_890] : memref<1x8x16x16xf32, #tpu.memory_space<vmem>>, vector<1x1x16x16xf32>
    %1895 = vector.shape_cast %1894 : vector<1x1x16x16xf32> to vector<16x16xf32>
    %1896 = vector.shape_cast %1893 : vector<16x16xf32> to vector<1x1x16x16xf32>
    tpu.vector_store %arg8[%c0_887, %c6_888, %c0_889, %c0_890], %1896 {strides = array<i32>} : memref<1x8x16x16xf32, #tpu.memory_space<vmem>>, vector<1x1x16x16xf32>,
    %1897 = arith.addf %1760, %1889 : vector<16x16xf32>
    %c6_891 = arith.constant 6 : index
    %1898 = memref.load %arg6[%c6_891] : memref<8xf32, #tpu.memory_space<smem>>
    %1899 = vector.broadcast %1898 : f32 to vector<16x16xf32>
    %1900 = arith.addf %1897, %1899 : vector<16x16xf32>
    %c0_892 = arith.constant 0 : index
    %c6_893 = arith.constant 6 : index
    %c0_894 = arith.constant 0 : index
    %c0_895 = arith.constant 0 : index
    %1901 = vector.load %arg9[%c0_892, %c6_893, %c0_894, %c0_895] : memref<1x8x16x16xf32, #tpu.memory_space<vmem>>, vector<1x1x16x16xf32>
    %1902 = vector.shape_cast %1901 : vector<1x1x16x16xf32> to vector<16x16xf32>
    %1903 = vector.shape_cast %1900 : vector<16x16xf32> to vector<1x1x16x16xf32>
    tpu.vector_store %arg9[%c0_892, %c6_893, %c0_894, %c0_895], %1903 {strides = array<i32>} : memref<1x8x16x16xf32, #tpu.memory_space<vmem>>, vector<1x1x16x16xf32>,
    %c0_896 = arith.constant 0 : index
    %c14_897 = arith.constant 14 : index
    %c0_898 = arith.constant 0 : index
    %c0_899 = arith.constant 0 : index
    %1904 = vector.load %arg1[%c0_896, %c14_897, %c0_898, %c0_899] : memref<1x16x18x18xf32, #tpu.memory_space<vmem>>, vector<1x1x16x16xf32>
    %1905 = vector.shape_cast %1904 : vector<1x1x16x16xf32> to vector<16x16xf32>
    %c0_900 = arith.constant 0 : index
    %c14_901 = arith.constant 14 : index
    %c0_902 = arith.constant 0 : index
    %c1_903 = arith.constant 1 : index
    %1906 = vector.load %arg1[%c0_900, %c14_901, %c0_902, %c1_903] : memref<1x16x18x18xf32, #tpu.memory_space<vmem>>, vector<1x1x16x16xf32>
    %1907 = vector.shape_cast %1906 : vector<1x1x16x16xf32> to vector<16x16xf32>
    %c0_904 = arith.constant 0 : index
    %c14_905 = arith.constant 14 : index
    %c0_906 = arith.constant 0 : index
    %c2_907 = arith.constant 2 : index
    %1908 = vector.load %arg1[%c0_904, %c14_905, %c0_906, %c2_907] : memref<1x16x18x18xf32, #tpu.memory_space<vmem>>, vector<1x1x16x16xf32>
    %1909 = vector.shape_cast %1908 : vector<1x1x16x16xf32> to vector<16x16xf32>
    %c0_908 = arith.constant 0 : index
    %c14_909 = arith.constant 14 : index
    %c1_910 = arith.constant 1 : index
    %c0_911 = arith.constant 0 : index
    %1910 = vector.load %arg1[%c0_908, %c14_909, %c1_910, %c0_911] : memref<1x16x18x18xf32, #tpu.memory_space<vmem>>, vector<1x1x16x16xf32>
    %1911 = vector.shape_cast %1910 : vector<1x1x16x16xf32> to vector<16x16xf32>
    %c0_912 = arith.constant 0 : index
    %c14_913 = arith.constant 14 : index
    %c1_914 = arith.constant 1 : index
    %c1_915 = arith.constant 1 : index
    %1912 = vector.load %arg1[%c0_912, %c14_913, %c1_914, %c1_915] : memref<1x16x18x18xf32, #tpu.memory_space<vmem>>, vector<1x1x16x16xf32>
    %1913 = vector.shape_cast %1912 : vector<1x1x16x16xf32> to vector<16x16xf32>
    %c0_916 = arith.constant 0 : index
    %c14_917 = arith.constant 14 : index
    %c1_918 = arith.constant 1 : index
    %c2_919 = arith.constant 2 : index
    %1914 = vector.load %arg1[%c0_916, %c14_917, %c1_918, %c2_919] : memref<1x16x18x18xf32, #tpu.memory_space<vmem>>, vector<1x1x16x16xf32>
    %1915 = vector.shape_cast %1914 : vector<1x1x16x16xf32> to vector<16x16xf32>
    %c0_920 = arith.constant 0 : index
    %c14_921 = arith.constant 14 : index
    %c2_922 = arith.constant 2 : index
    %c0_923 = arith.constant 0 : index
    %1916 = vector.load %arg1[%c0_920, %c14_921, %c2_922, %c0_923] : memref<1x16x18x18xf32, #tpu.memory_space<vmem>>, vector<1x1x16x16xf32>
    %1917 = vector.shape_cast %1916 : vector<1x1x16x16xf32> to vector<16x16xf32>
    %c0_924 = arith.constant 0 : index
    %c14_925 = arith.constant 14 : index
    %c2_926 = arith.constant 2 : index
    %c1_927 = arith.constant 1 : index
    %1918 = vector.load %arg1[%c0_924, %c14_925, %c2_926, %c1_927] : memref<1x16x18x18xf32, #tpu.memory_space<vmem>>, vector<1x1x16x16xf32>
    %1919 = vector.shape_cast %1918 : vector<1x1x16x16xf32> to vector<16x16xf32>
    %c0_928 = arith.constant 0 : index
    %c14_929 = arith.constant 14 : index
    %c2_930 = arith.constant 2 : index
    %c2_931 = arith.constant 2 : index
    %1920 = vector.load %arg1[%c0_928, %c14_929, %c2_930, %c2_931] : memref<1x16x18x18xf32, #tpu.memory_space<vmem>>, vector<1x1x16x16xf32>
    %1921 = vector.shape_cast %1920 : vector<1x1x16x16xf32> to vector<16x16xf32>
    %c126 = arith.constant 126 : index
    %1922 = memref.load %arg4[%c126] : memref<144xf32, #tpu.memory_space<smem>>
    %1923 = vector.broadcast %1922 : f32 to vector<16x16xf32>
    %1924 = arith.mulf %1905, %1923 : vector<16x16xf32>
    %c127 = arith.constant 127 : index
    %1925 = memref.load %arg4[%c127] : memref<144xf32, #tpu.memory_space<smem>>
    %1926 = vector.broadcast %1925 : f32 to vector<16x16xf32>
    %1927 = arith.mulf %1907, %1926 : vector<16x16xf32>
    %1928 = arith.addf %1924, %1927 : vector<16x16xf32>
    %c128 = arith.constant 128 : index
    %1929 = memref.load %arg4[%c128] : memref<144xf32, #tpu.memory_space<smem>>
    %1930 = vector.broadcast %1929 : f32 to vector<16x16xf32>
    %1931 = arith.mulf %1909, %1930 : vector<16x16xf32>
    %1932 = arith.addf %1928, %1931 : vector<16x16xf32>
    %c129 = arith.constant 129 : index
    %1933 = memref.load %arg4[%c129] : memref<144xf32, #tpu.memory_space<smem>>
    %1934 = vector.broadcast %1933 : f32 to vector<16x16xf32>
    %1935 = arith.mulf %1911, %1934 : vector<16x16xf32>
    %1936 = arith.addf %1932, %1935 : vector<16x16xf32>
    %c130 = arith.constant 130 : index
    %1937 = memref.load %arg4[%c130] : memref<144xf32, #tpu.memory_space<smem>>
    %1938 = vector.broadcast %1937 : f32 to vector<16x16xf32>
    %1939 = arith.mulf %1913, %1938 : vector<16x16xf32>
    %1940 = arith.addf %1936, %1939 : vector<16x16xf32>
    %c131 = arith.constant 131 : index
    %1941 = memref.load %arg4[%c131] : memref<144xf32, #tpu.memory_space<smem>>
    %1942 = vector.broadcast %1941 : f32 to vector<16x16xf32>
    %1943 = arith.mulf %1915, %1942 : vector<16x16xf32>
    %1944 = arith.addf %1940, %1943 : vector<16x16xf32>
    %c132 = arith.constant 132 : index
    %1945 = memref.load %arg4[%c132] : memref<144xf32, #tpu.memory_space<smem>>
    %1946 = vector.broadcast %1945 : f32 to vector<16x16xf32>
    %1947 = arith.mulf %1917, %1946 : vector<16x16xf32>
    %1948 = arith.addf %1944, %1947 : vector<16x16xf32>
    %c133 = arith.constant 133 : index
    %1949 = memref.load %arg4[%c133] : memref<144xf32, #tpu.memory_space<smem>>
    %1950 = vector.broadcast %1949 : f32 to vector<16x16xf32>
    %1951 = arith.mulf %1919, %1950 : vector<16x16xf32>
    %1952 = arith.addf %1948, %1951 : vector<16x16xf32>
    %c134 = arith.constant 134 : index
    %1953 = memref.load %arg4[%c134] : memref<144xf32, #tpu.memory_space<smem>>
    %1954 = vector.broadcast %1953 : f32 to vector<16x16xf32>
    %1955 = arith.mulf %1921, %1954 : vector<16x16xf32>
    %1956 = arith.addf %1952, %1955 : vector<16x16xf32>
    %c14_932 = arith.constant 14 : index
    %1957 = memref.load %arg7[%c14_932] : memref<16xf32, #tpu.memory_space<smem>>
    %1958 = vector.broadcast %1957 : f32 to vector<16x16xf32>
    %1959 = arith.addf %1956, %1958 : vector<16x16xf32>
    %c0_933 = arith.constant 0 : index
    %c14_934 = arith.constant 14 : index
    %c0_935 = arith.constant 0 : index
    %c0_936 = arith.constant 0 : index
    %1960 = vector.load %arg10[%c0_933, %c14_934, %c0_935, %c0_936] : memref<1x16x16x16xf32, #tpu.memory_space<vmem>>, vector<1x1x16x16xf32>
    %1961 = vector.shape_cast %1960 : vector<1x1x16x16xf32> to vector<16x16xf32>
    %1962 = vector.shape_cast %1959 : vector<16x16xf32> to vector<1x1x16x16xf32>
    tpu.vector_store %arg10[%c0_933, %c14_934, %c0_935, %c0_936], %1962 {strides = array<i32>} : memref<1x16x16x16xf32, #tpu.memory_space<vmem>>, vector<1x1x16x16xf32>,
    %c126_937 = arith.constant 126 : index
    %1963 = memref.load %arg2[%c126_937] : memref<144xf32, #tpu.memory_space<smem>>
    %1964 = vector.broadcast %1963 : f32 to vector<16x16xf32>
    %1965 = arith.mulf %1905, %1964 : vector<16x16xf32>
    %c126_938 = arith.constant 126 : index
    %1966 = memref.load %arg3[%c126_938] : memref<144xf32, #tpu.memory_space<smem>>
    %1967 = vector.broadcast %1966 : f32 to vector<16x16xf32>
    %1968 = arith.mulf %1905, %1967 : vector<16x16xf32>
    %c127_939 = arith.constant 127 : index
    %1969 = memref.load %arg2[%c127_939] : memref<144xf32, #tpu.memory_space<smem>>
    %1970 = vector.broadcast %1969 : f32 to vector<16x16xf32>
    %1971 = arith.mulf %1907, %1970 : vector<16x16xf32>
    %1972 = arith.addf %1965, %1971 : vector<16x16xf32>
    %c127_940 = arith.constant 127 : index
    %1973 = memref.load %arg3[%c127_940] : memref<144xf32, #tpu.memory_space<smem>>
    %1974 = vector.broadcast %1973 : f32 to vector<16x16xf32>
    %1975 = arith.mulf %1907, %1974 : vector<16x16xf32>
    %1976 = arith.addf %1968, %1975 : vector<16x16xf32>
    %c128_941 = arith.constant 128 : index
    %1977 = memref.load %arg2[%c128_941] : memref<144xf32, #tpu.memory_space<smem>>
    %1978 = vector.broadcast %1977 : f32 to vector<16x16xf32>
    %1979 = arith.mulf %1909, %1978 : vector<16x16xf32>
    %1980 = arith.addf %1972, %1979 : vector<16x16xf32>
    %c128_942 = arith.constant 128 : index
    %1981 = memref.load %arg3[%c128_942] : memref<144xf32, #tpu.memory_space<smem>>
    %1982 = vector.broadcast %1981 : f32 to vector<16x16xf32>
    %1983 = arith.mulf %1909, %1982 : vector<16x16xf32>
    %1984 = arith.addf %1976, %1983 : vector<16x16xf32>
    %c129_943 = arith.constant 129 : index
    %1985 = memref.load %arg2[%c129_943] : memref<144xf32, #tpu.memory_space<smem>>
    %1986 = vector.broadcast %1985 : f32 to vector<16x16xf32>
    %1987 = arith.mulf %1911, %1986 : vector<16x16xf32>
    %1988 = arith.addf %1980, %1987 : vector<16x16xf32>
    %c129_944 = arith.constant 129 : index
    %1989 = memref.load %arg3[%c129_944] : memref<144xf32, #tpu.memory_space<smem>>
    %1990 = vector.broadcast %1989 : f32 to vector<16x16xf32>
    %1991 = arith.mulf %1911, %1990 : vector<16x16xf32>
    %1992 = arith.addf %1984, %1991 : vector<16x16xf32>
    %c130_945 = arith.constant 130 : index
    %1993 = memref.load %arg2[%c130_945] : memref<144xf32, #tpu.memory_space<smem>>
    %1994 = vector.broadcast %1993 : f32 to vector<16x16xf32>
    %1995 = arith.mulf %1913, %1994 : vector<16x16xf32>
    %1996 = arith.addf %1988, %1995 : vector<16x16xf32>
    %c130_946 = arith.constant 130 : index
    %1997 = memref.load %arg3[%c130_946] : memref<144xf32, #tpu.memory_space<smem>>
    %1998 = vector.broadcast %1997 : f32 to vector<16x16xf32>
    %1999 = arith.mulf %1913, %1998 : vector<16x16xf32>
    %2000 = arith.addf %1992, %1999 : vector<16x16xf32>
    %c131_947 = arith.constant 131 : index
    %2001 = memref.load %arg2[%c131_947] : memref<144xf32, #tpu.memory_space<smem>>
    %2002 = vector.broadcast %2001 : f32 to vector<16x16xf32>
    %2003 = arith.mulf %1915, %2002 : vector<16x16xf32>
    %2004 = arith.addf %1996, %2003 : vector<16x16xf32>
    %c131_948 = arith.constant 131 : index
    %2005 = memref.load %arg3[%c131_948] : memref<144xf32, #tpu.memory_space<smem>>
    %2006 = vector.broadcast %2005 : f32 to vector<16x16xf32>
    %2007 = arith.mulf %1915, %2006 : vector<16x16xf32>
    %2008 = arith.addf %2000, %2007 : vector<16x16xf32>
    %c132_949 = arith.constant 132 : index
    %2009 = memref.load %arg2[%c132_949] : memref<144xf32, #tpu.memory_space<smem>>
    %2010 = vector.broadcast %2009 : f32 to vector<16x16xf32>
    %2011 = arith.mulf %1917, %2010 : vector<16x16xf32>
    %2012 = arith.addf %2004, %2011 : vector<16x16xf32>
    %c132_950 = arith.constant 132 : index
    %2013 = memref.load %arg3[%c132_950] : memref<144xf32, #tpu.memory_space<smem>>
    %2014 = vector.broadcast %2013 : f32 to vector<16x16xf32>
    %2015 = arith.mulf %1917, %2014 : vector<16x16xf32>
    %2016 = arith.addf %2008, %2015 : vector<16x16xf32>
    %c133_951 = arith.constant 133 : index
    %2017 = memref.load %arg2[%c133_951] : memref<144xf32, #tpu.memory_space<smem>>
    %2018 = vector.broadcast %2017 : f32 to vector<16x16xf32>
    %2019 = arith.mulf %1919, %2018 : vector<16x16xf32>
    %2020 = arith.addf %2012, %2019 : vector<16x16xf32>
    %c133_952 = arith.constant 133 : index
    %2021 = memref.load %arg3[%c133_952] : memref<144xf32, #tpu.memory_space<smem>>
    %2022 = vector.broadcast %2021 : f32 to vector<16x16xf32>
    %2023 = arith.mulf %1919, %2022 : vector<16x16xf32>
    %2024 = arith.addf %2016, %2023 : vector<16x16xf32>
    %c134_953 = arith.constant 134 : index
    %2025 = memref.load %arg2[%c134_953] : memref<144xf32, #tpu.memory_space<smem>>
    %2026 = vector.broadcast %2025 : f32 to vector<16x16xf32>
    %2027 = arith.mulf %1921, %2026 : vector<16x16xf32>
    %2028 = arith.addf %2020, %2027 : vector<16x16xf32>
    %c134_954 = arith.constant 134 : index
    %2029 = memref.load %arg3[%c134_954] : memref<144xf32, #tpu.memory_space<smem>>
    %2030 = vector.broadcast %2029 : f32 to vector<16x16xf32>
    %2031 = arith.mulf %1921, %2030 : vector<16x16xf32>
    %2032 = arith.addf %2024, %2031 : vector<16x16xf32>
    %c0_955 = arith.constant 0 : index
    %c15_956 = arith.constant 15 : index
    %c0_957 = arith.constant 0 : index
    %c0_958 = arith.constant 0 : index
    %2033 = vector.load %arg1[%c0_955, %c15_956, %c0_957, %c0_958] : memref<1x16x18x18xf32, #tpu.memory_space<vmem>>, vector<1x1x16x16xf32>
    %2034 = vector.shape_cast %2033 : vector<1x1x16x16xf32> to vector<16x16xf32>
    %c0_959 = arith.constant 0 : index
    %c15_960 = arith.constant 15 : index
    %c0_961 = arith.constant 0 : index
    %c1_962 = arith.constant 1 : index
    %2035 = vector.load %arg1[%c0_959, %c15_960, %c0_961, %c1_962] : memref<1x16x18x18xf32, #tpu.memory_space<vmem>>, vector<1x1x16x16xf32>
    %2036 = vector.shape_cast %2035 : vector<1x1x16x16xf32> to vector<16x16xf32>
    %c0_963 = arith.constant 0 : index
    %c15_964 = arith.constant 15 : index
    %c0_965 = arith.constant 0 : index
    %c2_966 = arith.constant 2 : index
    %2037 = vector.load %arg1[%c0_963, %c15_964, %c0_965, %c2_966] : memref<1x16x18x18xf32, #tpu.memory_space<vmem>>, vector<1x1x16x16xf32>
    %2038 = vector.shape_cast %2037 : vector<1x1x16x16xf32> to vector<16x16xf32>
    %c0_967 = arith.constant 0 : index
    %c15_968 = arith.constant 15 : index
    %c1_969 = arith.constant 1 : index
    %c0_970 = arith.constant 0 : index
    %2039 = vector.load %arg1[%c0_967, %c15_968, %c1_969, %c0_970] : memref<1x16x18x18xf32, #tpu.memory_space<vmem>>, vector<1x1x16x16xf32>
    %2040 = vector.shape_cast %2039 : vector<1x1x16x16xf32> to vector<16x16xf32>
    %c0_971 = arith.constant 0 : index
    %c15_972 = arith.constant 15 : index
    %c1_973 = arith.constant 1 : index
    %c1_974 = arith.constant 1 : index
    %2041 = vector.load %arg1[%c0_971, %c15_972, %c1_973, %c1_974] : memref<1x16x18x18xf32, #tpu.memory_space<vmem>>, vector<1x1x16x16xf32>
    %2042 = vector.shape_cast %2041 : vector<1x1x16x16xf32> to vector<16x16xf32>
    %c0_975 = arith.constant 0 : index
    %c15_976 = arith.constant 15 : index
    %c1_977 = arith.constant 1 : index
    %c2_978 = arith.constant 2 : index
    %2043 = vector.load %arg1[%c0_975, %c15_976, %c1_977, %c2_978] : memref<1x16x18x18xf32, #tpu.memory_space<vmem>>, vector<1x1x16x16xf32>
    %2044 = vector.shape_cast %2043 : vector<1x1x16x16xf32> to vector<16x16xf32>
    %c0_979 = arith.constant 0 : index
    %c15_980 = arith.constant 15 : index
    %c2_981 = arith.constant 2 : index
    %c0_982 = arith.constant 0 : index
    %2045 = vector.load %arg1[%c0_979, %c15_980, %c2_981, %c0_982] : memref<1x16x18x18xf32, #tpu.memory_space<vmem>>, vector<1x1x16x16xf32>
    %2046 = vector.shape_cast %2045 : vector<1x1x16x16xf32> to vector<16x16xf32>
    %c0_983 = arith.constant 0 : index
    %c15_984 = arith.constant 15 : index
    %c2_985 = arith.constant 2 : index
    %c1_986 = arith.constant 1 : index
    %2047 = vector.load %arg1[%c0_983, %c15_984, %c2_985, %c1_986] : memref<1x16x18x18xf32, #tpu.memory_space<vmem>>, vector<1x1x16x16xf32>
    %2048 = vector.shape_cast %2047 : vector<1x1x16x16xf32> to vector<16x16xf32>
    %c0_987 = arith.constant 0 : index
    %c15_988 = arith.constant 15 : index
    %c2_989 = arith.constant 2 : index
    %c2_990 = arith.constant 2 : index
    %2049 = vector.load %arg1[%c0_987, %c15_988, %c2_989, %c2_990] : memref<1x16x18x18xf32, #tpu.memory_space<vmem>>, vector<1x1x16x16xf32>
    %2050 = vector.shape_cast %2049 : vector<1x1x16x16xf32> to vector<16x16xf32>
    %c135 = arith.constant 135 : index
    %2051 = memref.load %arg4[%c135] : memref<144xf32, #tpu.memory_space<smem>>
    %2052 = vector.broadcast %2051 : f32 to vector<16x16xf32>
    %2053 = arith.mulf %2034, %2052 : vector<16x16xf32>
    %c136 = arith.constant 136 : index
    %2054 = memref.load %arg4[%c136] : memref<144xf32, #tpu.memory_space<smem>>
    %2055 = vector.broadcast %2054 : f32 to vector<16x16xf32>
    %2056 = arith.mulf %2036, %2055 : vector<16x16xf32>
    %2057 = arith.addf %2053, %2056 : vector<16x16xf32>
    %c137 = arith.constant 137 : index
    %2058 = memref.load %arg4[%c137] : memref<144xf32, #tpu.memory_space<smem>>
    %2059 = vector.broadcast %2058 : f32 to vector<16x16xf32>
    %2060 = arith.mulf %2038, %2059 : vector<16x16xf32>
    %2061 = arith.addf %2057, %2060 : vector<16x16xf32>
    %c138 = arith.constant 138 : index
    %2062 = memref.load %arg4[%c138] : memref<144xf32, #tpu.memory_space<smem>>
    %2063 = vector.broadcast %2062 : f32 to vector<16x16xf32>
    %2064 = arith.mulf %2040, %2063 : vector<16x16xf32>
    %2065 = arith.addf %2061, %2064 : vector<16x16xf32>
    %c139 = arith.constant 139 : index
    %2066 = memref.load %arg4[%c139] : memref<144xf32, #tpu.memory_space<smem>>
    %2067 = vector.broadcast %2066 : f32 to vector<16x16xf32>
    %2068 = arith.mulf %2042, %2067 : vector<16x16xf32>
    %2069 = arith.addf %2065, %2068 : vector<16x16xf32>
    %c140 = arith.constant 140 : index
    %2070 = memref.load %arg4[%c140] : memref<144xf32, #tpu.memory_space<smem>>
    %2071 = vector.broadcast %2070 : f32 to vector<16x16xf32>
    %2072 = arith.mulf %2044, %2071 : vector<16x16xf32>
    %2073 = arith.addf %2069, %2072 : vector<16x16xf32>
    %c141 = arith.constant 141 : index
    %2074 = memref.load %arg4[%c141] : memref<144xf32, #tpu.memory_space<smem>>
    %2075 = vector.broadcast %2074 : f32 to vector<16x16xf32>
    %2076 = arith.mulf %2046, %2075 : vector<16x16xf32>
    %2077 = arith.addf %2073, %2076 : vector<16x16xf32>
    %c142 = arith.constant 142 : index
    %2078 = memref.load %arg4[%c142] : memref<144xf32, #tpu.memory_space<smem>>
    %2079 = vector.broadcast %2078 : f32 to vector<16x16xf32>
    %2080 = arith.mulf %2048, %2079 : vector<16x16xf32>
    %2081 = arith.addf %2077, %2080 : vector<16x16xf32>
    %c143 = arith.constant 143 : index
    %2082 = memref.load %arg4[%c143] : memref<144xf32, #tpu.memory_space<smem>>
    %2083 = vector.broadcast %2082 : f32 to vector<16x16xf32>
    %2084 = arith.mulf %2050, %2083 : vector<16x16xf32>
    %2085 = arith.addf %2081, %2084 : vector<16x16xf32>
    %c15_991 = arith.constant 15 : index
    %2086 = memref.load %arg7[%c15_991] : memref<16xf32, #tpu.memory_space<smem>>
    %2087 = vector.broadcast %2086 : f32 to vector<16x16xf32>
    %2088 = arith.addf %2085, %2087 : vector<16x16xf32>
    %c0_992 = arith.constant 0 : index
    %c15_993 = arith.constant 15 : index
    %c0_994 = arith.constant 0 : index
    %c0_995 = arith.constant 0 : index
    %2089 = vector.load %arg10[%c0_992, %c15_993, %c0_994, %c0_995] : memref<1x16x16x16xf32, #tpu.memory_space<vmem>>, vector<1x1x16x16xf32>
    %2090 = vector.shape_cast %2089 : vector<1x1x16x16xf32> to vector<16x16xf32>
    %2091 = vector.shape_cast %2088 : vector<16x16xf32> to vector<1x1x16x16xf32>
    tpu.vector_store %arg10[%c0_992, %c15_993, %c0_994, %c0_995], %2091 {strides = array<i32>} : memref<1x16x16x16xf32, #tpu.memory_space<vmem>>, vector<1x1x16x16xf32>,
    %c135_996 = arith.constant 135 : index
    %2092 = memref.load %arg2[%c135_996] : memref<144xf32, #tpu.memory_space<smem>>
    %2093 = vector.broadcast %2092 : f32 to vector<16x16xf32>
    %2094 = arith.mulf %2034, %2093 : vector<16x16xf32>
    %c135_997 = arith.constant 135 : index
    %2095 = memref.load %arg3[%c135_997] : memref<144xf32, #tpu.memory_space<smem>>
    %2096 = vector.broadcast %2095 : f32 to vector<16x16xf32>
    %2097 = arith.mulf %2034, %2096 : vector<16x16xf32>
    %c136_998 = arith.constant 136 : index
    %2098 = memref.load %arg2[%c136_998] : memref<144xf32, #tpu.memory_space<smem>>
    %2099 = vector.broadcast %2098 : f32 to vector<16x16xf32>
    %2100 = arith.mulf %2036, %2099 : vector<16x16xf32>
    %2101 = arith.addf %2094, %2100 : vector<16x16xf32>
    %c136_999 = arith.constant 136 : index
    %2102 = memref.load %arg3[%c136_999] : memref<144xf32, #tpu.memory_space<smem>>
    %2103 = vector.broadcast %2102 : f32 to vector<16x16xf32>
    %2104 = arith.mulf %2036, %2103 : vector<16x16xf32>
    %2105 = arith.addf %2097, %2104 : vector<16x16xf32>
    %c137_1000 = arith.constant 137 : index
    %2106 = memref.load %arg2[%c137_1000] : memref<144xf32, #tpu.memory_space<smem>>
    %2107 = vector.broadcast %2106 : f32 to vector<16x16xf32>
    %2108 = arith.mulf %2038, %2107 : vector<16x16xf32>
    %2109 = arith.addf %2101, %2108 : vector<16x16xf32>
    %c137_1001 = arith.constant 137 : index
    %2110 = memref.load %arg3[%c137_1001] : memref<144xf32, #tpu.memory_space<smem>>
    %2111 = vector.broadcast %2110 : f32 to vector<16x16xf32>
    %2112 = arith.mulf %2038, %2111 : vector<16x16xf32>
    %2113 = arith.addf %2105, %2112 : vector<16x16xf32>
    %c138_1002 = arith.constant 138 : index
    %2114 = memref.load %arg2[%c138_1002] : memref<144xf32, #tpu.memory_space<smem>>
    %2115 = vector.broadcast %2114 : f32 to vector<16x16xf32>
    %2116 = arith.mulf %2040, %2115 : vector<16x16xf32>
    %2117 = arith.addf %2109, %2116 : vector<16x16xf32>
    %c138_1003 = arith.constant 138 : index
    %2118 = memref.load %arg3[%c138_1003] : memref<144xf32, #tpu.memory_space<smem>>
    %2119 = vector.broadcast %2118 : f32 to vector<16x16xf32>
    %2120 = arith.mulf %2040, %2119 : vector<16x16xf32>
    %2121 = arith.addf %2113, %2120 : vector<16x16xf32>
    %c139_1004 = arith.constant 139 : index
    %2122 = memref.load %arg2[%c139_1004] : memref<144xf32, #tpu.memory_space<smem>>
    %2123 = vector.broadcast %2122 : f32 to vector<16x16xf32>
    %2124 = arith.mulf %2042, %2123 : vector<16x16xf32>
    %2125 = arith.addf %2117, %2124 : vector<16x16xf32>
    %c139_1005 = arith.constant 139 : index
    %2126 = memref.load %arg3[%c139_1005] : memref<144xf32, #tpu.memory_space<smem>>
    %2127 = vector.broadcast %2126 : f32 to vector<16x16xf32>
    %2128 = arith.mulf %2042, %2127 : vector<16x16xf32>
    %2129 = arith.addf %2121, %2128 : vector<16x16xf32>
    %c140_1006 = arith.constant 140 : index
    %2130 = memref.load %arg2[%c140_1006] : memref<144xf32, #tpu.memory_space<smem>>
    %2131 = vector.broadcast %2130 : f32 to vector<16x16xf32>
    %2132 = arith.mulf %2044, %2131 : vector<16x16xf32>
    %2133 = arith.addf %2125, %2132 : vector<16x16xf32>
    %c140_1007 = arith.constant 140 : index
    %2134 = memref.load %arg3[%c140_1007] : memref<144xf32, #tpu.memory_space<smem>>
    %2135 = vector.broadcast %2134 : f32 to vector<16x16xf32>
    %2136 = arith.mulf %2044, %2135 : vector<16x16xf32>
    %2137 = arith.addf %2129, %2136 : vector<16x16xf32>
    %c141_1008 = arith.constant 141 : index
    %2138 = memref.load %arg2[%c141_1008] : memref<144xf32, #tpu.memory_space<smem>>
    %2139 = vector.broadcast %2138 : f32 to vector<16x16xf32>
    %2140 = arith.mulf %2046, %2139 : vector<16x16xf32>
    %2141 = arith.addf %2133, %2140 : vector<16x16xf32>
    %c141_1009 = arith.constant 141 : index
    %2142 = memref.load %arg3[%c141_1009] : memref<144xf32, #tpu.memory_space<smem>>
    %2143 = vector.broadcast %2142 : f32 to vector<16x16xf32>
    %2144 = arith.mulf %2046, %2143 : vector<16x16xf32>
    %2145 = arith.addf %2137, %2144 : vector<16x16xf32>
    %c142_1010 = arith.constant 142 : index
    %2146 = memref.load %arg2[%c142_1010] : memref<144xf32, #tpu.memory_space<smem>>
    %2147 = vector.broadcast %2146 : f32 to vector<16x16xf32>
    %2148 = arith.mulf %2048, %2147 : vector<16x16xf32>
    %2149 = arith.addf %2141, %2148 : vector<16x16xf32>
    %c142_1011 = arith.constant 142 : index
    %2150 = memref.load %arg3[%c142_1011] : memref<144xf32, #tpu.memory_space<smem>>
    %2151 = vector.broadcast %2150 : f32 to vector<16x16xf32>
    %2152 = arith.mulf %2048, %2151 : vector<16x16xf32>
    %2153 = arith.addf %2145, %2152 : vector<16x16xf32>
    %c143_1012 = arith.constant 143 : index
    %2154 = memref.load %arg2[%c143_1012] : memref<144xf32, #tpu.memory_space<smem>>
    %2155 = vector.broadcast %2154 : f32 to vector<16x16xf32>
    %2156 = arith.mulf %2050, %2155 : vector<16x16xf32>
    %2157 = arith.addf %2149, %2156 : vector<16x16xf32>
    %c143_1013 = arith.constant 143 : index
    %2158 = memref.load %arg3[%c143_1013] : memref<144xf32, #tpu.memory_space<smem>>
    %2159 = vector.broadcast %2158 : f32 to vector<16x16xf32>
    %2160 = arith.mulf %2050, %2159 : vector<16x16xf32>
    %2161 = arith.addf %2153, %2160 : vector<16x16xf32>
    %2162 = arith.addf %2028, %2157 : vector<16x16xf32>
    %c7_1014 = arith.constant 7 : index
    %2163 = memref.load %arg5[%c7_1014] : memref<8xf32, #tpu.memory_space<smem>>
    %2164 = vector.broadcast %2163 : f32 to vector<16x16xf32>
    %2165 = arith.addf %2162, %2164 : vector<16x16xf32>
    %c0_1015 = arith.constant 0 : index
    %c7_1016 = arith.constant 7 : index
    %c0_1017 = arith.constant 0 : index
    %c0_1018 = arith.constant 0 : index
    %2166 = vector.load %arg8[%c0_1015, %c7_1016, %c0_1017, %c0_1018] : memref<1x8x16x16xf32, #tpu.memory_space<vmem>>, vector<1x1x16x16xf32>
    %2167 = vector.shape_cast %2166 : vector<1x1x16x16xf32> to vector<16x16xf32>
    %2168 = vector.shape_cast %2165 : vector<16x16xf32> to vector<1x1x16x16xf32>
    tpu.vector_store %arg8[%c0_1015, %c7_1016, %c0_1017, %c0_1018], %2168 {strides = array<i32>} : memref<1x8x16x16xf32, #tpu.memory_space<vmem>>, vector<1x1x16x16xf32>,
    %2169 = arith.addf %2032, %2161 : vector<16x16xf32>
    %c7_1019 = arith.constant 7 : index
    %2170 = memref.load %arg6[%c7_1019] : memref<8xf32, #tpu.memory_space<smem>>
    %2171 = vector.broadcast %2170 : f32 to vector<16x16xf32>
    %2172 = arith.addf %2169, %2171 : vector<16x16xf32>
    %c0_1020 = arith.constant 0 : index
    %c7_1021 = arith.constant 7 : index
    %c0_1022 = arith.constant 0 : index
    %c0_1023 = arith.constant 0 : index
    %2173 = vector.load %arg9[%c0_1020, %c7_1021, %c0_1022, %c0_1023] : memref<1x8x16x16xf32, #tpu.memory_space<vmem>>, vector<1x1x16x16xf32>
    %2174 = vector.shape_cast %2173 : vector<1x1x16x16xf32> to vector<16x16xf32>
    %2175 = vector.shape_cast %2172 : vector<16x16xf32> to vector<1x1x16x16xf32>
    tpu.vector_store %arg9[%c0_1020, %c7_1021, %c0_1022, %c0_1023], %2175 {strides = array<i32>} : memref<1x8x16x16xf32, #tpu.memory_space<vmem>>, vector<1x1x16x16xf32>,
    return
  }
  func.func @transform_0(%arg0: i32) -> (i32, i32, i32, i32) {
    %c0_i32 = arith.constant 0 : i32
    %c0_i32_0 = arith.constant 0 : i32
    %c0_i32_1 = arith.constant 0 : i32
    %c0_i32_2 = arith.constant 0 : i32
    return %arg0, %c0_i32, %c0_i32_0, %c0_i32_1 : i32, i32, i32, i32
  }
  func.func @transform_1(%arg0: i32) -> i32 {
    %c0_i32 = arith.constant 0 : i32
    %c0_i32_0 = arith.constant 0 : i32
    return %c0_i32 : i32
  }
  func.func @transform_2(%arg0: i32) -> i32 {
    %c0_i32 = arith.constant 0 : i32
    %c0_i32_0 = arith.constant 0 : i32
    return %c0_i32 : i32
  }
  func.func @transform_3(%arg0: i32) -> i32 {
    %c0_i32 = arith.constant 0 : i32
    %c0_i32_0 = arith.constant 0 : i32
    return %c0_i32 : i32
  }
  func.func @transform_4(%arg0: i32) -> i32 {
    %c0_i32 = arith.constant 0 : i32
    %c0_i32_0 = arith.constant 0 : i32
    return %c0_i32 : i32
  }
  func.func @transform_5(%arg0: i32) -> i32 {
    %c0_i32 = arith.constant 0 : i32
    %c0_i32_0 = arith.constant 0 : i32
    return %c0_i32 : i32
  }
  func.func @transform_6(%arg0: i32) -> i32 {
    %c0_i32 = arith.constant 0 : i32
    %c0_i32_0 = arith.constant 0 : i32
    return %c0_i32 : i32
  }
  func.func @transform_7(%arg0: i32) -> (i32, i32, i32, i32) {
    %c0_i32 = arith.constant 0 : i32
    %c0_i32_0 = arith.constant 0 : i32
    %c0_i32_1 = arith.constant 0 : i32
    %c0_i32_2 = arith.constant 0 : i32
    return %arg0, %c0_i32, %c0_i32_0, %c0_i32_1 : i32, i32, i32, i32
  }
  func.func @transform_8(%arg0: i32) -> (i32, i32, i32, i32) {
    %c0_i32 = arith.constant 0 : i32
    %c0_i32_0 = arith.constant 0 : i32
    %c0_i32_1 = arith.constant 0 : i32
    %c0_i32_2 = arith.constant 0 : i32
    return %arg0, %c0_i32, %c0_i32_0, %c0_i32_1 : i32, i32, i32, i32
  }
  func.func @transform_9(%arg0: i32) -> (i32, i32, i32, i32) {
    %c0_i32 = arith.constant 0 : i32
    %c0_i32_0 = arith.constant 0 : i32
    %c0_i32_1 = arith.constant 0 : i32
    %c0_i32_2 = arith.constant 0 : i32
    return %arg0, %c0_i32, %c0_i32_0, %c0_i32_1 : i32, i32, i32, i32
  }
}

</mosaic_0001>

<llo_original>
// kernel: tpu_custom_call.1
$region0: #{tpu_custom_call.1}
  #allocation0 [shape = 'u32[]', space=smem, size = 0x4, offset = 0x4, fixed_abs, tag = 'smem constant byte address 0x4 - core index']
  #allocation1 [shape = 'u32[72,128]{1,0:T(1,128)}', space=vmem, size = 0x9000, scoped, tag = 'internal scratch']
  %s0 = inlined_call_operand.vmem [shape: f32[2,16,18,18], index: 0, kind: input, shape index: {}]
  %s1 = inlined_call_operand.vmem [shape: f32[144], index: 1, kind: input, shape index: {}]
  %s2 = inlined_call_operand.vmem [shape: f32[144], index: 2, kind: input, shape index: {}]
  %s3 = inlined_call_operand.vmem [shape: f32[144], index: 3, kind: input, shape index: {}]
  %s4 = inlined_call_operand.vmem [shape: f32[8], index: 4, kind: input, shape index: {}]
  %s5 = inlined_call_operand.vmem [shape: f32[8], index: 5, kind: input, shape index: {}]
  %s6 = inlined_call_operand.vmem [shape: f32[16], index: 6, kind: input, shape index: {}]
  %s7 = inlined_call_operand.hbm [shape: f32[2,8,16,16], index: 7, kind: output, shape index: {0}]
  %s8 = inlined_call_operand.hbm [shape: f32[2,8,16,16], index: 8, kind: output, shape index: {1}]
  %s9 = inlined_call_operand.hbm [shape: f32[2,16,16,16], index: 9, kind: output, shape index: {2}]
  %10 = xla_tuple %s7, %s8, %s9
  %s11 = sld [smem:[#allocation0]]
  $region101: #{tpu_custom_call.1} parent=0
    _
  %s13 = ssub.s32 1, %s11
  %s14 = scalar_select 0, %s13, %s11
  $region1: #{tpu_custom_call.1} parent=0
    #allocation2 [shape = 'u8[1024]{0}', space=smem, size = 0x400, scoped, tag = 'input window, operand 1, single buffered']
    #allocation3 [shape = 's32[2]{0}', space=sflag, size = 0x8, scoped, tag = 'scoped memory for tpu_custom_call.1']
    #allocation4 [shape = 's32[2]{0}', space=sflag, size = 0x8, scoped, tag = 'scoped memory for tpu_custom_call.1']
    #allocation5 [shape = 'u8[1024]{0}', space=smem, size = 0x400, scoped, tag = 'input window, operand 2, single buffered']
    #allocation6 [shape = 's32[1]{0}', space=sflag, size = 0x4, scoped, tag = 'scoped memory for tpu_custom_call.1']
    #allocation7 [shape = 'u8[1024]{0}', space=smem, size = 0x400, scoped, tag = 'input window, operand 3, single buffered']
    #allocation8 [shape = 'u8[512]{0}', space=smem, size = 0x200, scoped, tag = 'input window, operand 4, single buffered']
    #allocation9 [shape = 's32[1]{0}', space=sflag, size = 0x4, scoped, tag = 'scoped memory for tpu_custom_call.1']
    #allocation10 [shape = 'u8[512]{0}', space=smem, size = 0x200, scoped, tag = 'input window, operand 5, single buffered']
    #allocation11 [shape = 'u8[512]{0}', space=smem, size = 0x200, scoped, tag = 'input window, operand 6, single buffered']
    #allocation12 [shape = 's32[1]{0}', space=sflag, size = 0x4, scoped, tag = 'scoped memory for tpu_custom_call.1']
    #allocation13 [shape = 'u8[131072]{0}', space=vmem, size = 0x20000, scoped, tag = 'output window, operand 0']
    #allocation14 [shape = 'u8[131072]{0}', space=vmem, size = 0x20000, scoped, tag = 'output window, operand 1']
    #allocation15 [shape = 's32[2]{0}', space=sflag, size = 0x8, scoped, tag = 'scoped memory for tpu_custom_call.1']
    #allocation16 [shape = 'u8[262144]{0}', space=vmem, size = 0x40000, scoped, tag = 'output window, operand 2']
    %15 = vsyncpa [#allocation4], 0
    %16 = vsyncpa [#allocation6], 0
    %17 = vsyncpa [#allocation9], 0
    %18 = vsyncpa [#allocation12], 0
    %19 = vsyncpa [#allocation3], 0
    %s20 = scalar_lea.sflag [#allocation3], 1
    %21 = vsyncpa %s20, 0
    %22 = vsyncpa [#allocation15], 0
    %s23 = scalar_lea.sflag [#allocation15], 1
    %24 = vsyncpa %s23, 0
    loop: start=0, step=1, limit=4
    $region2: #{tpu_custom_call.1} parent=1 // loop_pre_header
      _
    $region3: #{tpu_custom_call.1} parent=1 // loop_header
      %s26 = sphi 0, %s30
      %p27 = scmp.ge.s32.totalorder %s26, 4
      %s36 = sphi 0, %s38
      %s39 = sphi 0, %s36
      %s40 = sphi 0, %s39
      %s56 = sphi 0, %s40
      %s60 = sphi 0, %s60
      %s62 = sphi 0, %s60
      %s63 = sphi 0, %s62
      %s77 = sphi 0, %s63
      %s81 = sphi 0, %s81
      %s83 = sphi 0, %s81
      %s84 = sphi 0, %s83
      %s98 = sphi 0, %s84
      %s102 = sphi 0, %s102
      %s104 = sphi 0, %s102
      %s105 = sphi 0, %s104
      %s119 = sphi 0, %s105
      %s123 = sphi 0, %s123
      %s125 = sphi 0, %s123
      %s126 = sphi 0, %s125
      %s140 = sphi 0, %s126
      %s144 = sphi 0, %s144
      %s146 = sphi 0, %s144
      %s147 = sphi 0, %s146
      %s161 = sphi 0, %s147
      %s165 = sphi 0, %s165
      %s167 = sphi 0, %s165
      %s168 = sphi 0, %s167
      %s182 = sphi 0, %s168
      %s188 = sphi 0, %s190
      %s191 = sphi 0, %s188
      %s192 = sphi 0, %s191
      %s208 = sphi 0, %s192
      %s214 = sphi 0, %s216
      %s217 = sphi 0, %s214
      %s218 = sphi 0, %s217
      %s234 = sphi 0, %s218
      %s240 = sphi 0, %s242
      %s243 = sphi 0, %s240
      %s244 = sphi 0, %s243
      %s260 = sphi 0, %s244
    $region4: #{tpu_custom_call.1} parent=1 // loop_header_branch
      %29 = sbr.rel (%p27) target = $region8
    $region5: #{tpu_custom_call.1} parent=1 // loop_body
      %s31 = ssub.s32 %s26, 1
      %s32 = ssub.s32 %s26, 2
      %s33 = sadd.s32 %s26, 1
      %s34 = ssub.s32 %s26, %s33
      %p35 = scmp.eq.s32.totalorder %s34, 0
      %s37 = sadd.s32 %s36, 1
      %s38 = scalar_select %p35, %s36, %s37
      %p41 = pneg %p35
      %p42 = scmp.eq.s32.totalorder %s26, 1
      %p43 = por %p41, %p42
      %p44 = scmp.ne.s32.totalorder %s36, %s39
      %p45 = scmp.eq.s32.totalorder %s26, 0
      %p46 = por %p44, %p45
      %p47 = scmp.ne.s32.totalorder %s36, %s39
      %p48 = scmp.eq.s32.totalorder %s31, 1
      %p49 = por %p47, %p48
      %p50 = scmp.ne.s32.totalorder %s39, %s40
      %p51 = scmp.eq.s32.totalorder %s31, 0
      %p52 = por %p50, %p51
      %p53 = scmp.ne.s32.totalorder %s39, %s40
      %p54 = scmp.eq.s32.totalorder %s32, 1
      %p55 = por %p53, %p54
      %p57 = scmp.ne.s32.totalorder %s40, %s56
      %p58 = scmp.eq.s32.totalorder %s32, 0
      %p59 = por %p57, %p58
      %s61 = sadd.s32 %s60, 1
      %p64 = scmp.eq.s32.totalorder %s26, 1
      %p65 = scmp.ne.s32.totalorder %s60, %s62
      %p66 = scmp.eq.s32.totalorder %s26, 0
      %p67 = por %p65, %p66
      %p68 = scmp.ne.s32.totalorder %s60, %s62
      %p69 = scmp.eq.s32.totalorder %s31, 1
      %p70 = por %p68, %p69
      %p71 = scmp.ne.s32.totalorder %s62, %s63
      %p72 = scmp.eq.s32.totalorder %s31, 0
      %p73 = por %p71, %p72
      %p74 = scmp.ne.s32.totalorder %s62, %s63
      %p75 = scmp.eq.s32.totalorder %s32, 1
      %p76 = por %p74, %p75
      %p78 = scmp.ne.s32.totalorder %s63, %s77
      %p79 = scmp.eq.s32.totalorder %s32, 0
      %p80 = por %p78, %p79
      %s82 = sadd.s32 %s81, 1
      %p85 = scmp.eq.s32.totalorder %s26, 1
      %p86 = scmp.ne.s32.totalorder %s81, %s83
      %p87 = scmp.eq.s32.totalorder %s26, 0
      %p88 = por %p86, %p87
      %p89 = scmp.ne.s32.totalorder %s81, %s83
      %p90 = scmp.eq.s32.totalorder %s31, 1
      %p91 = por %p89, %p90
      %p92 = scmp.ne.s32.totalorder %s83, %s84
      %p93 = scmp.eq.s32.totalorder %s31, 0
      %p94 = por %p92, %p93
      %p95 = scmp.ne.s32.totalorder %s83, %s84
      %p96 = scmp.eq.s32.totalorder %s32, 1
      %p97 = por %p95, %p96
      %p99 = scmp.ne.s32.totalorder %s84, %s98
      %p100 = scmp.eq.s32.totalorder %s32, 0
      %p101 = por %p99, %p100
      %s103 = sadd.s32 %s102, 1
      %p106 = scmp.eq.s32.totalorder %s26, 1
      %p107 = scmp.ne.s32.totalorder %s102, %s104
      %p108 = scmp.eq.s32.totalorder %s26, 0
      %p109 = por %p107, %p108
      %p110 = scmp.ne.s32.totalorder %s102, %s104
      %p111 = scmp.eq.s32.totalorder %s31, 1
      %p112 = por %p110, %p111
      %p113 = scmp.ne.s32.totalorder %s104, %s105
      %p114 = scmp.eq.s32.totalorder %s31, 0
      %p115 = por %p113, %p114
      %p116 = scmp.ne.s32.totalorder %s104, %s105
      %p117 = scmp.eq.s32.totalorder %s32, 1
      %p118 = por %p116, %p117
      %p120 = scmp.ne.s32.totalorder %s105, %s119
      %p121 = scmp.eq.s32.totalorder %s32, 0
      %p122 = por %p120, %p121
      %s124 = sadd.s32 %s123, 1
      %p127 = scmp.eq.s32.totalorder %s26, 1
      %p128 = scmp.ne.s32.totalorder %s123, %s125
      %p129 = scmp.eq.s32.totalorder %s26, 0
      %p130 = por %p128, %p129
      %p131 = scmp.ne.s32.totalorder %s123, %s125
      %p132 = scmp.eq.s32.totalorder %s31, 1
      %p133 = por %p131, %p132
      %p134 = scmp.ne.s32.totalorder %s125, %s126
      %p135 = scmp.eq.s32.totalorder %s31, 0
      %p136 = por %p134, %p135
      %p137 = scmp.ne.s32.totalorder %s125, %s126
      %p138 = scmp.eq.s32.totalorder %s32, 1
      %p139 = por %p137, %p138
      %p141 = scmp.ne.s32.totalorder %s126, %s140
      %p142 = scmp.eq.s32.totalorder %s32, 0
      %p143 = por %p141, %p142
      %s145 = sadd.s32 %s144, 1
      %p148 = scmp.eq.s32.totalorder %s26, 1
      %p149 = scmp.ne.s32.totalorder %s144, %s146
      %p150 = scmp.eq.s32.totalorder %s26, 0
      %p151 = por %p149, %p150
      %p152 = scmp.ne.s32.totalorder %s144, %s146
      %p153 = scmp.eq.s32.totalorder %s31, 1
      %p154 = por %p152, %p153
      %p155 = scmp.ne.s32.totalorder %s146, %s147
      %p156 = scmp.eq.s32.totalorder %s31, 0
      %p157 = por %p155, %p156
      %p158 = scmp.ne.s32.totalorder %s146, %s147
      %p159 = scmp.eq.s32.totalorder %s32, 1
      %p160 = por %p158, %p159
      %p162 = scmp.ne.s32.totalorder %s147, %s161
      %p163 = scmp.eq.s32.totalorder %s32, 0
      %p164 = por %p162, %p163
      %s166 = sadd.s32 %s165, 1
      %p169 = scmp.eq.s32.totalorder %s26, 1
      %p170 = scmp.ne.s32.totalorder %s165, %s167
      %p171 = scmp.eq.s32.totalorder %s26, 0
      %p172 = por %p170, %p171
      %p173 = scmp.ne.s32.totalorder %s165, %s167
      %p174 = scmp.eq.s32.totalorder %s31, 1
      %p175 = por %p173, %p174
      %p176 = scmp.ne.s32.totalorder %s167, %s168
      %p177 = scmp.eq.s32.totalorder %s31, 0
      %p178 = por %p176, %p177
      %p179 = scmp.ne.s32.totalorder %s167, %s168
      %p180 = scmp.eq.s32.totalorder %s32, 1
      %p181 = por %p179, %p180
      %p183 = scmp.ne.s32.totalorder %s168, %s182
      %p184 = scmp.eq.s32.totalorder %s32, 0
      %p185 = por %p183, %p184
      %s186 = ssub.s32 %s26, %s33
      %p187 = scmp.eq.s32.totalorder %s186, 0
      %s189 = sadd.s32 %s188, 1
      %s190 = scalar_select %p187, %s188, %s189
      %p193 = pneg %p187
      %p194 = scmp.eq.s32.totalorder %s26, 1
      %p195 = por %p193, %p194
      %p196 = scmp.ne.s32.totalorder %s188, %s191
      %p197 = scmp.eq.s32.totalorder %s26, 0
      %p198 = por %p196, %p197
      %p199 = scmp.ne.s32.totalorder %s188, %s191
      %p200 = scmp.eq.s32.totalorder %s31, 1
      %p201 = por %p199, %p200
      %p202 = scmp.ne.s32.totalorder %s191, %s192
      %p203 = scmp.eq.s32.totalorder %s31, 0
      %p204 = por %p202, %p203
      %p205 = scmp.ne.s32.totalorder %s191, %s192
      %p206 = scmp.eq.s32.totalorder %s32, 1
      %p207 = por %p205, %p206
      %p209 = scmp.ne.s32.totalorder %s192, %s208
      %p210 = scmp.eq.s32.totalorder %s32, 0
      %p211 = por %p209, %p210
      %s212 = ssub.s32 %s26, %s33
      %p213 = scmp.eq.s32.totalorder %s212, 0
      %s215 = sadd.s32 %s214, 1
      %s216 = scalar_select %p213, %s214, %s215
      %p219 = pneg %p213
      %p220 = scmp.eq.s32.totalorder %s26, 1
      %p221 = por %p219, %p220
      %p222 = scmp.ne.s32.totalorder %s214, %s217
      %p223 = scmp.eq.s32.totalorder %s26, 0
      %p224 = por %p222, %p223
      %p225 = scmp.ne.s32.totalorder %s214, %s217
      %p226 = scmp.eq.s32.totalorder %s31, 1
      %p227 = por %p225, %p226
      %p228 = scmp.ne.s32.totalorder %s217, %s218
      %p229 = scmp.eq.s32.totalorder %s31, 0
      %p230 = por %p228, %p229
      %p231 = scmp.ne.s32.totalorder %s217, %s218
      %p232 = scmp.eq.s32.totalorder %s32, 1
      %p233 = por %p231, %p232
      %p235 = scmp.ne.s32.totalorder %s218, %s234
      %p236 = scmp.eq.s32.totalorder %s32, 0
      %p237 = por %p235, %p236
      %s238 = ssub.s32 %s26, %s33
      %p239 = scmp.eq.s32.totalorder %s238, 0
      %s241 = sadd.s32 %s240, 1
      %s242 = scalar_select %p239, %s240, %s241
      %p245 = pneg %p239
      %p246 = scmp.eq.s32.totalorder %s26, 1
      %p247 = por %p245, %p246
      %p248 = scmp.ne.s32.totalorder %s240, %s243
      %p249 = scmp.eq.s32.totalorder %s26, 0
      %p250 = por %p248, %p249
      %p251 = scmp.ne.s32.totalorder %s240, %s243
      %p252 = scmp.eq.s32.totalorder %s31, 1
      %p253 = por %p251, %p252
      %p254 = scmp.ne.s32.totalorder %s243, %s244
      %p255 = scmp.eq.s32.totalorder %s31, 0
      %p256 = por %p254, %p255
      %p257 = scmp.ne.s32.totalorder %s243, %s244
      %p258 = scmp.eq.s32.totalorder %s32, 1
      %p259 = por %p257, %p258
      %p261 = scmp.ne.s32.totalorder %s244, %s260
      %p262 = scmp.eq.s32.totalorder %s32, 0
      %p263 = por %p261, %p262
      %p264 = scmp.le.s32.totalorder 1, %s26
      %p265 = scmp.lt.s32.totalorder %s26, 3
      %p266 = pnand %p264, %p265
      %p267 = pneg %p266
      // Predicated region
      $region9: #{tpu_custom_call.1} parent=5 // pred_check
        _
      $region10: #{tpu_custom_call.1} parent=5 // pred_check_branch
        %269 = sbr.rel (%p266) target = $region12
      $region11: #{tpu_custom_call.1} parent=5 // pred_region
        %s270 = ssub.s32 %s26, 1
        // Predicated region
        $region13: #{tpu_custom_call.1} parent=11 // pred_check
          %p271 = pneg %p73
        $region14: #{tpu_custom_call.1} parent=11 // pred_check_branch
          %273 = sbr.rel (%p271) target = $region16
        $region15: #{tpu_custom_call.1} parent=11 // pred_region
          %275 = vsyncadd [#allocation4], 0
          %s277 = sshll.u32 %s1, 4
          %s278 = int_to_ptr.vmem [resolvable:$true] %s277
          %280 = dma.vmem_to_smem %s278, 32, [#allocation2], [#allocation4]
        $region16: #{tpu_custom_call.1} parent=11 // pred_fallthru
          _
        // Predicated region
        $region17: #{tpu_custom_call.1} parent=11 // pred_check
          %p281 = pneg %p94
        $region18: #{tpu_custom_call.1} parent=11 // pred_check_branch
          %283 = sbr.rel (%p281) target = $region20
        $region19: #{tpu_custom_call.1} parent=11 // pred_region
          %285 = vsyncadd [#allocation6], 0
          %s287 = sshll.u32 %s2, 4
          %s288 = int_to_ptr.vmem [resolvable:$true] %s287
          %290 = dma.vmem_to_smem %s288, 32, [#allocation5], [#allocation6]
        $region20: #{tpu_custom_call.1} parent=11 // pred_fallthru
          _
        // Predicated region
        $region21: #{tpu_custom_call.1} parent=11 // pred_check
          %p291 = pneg %p115
        $region22: #{tpu_custom_call.1} parent=11 // pred_check_branch
          %293 = sbr.rel (%p291) target = $region24
        $region23: #{tpu_custom_call.1} parent=11 // pred_region
          %295 = vsyncadd [#allocation6], 0
          %s297 = sshll.u32 %s3, 4
          %s298 = int_to_ptr.vmem [resolvable:$true] %s297
          %300 = dma.vmem_to_smem %s298, 32, [#allocation7], [#allocation6]
        $region24: #{tpu_custom_call.1} parent=11 // pred_fallthru
          _
        // Predicated region
        $region25: #{tpu_custom_call.1} parent=11 // pred_check
          %p301 = pneg %p136
        $region26: #{tpu_custom_call.1} parent=11 // pred_check_branch
          %303 = sbr.rel (%p301) target = $region28
        $region27: #{tpu_custom_call.1} parent=11 // pred_region
          %305 = vsyncadd [#allocation9], 0
          %s307 = sshll.u32 %s4, 4
          %s308 = int_to_ptr.vmem [resolvable:$true] %s307
          %310 = dma.vmem_to_smem %s308, 16, [#allocation8], [#allocation9]
        $region28: #{tpu_custom_call.1} parent=11 // pred_fallthru
          _
        // Predicated region
        $region29: #{tpu_custom_call.1} parent=11 // pred_check
          %p311 = pneg %p157
        $region30: #{tpu_custom_call.1} parent=11 // pred_check_branch
          %313 = sbr.rel (%p311) target = $region32
        $region31: #{tpu_custom_call.1} parent=11 // pred_region
          %315 = vsyncadd [#allocation9], 0
          %s317 = sshll.u32 %s5, 4
          %s318 = int_to_ptr.vmem [resolvable:$true] %s317
          %320 = dma.vmem_to_smem %s318, 16, [#allocation10], [#allocation9]
        $region32: #{tpu_custom_call.1} parent=11 // pred_fallthru
          _
        // Predicated region
        $region33: #{tpu_custom_call.1} parent=11 // pred_check
          %p321 = pneg %p178
        $region34: #{tpu_custom_call.1} parent=11 // pred_check_branch
          %323 = sbr.rel (%p321) target = $region36
        $region35: #{tpu_custom_call.1} parent=11 // pred_region
          %325 = vsyncadd [#allocation12], 0
          %s327 = sshll.u32 %s6, 4
          %s328 = int_to_ptr.vmem [resolvable:$true] %s327
          %330 = dma.vmem_to_smem %s328, 16, [#allocation11], [#allocation12]
        $region36: #{tpu_custom_call.1} parent=11 // pred_fallthru
          _
      $region12: #{tpu_custom_call.1} parent=5 // pred_fallthru
        _
      %p331 = scmp.lt.s32.totalorder %s26, 2
      // Predicated region
      $region37: #{tpu_custom_call.1} parent=5 // pred_check
        %p332 = pneg %p331
      $region38: #{tpu_custom_call.1} parent=5 // pred_check_branch
        %334 = sbr.rel (%p332) target = $region40
      $region39: #{tpu_custom_call.1} parent=5 // pred_region
        // Predicated region
        $region41: #{tpu_custom_call.1} parent=39 // pred_check
          %p335 = pneg %p46
        $region42: #{tpu_custom_call.1} parent=39 // pred_check_branch
          %337 = sbr.rel (%p335) target = $region44
        $region43: #{tpu_custom_call.1} parent=39 // pred_region
          %p338 = scmp.lt.s32.totalorder %s26, 1
          %s339 = scalar_select %p338, %s26, 1
          %s340 = smul.addr %s339, 48
          %s341 = smul.addr %s340, 8
          %s342 = scalar_lea.vmem %s0, %s341
        $region44: #{tpu_custom_call.1} parent=39 // pred_fallthru
          _
      $region40: #{tpu_custom_call.1} parent=5 // pred_fallthru
        _
      %p343 = scmp.le.s32.totalorder 1, %s26
      %p344 = scmp.lt.s32.totalorder %s26, 3
      %p345 = pnand %p343, %p344
      %p346 = pneg %p345
      // Predicated region
      $region45: #{tpu_custom_call.1} parent=5 // pred_check
        _
      $region46: #{tpu_custom_call.1} parent=5 // pred_check_branch
        %348 = sbr.rel (%p345) target = $region48
      $region47: #{tpu_custom_call.1} parent=5 // pred_region
        %s349 = ssub.s32 %s26, 1
        // Predicated region
        $region49: #{tpu_custom_call.1} parent=47 // pred_check
          %p350 = pneg %p73
        $region50: #{tpu_custom_call.1} parent=47 // pred_check_branch
          %352 = sbr.rel (%p350) target = $region52
        $region51: #{tpu_custom_call.1} parent=47 // pred_region
          %354 = dma.done [#allocation4], 32
        $region52: #{tpu_custom_call.1} parent=47 // pred_fallthru
          _
        // Predicated region
        $region53: #{tpu_custom_call.1} parent=47 // pred_check
          %p355 = pneg %p94
        $region54: #{tpu_custom_call.1} parent=47 // pred_check_branch
          %357 = sbr.rel (%p355) target = $region56
        $region55: #{tpu_custom_call.1} parent=47 // pred_region
          %359 = dma.done [#allocation6], 32
        $region56: #{tpu_custom_call.1} parent=47 // pred_fallthru
          _
        // Predicated region
        $region57: #{tpu_custom_call.1} parent=47 // pred_check
          %p360 = pneg %p115
        $region58: #{tpu_custom_call.1} parent=47 // pred_check_branch
          %362 = sbr.rel (%p360) target = $region60
        $region59: #{tpu_custom_call.1} parent=47 // pred_region
          %364 = dma.done [#allocation6], 32
        $region60: #{tpu_custom_call.1} parent=47 // pred_fallthru
          _
        // Predicated region
        $region61: #{tpu_custom_call.1} parent=47 // pred_check
          %p365 = pneg %p136
        $region62: #{tpu_custom_call.1} parent=47 // pred_check_branch
          %367 = sbr.rel (%p365) target = $region64
        $region63: #{tpu_custom_call.1} parent=47 // pred_region
          %369 = dma.done [#allocation9], 16
        $region64: #{tpu_custom_call.1} parent=47 // pred_fallthru
          _
        // Predicated region
        $region65: #{tpu_custom_call.1} parent=47 // pred_check
          %p370 = pneg %p157
        $region66: #{tpu_custom_call.1} parent=47 // pred_check_branch
          %372 = sbr.rel (%p370) target = $region68
        $region67: #{tpu_custom_call.1} parent=47 // pred_region
          %374 = dma.done [#allocation9], 16
        $region68: #{tpu_custom_call.1} parent=47 // pred_fallthru
          _
        // Predicated region
        $region69: #{tpu_custom_call.1} parent=47 // pred_check
          %p375 = pneg %p178
        $region70: #{tpu_custom_call.1} parent=47 // pred_check_branch
          %377 = sbr.rel (%p375) target = $region72
        $region71: #{tpu_custom_call.1} parent=47 // pred_region
          %379 = dma.done [#allocation12], 16
        $region72: #{tpu_custom_call.1} parent=47 // pred_fallthru
          _
        %380 = sfence
        %p381 = scmp.lt.s32.totalorder %s31, 1
        %s382 = scalar_select %p381, %s31, 1
        %s383 = smul.addr %s382, 48
        %s384 = smul.addr %s383, 8
        %s385 = scalar_lea.vmem %s0, %s384
        %p386 = pneg %p52
        %p387 = pneg %p49
        %p388 = pneg %p73
        %p389 = pneg %p70
        %p390 = pneg %p94
        %p391 = pneg %p91
        %p392 = pneg %p115
        %p393 = pneg %p112
        %p394 = pneg %p136
        %p395 = pneg %p133
        %p396 = pneg %p157
        %p397 = pneg %p154
        %p398 = pneg %p178
        %p399 = pneg %p175
        %p400 = pneg %p204
        %p401 = pneg %p201
        %s402 = sand.u32 %s191, 1
        %s403 = scalar_lea.sflag [#allocation3], %s402
        %s404 = sand.u32 %s191, 1
        %s405 = smul.addr %s404, 128
        %s406 = scalar_lea.vmem [#allocation13], %s405
        %p407 = pneg %p230
        %p408 = pneg %p227
        %s409 = sand.u32 %s31, 1
        %s410 = scalar_lea.sflag [#allocation15], %s409
        %s411 = sand.u32 %s217, 1
        %s412 = smul.addr %s411, 128
        %s413 = scalar_lea.vmem [#allocation14], %s412
        %p414 = pneg %p256
        %p415 = pneg %p253
        %s416 = sand.u32 %s31, 1
        %s417 = scalar_lea.sflag [#allocation15], %s416
        %s418 = sand.u32 %s243, 1
        %s419 = smul.addr %s418, 256
        %s420 = scalar_lea.vmem [#allocation16], %s419
        %p421 = scmp.lt.s32.totalorder %s31, 1
        %s422 = scalar_select %p421, %s31, 1
        %s423 = smul.addr %s422, 48
        %s424 = smul.addr %s423, 8
        %s425 = scalar_lea.vmem %s0, %s424
        %v426 = vld [vmem:[%s425] sm:$0xff]
        %v427 = vld [vmem:[%s425 + $0x8] sm:$0xff]
        %v428 = vld [vmem:[%s425 + $0x1] sm:$0xff]
        %v429 = vld [vmem:[%s425 + $0x9] sm:$0xff]
        %v430 = vld [vmem:[%s425 + $0x2] sm:$0xff]
        %v431 = vld [vmem:[%s425 + $0xa] sm:$0xff]
        %s432 = sld [smem:[#allocation7]]
        %v433 = vstv %s432
        %v434 = vmul.f32 %v426, %v433
        %v435 = vmul.f32 %v427, %v433
        %s436 = sld [smem:[#allocation7 + $0x1]]
        %v437 = vstv %s436
        %v438 = vmul.f32 %v426, %v437
        %v439 = vmul.f32 %v427, %v437
        %442 = vrot.lane.b32.xlu0 %v438, 127
        %v443 = vpop.permute.xlu0 %442
        %444 = vrot.lane.b32.xlu0 %v439, 127
        %v445 = vpop.permute.xlu0 %444
        %v448 = vadd.f32 %v434, %v443
        %v449 = vadd.f32 %v435, %v445
        %s450 = sld [smem:[#allocation7 + $0x2]]
        %v451 = vstv %s450
        %v452 = vmul.f32 %v426, %v451
        %v453 = vmul.f32 %v427, %v451
        %456 = vrot.lane.b32.xlu0 %v452, 126
        %v457 = vpop.permute.xlu0 %456
        %458 = vrot.lane.b32.xlu0 %v453, 126
        %v459 = vpop.permute.xlu0 %458
        %v462 = vadd.f32 %v448, %v457
        %v463 = vadd.f32 %v449, %v459
        %s464 = sld [smem:[#allocation7 + $0x3]]
        %v465 = vstv %s464
        %v466 = vmul.f32 %v428, %v465
        %v467 = vmul.f32 %v429, %v465
        %v468 = vadd.f32 %v462, %v466
        %v469 = vadd.f32 %v463, %v467
        %s470 = sld [smem:[#allocation7 + $0x4]]
        %v471 = vstv %s470
        %v472 = vmul.f32 %v428, %v471
        %v473 = vmul.f32 %v429, %v471
        %476 = vrot.lane.b32.xlu0 %v472, 127
        %v477 = vpop.permute.xlu0 %476
        %478 = vrot.lane.b32.xlu0 %v473, 127
        %v479 = vpop.permute.xlu0 %478
        %v482 = vadd.f32 %v468, %v477
        %v483 = vadd.f32 %v469, %v479
        %s484 = sld [smem:[#allocation7 + $0x5]]
        %v485 = vstv %s484
        %v486 = vmul.f32 %v428, %v485
        %v487 = vmul.f32 %v429, %v485
        %490 = vrot.lane.b32.xlu0 %v486, 126
        %v491 = vpop.permute.xlu0 %490
        %492 = vrot.lane.b32.xlu0 %v487, 126
        %v493 = vpop.permute.xlu0 %492
        %v496 = vadd.f32 %v482, %v491
        %v497 = vadd.f32 %v483, %v493
        %s498 = sld [smem:[#allocation7 + $0x6]]
        %v499 = vstv %s498
        %v500 = vmul.f32 %v430, %v499
        %v501 = vmul.f32 %v431, %v499
        %v502 = vadd.f32 %v496, %v500
        %v503 = vadd.f32 %v497, %v501
        %s504 = sld [smem:[#allocation7 + $0x7]]
        %v505 = vstv %s504
        %v506 = vmul.f32 %v430, %v505
        %v507 = vmul.f32 %v431, %v505
        %510 = vrot.lane.b32.xlu0 %v506, 127
        %v511 = vpop.permute.xlu0 %510
        %512 = vrot.lane.b32.xlu0 %v507, 127
        %v513 = vpop.permute.xlu0 %512
        %v516 = vadd.f32 %v502, %v511
        %v517 = vadd.f32 %v503, %v513
        %s518 = sld [smem:[#allocation7 + $0x8]]
        %v519 = vstv %s518
        %v520 = vmul.f32 %v430, %v519
        %v521 = vmul.f32 %v431, %v519
        %524 = vrot.lane.b32.xlu0 %v520, 126
        %v525 = vpop.permute.xlu0 %524
        %526 = vrot.lane.b32.xlu0 %v521, 126
        %v527 = vpop.permute.xlu0 %526
        %v530 = vadd.f32 %v516, %v525
        %v531 = vadd.f32 %v517, %v527
        %s532 = sld [smem:[#allocation11]]
        %v533 = vstv %s532
        %v534 = vadd.f32 %v530, %v533
        %v535 = vadd.f32 %v531, %v533
        %vm536 = vcmask 130048
        %537 = vst.msk [vmem:[%s420] sm:$0xff] %vm536, %v534
        %538 = vst.msk [vmem:[%s420 + $0x8] sm:$0xff] %vm536, %v535
        %s539 = sld [smem:[#allocation2]]
        %v540 = vstv %s539
        %v541 = vmul.f32 %v426, %v540
        %v542 = vmul.f32 %v427, %v540
        %s543 = sld [smem:[#allocation5]]
        %v544 = vstv %s543
        %v545 = vmul.f32 %v426, %v544
        %v546 = vmul.f32 %v427, %v544
        %s547 = sld [smem:[#allocation2 + $0x1]]
        %v548 = vstv %s547
        %v549 = vmul.f32 %v426, %v548
        %v550 = vmul.f32 %v427, %v548
        %553 = vrot.lane.b32.xlu0 %v549, 127
        %v554 = vpop.permute.xlu0 %553
        %555 = vrot.lane.b32.xlu0 %v550, 127
        %v556 = vpop.permute.xlu0 %555
        %v559 = vadd.f32 %v541, %v554
        %v560 = vadd.f32 %v542, %v556
        %s561 = sld [smem:[#allocation5 + $0x1]]
        %v562 = vstv %s561
        %v563 = vmul.f32 %v426, %v562
        %v564 = vmul.f32 %v427, %v562
        %567 = vrot.lane.b32.xlu0 %v563, 127
        %v568 = vpop.permute.xlu0 %567
        %569 = vrot.lane.b32.xlu0 %v564, 127
        %v570 = vpop.permute.xlu0 %569
        %v573 = vadd.f32 %v545, %v568
        %v574 = vadd.f32 %v546, %v570
        %s575 = sld [smem:[#allocation2 + $0x2]]
        %v576 = vstv %s575
        %v577 = vmul.f32 %v426, %v576
        %v578 = vmul.f32 %v427, %v576
        %581 = vrot.lane.b32.xlu0 %v577, 126
        %v582 = vpop.permute.xlu0 %581
        %583 = vrot.lane.b32.xlu0 %v578, 126
        %v584 = vpop.permute.xlu0 %583
        %v587 = vadd.f32 %v559, %v582
        %v588 = vadd.f32 %v560, %v584
        %s589 = sld [smem:[#allocation5 + $0x2]]
        %v590 = vstv %s589
        %v591 = vmul.f32 %v426, %v590
        %v592 = vmul.f32 %v427, %v590
        %595 = vrot.lane.b32.xlu0 %v591, 126
        %v596 = vpop.permute.xlu0 %595
        %597 = vrot.lane.b32.xlu0 %v592, 126
        %v598 = vpop.permute.xlu0 %597
        %v601 = vadd.f32 %v573, %v596
        %v602 = vadd.f32 %v574, %v598
        %s603 = sld [smem:[#allocation2 + $0x3]]
        %v604 = vstv %s603
        %v605 = vmul.f32 %v428, %v604
        %v606 = vmul.f32 %v429, %v604
        %v607 = vadd.f32 %v587, %v605
        %v608 = vadd.f32 %v588, %v606
        %s609 = sld [smem:[#allocation5 + $0x3]]
        %v610 = vstv %s609
        %v611 = vmul.f32 %v428, %v610
        %v612 = vmul.f32 %v429, %v610
        %v613 = vadd.f32 %v601, %v611
        %v614 = vadd.f32 %v602, %v612
        %s615 = sld [smem:[#allocation2 + $0x4]]
        %v616 = vstv %s615
        %v617 = vmul.f32 %v428, %v616
        %v618 = vmul.f32 %v429, %v616
        %621 = vrot.lane.b32.xlu0 %v617, 127
        %v622 = vpop.permute.xlu0 %621
        %623 = vrot.lane.b32.xlu0 %v618, 127
        %v624 = vpop.permute.xlu0 %623
        %v627 = vadd.f32 %v607, %v622
        %v628 = vadd.f32 %v608, %v624
        %s629 = sld [smem:[#allocation5 + $0x4]]
        %v630 = vstv %s629
        %v631 = vmul.f32 %v428, %v630
        %v632 = vmul.f32 %v429, %v630
        %635 = vrot.lane.b32.xlu0 %v631, 127
        %v636 = vpop.permute.xlu0 %635
        %637 = vrot.lane.b32.xlu0 %v632, 127
        %v638 = vpop.permute.xlu0 %637
        %v641 = vadd.f32 %v613, %v636
        %v642 = vadd.f32 %v614, %v638
        %s643 = sld [smem:[#allocation2 + $0x5]]
        %v644 = vstv %s643
        %v645 = vmul.f32 %v428, %v644
        %v646 = vmul.f32 %v429, %v644
        %649 = vrot.lane.b32.xlu0 %v645, 126
        %v650 = vpop.permute.xlu0 %649
        %651 = vrot.lane.b32.xlu0 %v646, 126
        %v652 = vpop.permute.xlu0 %651
        %v655 = vadd.f32 %v627, %v650
        %v656 = vadd.f32 %v628, %v652
        %s657 = sld [smem:[#allocation5 + $0x5]]
        %v658 = vstv %s657
        %v659 = vmul.f32 %v428, %v658
        %v660 = vmul.f32 %v429, %v658
        %663 = vrot.lane.b32.xlu0 %v659, 126
        %v664 = vpop.permute.xlu0 %663
        %665 = vrot.lane.b32.xlu0 %v660, 126
        %v666 = vpop.permute.xlu0 %665
        %v669 = vadd.f32 %v641, %v664
        %v670 = vadd.f32 %v642, %v666
        %s671 = sld [smem:[#allocation2 + $0x6]]
        %v672 = vstv %s671
        %v673 = vmul.f32 %v430, %v672
        %v674 = vmul.f32 %v431, %v672
        %v675 = vadd.f32 %v655, %v673
        %v676 = vadd.f32 %v656, %v674
        %s677 = sld [smem:[#allocation5 + $0x6]]
        %v678 = vstv %s677
        %v679 = vmul.f32 %v430, %v678
        %v680 = vmul.f32 %v431, %v678
        %v681 = vadd.f32 %v669, %v679
        %v682 = vadd.f32 %v670, %v680
        %s683 = sld [smem:[#allocation2 + $0x7]]
        %v684 = vstv %s683
        %v685 = vmul.f32 %v430, %v684
        %v686 = vmul.f32 %v431, %v684
        %689 = vrot.lane.b32.xlu0 %v685, 127
        %v690 = vpop.permute.xlu0 %689
        %691 = vrot.lane.b32.xlu0 %v686, 127
        %v692 = vpop.permute.xlu0 %691
        %v695 = vadd.f32 %v675, %v690
        %v696 = vadd.f32 %v676, %v692
        %s697 = sld [smem:[#allocation5 + $0x7]]
        %v698 = vstv %s697
        %v699 = vmul.f32 %v430, %v698
        %v700 = vmul.f32 %v431, %v698
        %703 = vrot.lane.b32.xlu0 %v699, 127
        %v704 = vpop.permute.xlu0 %703
        %705 = vrot.lane.b32.xlu0 %v700, 127
        %v706 = vpop.permute.xlu0 %705
        %v709 = vadd.f32 %v681, %v704
        %v710 = vadd.f32 %v682, %v706
        %s711 = sld [smem:[#allocation2 + $0x8]]
        %v712 = vstv %s711
        %v713 = vmul.f32 %v430, %v712
        %v714 = vmul.f32 %v431, %v712
        %717 = vrot.lane.b32.xlu0 %v713, 126
        %v718 = vpop.permute.xlu0 %717
        %719 = vrot.lane.b32.xlu0 %v714, 126
        %v720 = vpop.permute.xlu0 %719
        %v723 = vadd.f32 %v695, %v718
        %v724 = vadd.f32 %v696, %v720
        %s725 = sld [smem:[#allocation5 + $0x8]]
        %v726 = vstv %s725
        %v727 = vmul.f32 %v430, %v726
        %v728 = vmul.f32 %v431, %v726
        %731 = vrot.lane.b32.xlu0 %v727, 126
        %v732 = vpop.permute.xlu0 %731
        %733 = vrot.lane.b32.xlu0 %v728, 126
        %v734 = vpop.permute.xlu0 %733
        %v737 = vadd.f32 %v709, %v732
        %v738 = vadd.f32 %v710, %v734
        %s739 = scalar_lea.vmem %s425, 24
        %v740 = vld [vmem:[%s739] sm:$0xff]
        %v741 = vld [vmem:[%s739 + $0x8] sm:$0xff]
        %v742 = vld [vmem:[%s739 + $0x1] sm:$0xff]
        %v743 = vld [vmem:[%s739 + $0x9] sm:$0xff]
        %v744 = vld [vmem:[%s739 + $0x2] sm:$0xff]
        %v745 = vld [vmem:[%s739 + $0xa] sm:$0xff]
        %s746 = sld [smem:[#allocation7 + $0x9]]
        %v747 = vstv %s746
        %v748 = vmul.f32 %v740, %v747
        %v749 = vmul.f32 %v741, %v747
        %s750 = sld [smem:[#allocation7 + $0xa]]
        %v751 = vstv %s750
        %v752 = vmul.f32 %v740, %v751
        %v753 = vmul.f32 %v741, %v751
        %756 = vrot.lane.b32.xlu0 %v752, 127
        %v757 = vpop.permute.xlu0 %756
        %758 = vrot.lane.b32.xlu0 %v753, 127
        %v759 = vpop.permute.xlu0 %758
        %v762 = vadd.f32 %v748, %v757
        %v763 = vadd.f32 %v749, %v759
        %s764 = sld [smem:[#allocation7 + $0xb]]
        %v765 = vstv %s764
        %v766 = vmul.f32 %v740, %v765
        %v767 = vmul.f32 %v741, %v765
        %770 = vrot.lane.b32.xlu0 %v766, 126
        %v771 = vpop.permute.xlu0 %770
        %772 = vrot.lane.b32.xlu0 %v767, 126
        %v773 = vpop.permute.xlu0 %772
        %v776 = vadd.f32 %v762, %v771
        %v777 = vadd.f32 %v763, %v773
        %s778 = sld [smem:[#allocation7 + $0xc]]
        %v779 = vstv %s778
        %v780 = vmul.f32 %v742, %v779
        %v781 = vmul.f32 %v743, %v779
        %v782 = vadd.f32 %v776, %v780
        %v783 = vadd.f32 %v777, %v781
        %s784 = sld [smem:[#allocation7 + $0xd]]
        %v785 = vstv %s784
        %v786 = vmul.f32 %v742, %v785
        %v787 = vmul.f32 %v743, %v785
        %790 = vrot.lane.b32.xlu0 %v786, 127
        %v791 = vpop.permute.xlu0 %790
        %792 = vrot.lane.b32.xlu0 %v787, 127
        %v793 = vpop.permute.xlu0 %792
        %v796 = vadd.f32 %v782, %v791
        %v797 = vadd.f32 %v783, %v793
        %s798 = sld [smem:[#allocation7 + $0xe]]
        %v799 = vstv %s798
        %v800 = vmul.f32 %v742, %v799
        %v801 = vmul.f32 %v743, %v799
        %804 = vrot.lane.b32.xlu0 %v800, 126
        %v805 = vpop.permute.xlu0 %804
        %806 = vrot.lane.b32.xlu0 %v801, 126
        %v807 = vpop.permute.xlu0 %806
        %v810 = vadd.f32 %v796, %v805
        %v811 = vadd.f32 %v797, %v807
        %s812 = sld [smem:[#allocation7 + $0xf]]
        %v813 = vstv %s812
        %v814 = vmul.f32 %v744, %v813
        %v815 = vmul.f32 %v745, %v813
        %v816 = vadd.f32 %v810, %v814
        %v817 = vadd.f32 %v811, %v815
        %s818 = sld [smem:[#allocation7 + $0x10]]
        %v819 = vstv %s818
        %v820 = vmul.f32 %v744, %v819
        %v821 = vmul.f32 %v745, %v819
        %824 = vrot.lane.b32.xlu0 %v820, 127
        %v825 = vpop.permute.xlu0 %824
        %826 = vrot.lane.b32.xlu0 %v821, 127
        %v827 = vpop.permute.xlu0 %826
        %v830 = vadd.f32 %v816, %v825
        %v831 = vadd.f32 %v817, %v827
        %s832 = sld [smem:[#allocation7 + $0x11]]
        %v833 = vstv %s832
        %v834 = vmul.f32 %v744, %v833
        %v835 = vmul.f32 %v745, %v833
        %838 = vrot.lane.b32.xlu0 %v834, 126
        %v839 = vpop.permute.xlu0 %838
        %840 = vrot.lane.b32.xlu0 %v835, 126
        %v841 = vpop.permute.xlu0 %840
        %v844 = vadd.f32 %v830, %v839
        %v845 = vadd.f32 %v831, %v841
        %s846 = sld [smem:[#allocation11 + $0x1]]
        %v847 = vstv %s846
        %v848 = vadd.f32 %v844, %v847
        %v849 = vadd.f32 %v845, %v847
        %s850 = scalar_lea.vmem %s420, 16 [#allocation16]
        %851 = vst.msk [vmem:[%s850] sm:$0xff] %vm536, %v848
        %852 = vst.msk [vmem:[%s850 + $0x8] sm:$0xff] %vm536, %v849
        %s853 = sld [smem:[#allocation2 + $0x9]]
        %v854 = vstv %s853
        %v855 = vmul.f32 %v740, %v854
        %v856 = vmul.f32 %v741, %v854
        %s857 = sld [smem:[#allocation5 + $0x9]]
        %v858 = vstv %s857
        %v859 = vmul.f32 %v740, %v858
        %v860 = vmul.f32 %v741, %v858
        %s861 = sld [smem:[#allocation2 + $0xa]]
        %v862 = vstv %s861
        %v863 = vmul.f32 %v740, %v862
        %v864 = vmul.f32 %v741, %v862
        %867 = vrot.lane.b32.xlu0 %v863, 127
        %v868 = vpop.permute.xlu0 %867
        %869 = vrot.lane.b32.xlu0 %v864, 127
        %v870 = vpop.permute.xlu0 %869
        %v873 = vadd.f32 %v855, %v868
        %v874 = vadd.f32 %v856, %v870
        %s875 = sld [smem:[#allocation5 + $0xa]]
        %v876 = vstv %s875
        %v877 = vmul.f32 %v740, %v876
        %v878 = vmul.f32 %v741, %v876
        %881 = vrot.lane.b32.xlu0 %v877, 127
        %v882 = vpop.permute.xlu0 %881
        %883 = vrot.lane.b32.xlu0 %v878, 127
        %v884 = vpop.permute.xlu0 %883
        %v887 = vadd.f32 %v859, %v882
        %v888 = vadd.f32 %v860, %v884
        %s889 = sld [smem:[#allocation2 + $0xb]]
        %v890 = vstv %s889
        %v891 = vmul.f32 %v740, %v890
        %v892 = vmul.f32 %v741, %v890
        %895 = vrot.lane.b32.xlu0 %v891, 126
        %v896 = vpop.permute.xlu0 %895
        %897 = vrot.lane.b32.xlu0 %v892, 126
        %v898 = vpop.permute.xlu0 %897
        %v901 = vadd.f32 %v873, %v896
        %v902 = vadd.f32 %v874, %v898
        %s903 = sld [smem:[#allocation5 + $0xb]]
        %v904 = vstv %s903
        %v905 = vmul.f32 %v740, %v904
        %v906 = vmul.f32 %v741, %v904
        %909 = vrot.lane.b32.xlu0 %v905, 126
        %v910 = vpop.permute.xlu0 %909
        %911 = vrot.lane.b32.xlu0 %v906, 126
        %v912 = vpop.permute.xlu0 %911
        %v915 = vadd.f32 %v887, %v910
        %v916 = vadd.f32 %v888, %v912
        %s917 = sld [smem:[#allocation2 + $0xc]]
        %v918 = vstv %s917
        %v919 = vmul.f32 %v742, %v918
        %v920 = vmul.f32 %v743, %v918
        %v921 = vadd.f32 %v901, %v919
        %v922 = vadd.f32 %v902, %v920
        %s923 = sld [smem:[#allocation5 + $0xc]]
        %v924 = vstv %s923
        %v925 = vmul.f32 %v742, %v924
        %v926 = vmul.f32 %v743, %v924
        %v927 = vadd.f32 %v915, %v925
        %v928 = vadd.f32 %v916, %v926
        %s929 = sld [smem:[#allocation2 + $0xd]]
        %v930 = vstv %s929
        %v931 = vmul.f32 %v742, %v930
        %v932 = vmul.f32 %v743, %v930
        %935 = vrot.lane.b32.xlu0 %v931, 127
        %v936 = vpop.permute.xlu0 %935
        %937 = vrot.lane.b32.xlu0 %v932, 127
        %v938 = vpop.permute.xlu0 %937
        %v941 = vadd.f32 %v921, %v936
        %v942 = vadd.f32 %v922, %v938
        %s943 = sld [smem:[#allocation5 + $0xd]]
        %v944 = vstv %s943
        %v945 = vmul.f32 %v742, %v944
        %v946 = vmul.f32 %v743, %v944
        %949 = vrot.lane.b32.xlu0 %v945, 127
        %v950 = vpop.permute.xlu0 %949
        %951 = vrot.lane.b32.xlu0 %v946, 127
        %v952 = vpop.permute.xlu0 %951
        %v955 = vadd.f32 %v927, %v950
        %v956 = vadd.f32 %v928, %v952
        %s957 = sld [smem:[#allocation2 + $0xe]]
        %v958 = vstv %s957
        %v959 = vmul.f32 %v742, %v958
        %v960 = vmul.f32 %v743, %v958
        %963 = vrot.lane.b32.xlu0 %v959, 126
        %v964 = vpop.permute.xlu0 %963
        %965 = vrot.lane.b32.xlu0 %v960, 126
        %v966 = vpop.permute.xlu0 %965
        %v969 = vadd.f32 %v941, %v964
        %v970 = vadd.f32 %v942, %v966
        %s971 = sld [smem:[#allocation5 + $0xe]]
        %v972 = vstv %s971
        %v973 = vmul.f32 %v742, %v972
        %v974 = vmul.f32 %v743, %v972
        %977 = vrot.lane.b32.xlu0 %v973, 126
        %v978 = vpop.permute.xlu0 %977
        %979 = vrot.lane.b32.xlu0 %v974, 126
        %v980 = vpop.permute.xlu0 %979
        %v983 = vadd.f32 %v955, %v978
        %v984 = vadd.f32 %v956, %v980
        %s985 = sld [smem:[#allocation2 + $0xf]]
        %v986 = vstv %s985
        %v987 = vmul.f32 %v744, %v986
        %v988 = vmul.f32 %v745, %v986
        %v989 = vadd.f32 %v969, %v987
        %v990 = vadd.f32 %v970, %v988
        %s991 = sld [smem:[#allocation5 + $0xf]]
        %v992 = vstv %s991
        %v993 = vmul.f32 %v744, %v992
        %v994 = vmul.f32 %v745, %v992
        %v995 = vadd.f32 %v983, %v993
        %v996 = vadd.f32 %v984, %v994
        %s997 = sld [smem:[#allocation2 + $0x10]]
        %v998 = vstv %s997
        %v999 = vmul.f32 %v744, %v998
        %v1000 = vmul.f32 %v745, %v998
        %1003 = vrot.lane.b32.xlu0 %v999, 127
        %v1004 = vpop.permute.xlu0 %1003
        %1005 = vrot.lane.b32.xlu0 %v1000, 127
        %v1006 = vpop.permute.xlu0 %1005
        %v1009 = vadd.f32 %v989, %v1004
        %v1010 = vadd.f32 %v990, %v1006
        %s1011 = sld [smem:[#allocation5 + $0x10]]
        %v1012 = vstv %s1011
        %v1013 = vmul.f32 %v744, %v1012
        %v1014 = vmul.f32 %v745, %v1012
        %1017 = vrot.lane.b32.xlu0 %v1013, 127
        %v1018 = vpop.permute.xlu0 %1017
        %1019 = vrot.lane.b32.xlu0 %v1014, 127
        %v1020 = vpop.permute.xlu0 %1019
        %v1023 = vadd.f32 %v995, %v1018
        %v1024 = vadd.f32 %v996, %v1020
        %s1025 = sld [smem:[#allocation2 + $0x11]]
        %v1026 = vstv %s1025
        %v1027 = vmul.f32 %v744, %v1026
        %v1028 = vmul.f32 %v745, %v1026
        %1031 = vrot.lane.b32.xlu0 %v1027, 126
        %v1032 = vpop.permute.xlu0 %1031
        %1033 = vrot.lane.b32.xlu0 %v1028, 126
        %v1034 = vpop.permute.xlu0 %1033
        %v1037 = vadd.f32 %v1009, %v1032
        %v1038 = vadd.f32 %v1010, %v1034
        %s1039 = sld [smem:[#allocation5 + $0x11]]
        %v1040 = vstv %s1039
        %v1041 = vmul.f32 %v744, %v1040
        %v1042 = vmul.f32 %v745, %v1040
        %1045 = vrot.lane.b32.xlu0 %v1041, 126
        %v1046 = vpop.permute.xlu0 %1045
        %1047 = vrot.lane.b32.xlu0 %v1042, 126
        %v1048 = vpop.permute.xlu0 %1047
        %v1051 = vadd.f32 %v1023, %v1046
        %v1052 = vadd.f32 %v1024, %v1048
        %v1053 = vadd.f32 %v723, %v1037
        %v1054 = vadd.f32 %v724, %v1038
        %s1055 = sld [smem:[#allocation8]]
        %v1056 = vstv %s1055
        %v1057 = vadd.f32 %v1053, %v1056
        %v1058 = vadd.f32 %v1054, %v1056
        %1059 = vst.msk [vmem:[%s406] sm:$0xff] %vm536, %v1057
        %1060 = vst.msk [vmem:[%s406 + $0x8] sm:$0xff] %vm536, %v1058
        %v1061 = vadd.f32 %v737, %v1051
        %v1062 = vadd.f32 %v738, %v1052
        %s1063 = sld [smem:[#allocation10]]
        %v1064 = vstv %s1063
        %v1065 = vadd.f32 %v1061, %v1064
        %v1066 = vadd.f32 %v1062, %v1064
        %1067 = vst.msk [vmem:[%s413] sm:$0xff] %vm536, %v1065
        %1068 = vst.msk [vmem:[%s413 + $0x8] sm:$0xff] %vm536, %v1066
        %s1069 = scalar_lea.vmem %s425, 48
        %v1070 = vld [vmem:[%s1069] sm:$0xff]
        %v1071 = vld [vmem:[%s1069 + $0x8] sm:$0xff]
        %v1072 = vld [vmem:[%s1069 + $0x1] sm:$0xff]
        %v1073 = vld [vmem:[%s1069 + $0x9] sm:$0xff]
        %v1074 = vld [vmem:[%s1069 + $0x2] sm:$0xff]
        %v1075 = vld [vmem:[%s1069 + $0xa] sm:$0xff]
        %s1076 = sld [smem:[#allocation7 + $0x12]]
        %v1077 = vstv %s1076
        %v1078 = vmul.f32 %v1070, %v1077
        %v1079 = vmul.f32 %v1071, %v1077
        %s1080 = sld [smem:[#allocation7 + $0x13]]
        %v1081 = vstv %s1080
        %v1082 = vmul.f32 %v1070, %v1081
        %v1083 = vmul.f32 %v1071, %v1081
        %1086 = vrot.lane.b32.xlu0 %v1082, 127
        %v1087 = vpop.permute.xlu0 %1086
        %1088 = vrot.lane.b32.xlu0 %v1083, 127
        %v1089 = vpop.permute.xlu0 %1088
        %v1092 = vadd.f32 %v1078, %v1087
        %v1093 = vadd.f32 %v1079, %v1089
        %s1094 = sld [smem:[#allocation7 + $0x14]]
        %v1095 = vstv %s1094
        %v1096 = vmul.f32 %v1070, %v1095
        %v1097 = vmul.f32 %v1071, %v1095
        %1100 = vrot.lane.b32.xlu0 %v1096, 126
        %v1101 = vpop.permute.xlu0 %1100
        %1102 = vrot.lane.b32.xlu0 %v1097, 126
        %v1103 = vpop.permute.xlu0 %1102
        %v1106 = vadd.f32 %v1092, %v1101
        %v1107 = vadd.f32 %v1093, %v1103
        %s1108 = sld [smem:[#allocation7 + $0x15]]
        %v1109 = vstv %s1108
        %v1110 = vmul.f32 %v1072, %v1109
        %v1111 = vmul.f32 %v1073, %v1109
        %v1112 = vadd.f32 %v1106, %v1110
        %v1113 = vadd.f32 %v1107, %v1111
        %s1114 = sld [smem:[#allocation7 + $0x16]]
        %v1115 = vstv %s1114
        %v1116 = vmul.f32 %v1072, %v1115
        %v1117 = vmul.f32 %v1073, %v1115
        %1120 = vrot.lane.b32.xlu0 %v1116, 127
        %v1121 = vpop.permute.xlu0 %1120
        %1122 = vrot.lane.b32.xlu0 %v1117, 127
        %v1123 = vpop.permute.xlu0 %1122
        %v1126 = vadd.f32 %v1112, %v1121
        %v1127 = vadd.f32 %v1113, %v1123
        %s1128 = sld [smem:[#allocation7 + $0x17]]
        %v1129 = vstv %s1128
        %v1130 = vmul.f32 %v1072, %v1129
        %v1131 = vmul.f32 %v1073, %v1129
        %1134 = vrot.lane.b32.xlu0 %v1130, 126
        %v1135 = vpop.permute.xlu0 %1134
        %1136 = vrot.lane.b32.xlu0 %v1131, 126
        %v1137 = vpop.permute.xlu0 %1136
        %v1140 = vadd.f32 %v1126, %v1135
        %v1141 = vadd.f32 %v1127, %v1137
        %s1142 = sld [smem:[#allocation7 + $0x18]]
        %v1143 = vstv %s1142
        %v1144 = vmul.f32 %v1074, %v1143
        %v1145 = vmul.f32 %v1075, %v1143
        %v1146 = vadd.f32 %v1140, %v1144
        %v1147 = vadd.f32 %v1141, %v1145
        %s1148 = sld [smem:[#allocation7 + $0x19]]
        %v1149 = vstv %s1148
        %v1150 = vmul.f32 %v1074, %v1149
        %v1151 = vmul.f32 %v1075, %v1149
        %1154 = vrot.lane.b32.xlu0 %v1150, 127
        %v1155 = vpop.permute.xlu0 %1154
        %1156 = vrot.lane.b32.xlu0 %v1151, 127
        %v1157 = vpop.permute.xlu0 %1156
        %v1160 = vadd.f32 %v1146, %v1155
        %v1161 = vadd.f32 %v1147, %v1157
        %s1162 = sld [smem:[#allocation7 + $0x1a]]
        %v1163 = vstv %s1162
        %v1164 = vmul.f32 %v1074, %v1163
        %v1165 = vmul.f32 %v1075, %v1163
        %1168 = vrot.lane.b32.xlu0 %v1164, 126
        %v1169 = vpop.permute.xlu0 %1168
        %1170 = vrot.lane.b32.xlu0 %v1165, 126
        %v1171 = vpop.permute.xlu0 %1170
        %v1174 = vadd.f32 %v1160, %v1169
        %v1175 = vadd.f32 %v1161, %v1171
        %s1176 = sld [smem:[#allocation11 + $0x2]]
        %v1177 = vstv %s1176
        %v1178 = vadd.f32 %v1174, %v1177
        %v1179 = vadd.f32 %v1175, %v1177
        %s1180 = scalar_lea.vmem %s420, 32 [#allocation16]
        %1181 = vst.msk [vmem:[%s1180] sm:$0xff] %vm536, %v1178
        %1182 = vst.msk [vmem:[%s1180 + $0x8] sm:$0xff] %vm536, %v1179
        %s1183 = sld [smem:[#allocation2 + $0x12]]
        %v1184 = vstv %s1183
        %v1185 = vmul.f32 %v1070, %v1184
        %v1186 = vmul.f32 %v1071, %v1184
        %s1187 = sld [smem:[#allocation5 + $0x12]]
        %v1188 = vstv %s1187
        %v1189 = vmul.f32 %v1070, %v1188
        %v1190 = vmul.f32 %v1071, %v1188
        %s1191 = sld [smem:[#allocation2 + $0x13]]
        %v1192 = vstv %s1191
        %v1193 = vmul.f32 %v1070, %v1192
        %v1194 = vmul.f32 %v1071, %v1192
        %1197 = vrot.lane.b32.xlu0 %v1193, 127
        %v1198 = vpop.permute.xlu0 %1197
        %1199 = vrot.lane.b32.xlu0 %v1194, 127
        %v1200 = vpop.permute.xlu0 %1199
        %v1203 = vadd.f32 %v1185, %v1198
        %v1204 = vadd.f32 %v1186, %v1200
        %s1205 = sld [smem:[#allocation5 + $0x13]]
        %v1206 = vstv %s1205
        %v1207 = vmul.f32 %v1070, %v1206
        %v1208 = vmul.f32 %v1071, %v1206
        %1211 = vrot.lane.b32.xlu0 %v1207, 127
        %v1212 = vpop.permute.xlu0 %1211
        %1213 = vrot.lane.b32.xlu0 %v1208, 127
        %v1214 = vpop.permute.xlu0 %1213
        %v1217 = vadd.f32 %v1189, %v1212
        %v1218 = vadd.f32 %v1190, %v1214
        %s1219 = sld [smem:[#allocation2 + $0x14]]
        %v1220 = vstv %s1219
        %v1221 = vmul.f32 %v1070, %v1220
        %v1222 = vmul.f32 %v1071, %v1220
        %1225 = vrot.lane.b32.xlu0 %v1221, 126
        %v1226 = vpop.permute.xlu0 %1225
        %1227 = vrot.lane.b32.xlu0 %v1222, 126
        %v1228 = vpop.permute.xlu0 %1227
        %v1231 = vadd.f32 %v1203, %v1226
        %v1232 = vadd.f32 %v1204, %v1228
        %s1233 = sld [smem:[#allocation5 + $0x14]]
        %v1234 = vstv %s1233
        %v1235 = vmul.f32 %v1070, %v1234
        %v1236 = vmul.f32 %v1071, %v1234
        %1239 = vrot.lane.b32.xlu0 %v1235, 126
        %v1240 = vpop.permute.xlu0 %1239
        %1241 = vrot.lane.b32.xlu0 %v1236, 126
        %v1242 = vpop.permute.xlu0 %1241
        %v1245 = vadd.f32 %v1217, %v1240
        %v1246 = vadd.f32 %v1218, %v1242
        %s1247 = sld [smem:[#allocation2 + $0x15]]
        %v1248 = vstv %s1247
        %v1249 = vmul.f32 %v1072, %v1248
        %v1250 = vmul.f32 %v1073, %v1248
        %v1251 = vadd.f32 %v1231, %v1249
        %v1252 = vadd.f32 %v1232, %v1250
        %s1253 = sld [smem:[#allocation5 + $0x15]]
        %v1254 = vstv %s1253
        %v1255 = vmul.f32 %v1072, %v1254
        %v1256 = vmul.f32 %v1073, %v1254
        %v1257 = vadd.f32 %v1245, %v1255
        %v1258 = vadd.f32 %v1246, %v1256
        %s1259 = sld [smem:[#allocation2 + $0x16]]
        %v1260 = vstv %s1259
        %v1261 = vmul.f32 %v1072, %v1260
        %v1262 = vmul.f32 %v1073, %v1260
        %1265 = vrot.lane.b32.xlu0 %v1261, 127
        %v1266 = vpop.permute.xlu0 %1265
        %1267 = vrot.lane.b32.xlu0 %v1262, 127
        %v1268 = vpop.permute.xlu0 %1267
        %v1271 = vadd.f32 %v1251, %v1266
        %v1272 = vadd.f32 %v1252, %v1268
        %s1273 = sld [smem:[#allocation5 + $0x16]]
        %v1274 = vstv %s1273
        %v1275 = vmul.f32 %v1072, %v1274
        %v1276 = vmul.f32 %v1073, %v1274
        %1279 = vrot.lane.b32.xlu0 %v1275, 127
        %v1280 = vpop.permute.xlu0 %1279
        %1281 = vrot.lane.b32.xlu0 %v1276, 127
        %v1282 = vpop.permute.xlu0 %1281
        %v1285 = vadd.f32 %v1257, %v1280
        %v1286 = vadd.f32 %v1258, %v1282
        %s1287 = sld [smem:[#allocation2 + $0x17]]
        %v1288 = vstv %s1287
        %v1289 = vmul.f32 %v1072, %v1288
        %v1290 = vmul.f32 %v1073, %v1288
        %1293 = vrot.lane.b32.xlu0 %v1289, 126
        %v1294 = vpop.permute.xlu0 %1293
        %1295 = vrot.lane.b32.xlu0 %v1290, 126
        %v1296 = vpop.permute.xlu0 %1295
        %v1299 = vadd.f32 %v1271, %v1294
        %v1300 = vadd.f32 %v1272, %v1296
        %s1301 = sld [smem:[#allocation5 + $0x17]]
        %v1302 = vstv %s1301
        %v1303 = vmul.f32 %v1072, %v1302
        %v1304 = vmul.f32 %v1073, %v1302
        %1307 = vrot.lane.b32.xlu0 %v1303, 126
        %v1308 = vpop.permute.xlu0 %1307
        %1309 = vrot.lane.b32.xlu0 %v1304, 126
        %v1310 = vpop.permute.xlu0 %1309
        %v1313 = vadd.f32 %v1285, %v1308
        %v1314 = vadd.f32 %v1286, %v1310
        %s1315 = sld [smem:[#allocation2 + $0x18]]
        %v1316 = vstv %s1315
        %v1317 = vmul.f32 %v1074, %v1316
        %v1318 = vmul.f32 %v1075, %v1316
        %v1319 = vadd.f32 %v1299, %v1317
        %v1320 = vadd.f32 %v1300, %v1318
        %s1321 = sld [smem:[#allocation5 + $0x18]]
        %v1322 = vstv %s1321
        %v1323 = vmul.f32 %v1074, %v1322
        %v1324 = vmul.f32 %v1075, %v1322
        %v1325 = vadd.f32 %v1313, %v1323
        %v1326 = vadd.f32 %v1314, %v1324
        %s1327 = sld [smem:[#allocation2 + $0x19]]
        %v1328 = vstv %s1327
        %v1329 = vmul.f32 %v1074, %v1328
        %v1330 = vmul.f32 %v1075, %v1328
        %1333 = vrot.lane.b32.xlu0 %v1329, 127
        %v1334 = vpop.permute.xlu0 %1333
        %1335 = vrot.lane.b32.xlu0 %v1330, 127
        %v1336 = vpop.permute.xlu0 %1335
        %v1339 = vadd.f32 %v1319, %v1334
        %v1340 = vadd.f32 %v1320, %v1336
        %s1341 = sld [smem:[#allocation5 + $0x19]]
        %v1342 = vstv %s1341
        %v1343 = vmul.f32 %v1074, %v1342
        %v1344 = vmul.f32 %v1075, %v1342
        %1347 = vrot.lane.b32.xlu0 %v1343, 127
        %v1348 = vpop.permute.xlu0 %1347
        %1349 = vrot.lane.b32.xlu0 %v1344, 127
        %v1350 = vpop.permute.xlu0 %1349
        %v1353 = vadd.f32 %v1325, %v1348
        %v1354 = vadd.f32 %v1326, %v1350
        %s1355 = sld [smem:[#allocation2 + $0x1a]]
        %v1356 = vstv %s1355
        %v1357 = vmul.f32 %v1074, %v1356
        %v1358 = vmul.f32 %v1075, %v1356
        %1361 = vrot.lane.b32.xlu0 %v1357, 126
        %v1362 = vpop.permute.xlu0 %1361
        %1363 = vrot.lane.b32.xlu0 %v1358, 126
        %v1364 = vpop.permute.xlu0 %1363
        %v1367 = vadd.f32 %v1339, %v1362
        %v1368 = vadd.f32 %v1340, %v1364
        %s1369 = sld [smem:[#allocation5 + $0x1a]]
        %v1370 = vstv %s1369
        %v1371 = vmul.f32 %v1074, %v1370
        %v1372 = vmul.f32 %v1075, %v1370
        %1375 = vrot.lane.b32.xlu0 %v1371, 126
        %v1376 = vpop.permute.xlu0 %1375
        %1377 = vrot.lane.b32.xlu0 %v1372, 126
        %v1378 = vpop.permute.xlu0 %1377
        %v1381 = vadd.f32 %v1353, %v1376
        %v1382 = vadd.f32 %v1354, %v1378
        %s1383 = scalar_lea.vmem %s425, 72
        %v1384 = vld [vmem:[%s1383] sm:$0xff]
        %v1385 = vld [vmem:[%s1383 + $0x8] sm:$0xff]
        %v1386 = vld [vmem:[%s1383 + $0x1] sm:$0xff]
        %v1387 = vld [vmem:[%s1383 + $0x9] sm:$0xff]
        %v1388 = vld [vmem:[%s1383 + $0x2] sm:$0xff]
        %v1389 = vld [vmem:[%s1383 + $0xa] sm:$0xff]
        %s1390 = sld [smem:[#allocation7 + $0x1b]]
        %v1391 = vstv %s1390
        %v1392 = vmul.f32 %v1384, %v1391
        %v1393 = vmul.f32 %v1385, %v1391
        %s1394 = sld [smem:[#allocation7 + $0x1c]]
        %v1395 = vstv %s1394
        %v1396 = vmul.f32 %v1384, %v1395
        %v1397 = vmul.f32 %v1385, %v1395
        %1400 = vrot.lane.b32.xlu0 %v1396, 127
        %v1401 = vpop.permute.xlu0 %1400
        %1402 = vrot.lane.b32.xlu0 %v1397, 127
        %v1403 = vpop.permute.xlu0 %1402
        %v1406 = vadd.f32 %v1392, %v1401
        %v1407 = vadd.f32 %v1393, %v1403
        %s1408 = sld [smem:[#allocation7 + $0x1d]]
        %v1409 = vstv %s1408
        %v1410 = vmul.f32 %v1384, %v1409
        %v1411 = vmul.f32 %v1385, %v1409
        %1414 = vrot.lane.b32.xlu0 %v1410, 126
        %v1415 = vpop.permute.xlu0 %1414
        %1416 = vrot.lane.b32.xlu0 %v1411, 126
        %v1417 = vpop.permute.xlu0 %1416
        %v1420 = vadd.f32 %v1406, %v1415
        %v1421 = vadd.f32 %v1407, %v1417
        %s1422 = sld [smem:[#allocation7 + $0x1e]]
        %v1423 = vstv %s1422
        %v1424 = vmul.f32 %v1386, %v1423
        %v1425 = vmul.f32 %v1387, %v1423
        %v1426 = vadd.f32 %v1420, %v1424
        %v1427 = vadd.f32 %v1421, %v1425
        %s1428 = sld [smem:[#allocation7 + $0x1f]]
        %v1429 = vstv %s1428
        %v1430 = vmul.f32 %v1386, %v1429
        %v1431 = vmul.f32 %v1387, %v1429
        %1434 = vrot.lane.b32.xlu0 %v1430, 127
        %v1435 = vpop.permute.xlu0 %1434
        %1436 = vrot.lane.b32.xlu0 %v1431, 127
        %v1437 = vpop.permute.xlu0 %1436
        %v1440 = vadd.f32 %v1426, %v1435
        %v1441 = vadd.f32 %v1427, %v1437
        %s1442 = sld [smem:[#allocation7 + $0x20]]
        %v1443 = vstv %s1442
        %v1444 = vmul.f32 %v1386, %v1443
        %v1445 = vmul.f32 %v1387, %v1443
        %1448 = vrot.lane.b32.xlu0 %v1444, 126
        %v1449 = vpop.permute.xlu0 %1448
        %1450 = vrot.lane.b32.xlu0 %v1445, 126
        %v1451 = vpop.permute.xlu0 %1450
        %v1454 = vadd.f32 %v1440, %v1449
        %v1455 = vadd.f32 %v1441, %v1451
        %s1456 = sld [smem:[#allocation7 + $0x21]]
        %v1457 = vstv %s1456
        %v1458 = vmul.f32 %v1388, %v1457
        %v1459 = vmul.f32 %v1389, %v1457
        %v1460 = vadd.f32 %v1454, %v1458
        %v1461 = vadd.f32 %v1455, %v1459
        %s1462 = sld [smem:[#allocation7 + $0x22]]
        %v1463 = vstv %s1462
        %v1464 = vmul.f32 %v1388, %v1463
        %v1465 = vmul.f32 %v1389, %v1463
        %1468 = vrot.lane.b32.xlu0 %v1464, 127
        %v1469 = vpop.permute.xlu0 %1468
        %1470 = vrot.lane.b32.xlu0 %v1465, 127
        %v1471 = vpop.permute.xlu0 %1470
        %v1474 = vadd.f32 %v1460, %v1469
        %v1475 = vadd.f32 %v1461, %v1471
        %s1476 = sld [smem:[#allocation7 + $0x23]]
        %v1477 = vstv %s1476
        %v1478 = vmul.f32 %v1388, %v1477
        %v1479 = vmul.f32 %v1389, %v1477
        %1482 = vrot.lane.b32.xlu0 %v1478, 126
        %v1483 = vpop.permute.xlu0 %1482
        %1484 = vrot.lane.b32.xlu0 %v1479, 126
        %v1485 = vpop.permute.xlu0 %1484
        %v1488 = vadd.f32 %v1474, %v1483
        %v1489 = vadd.f32 %v1475, %v1485
        %s1490 = sld [smem:[#allocation11 + $0x3]]
        %v1491 = vstv %s1490
        %v1492 = vadd.f32 %v1488, %v1491
        %v1493 = vadd.f32 %v1489, %v1491
        %s1494 = scalar_lea.vmem %s420, 48 [#allocation16]
        %1495 = vst.msk [vmem:[%s1494] sm:$0xff] %vm536, %v1492
        %1496 = vst.msk [vmem:[%s1494 + $0x8] sm:$0xff] %vm536, %v1493
        %s1497 = sld [smem:[#allocation2 + $0x1b]]
        %v1498 = vstv %s1497
        %v1499 = vmul.f32 %v1384, %v1498
        %v1500 = vmul.f32 %v1385, %v1498
        %s1501 = sld [smem:[#allocation5 + $0x1b]]
        %v1502 = vstv %s1501
        %v1503 = vmul.f32 %v1384, %v1502
        %v1504 = vmul.f32 %v1385, %v1502
        %s1505 = sld [smem:[#allocation2 + $0x1c]]
        %v1506 = vstv %s1505
        %v1507 = vmul.f32 %v1384, %v1506
        %v1508 = vmul.f32 %v1385, %v1506
        %1511 = vrot.lane.b32.xlu0 %v1507, 127
        %v1512 = vpop.permute.xlu0 %1511
        %1513 = vrot.lane.b32.xlu0 %v1508, 127
        %v1514 = vpop.permute.xlu0 %1513
        %v1517 = vadd.f32 %v1499, %v1512
        %v1518 = vadd.f32 %v1500, %v1514
        %s1519 = sld [smem:[#allocation5 + $0x1c]]
        %v1520 = vstv %s1519
        %v1521 = vmul.f32 %v1384, %v1520
        %v1522 = vmul.f32 %v1385, %v1520
        %1525 = vrot.lane.b32.xlu0 %v1521, 127
        %v1526 = vpop.permute.xlu0 %1525
        %1527 = vrot.lane.b32.xlu0 %v1522, 127
        %v1528 = vpop.permute.xlu0 %1527
        %v1531 = vadd.f32 %v1503, %v1526
        %v1532 = vadd.f32 %v1504, %v1528
        %s1533 = sld [smem:[#allocation2 + $0x1d]]
        %v1534 = vstv %s1533
        %v1535 = vmul.f32 %v1384, %v1534
        %v1536 = vmul.f32 %v1385, %v1534
        %1539 = vrot.lane.b32.xlu0 %v1535, 126
        %v1540 = vpop.permute.xlu0 %1539
        %1541 = vrot.lane.b32.xlu0 %v1536, 126
        %v1542 = vpop.permute.xlu0 %1541
        %v1545 = vadd.f32 %v1517, %v1540
        %v1546 = vadd.f32 %v1518, %v1542
        %s1547 = sld [smem:[#allocation5 + $0x1d]]
        %v1548 = vstv %s1547
        %v1549 = vmul.f32 %v1384, %v1548
        %v1550 = vmul.f32 %v1385, %v1548
        %1553 = vrot.lane.b32.xlu0 %v1549, 126
        %v1554 = vpop.permute.xlu0 %1553
        %1555 = vrot.lane.b32.xlu0 %v1550, 126
        %v1556 = vpop.permute.xlu0 %1555
        %v1559 = vadd.f32 %v1531, %v1554
        %v1560 = vadd.f32 %v1532, %v1556
        %s1561 = sld [smem:[#allocation2 + $0x1e]]
        %v1562 = vstv %s1561
        %v1563 = vmul.f32 %v1386, %v1562
        %v1564 = vmul.f32 %v1387, %v1562
        %v1565 = vadd.f32 %v1545, %v1563
        %v1566 = vadd.f32 %v1546, %v1564
        %s1567 = sld [smem:[#allocation5 + $0x1e]]
        %v1568 = vstv %s1567
        %v1569 = vmul.f32 %v1386, %v1568
        %v1570 = vmul.f32 %v1387, %v1568
        %v1571 = vadd.f32 %v1559, %v1569
        %v1572 = vadd.f32 %v1560, %v1570
        %s1573 = sld [smem:[#allocation2 + $0x1f]]
        %v1574 = vstv %s1573
        %v1575 = vmul.f32 %v1386, %v1574
        %v1576 = vmul.f32 %v1387, %v1574
        %1579 = vrot.lane.b32.xlu0 %v1575, 127
        %v1580 = vpop.permute.xlu0 %1579
        %1581 = vrot.lane.b32.xlu0 %v1576, 127
        %v1582 = vpop.permute.xlu0 %1581
        %v1585 = vadd.f32 %v1565, %v1580
        %v1586 = vadd.f32 %v1566, %v1582
        %s1587 = sld [smem:[#allocation5 + $0x1f]]
        %v1588 = vstv %s1587
        %v1589 = vmul.f32 %v1386, %v1588
        %v1590 = vmul.f32 %v1387, %v1588
        %1593 = vrot.lane.b32.xlu0 %v1589, 127
        %v1594 = vpop.permute.xlu0 %1593
        %1595 = vrot.lane.b32.xlu0 %v1590, 127
        %v1596 = vpop.permute.xlu0 %1595
        %v1599 = vadd.f32 %v1571, %v1594
        %v1600 = vadd.f32 %v1572, %v1596
        %s1601 = sld [smem:[#allocation2 + $0x20]]
        %v1602 = vstv %s1601
        %v1603 = vmul.f32 %v1386, %v1602
        %v1604 = vmul.f32 %v1387, %v1602
        %1607 = vrot.lane.b32.xlu0 %v1603, 126
        %v1608 = vpop.permute.xlu0 %1607
        %1609 = vrot.lane.b32.xlu0 %v1604, 126
        %v1610 = vpop.permute.xlu0 %1609
        %v1613 = vadd.f32 %v1585, %v1608
        %v1614 = vadd.f32 %v1586, %v1610
        %s1615 = sld [smem:[#allocation5 + $0x20]]
        %v1616 = vstv %s1615
        %v1617 = vmul.f32 %v1386, %v1616
        %v1618 = vmul.f32 %v1387, %v1616
        %1621 = vrot.lane.b32.xlu0 %v1617, 126
        %v1622 = vpop.permute.xlu0 %1621
        %1623 = vrot.lane.b32.xlu0 %v1618, 126
        %v1624 = vpop.permute.xlu0 %1623
        %v1627 = vadd.f32 %v1599, %v1622
        %v1628 = vadd.f32 %v1600, %v1624
        %s1629 = sld [smem:[#allocation2 + $0x21]]
        %v1630 = vstv %s1629
        %v1631 = vmul.f32 %v1388, %v1630
        %v1632 = vmul.f32 %v1389, %v1630
        %v1633 = vadd.f32 %v1613, %v1631
        %v1634 = vadd.f32 %v1614, %v1632
        %s1635 = sld [smem:[#allocation5 + $0x21]]
        %v1636 = vstv %s1635
        %v1637 = vmul.f32 %v1388, %v1636
        %v1638 = vmul.f32 %v1389, %v1636
        %v1639 = vadd.f32 %v1627, %v1637
        %v1640 = vadd.f32 %v1628, %v1638
        %s1641 = sld [smem:[#allocation2 + $0x22]]
        %v1642 = vstv %s1641
        %v1643 = vmul.f32 %v1388, %v1642
        %v1644 = vmul.f32 %v1389, %v1642
        %1647 = vrot.lane.b32.xlu0 %v1643, 127
        %v1648 = vpop.permute.xlu0 %1647
        %1649 = vrot.lane.b32.xlu0 %v1644, 127
        %v1650 = vpop.permute.xlu0 %1649
        %v1653 = vadd.f32 %v1633, %v1648
        %v1654 = vadd.f32 %v1634, %v1650
        %s1655 = sld [smem:[#allocation5 + $0x22]]
        %v1656 = vstv %s1655
        %v1657 = vmul.f32 %v1388, %v1656
        %v1658 = vmul.f32 %v1389, %v1656
        %1661 = vrot.lane.b32.xlu0 %v1657, 127
        %v1662 = vpop.permute.xlu0 %1661
        %1663 = vrot.lane.b32.xlu0 %v1658, 127
        %v1664 = vpop.permute.xlu0 %1663
        %v1667 = vadd.f32 %v1639, %v1662
        %v1668 = vadd.f32 %v1640, %v1664
        %s1669 = sld [smem:[#allocation2 + $0x23]]
        %v1670 = vstv %s1669
        %v1671 = vmul.f32 %v1388, %v1670
        %v1672 = vmul.f32 %v1389, %v1670
        %1675 = vrot.lane.b32.xlu0 %v1671, 126
        %v1676 = vpop.permute.xlu0 %1675
        %1677 = vrot.lane.b32.xlu0 %v1672, 126
        %v1678 = vpop.permute.xlu0 %1677
        %v1681 = vadd.f32 %v1653, %v1676
        %v1682 = vadd.f32 %v1654, %v1678
        %s1683 = sld [smem:[#allocation5 + $0x23]]
        %v1684 = vstv %s1683
        %v1685 = vmul.f32 %v1388, %v1684
        %v1686 = vmul.f32 %v1389, %v1684
        %1689 = vrot.lane.b32.xlu0 %v1685, 126
        %v1690 = vpop.permute.xlu0 %1689
        %1691 = vrot.lane.b32.xlu0 %v1686, 126
        %v1692 = vpop.permute.xlu0 %1691
        %v1695 = vadd.f32 %v1667, %v1690
        %v1696 = vadd.f32 %v1668, %v1692
        %v1697 = vadd.f32 %v1367, %v1681
        %v1698 = vadd.f32 %v1368, %v1682
        %s1699 = sld [smem:[#allocation8 + $0x1]]
        %v1700 = vstv %s1699
        %v1701 = vadd.f32 %v1697, %v1700
        %v1702 = vadd.f32 %v1698, %v1700
        %s1703 = scalar_lea.vmem %s406, 16 [#allocation13]
        %1704 = vst.msk [vmem:[%s1703] sm:$0xff] %vm536, %v1701
        %1705 = vst.msk [vmem:[%s1703 + $0x8] sm:$0xff] %vm536, %v1702
        %v1706 = vadd.f32 %v1381, %v1695
        %v1707 = vadd.f32 %v1382, %v1696
        %s1708 = sld [smem:[#allocation10 + $0x1]]
        %v1709 = vstv %s1708
        %v1710 = vadd.f32 %v1706, %v1709
        %v1711 = vadd.f32 %v1707, %v1709
        %s1712 = scalar_lea.vmem %s413, 16 [#allocation14]
        %1713 = vst.msk [vmem:[%s1712] sm:$0xff] %vm536, %v1710
        %1714 = vst.msk [vmem:[%s1712 + $0x8] sm:$0xff] %vm536, %v1711
        %s1715 = scalar_lea.vmem %s425, 96
        %v1716 = vld [vmem:[%s1715] sm:$0xff]
        %v1717 = vld [vmem:[%s1715 + $0x8] sm:$0xff]
        %v1718 = vld [vmem:[%s1715 + $0x1] sm:$0xff]
        %v1719 = vld [vmem:[%s1715 + $0x9] sm:$0xff]
        %v1720 = vld [vmem:[%s1715 + $0x2] sm:$0xff]
        %v1721 = vld [vmem:[%s1715 + $0xa] sm:$0xff]
        %s1722 = sld [smem:[#allocation7 + $0x24]]
        %v1723 = vstv %s1722
        %v1724 = vmul.f32 %v1716, %v1723
        %v1725 = vmul.f32 %v1717, %v1723
        %s1726 = sld [smem:[#allocation7 + $0x25]]
        %v1727 = vstv %s1726
        %v1728 = vmul.f32 %v1716, %v1727
        %v1729 = vmul.f32 %v1717, %v1727
        %1732 = vrot.lane.b32.xlu0 %v1728, 127
        %v1733 = vpop.permute.xlu0 %1732
        %1734 = vrot.lane.b32.xlu0 %v1729, 127
        %v1735 = vpop.permute.xlu0 %1734
        %v1738 = vadd.f32 %v1724, %v1733
        %v1739 = vadd.f32 %v1725, %v1735
        %s1740 = sld [smem:[#allocation7 + $0x26]]
        %v1741 = vstv %s1740
        %v1742 = vmul.f32 %v1716, %v1741
        %v1743 = vmul.f32 %v1717, %v1741
        %1746 = vrot.lane.b32.xlu0 %v1742, 126
        %v1747 = vpop.permute.xlu0 %1746
        %1748 = vrot.lane.b32.xlu0 %v1743, 126
        %v1749 = vpop.permute.xlu0 %1748
        %v1752 = vadd.f32 %v1738, %v1747
        %v1753 = vadd.f32 %v1739, %v1749
        %s1754 = sld [smem:[#allocation7 + $0x27]]
        %v1755 = vstv %s1754
        %v1756 = vmul.f32 %v1718, %v1755
        %v1757 = vmul.f32 %v1719, %v1755
        %v1758 = vadd.f32 %v1752, %v1756
        %v1759 = vadd.f32 %v1753, %v1757
        %s1760 = sld [smem:[#allocation7 + $0x28]]
        %v1761 = vstv %s1760
        %v1762 = vmul.f32 %v1718, %v1761
        %v1763 = vmul.f32 %v1719, %v1761
        %1766 = vrot.lane.b32.xlu0 %v1762, 127
        %v1767 = vpop.permute.xlu0 %1766
        %1768 = vrot.lane.b32.xlu0 %v1763, 127
        %v1769 = vpop.permute.xlu0 %1768
        %v1772 = vadd.f32 %v1758, %v1767
        %v1773 = vadd.f32 %v1759, %v1769
        %s1774 = sld [smem:[#allocation7 + $0x29]]
        %v1775 = vstv %s1774
        %v1776 = vmul.f32 %v1718, %v1775
        %v1777 = vmul.f32 %v1719, %v1775
        %1780 = vrot.lane.b32.xlu0 %v1776, 126
        %v1781 = vpop.permute.xlu0 %1780
        %1782 = vrot.lane.b32.xlu0 %v1777, 126
        %v1783 = vpop.permute.xlu0 %1782
        %v1786 = vadd.f32 %v1772, %v1781
        %v1787 = vadd.f32 %v1773, %v1783
        %s1788 = sld [smem:[#allocation7 + $0x2a]]
        %v1789 = vstv %s1788
        %v1790 = vmul.f32 %v1720, %v1789
        %v1791 = vmul.f32 %v1721, %v1789
        %v1792 = vadd.f32 %v1786, %v1790
        %v1793 = vadd.f32 %v1787, %v1791
        %s1794 = sld [smem:[#allocation7 + $0x2b]]
        %v1795 = vstv %s1794
        %v1796 = vmul.f32 %v1720, %v1795
        %v1797 = vmul.f32 %v1721, %v1795
        %1800 = vrot.lane.b32.xlu0 %v1796, 127
        %v1801 = vpop.permute.xlu0 %1800
        %1802 = vrot.lane.b32.xlu0 %v1797, 127
        %v1803 = vpop.permute.xlu0 %1802
        %v1806 = vadd.f32 %v1792, %v1801
        %v1807 = vadd.f32 %v1793, %v1803
        %s1808 = sld [smem:[#allocation7 + $0x2c]]
        %v1809 = vstv %s1808
        %v1810 = vmul.f32 %v1720, %v1809
        %v1811 = vmul.f32 %v1721, %v1809
        %1814 = vrot.lane.b32.xlu0 %v1810, 126
        %v1815 = vpop.permute.xlu0 %1814
        %1816 = vrot.lane.b32.xlu0 %v1811, 126
        %v1817 = vpop.permute.xlu0 %1816
        %v1820 = vadd.f32 %v1806, %v1815
        %v1821 = vadd.f32 %v1807, %v1817
        %s1822 = sld [smem:[#allocation11 + $0x4]]
        %v1823 = vstv %s1822
        %v1824 = vadd.f32 %v1820, %v1823
        %v1825 = vadd.f32 %v1821, %v1823
        %s1826 = scalar_lea.vmem %s420, 64 [#allocation16]
        %1827 = vst.msk [vmem:[%s1826] sm:$0xff] %vm536, %v1824
        %1828 = vst.msk [vmem:[%s1826 + $0x8] sm:$0xff] %vm536, %v1825
        %s1829 = sld [smem:[#allocation2 + $0x24]]
        %v1830 = vstv %s1829
        %v1831 = vmul.f32 %v1716, %v1830
        %v1832 = vmul.f32 %v1717, %v1830
        %s1833 = sld [smem:[#allocation5 + $0x24]]
        %v1834 = vstv %s1833
        %v1835 = vmul.f32 %v1716, %v1834
        %v1836 = vmul.f32 %v1717, %v1834
        %s1837 = sld [smem:[#allocation2 + $0x25]]
        %v1838 = vstv %s1837
        %v1839 = vmul.f32 %v1716, %v1838
        %v1840 = vmul.f32 %v1717, %v1838
        %1843 = vrot.lane.b32.xlu0 %v1839, 127
        %v1844 = vpop.permute.xlu0 %1843
        %1845 = vrot.lane.b32.xlu0 %v1840, 127
        %v1846 = vpop.permute.xlu0 %1845
        %v1849 = vadd.f32 %v1831, %v1844
        %v1850 = vadd.f32 %v1832, %v1846
        %s1851 = sld [smem:[#allocation5 + $0x25]]
        %v1852 = vstv %s1851
        %v1853 = vmul.f32 %v1716, %v1852
        %v1854 = vmul.f32 %v1717, %v1852
        %1857 = vrot.lane.b32.xlu0 %v1853, 127
        %v1858 = vpop.permute.xlu0 %1857
        %1859 = vrot.lane.b32.xlu0 %v1854, 127
        %v1860 = vpop.permute.xlu0 %1859
        %v1863 = vadd.f32 %v1835, %v1858
        %v1864 = vadd.f32 %v1836, %v1860
        %s1865 = sld [smem:[#allocation2 + $0x26]]
        %v1866 = vstv %s1865
        %v1867 = vmul.f32 %v1716, %v1866
        %v1868 = vmul.f32 %v1717, %v1866
        %1871 = vrot.lane.b32.xlu0 %v1867, 126
        %v1872 = vpop.permute.xlu0 %1871
        %1873 = vrot.lane.b32.xlu0 %v1868, 126
        %v1874 = vpop.permute.xlu0 %1873
        %v1877 = vadd.f32 %v1849, %v1872
        %v1878 = vadd.f32 %v1850, %v1874
        %s1879 = sld [smem:[#allocation5 + $0x26]]
        %v1880 = vstv %s1879
        %v1881 = vmul.f32 %v1716, %v1880
        %v1882 = vmul.f32 %v1717, %v1880
        %1885 = vrot.lane.b32.xlu0 %v1881, 126
        %v1886 = vpop.permute.xlu0 %1885
        %1887 = vrot.lane.b32.xlu0 %v1882, 126
        %v1888 = vpop.permute.xlu0 %1887
        %v1891 = vadd.f32 %v1863, %v1886
        %v1892 = vadd.f32 %v1864, %v1888
        %s1893 = sld [smem:[#allocation2 + $0x27]]
        %v1894 = vstv %s1893
        %v1895 = vmul.f32 %v1718, %v1894
        %v1896 = vmul.f32 %v1719, %v1894
        %v1897 = vadd.f32 %v1877, %v1895
        %v1898 = vadd.f32 %v1878, %v1896
        %s1899 = sld [smem:[#allocation5 + $0x27]]
        %v1900 = vstv %s1899
        %v1901 = vmul.f32 %v1718, %v1900
        %v1902 = vmul.f32 %v1719, %v1900
        %v1903 = vadd.f32 %v1891, %v1901
        %v1904 = vadd.f32 %v1892, %v1902
        %s1905 = sld [smem:[#allocation2 + $0x28]]
        %v1906 = vstv %s1905
        %v1907 = vmul.f32 %v1718, %v1906
        %v1908 = vmul.f32 %v1719, %v1906
        %1911 = vrot.lane.b32.xlu0 %v1907, 127
        %v1912 = vpop.permute.xlu0 %1911
        %1913 = vrot.lane.b32.xlu0 %v1908, 127
        %v1914 = vpop.permute.xlu0 %1913
        %v1917 = vadd.f32 %v1897, %v1912
        %v1918 = vadd.f32 %v1898, %v1914
        %s1919 = sld [smem:[#allocation5 + $0x28]]
        %v1920 = vstv %s1919
        %v1921 = vmul.f32 %v1718, %v1920
        %v1922 = vmul.f32 %v1719, %v1920
        %1925 = vrot.lane.b32.xlu0 %v1921, 127
        %v1926 = vpop.permute.xlu0 %1925
        %1927 = vrot.lane.b32.xlu0 %v1922, 127
        %v1928 = vpop.permute.xlu0 %1927
        %v1931 = vadd.f32 %v1903, %v1926
        %v1932 = vadd.f32 %v1904, %v1928
        %s1933 = sld [smem:[#allocation2 + $0x29]]
        %v1934 = vstv %s1933
        %v1935 = vmul.f32 %v1718, %v1934
        %v1936 = vmul.f32 %v1719, %v1934
        %1939 = vrot.lane.b32.xlu0 %v1935, 126
        %v1940 = vpop.permute.xlu0 %1939
        %1941 = vrot.lane.b32.xlu0 %v1936, 126
        %v1942 = vpop.permute.xlu0 %1941
        %v1945 = vadd.f32 %v1917, %v1940
        %v1946 = vadd.f32 %v1918, %v1942
        %s1947 = sld [smem:[#allocation5 + $0x29]]
        %v1948 = vstv %s1947
        %v1949 = vmul.f32 %v1718, %v1948
        %v1950 = vmul.f32 %v1719, %v1948
        %1953 = vrot.lane.b32.xlu0 %v1949, 126
        %v1954 = vpop.permute.xlu0 %1953
        %1955 = vrot.lane.b32.xlu0 %v1950, 126
        %v1956 = vpop.permute.xlu0 %1955
        %v1959 = vadd.f32 %v1931, %v1954
        %v1960 = vadd.f32 %v1932, %v1956
        %s1961 = sld [smem:[#allocation2 + $0x2a]]
        %v1962 = vstv %s1961
        %v1963 = vmul.f32 %v1720, %v1962
        %v1964 = vmul.f32 %v1721, %v1962
        %v1965 = vadd.f32 %v1945, %v1963
        %v1966 = vadd.f32 %v1946, %v1964
        %s1967 = sld [smem:[#allocation5 + $0x2a]]
        %v1968 = vstv %s1967
        %v1969 = vmul.f32 %v1720, %v1968
        %v1970 = vmul.f32 %v1721, %v1968
        %v1971 = vadd.f32 %v1959, %v1969
        %v1972 = vadd.f32 %v1960, %v1970
        %s1973 = sld [smem:[#allocation2 + $0x2b]]
        %v1974 = vstv %s1973
        %v1975 = vmul.f32 %v1720, %v1974
        %v1976 = vmul.f32 %v1721, %v1974
        %1979 = vrot.lane.b32.xlu0 %v1975, 127
        %v1980 = vpop.permute.xlu0 %1979
        %1981 = vrot.lane.b32.xlu0 %v1976, 127
        %v1982 = vpop.permute.xlu0 %1981
        %v1985 = vadd.f32 %v1965, %v1980
        %v1986 = vadd.f32 %v1966, %v1982
        %s1987 = sld [smem:[#allocation5 + $0x2b]]
        %v1988 = vstv %s1987
        %v1989 = vmul.f32 %v1720, %v1988
        %v1990 = vmul.f32 %v1721, %v1988
        %1993 = vrot.lane.b32.xlu0 %v1989, 127
        %v1994 = vpop.permute.xlu0 %1993
        %1995 = vrot.lane.b32.xlu0 %v1990, 127
        %v1996 = vpop.permute.xlu0 %1995
        %v1999 = vadd.f32 %v1971, %v1994
        %v2000 = vadd.f32 %v1972, %v1996
        %s2001 = sld [smem:[#allocation2 + $0x2c]]
        %v2002 = vstv %s2001
        %v2003 = vmul.f32 %v1720, %v2002
        %v2004 = vmul.f32 %v1721, %v2002
        %2007 = vrot.lane.b32.xlu0 %v2003, 126
        %v2008 = vpop.permute.xlu0 %2007
        %2009 = vrot.lane.b32.xlu0 %v2004, 126
        %v2010 = vpop.permute.xlu0 %2009
        %v2013 = vadd.f32 %v1985, %v2008
        %v2014 = vadd.f32 %v1986, %v2010
        %s2015 = sld [smem:[#allocation5 + $0x2c]]
        %v2016 = vstv %s2015
        %v2017 = vmul.f32 %v1720, %v2016
        %v2018 = vmul.f32 %v1721, %v2016
        %2021 = vrot.lane.b32.xlu0 %v2017, 126
        %v2022 = vpop.permute.xlu0 %2021
        %2023 = vrot.lane.b32.xlu0 %v2018, 126
        %v2024 = vpop.permute.xlu0 %2023
        %v2027 = vadd.f32 %v1999, %v2022
        %v2028 = vadd.f32 %v2000, %v2024
        %s2029 = scalar_lea.vmem %s425, 120
        %v2030 = vld [vmem:[%s2029] sm:$0xff]
        %v2031 = vld [vmem:[%s2029 + $0x8] sm:$0xff]
        %v2032 = vld [vmem:[%s2029 + $0x1] sm:$0xff]
        %v2033 = vld [vmem:[%s2029 + $0x9] sm:$0xff]
        %v2034 = vld [vmem:[%s2029 + $0x2] sm:$0xff]
        %v2035 = vld [vmem:[%s2029 + $0xa] sm:$0xff]
        %s2036 = sld [smem:[#allocation7 + $0x2d]]
        %v2037 = vstv %s2036
        %v2038 = vmul.f32 %v2030, %v2037
        %v2039 = vmul.f32 %v2031, %v2037
        %s2040 = sld [smem:[#allocation7 + $0x2e]]
        %v2041 = vstv %s2040
        %v2042 = vmul.f32 %v2030, %v2041
        %v2043 = vmul.f32 %v2031, %v2041
        %2046 = vrot.lane.b32.xlu0 %v2042, 127
        %v2047 = vpop.permute.xlu0 %2046
        %2048 = vrot.lane.b32.xlu0 %v2043, 127
        %v2049 = vpop.permute.xlu0 %2048
        %v2052 = vadd.f32 %v2038, %v2047
        %v2053 = vadd.f32 %v2039, %v2049
        %s2054 = sld [smem:[#allocation7 + $0x2f]]
        %v2055 = vstv %s2054
        %v2056 = vmul.f32 %v2030, %v2055
        %v2057 = vmul.f32 %v2031, %v2055
        %2060 = vrot.lane.b32.xlu0 %v2056, 126
        %v2061 = vpop.permute.xlu0 %2060
        %2062 = vrot.lane.b32.xlu0 %v2057, 126
        %v2063 = vpop.permute.xlu0 %2062
        %v2066 = vadd.f32 %v2052, %v2061
        %v2067 = vadd.f32 %v2053, %v2063
        %s2068 = sld [smem:[#allocation7 + $0x30]]
        %v2069 = vstv %s2068
        %v2070 = vmul.f32 %v2032, %v2069
        %v2071 = vmul.f32 %v2033, %v2069
        %v2072 = vadd.f32 %v2066, %v2070
        %v2073 = vadd.f32 %v2067, %v2071
        %s2074 = sld [smem:[#allocation7 + $0x31]]
        %v2075 = vstv %s2074
        %v2076 = vmul.f32 %v2032, %v2075
        %v2077 = vmul.f32 %v2033, %v2075
        %2080 = vrot.lane.b32.xlu0 %v2076, 127
        %v2081 = vpop.permute.xlu0 %2080
        %2082 = vrot.lane.b32.xlu0 %v2077, 127
        %v2083 = vpop.permute.xlu0 %2082
        %v2086 = vadd.f32 %v2072, %v2081
        %v2087 = vadd.f32 %v2073, %v2083
        %s2088 = sld [smem:[#allocation7 + $0x32]]
        %v2089 = vstv %s2088
        %v2090 = vmul.f32 %v2032, %v2089
        %v2091 = vmul.f32 %v2033, %v2089
        %2094 = vrot.lane.b32.xlu0 %v2090, 126
        %v2095 = vpop.permute.xlu0 %2094
        %2096 = vrot.lane.b32.xlu0 %v2091, 126
        %v2097 = vpop.permute.xlu0 %2096
        %v2100 = vadd.f32 %v2086, %v2095
        %v2101 = vadd.f32 %v2087, %v2097
        %s2102 = sld [smem:[#allocation7 + $0x33]]
        %v2103 = vstv %s2102
        %v2104 = vmul.f32 %v2034, %v2103
        %v2105 = vmul.f32 %v2035, %v2103
        %v2106 = vadd.f32 %v2100, %v2104
        %v2107 = vadd.f32 %v2101, %v2105
        %s2108 = sld [smem:[#allocation7 + $0x34]]
        %v2109 = vstv %s2108
        %v2110 = vmul.f32 %v2034, %v2109
        %v2111 = vmul.f32 %v2035, %v2109
        %2114 = vrot.lane.b32.xlu0 %v2110, 127
        %v2115 = vpop.permute.xlu0 %2114
        %2116 = vrot.lane.b32.xlu0 %v2111, 127
        %v2117 = vpop.permute.xlu0 %2116
        %v2120 = vadd.f32 %v2106, %v2115
        %v2121 = vadd.f32 %v2107, %v2117
        %s2122 = sld [smem:[#allocation7 + $0x35]]
        %v2123 = vstv %s2122
        %v2124 = vmul.f32 %v2034, %v2123
        %v2125 = vmul.f32 %v2035, %v2123
        %2128 = vrot.lane.b32.xlu0 %v2124, 126
        %v2129 = vpop.permute.xlu0 %2128
        %2130 = vrot.lane.b32.xlu0 %v2125, 126
        %v2131 = vpop.permute.xlu0 %2130
        %v2134 = vadd.f32 %v2120, %v2129
        %v2135 = vadd.f32 %v2121, %v2131
        %s2136 = sld [smem:[#allocation11 + $0x5]]
        %v2137 = vstv %s2136
        %v2138 = vadd.f32 %v2134, %v2137
        %v2139 = vadd.f32 %v2135, %v2137
        %s2140 = scalar_lea.vmem %s420, 80 [#allocation16]
        %2141 = vst.msk [vmem:[%s2140] sm:$0xff] %vm536, %v2138
        %2142 = vst.msk [vmem:[%s2140 + $0x8] sm:$0xff] %vm536, %v2139
        %s2143 = sld [smem:[#allocation2 + $0x2d]]
        %v2144 = vstv %s2143
        %v2145 = vmul.f32 %v2030, %v2144
        %v2146 = vmul.f32 %v2031, %v2144
        %s2147 = sld [smem:[#allocation5 + $0x2d]]
        %v2148 = vstv %s2147
        %v2149 = vmul.f32 %v2030, %v2148
        %v2150 = vmul.f32 %v2031, %v2148
        %s2151 = sld [smem:[#allocation2 + $0x2e]]
        %v2152 = vstv %s2151
        %v2153 = vmul.f32 %v2030, %v2152
        %v2154 = vmul.f32 %v2031, %v2152
        %2157 = vrot.lane.b32.xlu0 %v2153, 127
        %v2158 = vpop.permute.xlu0 %2157
        %2159 = vrot.lane.b32.xlu0 %v2154, 127
        %v2160 = vpop.permute.xlu0 %2159
        %v2163 = vadd.f32 %v2145, %v2158
        %v2164 = vadd.f32 %v2146, %v2160
        %s2165 = sld [smem:[#allocation5 + $0x2e]]
        %v2166 = vstv %s2165
        %v2167 = vmul.f32 %v2030, %v2166
        %v2168 = vmul.f32 %v2031, %v2166
        %2171 = vrot.lane.b32.xlu0 %v2167, 127
        %v2172 = vpop.permute.xlu0 %2171
        %2173 = vrot.lane.b32.xlu0 %v2168, 127
        %v2174 = vpop.permute.xlu0 %2173
        %v2177 = vadd.f32 %v2149, %v2172
        %v2178 = vadd.f32 %v2150, %v2174
        %s2179 = sld [smem:[#allocation2 + $0x2f]]
        %v2180 = vstv %s2179
        %v2181 = vmul.f32 %v2030, %v2180
        %v2182 = vmul.f32 %v2031, %v2180
        %2185 = vrot.lane.b32.xlu0 %v2181, 126
        %v2186 = vpop.permute.xlu0 %2185
        %2187 = vrot.lane.b32.xlu0 %v2182, 126
        %v2188 = vpop.permute.xlu0 %2187
        %v2191 = vadd.f32 %v2163, %v2186
        %v2192 = vadd.f32 %v2164, %v2188
        %s2193 = sld [smem:[#allocation5 + $0x2f]]
        %v2194 = vstv %s2193
        %v2195 = vmul.f32 %v2030, %v2194
        %v2196 = vmul.f32 %v2031, %v2194
        %2199 = vrot.lane.b32.xlu0 %v2195, 126
        %v2200 = vpop.permute.xlu0 %2199
        %2201 = vrot.lane.b32.xlu0 %v2196, 126
        %v2202 = vpop.permute.xlu0 %2201
        %v2205 = vadd.f32 %v2177, %v2200
        %v2206 = vadd.f32 %v2178, %v2202
        %s2207 = sld [smem:[#allocation2 + $0x30]]
        %v2208 = vstv %s2207
        %v2209 = vmul.f32 %v2032, %v2208
        %v2210 = vmul.f32 %v2033, %v2208
        %v2211 = vadd.f32 %v2191, %v2209
        %v2212 = vadd.f32 %v2192, %v2210
        %s2213 = sld [smem:[#allocation5 + $0x30]]
        %v2214 = vstv %s2213
        %v2215 = vmul.f32 %v2032, %v2214
        %v2216 = vmul.f32 %v2033, %v2214
        %v2217 = vadd.f32 %v2205, %v2215
        %v2218 = vadd.f32 %v2206, %v2216
        %s2219 = sld [smem:[#allocation2 + $0x31]]
        %v2220 = vstv %s2219
        %v2221 = vmul.f32 %v2032, %v2220
        %v2222 = vmul.f32 %v2033, %v2220
        %2225 = vrot.lane.b32.xlu0 %v2221, 127
        %v2226 = vpop.permute.xlu0 %2225
        %2227 = vrot.lane.b32.xlu0 %v2222, 127
        %v2228 = vpop.permute.xlu0 %2227
        %v2231 = vadd.f32 %v2211, %v2226
        %v2232 = vadd.f32 %v2212, %v2228
        %s2233 = sld [smem:[#allocation5 + $0x31]]
        %v2234 = vstv %s2233
        %v2235 = vmul.f32 %v2032, %v2234
        %v2236 = vmul.f32 %v2033, %v2234
        %2239 = vrot.lane.b32.xlu0 %v2235, 127
        %v2240 = vpop.permute.xlu0 %2239
        %2241 = vrot.lane.b32.xlu0 %v2236, 127
        %v2242 = vpop.permute.xlu0 %2241
        %v2245 = vadd.f32 %v2217, %v2240
        %v2246 = vadd.f32 %v2218, %v2242
        %s2247 = sld [smem:[#allocation2 + $0x32]]
        %v2248 = vstv %s2247
        %v2249 = vmul.f32 %v2032, %v2248
        %v2250 = vmul.f32 %v2033, %v2248
        %2253 = vrot.lane.b32.xlu0 %v2249, 126
        %v2254 = vpop.permute.xlu0 %2253
        %2255 = vrot.lane.b32.xlu0 %v2250, 126
        %v2256 = vpop.permute.xlu0 %2255
        %v2259 = vadd.f32 %v2231, %v2254
        %v2260 = vadd.f32 %v2232, %v2256
        %s2261 = sld [smem:[#allocation5 + $0x32]]
        %v2262 = vstv %s2261
        %v2263 = vmul.f32 %v2032, %v2262
        %v2264 = vmul.f32 %v2033, %v2262
        %2267 = vrot.lane.b32.xlu0 %v2263, 126
        %v2268 = vpop.permute.xlu0 %2267
        %2269 = vrot.lane.b32.xlu0 %v2264, 126
        %v2270 = vpop.permute.xlu0 %2269
        %v2273 = vadd.f32 %v2245, %v2268
        %v2274 = vadd.f32 %v2246, %v2270
        %s2275 = sld [smem:[#allocation2 + $0x33]]
        %v2276 = vstv %s2275
        %v2277 = vmul.f32 %v2034, %v2276
        %v2278 = vmul.f32 %v2035, %v2276
        %v2279 = vadd.f32 %v2259, %v2277
        %v2280 = vadd.f32 %v2260, %v2278
        %s2281 = sld [smem:[#allocation5 + $0x33]]
        %v2282 = vstv %s2281
        %v2283 = vmul.f32 %v2034, %v2282
        %v2284 = vmul.f32 %v2035, %v2282
        %v2285 = vadd.f32 %v2273, %v2283
        %v2286 = vadd.f32 %v2274, %v2284
        %s2287 = sld [smem:[#allocation2 + $0x34]]
        %v2288 = vstv %s2287
        %v2289 = vmul.f32 %v2034, %v2288
        %v2290 = vmul.f32 %v2035, %v2288
        %2293 = vrot.lane.b32.xlu0 %v2289, 127
        %v2294 = vpop.permute.xlu0 %2293
        %2295 = vrot.lane.b32.xlu0 %v2290, 127
        %v2296 = vpop.permute.xlu0 %2295
        %v2299 = vadd.f32 %v2279, %v2294
        %v2300 = vadd.f32 %v2280, %v2296
        %s2301 = sld [smem:[#allocation5 + $0x34]]
        %v2302 = vstv %s2301
        %v2303 = vmul.f32 %v2034, %v2302
        %v2304 = vmul.f32 %v2035, %v2302
        %2307 = vrot.lane.b32.xlu0 %v2303, 127
        %v2308 = vpop.permute.xlu0 %2307
        %2309 = vrot.lane.b32.xlu0 %v2304, 127
        %v2310 = vpop.permute.xlu0 %2309
        %v2313 = vadd.f32 %v2285, %v2308
        %v2314 = vadd.f32 %v2286, %v2310
        %s2315 = sld [smem:[#allocation2 + $0x35]]
        %v2316 = vstv %s2315
        %v2317 = vmul.f32 %v2034, %v2316
        %v2318 = vmul.f32 %v2035, %v2316
        %2321 = vrot.lane.b32.xlu0 %v2317, 126
        %v2322 = vpop.permute.xlu0 %2321
        %2323 = vrot.lane.b32.xlu0 %v2318, 126
        %v2324 = vpop.permute.xlu0 %2323
        %v2327 = vadd.f32 %v2299, %v2322
        %v2328 = vadd.f32 %v2300, %v2324
        %s2329 = sld [smem:[#allocation5 + $0x35]]
        %v2330 = vstv %s2329
        %v2331 = vmul.f32 %v2034, %v2330
        %v2332 = vmul.f32 %v2035, %v2330
        %2335 = vrot.lane.b32.xlu0 %v2331, 126
        %v2336 = vpop.permute.xlu0 %2335
        %2337 = vrot.lane.b32.xlu0 %v2332, 126
        %v2338 = vpop.permute.xlu0 %2337
        %v2341 = vadd.f32 %v2313, %v2336
        %v2342 = vadd.f32 %v2314, %v2338
        %v2343 = vadd.f32 %v2013, %v2327
        %v2344 = vadd.f32 %v2014, %v2328
        %s2345 = sld [smem:[#allocation8 + $0x2]]
        %v2346 = vstv %s2345
        %v2347 = vadd.f32 %v2343, %v2346
        %v2348 = vadd.f32 %v2344, %v2346
        %s2349 = scalar_lea.vmem %s406, 32 [#allocation13]
        %2350 = vst.msk [vmem:[%s2349] sm:$0xff] %vm536, %v2347
        %2351 = vst.msk [vmem:[%s2349 + $0x8] sm:$0xff] %vm536, %v2348
        %v2352 = vadd.f32 %v2027, %v2341
        %v2353 = vadd.f32 %v2028, %v2342
        %s2354 = sld [smem:[#allocation10 + $0x2]]
        %v2355 = vstv %s2354
        %v2356 = vadd.f32 %v2352, %v2355
        %v2357 = vadd.f32 %v2353, %v2355
        %s2358 = scalar_lea.vmem %s413, 32 [#allocation14]
        %2359 = vst.msk [vmem:[%s2358] sm:$0xff] %vm536, %v2356
        %2360 = vst.msk [vmem:[%s2358 + $0x8] sm:$0xff] %vm536, %v2357
        %s2361 = scalar_lea.vmem %s425, 144
        %v2362 = vld [vmem:[%s2361] sm:$0xff]
        %v2363 = vld [vmem:[%s2361 + $0x8] sm:$0xff]
        %v2364 = vld [vmem:[%s2361 + $0x1] sm:$0xff]
        %v2365 = vld [vmem:[%s2361 + $0x9] sm:$0xff]
        %v2366 = vld [vmem:[%s2361 + $0x2] sm:$0xff]
        %v2367 = vld [vmem:[%s2361 + $0xa] sm:$0xff]
        %s2368 = sld [smem:[#allocation7 + $0x36]]
        %v2369 = vstv %s2368
        %v2370 = vmul.f32 %v2362, %v2369
        %v2371 = vmul.f32 %v2363, %v2369
        %s2372 = sld [smem:[#allocation7 + $0x37]]
        %v2373 = vstv %s2372
        %v2374 = vmul.f32 %v2362, %v2373
        %v2375 = vmul.f32 %v2363, %v2373
        %2378 = vrot.lane.b32.xlu0 %v2374, 127
        %v2379 = vpop.permute.xlu0 %2378
        %2380 = vrot.lane.b32.xlu0 %v2375, 127
        %v2381 = vpop.permute.xlu0 %2380
        %v2384 = vadd.f32 %v2370, %v2379
        %v2385 = vadd.f32 %v2371, %v2381
        %s2386 = sld [smem:[#allocation7 + $0x38]]
        %v2387 = vstv %s2386
        %v2388 = vmul.f32 %v2362, %v2387
        %v2389 = vmul.f32 %v2363, %v2387
        %2392 = vrot.lane.b32.xlu0 %v2388, 126
        %v2393 = vpop.permute.xlu0 %2392
        %2394 = vrot.lane.b32.xlu0 %v2389, 126
        %v2395 = vpop.permute.xlu0 %2394
        %v2398 = vadd.f32 %v2384, %v2393
        %v2399 = vadd.f32 %v2385, %v2395
        %s2400 = sld [smem:[#allocation7 + $0x39]]
        %v2401 = vstv %s2400
        %v2402 = vmul.f32 %v2364, %v2401
        %v2403 = vmul.f32 %v2365, %v2401
        %v2404 = vadd.f32 %v2398, %v2402
        %v2405 = vadd.f32 %v2399, %v2403
        %s2406 = sld [smem:[#allocation7 + $0x3a]]
        %v2407 = vstv %s2406
        %v2408 = vmul.f32 %v2364, %v2407
        %v2409 = vmul.f32 %v2365, %v2407
        %2412 = vrot.lane.b32.xlu0 %v2408, 127
        %v2413 = vpop.permute.xlu0 %2412
        %2414 = vrot.lane.b32.xlu0 %v2409, 127
        %v2415 = vpop.permute.xlu0 %2414
        %v2418 = vadd.f32 %v2404, %v2413
        %v2419 = vadd.f32 %v2405, %v2415
        %s2420 = sld [smem:[#allocation7 + $0x3b]]
        %v2421 = vstv %s2420
        %v2422 = vmul.f32 %v2364, %v2421
        %v2423 = vmul.f32 %v2365, %v2421
        %2426 = vrot.lane.b32.xlu0 %v2422, 126
        %v2427 = vpop.permute.xlu0 %2426
        %2428 = vrot.lane.b32.xlu0 %v2423, 126
        %v2429 = vpop.permute.xlu0 %2428
        %v2432 = vadd.f32 %v2418, %v2427
        %v2433 = vadd.f32 %v2419, %v2429
        %s2434 = sld [smem:[#allocation7 + $0x3c]]
        %v2435 = vstv %s2434
        %v2436 = vmul.f32 %v2366, %v2435
        %v2437 = vmul.f32 %v2367, %v2435
        %v2438 = vadd.f32 %v2432, %v2436
        %v2439 = vadd.f32 %v2433, %v2437
        %s2440 = sld [smem:[#allocation7 + $0x3d]]
        %v2441 = vstv %s2440
        %v2442 = vmul.f32 %v2366, %v2441
        %v2443 = vmul.f32 %v2367, %v2441
        %2446 = vrot.lane.b32.xlu0 %v2442, 127
        %v2447 = vpop.permute.xlu0 %2446
        %2448 = vrot.lane.b32.xlu0 %v2443, 127
        %v2449 = vpop.permute.xlu0 %2448
        %v2452 = vadd.f32 %v2438, %v2447
        %v2453 = vadd.f32 %v2439, %v2449
        %s2454 = sld [smem:[#allocation7 + $0x3e]]
        %v2455 = vstv %s2454
        %v2456 = vmul.f32 %v2366, %v2455
        %v2457 = vmul.f32 %v2367, %v2455
        %2460 = vrot.lane.b32.xlu0 %v2456, 126
        %v2461 = vpop.permute.xlu0 %2460
        %2462 = vrot.lane.b32.xlu0 %v2457, 126
        %v2463 = vpop.permute.xlu0 %2462
        %v2466 = vadd.f32 %v2452, %v2461
        %v2467 = vadd.f32 %v2453, %v2463
        %s2468 = sld [smem:[#allocation11 + $0x6]]
        %v2469 = vstv %s2468
        %v2470 = vadd.f32 %v2466, %v2469
        %v2471 = vadd.f32 %v2467, %v2469
        %s2472 = scalar_lea.vmem %s420, 96 [#allocation16]
        %2473 = vst.msk [vmem:[%s2472] sm:$0xff] %vm536, %v2470
        %2474 = vst.msk [vmem:[%s2472 + $0x8] sm:$0xff] %vm536, %v2471
        %s2475 = sld [smem:[#allocation2 + $0x36]]
        %v2476 = vstv %s2475
        %v2477 = vmul.f32 %v2362, %v2476
        %v2478 = vmul.f32 %v2363, %v2476
        %s2479 = sld [smem:[#allocation5 + $0x36]]
        %v2480 = vstv %s2479
        %v2481 = vmul.f32 %v2362, %v2480
        %v2482 = vmul.f32 %v2363, %v2480
        %s2483 = sld [smem:[#allocation2 + $0x37]]
        %v2484 = vstv %s2483
        %v2485 = vmul.f32 %v2362, %v2484
        %v2486 = vmul.f32 %v2363, %v2484
        %2489 = vrot.lane.b32.xlu0 %v2485, 127
        %v2490 = vpop.permute.xlu0 %2489
        %2491 = vrot.lane.b32.xlu0 %v2486, 127
        %v2492 = vpop.permute.xlu0 %2491
        %v2495 = vadd.f32 %v2477, %v2490
        %v2496 = vadd.f32 %v2478, %v2492
        %s2497 = sld [smem:[#allocation5 + $0x37]]
        %v2498 = vstv %s2497
        %v2499 = vmul.f32 %v2362, %v2498
        %v2500 = vmul.f32 %v2363, %v2498
        %2503 = vrot.lane.b32.xlu0 %v2499, 127
        %v2504 = vpop.permute.xlu0 %2503
        %2505 = vrot.lane.b32.xlu0 %v2500, 127
        %v2506 = vpop.permute.xlu0 %2505
        %v2509 = vadd.f32 %v2481, %v2504
        %v2510 = vadd.f32 %v2482, %v2506
        %s2511 = sld [smem:[#allocation2 + $0x38]]
        %v2512 = vstv %s2511
        %v2513 = vmul.f32 %v2362, %v2512
        %v2514 = vmul.f32 %v2363, %v2512
        %2517 = vrot.lane.b32.xlu0 %v2513, 126
        %v2518 = vpop.permute.xlu0 %2517
        %2519 = vrot.lane.b32.xlu0 %v2514, 126
        %v2520 = vpop.permute.xlu0 %2519
        %v2523 = vadd.f32 %v2495, %v2518
        %v2524 = vadd.f32 %v2496, %v2520
        %s2525 = sld [smem:[#allocation5 + $0x38]]
        %v2526 = vstv %s2525
        %v2527 = vmul.f32 %v2362, %v2526
        %v2528 = vmul.f32 %v2363, %v2526
        %2531 = vrot.lane.b32.xlu0 %v2527, 126
        %v2532 = vpop.permute.xlu0 %2531
        %2533 = vrot.lane.b32.xlu0 %v2528, 126
        %v2534 = vpop.permute.xlu0 %2533
        %v2537 = vadd.f32 %v2509, %v2532
        %v2538 = vadd.f32 %v2510, %v2534
        %s2539 = sld [smem:[#allocation2 + $0x39]]
        %v2540 = vstv %s2539
        %v2541 = vmul.f32 %v2364, %v2540
        %v2542 = vmul.f32 %v2365, %v2540
        %v2543 = vadd.f32 %v2523, %v2541
        %v2544 = vadd.f32 %v2524, %v2542
        %s2545 = sld [smem:[#allocation5 + $0x39]]
        %v2546 = vstv %s2545
        %v2547 = vmul.f32 %v2364, %v2546
        %v2548 = vmul.f32 %v2365, %v2546
        %v2549 = vadd.f32 %v2537, %v2547
        %v2550 = vadd.f32 %v2538, %v2548
        %s2551 = sld [smem:[#allocation2 + $0x3a]]
        %v2552 = vstv %s2551
        %v2553 = vmul.f32 %v2364, %v2552
        %v2554 = vmul.f32 %v2365, %v2552
        %2557 = vrot.lane.b32.xlu0 %v2553, 127
        %v2558 = vpop.permute.xlu0 %2557
        %2559 = vrot.lane.b32.xlu0 %v2554, 127
        %v2560 = vpop.permute.xlu0 %2559
        %v2563 = vadd.f32 %v2543, %v2558
        %v2564 = vadd.f32 %v2544, %v2560
        %s2565 = sld [smem:[#allocation5 + $0x3a]]
        %v2566 = vstv %s2565
        %v2567 = vmul.f32 %v2364, %v2566
        %v2568 = vmul.f32 %v2365, %v2566
        %2571 = vrot.lane.b32.xlu0 %v2567, 127
        %v2572 = vpop.permute.xlu0 %2571
        %2573 = vrot.lane.b32.xlu0 %v2568, 127
        %v2574 = vpop.permute.xlu0 %2573
        %v2577 = vadd.f32 %v2549, %v2572
        %v2578 = vadd.f32 %v2550, %v2574
        %s2579 = sld [smem:[#allocation2 + $0x3b]]
        %v2580 = vstv %s2579
        %v2581 = vmul.f32 %v2364, %v2580
        %v2582 = vmul.f32 %v2365, %v2580
        %2585 = vrot.lane.b32.xlu0 %v2581, 126
        %v2586 = vpop.permute.xlu0 %2585
        %2587 = vrot.lane.b32.xlu0 %v2582, 126
        %v2588 = vpop.permute.xlu0 %2587
        %v2591 = vadd.f32 %v2563, %v2586
        %v2592 = vadd.f32 %v2564, %v2588
        %s2593 = sld [smem:[#allocation5 + $0x3b]]
        %v2594 = vstv %s2593
        %v2595 = vmul.f32 %v2364, %v2594
        %v2596 = vmul.f32 %v2365, %v2594
        %2599 = vrot.lane.b32.xlu0 %v2595, 126
        %v2600 = vpop.permute.xlu0 %2599
        %2601 = vrot.lane.b32.xlu0 %v2596, 126
        %v2602 = vpop.permute.xlu0 %2601
        %v2605 = vadd.f32 %v2577, %v2600
        %v2606 = vadd.f32 %v2578, %v2602
        %s2607 = sld [smem:[#allocation2 + $0x3c]]
        %v2608 = vstv %s2607
        %v2609 = vmul.f32 %v2366, %v2608
        %v2610 = vmul.f32 %v2367, %v2608
        %v2611 = vadd.f32 %v2591, %v2609
        %v2612 = vadd.f32 %v2592, %v2610
        %s2613 = sld [smem:[#allocation5 + $0x3c]]
        %v2614 = vstv %s2613
        %v2615 = vmul.f32 %v2366, %v2614
        %v2616 = vmul.f32 %v2367, %v2614
        %v2617 = vadd.f32 %v2605, %v2615
        %v2618 = vadd.f32 %v2606, %v2616
        %s2619 = sld [smem:[#allocation2 + $0x3d]]
        %v2620 = vstv %s2619
        %v2621 = vmul.f32 %v2366, %v2620
        %v2622 = vmul.f32 %v2367, %v2620
        %2625 = vrot.lane.b32.xlu0 %v2621, 127
        %v2626 = vpop.permute.xlu0 %2625
        %2627 = vrot.lane.b32.xlu0 %v2622, 127
        %v2628 = vpop.permute.xlu0 %2627
        %v2631 = vadd.f32 %v2611, %v2626
        %v2632 = vadd.f32 %v2612, %v2628
        %s2633 = sld [smem:[#allocation5 + $0x3d]]
        %v2634 = vstv %s2633
        %v2635 = vmul.f32 %v2366, %v2634
        %v2636 = vmul.f32 %v2367, %v2634
        %2639 = vrot.lane.b32.xlu0 %v2635, 127
        %v2640 = vpop.permute.xlu0 %2639
        %2641 = vrot.lane.b32.xlu0 %v2636, 127
        %v2642 = vpop.permute.xlu0 %2641
        %v2645 = vadd.f32 %v2617, %v2640
        %v2646 = vadd.f32 %v2618, %v2642
        %s2647 = sld [smem:[#allocation2 + $0x3e]]
        %v2648 = vstv %s2647
        %v2649 = vmul.f32 %v2366, %v2648
        %v2650 = vmul.f32 %v2367, %v2648
        %2653 = vrot.lane.b32.xlu0 %v2649, 126
        %v2654 = vpop.permute.xlu0 %2653
        %2655 = vrot.lane.b32.xlu0 %v2650, 126
        %v2656 = vpop.permute.xlu0 %2655
        %v2659 = vadd.f32 %v2631, %v2654
        %v2660 = vadd.f32 %v2632, %v2656
        %s2661 = sld [smem:[#allocation5 + $0x3e]]
        %v2662 = vstv %s2661
        %v2663 = vmul.f32 %v2366, %v2662
        %v2664 = vmul.f32 %v2367, %v2662
        %2667 = vrot.lane.b32.xlu0 %v2663, 126
        %v2668 = vpop.permute.xlu0 %2667
        %2669 = vrot.lane.b32.xlu0 %v2664, 126
        %v2670 = vpop.permute.xlu0 %2669
        %v2673 = vadd.f32 %v2645, %v2668
        %v2674 = vadd.f32 %v2646, %v2670
        %s2675 = scalar_lea.vmem %s425, 168
        %v2676 = vld [vmem:[%s2675] sm:$0xff]
        %v2677 = vld [vmem:[%s2675 + $0x8] sm:$0xff]
        %v2678 = vld [vmem:[%s2675 + $0x1] sm:$0xff]
        %v2679 = vld [vmem:[%s2675 + $0x9] sm:$0xff]
        %v2680 = vld [vmem:[%s2675 + $0x2] sm:$0xff]
        %v2681 = vld [vmem:[%s2675 + $0xa] sm:$0xff]
        %s2682 = sld [smem:[#allocation7 + $0x3f]]
        %v2683 = vstv %s2682
        %v2684 = vmul.f32 %v2676, %v2683
        %v2685 = vmul.f32 %v2677, %v2683
        %s2686 = sld [smem:[#allocation7 + $0x40]]
        %v2687 = vstv %s2686
        %v2688 = vmul.f32 %v2676, %v2687
        %v2689 = vmul.f32 %v2677, %v2687
        %2692 = vrot.lane.b32.xlu0 %v2688, 127
        %v2693 = vpop.permute.xlu0 %2692
        %2694 = vrot.lane.b32.xlu0 %v2689, 127
        %v2695 = vpop.permute.xlu0 %2694
        %v2698 = vadd.f32 %v2684, %v2693
        %v2699 = vadd.f32 %v2685, %v2695
        %s2700 = sld [smem:[#allocation7 + $0x41]]
        %v2701 = vstv %s2700
        %v2702 = vmul.f32 %v2676, %v2701
        %v2703 = vmul.f32 %v2677, %v2701
        %2706 = vrot.lane.b32.xlu0 %v2702, 126
        %v2707 = vpop.permute.xlu0 %2706
        %2708 = vrot.lane.b32.xlu0 %v2703, 126
        %v2709 = vpop.permute.xlu0 %2708
        %v2712 = vadd.f32 %v2698, %v2707
        %v2713 = vadd.f32 %v2699, %v2709
        %s2714 = sld [smem:[#allocation7 + $0x42]]
        %v2715 = vstv %s2714
        %v2716 = vmul.f32 %v2678, %v2715
        %v2717 = vmul.f32 %v2679, %v2715
        %v2718 = vadd.f32 %v2712, %v2716
        %v2719 = vadd.f32 %v2713, %v2717
        %s2720 = sld [smem:[#allocation7 + $0x43]]
        %v2721 = vstv %s2720
        %v2722 = vmul.f32 %v2678, %v2721
        %v2723 = vmul.f32 %v2679, %v2721
        %2726 = vrot.lane.b32.xlu0 %v2722, 127
        %v2727 = vpop.permute.xlu0 %2726
        %2728 = vrot.lane.b32.xlu0 %v2723, 127
        %v2729 = vpop.permute.xlu0 %2728
        %v2732 = vadd.f32 %v2718, %v2727
        %v2733 = vadd.f32 %v2719, %v2729
        %s2734 = sld [smem:[#allocation7 + $0x44]]
        %v2735 = vstv %s2734
        %v2736 = vmul.f32 %v2678, %v2735
        %v2737 = vmul.f32 %v2679, %v2735
        %2740 = vrot.lane.b32.xlu0 %v2736, 126
        %v2741 = vpop.permute.xlu0 %2740
        %2742 = vrot.lane.b32.xlu0 %v2737, 126
        %v2743 = vpop.permute.xlu0 %2742
        %v2746 = vadd.f32 %v2732, %v2741
        %v2747 = vadd.f32 %v2733, %v2743
        %s2748 = sld [smem:[#allocation7 + $0x45]]
        %v2749 = vstv %s2748
        %v2750 = vmul.f32 %v2680, %v2749
        %v2751 = vmul.f32 %v2681, %v2749
        %v2752 = vadd.f32 %v2746, %v2750
        %v2753 = vadd.f32 %v2747, %v2751
        %s2754 = sld [smem:[#allocation7 + $0x46]]
        %v2755 = vstv %s2754
        %v2756 = vmul.f32 %v2680, %v2755
        %v2757 = vmul.f32 %v2681, %v2755
        %2760 = vrot.lane.b32.xlu0 %v2756, 127
        %v2761 = vpop.permute.xlu0 %2760
        %2762 = vrot.lane.b32.xlu0 %v2757, 127
        %v2763 = vpop.permute.xlu0 %2762
        %v2766 = vadd.f32 %v2752, %v2761
        %v2767 = vadd.f32 %v2753, %v2763
        %s2768 = sld [smem:[#allocation7 + $0x47]]
        %v2769 = vstv %s2768
        %v2770 = vmul.f32 %v2680, %v2769
        %v2771 = vmul.f32 %v2681, %v2769
        %2774 = vrot.lane.b32.xlu0 %v2770, 126
        %v2775 = vpop.permute.xlu0 %2774
        %2776 = vrot.lane.b32.xlu0 %v2771, 126
        %v2777 = vpop.permute.xlu0 %2776
        %v2780 = vadd.f32 %v2766, %v2775
        %v2781 = vadd.f32 %v2767, %v2777
        %s2782 = sld [smem:[#allocation11 + $0x7]]
        %v2783 = vstv %s2782
        %v2784 = vadd.f32 %v2780, %v2783
        %v2785 = vadd.f32 %v2781, %v2783
        %s2786 = scalar_lea.vmem %s420, 112 [#allocation16]
        %2787 = vst.msk [vmem:[%s2786] sm:$0xff] %vm536, %v2784
        %2788 = vst.msk [vmem:[%s2786 + $0x8] sm:$0xff] %vm536, %v2785
        %s2789 = sld [smem:[#allocation2 + $0x3f]]
        %v2790 = vstv %s2789
        %v2791 = vmul.f32 %v2676, %v2790
        %v2792 = vmul.f32 %v2677, %v2790
        %s2793 = sld [smem:[#allocation5 + $0x3f]]
        %v2794 = vstv %s2793
        %v2795 = vmul.f32 %v2676, %v2794
        %v2796 = vmul.f32 %v2677, %v2794
        %s2797 = sld [smem:[#allocation2 + $0x40]]
        %v2798 = vstv %s2797
        %v2799 = vmul.f32 %v2676, %v2798
        %v2800 = vmul.f32 %v2677, %v2798
        %2803 = vrot.lane.b32.xlu0 %v2799, 127
        %v2804 = vpop.permute.xlu0 %2803
        %2805 = vrot.lane.b32.xlu0 %v2800, 127
        %v2806 = vpop.permute.xlu0 %2805
        %v2809 = vadd.f32 %v2791, %v2804
        %v2810 = vadd.f32 %v2792, %v2806
        %s2811 = sld [smem:[#allocation5 + $0x40]]
        %v2812 = vstv %s2811
        %v2813 = vmul.f32 %v2676, %v2812
        %v2814 = vmul.f32 %v2677, %v2812
        %2817 = vrot.lane.b32.xlu0 %v2813, 127
        %v2818 = vpop.permute.xlu0 %2817
        %2819 = vrot.lane.b32.xlu0 %v2814, 127
        %v2820 = vpop.permute.xlu0 %2819
        %v2823 = vadd.f32 %v2795, %v2818
        %v2824 = vadd.f32 %v2796, %v2820
        %s2825 = sld [smem:[#allocation2 + $0x41]]
        %v2826 = vstv %s2825
        %v2827 = vmul.f32 %v2676, %v2826
        %v2828 = vmul.f32 %v2677, %v2826
        %2831 = vrot.lane.b32.xlu0 %v2827, 126
        %v2832 = vpop.permute.xlu0 %2831
        %2833 = vrot.lane.b32.xlu0 %v2828, 126
        %v2834 = vpop.permute.xlu0 %2833
        %v2837 = vadd.f32 %v2809, %v2832
        %v2838 = vadd.f32 %v2810, %v2834
        %s2839 = sld [smem:[#allocation5 + $0x41]]
        %v2840 = vstv %s2839
        %v2841 = vmul.f32 %v2676, %v2840
        %v2842 = vmul.f32 %v2677, %v2840
        %2845 = vrot.lane.b32.xlu0 %v2841, 126
        %v2846 = vpop.permute.xlu0 %2845
        %2847 = vrot.lane.b32.xlu0 %v2842, 126
        %v2848 = vpop.permute.xlu0 %2847
        %v2851 = vadd.f32 %v2823, %v2846
        %v2852 = vadd.f32 %v2824, %v2848
        %s2853 = sld [smem:[#allocation2 + $0x42]]
        %v2854 = vstv %s2853
        %v2855 = vmul.f32 %v2678, %v2854
        %v2856 = vmul.f32 %v2679, %v2854
        %v2857 = vadd.f32 %v2837, %v2855
        %v2858 = vadd.f32 %v2838, %v2856
        %s2859 = sld [smem:[#allocation5 + $0x42]]
        %v2860 = vstv %s2859
        %v2861 = vmul.f32 %v2678, %v2860
        %v2862 = vmul.f32 %v2679, %v2860
        %v2863 = vadd.f32 %v2851, %v2861
        %v2864 = vadd.f32 %v2852, %v2862
        %s2865 = sld [smem:[#allocation2 + $0x43]]
        %v2866 = vstv %s2865
        %v2867 = vmul.f32 %v2678, %v2866
        %v2868 = vmul.f32 %v2679, %v2866
        %2871 = vrot.lane.b32.xlu0 %v2867, 127
        %v2872 = vpop.permute.xlu0 %2871
        %2873 = vrot.lane.b32.xlu0 %v2868, 127
        %v2874 = vpop.permute.xlu0 %2873
        %v2877 = vadd.f32 %v2857, %v2872
        %v2878 = vadd.f32 %v2858, %v2874
        %s2879 = sld [smem:[#allocation5 + $0x43]]
        %v2880 = vstv %s2879
        %v2881 = vmul.f32 %v2678, %v2880
        %v2882 = vmul.f32 %v2679, %v2880
        %2885 = vrot.lane.b32.xlu0 %v2881, 127
        %v2886 = vpop.permute.xlu0 %2885
        %2887 = vrot.lane.b32.xlu0 %v2882, 127
        %v2888 = vpop.permute.xlu0 %2887
        %v2891 = vadd.f32 %v2863, %v2886
        %v2892 = vadd.f32 %v2864, %v2888
        %s2893 = sld [smem:[#allocation2 + $0x44]]
        %v2894 = vstv %s2893
        %v2895 = vmul.f32 %v2678, %v2894
        %v2896 = vmul.f32 %v2679, %v2894
        %2899 = vrot.lane.b32.xlu0 %v2895, 126
        %v2900 = vpop.permute.xlu0 %2899
        %2901 = vrot.lane.b32.xlu0 %v2896, 126
        %v2902 = vpop.permute.xlu0 %2901
        %v2905 = vadd.f32 %v2877, %v2900
        %v2906 = vadd.f32 %v2878, %v2902
        %s2907 = sld [smem:[#allocation5 + $0x44]]
        %v2908 = vstv %s2907
        %v2909 = vmul.f32 %v2678, %v2908
        %v2910 = vmul.f32 %v2679, %v2908
        %2913 = vrot.lane.b32.xlu0 %v2909, 126
        %v2914 = vpop.permute.xlu0 %2913
        %2915 = vrot.lane.b32.xlu0 %v2910, 126
        %v2916 = vpop.permute.xlu0 %2915
        %v2919 = vadd.f32 %v2891, %v2914
        %v2920 = vadd.f32 %v2892, %v2916
        %s2921 = sld [smem:[#allocation2 + $0x45]]
        %v2922 = vstv %s2921
        %v2923 = vmul.f32 %v2680, %v2922
        %v2924 = vmul.f32 %v2681, %v2922
        %v2925 = vadd.f32 %v2905, %v2923
        %v2926 = vadd.f32 %v2906, %v2924
        %s2927 = sld [smem:[#allocation5 + $0x45]]
        %v2928 = vstv %s2927
        %v2929 = vmul.f32 %v2680, %v2928
        %v2930 = vmul.f32 %v2681, %v2928
        %v2931 = vadd.f32 %v2919, %v2929
        %v2932 = vadd.f32 %v2920, %v2930
        %s2933 = sld [smem:[#allocation2 + $0x46]]
        %v2934 = vstv %s2933
        %v2935 = vmul.f32 %v2680, %v2934
        %v2936 = vmul.f32 %v2681, %v2934
        %2939 = vrot.lane.b32.xlu0 %v2935, 127
        %v2940 = vpop.permute.xlu0 %2939
        %2941 = vrot.lane.b32.xlu0 %v2936, 127
        %v2942 = vpop.permute.xlu0 %2941
        %v2945 = vadd.f32 %v2925, %v2940
        %v2946 = vadd.f32 %v2926, %v2942
        %s2947 = sld [smem:[#allocation5 + $0x46]]
        %v2948 = vstv %s2947
        %v2949 = vmul.f32 %v2680, %v2948
        %v2950 = vmul.f32 %v2681, %v2948
        %2953 = vrot.lane.b32.xlu0 %v2949, 127
        %v2954 = vpop.permute.xlu0 %2953
        %2955 = vrot.lane.b32.xlu0 %v2950, 127
        %v2956 = vpop.permute.xlu0 %2955
        %v2959 = vadd.f32 %v2931, %v2954
        %v2960 = vadd.f32 %v2932, %v2956
        %s2961 = sld [smem:[#allocation2 + $0x47]]
        %v2962 = vstv %s2961
        %v2963 = vmul.f32 %v2680, %v2962
        %v2964 = vmul.f32 %v2681, %v2962
        %2967 = vrot.lane.b32.xlu0 %v2963, 126
        %v2968 = vpop.permute.xlu0 %2967
        %2969 = vrot.lane.b32.xlu0 %v2964, 126
        %v2970 = vpop.permute.xlu0 %2969
        %v2973 = vadd.f32 %v2945, %v2968
        %v2974 = vadd.f32 %v2946, %v2970
        %s2975 = sld [smem:[#allocation5 + $0x47]]
        %v2976 = vstv %s2975
        %v2977 = vmul.f32 %v2680, %v2976
        %v2978 = vmul.f32 %v2681, %v2976
        %2981 = vrot.lane.b32.xlu0 %v2977, 126
        %v2982 = vpop.permute.xlu0 %2981
        %2983 = vrot.lane.b32.xlu0 %v2978, 126
        %v2984 = vpop.permute.xlu0 %2983
        %v2987 = vadd.f32 %v2959, %v2982
        %v2988 = vadd.f32 %v2960, %v2984
        %v2989 = vadd.f32 %v2659, %v2973
        %v2990 = vadd.f32 %v2660, %v2974
        %s2991 = sld [smem:[#allocation8 + $0x3]]
        %v2992 = vstv %s2991
        %v2993 = vadd.f32 %v2989, %v2992
        %v2994 = vadd.f32 %v2990, %v2992
        %s2995 = scalar_lea.vmem %s406, 48 [#allocation13]
        %2996 = vst.msk [vmem:[%s2995] sm:$0xff] %vm536, %v2993
        %2997 = vst.msk [vmem:[%s2995 + $0x8] sm:$0xff] %vm536, %v2994
        %v2998 = vadd.f32 %v2673, %v2987
        %v2999 = vadd.f32 %v2674, %v2988
        %s3000 = sld [smem:[#allocation10 + $0x3]]
        %v3001 = vstv %s3000
        %v3002 = vadd.f32 %v2998, %v3001
        %v3003 = vadd.f32 %v2999, %v3001
        %s3004 = scalar_lea.vmem %s413, 48 [#allocation14]
        %3005 = vst.msk [vmem:[%s3004] sm:$0xff] %vm536, %v3002
        %3006 = vst.msk [vmem:[%s3004 + $0x8] sm:$0xff] %vm536, %v3003
        %s3007 = scalar_lea.vmem %s425, 192
        %v3008 = vld [vmem:[%s3007] sm:$0xff]
        %v3009 = vld [vmem:[%s3007 + $0x8] sm:$0xff]
        %v3010 = vld [vmem:[%s3007 + $0x1] sm:$0xff]
        %v3011 = vld [vmem:[%s3007 + $0x9] sm:$0xff]
        %v3012 = vld [vmem:[%s3007 + $0x2] sm:$0xff]
        %v3013 = vld [vmem:[%s3007 + $0xa] sm:$0xff]
        %s3014 = sld [smem:[#allocation7 + $0x48]]
        %v3015 = vstv %s3014
        %v3016 = vmul.f32 %v3008, %v3015
        %v3017 = vmul.f32 %v3009, %v3015
        %s3018 = sld [smem:[#allocation7 + $0x49]]
        %v3019 = vstv %s3018
        %v3020 = vmul.f32 %v3008, %v3019
        %v3021 = vmul.f32 %v3009, %v3019
        %3024 = vrot.lane.b32.xlu0 %v3020, 127
        %v3025 = vpop.permute.xlu0 %3024
        %3026 = vrot.lane.b32.xlu0 %v3021, 127
        %v3027 = vpop.permute.xlu0 %3026
        %v3030 = vadd.f32 %v3016, %v3025
        %v3031 = vadd.f32 %v3017, %v3027
        %s3032 = sld [smem:[#allocation7 + $0x4a]]
        %v3033 = vstv %s3032
        %v3034 = vmul.f32 %v3008, %v3033
        %v3035 = vmul.f32 %v3009, %v3033
        %3038 = vrot.lane.b32.xlu0 %v3034, 126
        %v3039 = vpop.permute.xlu0 %3038
        %3040 = vrot.lane.b32.xlu0 %v3035, 126
        %v3041 = vpop.permute.xlu0 %3040
        %v3044 = vadd.f32 %v3030, %v3039
        %v3045 = vadd.f32 %v3031, %v3041
        %s3046 = sld [smem:[#allocation7 + $0x4b]]
        %v3047 = vstv %s3046
        %v3048 = vmul.f32 %v3010, %v3047
        %v3049 = vmul.f32 %v3011, %v3047
        %v3050 = vadd.f32 %v3044, %v3048
        %v3051 = vadd.f32 %v3045, %v3049
        %s3052 = sld [smem:[#allocation7 + $0x4c]]
        %v3053 = vstv %s3052
        %v3054 = vmul.f32 %v3010, %v3053
        %v3055 = vmul.f32 %v3011, %v3053
        %3058 = vrot.lane.b32.xlu0 %v3054, 127
        %v3059 = vpop.permute.xlu0 %3058
        %3060 = vrot.lane.b32.xlu0 %v3055, 127
        %v3061 = vpop.permute.xlu0 %3060
        %v3064 = vadd.f32 %v3050, %v3059
        %v3065 = vadd.f32 %v3051, %v3061
        %s3066 = sld [smem:[#allocation7 + $0x4d]]
        %v3067 = vstv %s3066
        %v3068 = vmul.f32 %v3010, %v3067
        %v3069 = vmul.f32 %v3011, %v3067
        %3072 = vrot.lane.b32.xlu0 %v3068, 126
        %v3073 = vpop.permute.xlu0 %3072
        %3074 = vrot.lane.b32.xlu0 %v3069, 126
        %v3075 = vpop.permute.xlu0 %3074
        %v3078 = vadd.f32 %v3064, %v3073
        %v3079 = vadd.f32 %v3065, %v3075
        %s3080 = sld [smem:[#allocation7 + $0x4e]]
        %v3081 = vstv %s3080
        %v3082 = vmul.f32 %v3012, %v3081
        %v3083 = vmul.f32 %v3013, %v3081
        %v3084 = vadd.f32 %v3078, %v3082
        %v3085 = vadd.f32 %v3079, %v3083
        %s3086 = sld [smem:[#allocation7 + $0x4f]]
        %v3087 = vstv %s3086
        %v3088 = vmul.f32 %v3012, %v3087
        %v3089 = vmul.f32 %v3013, %v3087
        %3092 = vrot.lane.b32.xlu0 %v3088, 127
        %v3093 = vpop.permute.xlu0 %3092
        %3094 = vrot.lane.b32.xlu0 %v3089, 127
        %v3095 = vpop.permute.xlu0 %3094
        %v3098 = vadd.f32 %v3084, %v3093
        %v3099 = vadd.f32 %v3085, %v3095
        %s3100 = sld [smem:[#allocation7 + $0x50]]
        %v3101 = vstv %s3100
        %v3102 = vmul.f32 %v3012, %v3101
        %v3103 = vmul.f32 %v3013, %v3101
        %3106 = vrot.lane.b32.xlu0 %v3102, 126
        %v3107 = vpop.permute.xlu0 %3106
        %3108 = vrot.lane.b32.xlu0 %v3103, 126
        %v3109 = vpop.permute.xlu0 %3108
        %v3112 = vadd.f32 %v3098, %v3107
        %v3113 = vadd.f32 %v3099, %v3109
        %s3114 = sld [smem:[#allocation11 + $0x8]]
        %v3115 = vstv %s3114
        %v3116 = vadd.f32 %v3112, %v3115
        %v3117 = vadd.f32 %v3113, %v3115
        %s3118 = scalar_lea.vmem %s420, 128 [#allocation16]
        %3119 = vst.msk [vmem:[%s3118] sm:$0xff] %vm536, %v3116
        %3120 = vst.msk [vmem:[%s3118 + $0x8] sm:$0xff] %vm536, %v3117
        %s3121 = sld [smem:[#allocation2 + $0x48]]
        %v3122 = vstv %s3121
        %v3123 = vmul.f32 %v3008, %v3122
        %v3124 = vmul.f32 %v3009, %v3122
        %s3125 = sld [smem:[#allocation5 + $0x48]]
        %v3126 = vstv %s3125
        %v3127 = vmul.f32 %v3008, %v3126
        %v3128 = vmul.f32 %v3009, %v3126
        %s3129 = sld [smem:[#allocation2 + $0x49]]
        %v3130 = vstv %s3129
        %v3131 = vmul.f32 %v3008, %v3130
        %v3132 = vmul.f32 %v3009, %v3130
        %3135 = vrot.lane.b32.xlu0 %v3131, 127
        %v3136 = vpop.permute.xlu0 %3135
        %3137 = vrot.lane.b32.xlu0 %v3132, 127
        %v3138 = vpop.permute.xlu0 %3137
        %v3141 = vadd.f32 %v3123, %v3136
        %v3142 = vadd.f32 %v3124, %v3138
        %s3143 = sld [smem:[#allocation5 + $0x49]]
        %v3144 = vstv %s3143
        %v3145 = vmul.f32 %v3008, %v3144
        %v3146 = vmul.f32 %v3009, %v3144
        %3149 = vrot.lane.b32.xlu0 %v3145, 127
        %v3150 = vpop.permute.xlu0 %3149
        %3151 = vrot.lane.b32.xlu0 %v3146, 127
        %v3152 = vpop.permute.xlu0 %3151
        %v3155 = vadd.f32 %v3127, %v3150
        %v3156 = vadd.f32 %v3128, %v3152
        %s3157 = sld [smem:[#allocation2 + $0x4a]]
        %v3158 = vstv %s3157
        %v3159 = vmul.f32 %v3008, %v3158
        %v3160 = vmul.f32 %v3009, %v3158
        %3163 = vrot.lane.b32.xlu0 %v3159, 126
        %v3164 = vpop.permute.xlu0 %3163
        %3165 = vrot.lane.b32.xlu0 %v3160, 126
        %v3166 = vpop.permute.xlu0 %3165
        %v3169 = vadd.f32 %v3141, %v3164
        %v3170 = vadd.f32 %v3142, %v3166
        %s3171 = sld [smem:[#allocation5 + $0x4a]]
        %v3172 = vstv %s3171
        %v3173 = vmul.f32 %v3008, %v3172
        %v3174 = vmul.f32 %v3009, %v3172
        %3177 = vrot.lane.b32.xlu0 %v3173, 126
        %v3178 = vpop.permute.xlu0 %3177
        %3179 = vrot.lane.b32.xlu0 %v3174, 126
        %v3180 = vpop.permute.xlu0 %3179
        %v3183 = vadd.f32 %v3155, %v3178
        %v3184 = vadd.f32 %v3156, %v3180
        %s3185 = sld [smem:[#allocation2 + $0x4b]]
        %v3186 = vstv %s3185
        %v3187 = vmul.f32 %v3010, %v3186
        %v3188 = vmul.f32 %v3011, %v3186
        %v3189 = vadd.f32 %v3169, %v3187
        %v3190 = vadd.f32 %v3170, %v3188
        %s3191 = sld [smem:[#allocation5 + $0x4b]]
        %v3192 = vstv %s3191
        %v3193 = vmul.f32 %v3010, %v3192
        %v3194 = vmul.f32 %v3011, %v3192
        %v3195 = vadd.f32 %v3183, %v3193
        %v3196 = vadd.f32 %v3184, %v3194
        %s3197 = sld [smem:[#allocation2 + $0x4c]]
        %v3198 = vstv %s3197
        %v3199 = vmul.f32 %v3010, %v3198
        %v3200 = vmul.f32 %v3011, %v3198
        %3203 = vrot.lane.b32.xlu0 %v3199, 127
        %v3204 = vpop.permute.xlu0 %3203
        %3205 = vrot.lane.b32.xlu0 %v3200, 127
        %v3206 = vpop.permute.xlu0 %3205
        %v3209 = vadd.f32 %v3189, %v3204
        %v3210 = vadd.f32 %v3190, %v3206
        %s3211 = sld [smem:[#allocation5 + $0x4c]]
        %v3212 = vstv %s3211
        %v3213 = vmul.f32 %v3010, %v3212
        %v3214 = vmul.f32 %v3011, %v3212
        %3217 = vrot.lane.b32.xlu0 %v3213, 127
        %v3218 = vpop.permute.xlu0 %3217
        %3219 = vrot.lane.b32.xlu0 %v3214, 127
        %v3220 = vpop.permute.xlu0 %3219
        %v3223 = vadd.f32 %v3195, %v3218
        %v3224 = vadd.f32 %v3196, %v3220
        %s3225 = sld [smem:[#allocation2 + $0x4d]]
        %v3226 = vstv %s3225
        %v3227 = vmul.f32 %v3010, %v3226
        %v3228 = vmul.f32 %v3011, %v3226
        %3231 = vrot.lane.b32.xlu0 %v3227, 126
        %v3232 = vpop.permute.xlu0 %3231
        %3233 = vrot.lane.b32.xlu0 %v3228, 126
        %v3234 = vpop.permute.xlu0 %3233
        %v3237 = vadd.f32 %v3209, %v3232
        %v3238 = vadd.f32 %v3210, %v3234
        %s3239 = sld [smem:[#allocation5 + $0x4d]]
        %v3240 = vstv %s3239
        %v3241 = vmul.f32 %v3010, %v3240
        %v3242 = vmul.f32 %v3011, %v3240
        %3245 = vrot.lane.b32.xlu0 %v3241, 126
        %v3246 = vpop.permute.xlu0 %3245
        %3247 = vrot.lane.b32.xlu0 %v3242, 126
        %v3248 = vpop.permute.xlu0 %3247
        %v3251 = vadd.f32 %v3223, %v3246
        %v3252 = vadd.f32 %v3224, %v3248
        %s3253 = sld [smem:[#allocation2 + $0x4e]]
        %v3254 = vstv %s3253
        %v3255 = vmul.f32 %v3012, %v3254
        %v3256 = vmul.f32 %v3013, %v3254
        %v3257 = vadd.f32 %v3237, %v3255
        %v3258 = vadd.f32 %v3238, %v3256
        %s3259 = sld [smem:[#allocation5 + $0x4e]]
        %v3260 = vstv %s3259
        %v3261 = vmul.f32 %v3012, %v3260
        %v3262 = vmul.f32 %v3013, %v3260
        %v3263 = vadd.f32 %v3251, %v3261
        %v3264 = vadd.f32 %v3252, %v3262
        %s3265 = sld [smem:[#allocation2 + $0x4f]]
        %v3266 = vstv %s3265
        %v3267 = vmul.f32 %v3012, %v3266
        %v3268 = vmul.f32 %v3013, %v3266
        %3271 = vrot.lane.b32.xlu0 %v3267, 127
        %v3272 = vpop.permute.xlu0 %3271
        %3273 = vrot.lane.b32.xlu0 %v3268, 127
        %v3274 = vpop.permute.xlu0 %3273
        %v3277 = vadd.f32 %v3257, %v3272
        %v3278 = vadd.f32 %v3258, %v3274
        %s3279 = sld [smem:[#allocation5 + $0x4f]]
        %v3280 = vstv %s3279
        %v3281 = vmul.f32 %v3012, %v3280
        %v3282 = vmul.f32 %v3013, %v3280
        %3285 = vrot.lane.b32.xlu0 %v3281, 127
        %v3286 = vpop.permute.xlu0 %3285
        %3287 = vrot.lane.b32.xlu0 %v3282, 127
        %v3288 = vpop.permute.xlu0 %3287
        %v3291 = vadd.f32 %v3263, %v3286
        %v3292 = vadd.f32 %v3264, %v3288
        %s3293 = sld [smem:[#allocation2 + $0x50]]
        %v3294 = vstv %s3293
        %v3295 = vmul.f32 %v3012, %v3294
        %v3296 = vmul.f32 %v3013, %v3294
        %3299 = vrot.lane.b32.xlu0 %v3295, 126
        %v3300 = vpop.permute.xlu0 %3299
        %3301 = vrot.lane.b32.xlu0 %v3296, 126
        %v3302 = vpop.permute.xlu0 %3301
        %v3305 = vadd.f32 %v3277, %v3300
        %v3306 = vadd.f32 %v3278, %v3302
        %s3307 = sld [smem:[#allocation5 + $0x50]]
        %v3308 = vstv %s3307
        %v3309 = vmul.f32 %v3012, %v3308
        %v3310 = vmul.f32 %v3013, %v3308
        %3313 = vrot.lane.b32.xlu0 %v3309, 126
        %v3314 = vpop.permute.xlu0 %3313
        %3315 = vrot.lane.b32.xlu0 %v3310, 126
        %v3316 = vpop.permute.xlu0 %3315
        %v3319 = vadd.f32 %v3291, %v3314
        %v3320 = vadd.f32 %v3292, %v3316
        %s3321 = scalar_lea.vmem %s425, 216
        %v3322 = vld [vmem:[%s3321] sm:$0xff]
        %v3323 = vld [vmem:[%s3321 + $0x8] sm:$0xff]
        %v3324 = vld [vmem:[%s3321 + $0x1] sm:$0xff]
        %v3325 = vld [vmem:[%s3321 + $0x9] sm:$0xff]
        %v3326 = vld [vmem:[%s3321 + $0x2] sm:$0xff]
        %v3327 = vld [vmem:[%s3321 + $0xa] sm:$0xff]
        %s3328 = sld [smem:[#allocation7 + $0x51]]
        %v3329 = vstv %s3328
        %v3330 = vmul.f32 %v3322, %v3329
        %v3331 = vmul.f32 %v3323, %v3329
        %s3332 = sld [smem:[#allocation7 + $0x52]]
        %v3333 = vstv %s3332
        %v3334 = vmul.f32 %v3322, %v3333
        %v3335 = vmul.f32 %v3323, %v3333
        %3338 = vrot.lane.b32.xlu0 %v3334, 127
        %v3339 = vpop.permute.xlu0 %3338
        %3340 = vrot.lane.b32.xlu0 %v3335, 127
        %v3341 = vpop.permute.xlu0 %3340
        %v3344 = vadd.f32 %v3330, %v3339
        %v3345 = vadd.f32 %v3331, %v3341
        %s3346 = sld [smem:[#allocation7 + $0x53]]
        %v3347 = vstv %s3346
        %v3348 = vmul.f32 %v3322, %v3347
        %v3349 = vmul.f32 %v3323, %v3347
        %3352 = vrot.lane.b32.xlu0 %v3348, 126
        %v3353 = vpop.permute.xlu0 %3352
        %3354 = vrot.lane.b32.xlu0 %v3349, 126
        %v3355 = vpop.permute.xlu0 %3354
        %v3358 = vadd.f32 %v3344, %v3353
        %v3359 = vadd.f32 %v3345, %v3355
        %s3360 = sld [smem:[#allocation7 + $0x54]]
        %v3361 = vstv %s3360
        %v3362 = vmul.f32 %v3324, %v3361
        %v3363 = vmul.f32 %v3325, %v3361
        %v3364 = vadd.f32 %v3358, %v3362
        %v3365 = vadd.f32 %v3359, %v3363
        %s3366 = sld [smem:[#allocation7 + $0x55]]
        %v3367 = vstv %s3366
        %v3368 = vmul.f32 %v3324, %v3367
        %v3369 = vmul.f32 %v3325, %v3367
        %3372 = vrot.lane.b32.xlu0 %v3368, 127
        %v3373 = vpop.permute.xlu0 %3372
        %3374 = vrot.lane.b32.xlu0 %v3369, 127
        %v3375 = vpop.permute.xlu0 %3374
        %v3378 = vadd.f32 %v3364, %v3373
        %v3379 = vadd.f32 %v3365, %v3375
        %s3380 = sld [smem:[#allocation7 + $0x56]]
        %v3381 = vstv %s3380
        %v3382 = vmul.f32 %v3324, %v3381
        %v3383 = vmul.f32 %v3325, %v3381
        %3386 = vrot.lane.b32.xlu0 %v3382, 126
        %v3387 = vpop.permute.xlu0 %3386
        %3388 = vrot.lane.b32.xlu0 %v3383, 126
        %v3389 = vpop.permute.xlu0 %3388
        %v3392 = vadd.f32 %v3378, %v3387
        %v3393 = vadd.f32 %v3379, %v3389
        %s3394 = sld [smem:[#allocation7 + $0x57]]
        %v3395 = vstv %s3394
        %v3396 = vmul.f32 %v3326, %v3395
        %v3397 = vmul.f32 %v3327, %v3395
        %v3398 = vadd.f32 %v3392, %v3396
        %v3399 = vadd.f32 %v3393, %v3397
        %s3400 = sld [smem:[#allocation7 + $0x58]]
        %v3401 = vstv %s3400
        %v3402 = vmul.f32 %v3326, %v3401
        %v3403 = vmul.f32 %v3327, %v3401
        %3406 = vrot.lane.b32.xlu0 %v3402, 127
        %v3407 = vpop.permute.xlu0 %3406
        %3408 = vrot.lane.b32.xlu0 %v3403, 127
        %v3409 = vpop.permute.xlu0 %3408
        %v3412 = vadd.f32 %v3398, %v3407
        %v3413 = vadd.f32 %v3399, %v3409
        %s3414 = sld [smem:[#allocation7 + $0x59]]
        %v3415 = vstv %s3414
        %v3416 = vmul.f32 %v3326, %v3415
        %v3417 = vmul.f32 %v3327, %v3415
        %3420 = vrot.lane.b32.xlu0 %v3416, 126
        %v3421 = vpop.permute.xlu0 %3420
        %3422 = vrot.lane.b32.xlu0 %v3417, 126
        %v3423 = vpop.permute.xlu0 %3422
        %v3426 = vadd.f32 %v3412, %v3421
        %v3427 = vadd.f32 %v3413, %v3423
        %s3428 = sld [smem:[#allocation11 + $0x9]]
        %v3429 = vstv %s3428
        %v3430 = vadd.f32 %v3426, %v3429
        %v3431 = vadd.f32 %v3427, %v3429
        %s3432 = scalar_lea.vmem %s420, 144 [#allocation16]
        %3433 = vst.msk [vmem:[%s3432] sm:$0xff] %vm536, %v3430
        %3434 = vst.msk [vmem:[%s3432 + $0x8] sm:$0xff] %vm536, %v3431
        %s3435 = sld [smem:[#allocation2 + $0x51]]
        %v3436 = vstv %s3435
        %v3437 = vmul.f32 %v3322, %v3436
        %v3438 = vmul.f32 %v3323, %v3436
        %s3439 = sld [smem:[#allocation5 + $0x51]]
        %v3440 = vstv %s3439
        %v3441 = vmul.f32 %v3322, %v3440
        %v3442 = vmul.f32 %v3323, %v3440
        %s3443 = sld [smem:[#allocation2 + $0x52]]
        %v3444 = vstv %s3443
        %v3445 = vmul.f32 %v3322, %v3444
        %v3446 = vmul.f32 %v3323, %v3444
        %3449 = vrot.lane.b32.xlu0 %v3445, 127
        %v3450 = vpop.permute.xlu0 %3449
        %3451 = vrot.lane.b32.xlu0 %v3446, 127
        %v3452 = vpop.permute.xlu0 %3451
        %v3455 = vadd.f32 %v3437, %v3450
        %v3456 = vadd.f32 %v3438, %v3452
        %s3457 = sld [smem:[#allocation5 + $0x52]]
        %v3458 = vstv %s3457
        %v3459 = vmul.f32 %v3322, %v3458
        %v3460 = vmul.f32 %v3323, %v3458
        %3463 = vrot.lane.b32.xlu0 %v3459, 127
        %v3464 = vpop.permute.xlu0 %3463
        %3465 = vrot.lane.b32.xlu0 %v3460, 127
        %v3466 = vpop.permute.xlu0 %3465
        %v3469 = vadd.f32 %v3441, %v3464
        %v3470 = vadd.f32 %v3442, %v3466
        %s3471 = sld [smem:[#allocation2 + $0x53]]
        %v3472 = vstv %s3471
        %v3473 = vmul.f32 %v3322, %v3472
        %v3474 = vmul.f32 %v3323, %v3472
        %3477 = vrot.lane.b32.xlu0 %v3473, 126
        %v3478 = vpop.permute.xlu0 %3477
        %3479 = vrot.lane.b32.xlu0 %v3474, 126
        %v3480 = vpop.permute.xlu0 %3479
        %v3483 = vadd.f32 %v3455, %v3478
        %v3484 = vadd.f32 %v3456, %v3480
        %s3485 = sld [smem:[#allocation5 + $0x53]]
        %v3486 = vstv %s3485
        %v3487 = vmul.f32 %v3322, %v3486
        %v3488 = vmul.f32 %v3323, %v3486
        %3491 = vrot.lane.b32.xlu0 %v3487, 126
        %v3492 = vpop.permute.xlu0 %3491
        %3493 = vrot.lane.b32.xlu0 %v3488, 126
        %v3494 = vpop.permute.xlu0 %3493
        %v3497 = vadd.f32 %v3469, %v3492
        %v3498 = vadd.f32 %v3470, %v3494
        %s3499 = sld [smem:[#allocation2 + $0x54]]
        %v3500 = vstv %s3499
        %v3501 = vmul.f32 %v3324, %v3500
        %v3502 = vmul.f32 %v3325, %v3500
        %v3503 = vadd.f32 %v3483, %v3501
        %v3504 = vadd.f32 %v3484, %v3502
        %s3505 = sld [smem:[#allocation5 + $0x54]]
        %v3506 = vstv %s3505
        %v3507 = vmul.f32 %v3324, %v3506
        %v3508 = vmul.f32 %v3325, %v3506
        %v3509 = vadd.f32 %v3497, %v3507
        %v3510 = vadd.f32 %v3498, %v3508
        %s3511 = sld [smem:[#allocation2 + $0x55]]
        %v3512 = vstv %s3511
        %v3513 = vmul.f32 %v3324, %v3512
        %v3514 = vmul.f32 %v3325, %v3512
        %3517 = vrot.lane.b32.xlu0 %v3513, 127
        %v3518 = vpop.permute.xlu0 %3517
        %3519 = vrot.lane.b32.xlu0 %v3514, 127
        %v3520 = vpop.permute.xlu0 %3519
        %v3523 = vadd.f32 %v3503, %v3518
        %v3524 = vadd.f32 %v3504, %v3520
        %s3525 = sld [smem:[#allocation5 + $0x55]]
        %v3526 = vstv %s3525
        %v3527 = vmul.f32 %v3324, %v3526
        %v3528 = vmul.f32 %v3325, %v3526
        %3531 = vrot.lane.b32.xlu0 %v3527, 127
        %v3532 = vpop.permute.xlu0 %3531
        %3533 = vrot.lane.b32.xlu0 %v3528, 127
        %v3534 = vpop.permute.xlu0 %3533
        %v3537 = vadd.f32 %v3509, %v3532
        %v3538 = vadd.f32 %v3510, %v3534
        %s3539 = sld [smem:[#allocation2 + $0x56]]
        %v3540 = vstv %s3539
        %v3541 = vmul.f32 %v3324, %v3540
        %v3542 = vmul.f32 %v3325, %v3540
        %3545 = vrot.lane.b32.xlu0 %v3541, 126
        %v3546 = vpop.permute.xlu0 %3545
        %3547 = vrot.lane.b32.xlu0 %v3542, 126
        %v3548 = vpop.permute.xlu0 %3547
        %v3551 = vadd.f32 %v3523, %v3546
        %v3552 = vadd.f32 %v3524, %v3548
        %s3553 = sld [smem:[#allocation5 + $0x56]]
        %v3554 = vstv %s3553
        %v3555 = vmul.f32 %v3324, %v3554
        %v3556 = vmul.f32 %v3325, %v3554
        %3559 = vrot.lane.b32.xlu0 %v3555, 126
        %v3560 = vpop.permute.xlu0 %3559
        %3561 = vrot.lane.b32.xlu0 %v3556, 126
        %v3562 = vpop.permute.xlu0 %3561
        %v3565 = vadd.f32 %v3537, %v3560
        %v3566 = vadd.f32 %v3538, %v3562
        %s3567 = sld [smem:[#allocation2 + $0x57]]
        %v3568 = vstv %s3567
        %v3569 = vmul.f32 %v3326, %v3568
        %v3570 = vmul.f32 %v3327, %v3568
        %v3571 = vadd.f32 %v3551, %v3569
        %v3572 = vadd.f32 %v3552, %v3570
        %s3573 = sld [smem:[#allocation5 + $0x57]]
        %v3574 = vstv %s3573
        %v3575 = vmul.f32 %v3326, %v3574
        %v3576 = vmul.f32 %v3327, %v3574
        %v3577 = vadd.f32 %v3565, %v3575
        %v3578 = vadd.f32 %v3566, %v3576
        %s3579 = sld [smem:[#allocation2 + $0x58]]
        %v3580 = vstv %s3579
        %v3581 = vmul.f32 %v3326, %v3580
        %v3582 = vmul.f32 %v3327, %v3580
        %3585 = vrot.lane.b32.xlu0 %v3581, 127
        %v3586 = vpop.permute.xlu0 %3585
        %3587 = vrot.lane.b32.xlu0 %v3582, 127
        %v3588 = vpop.permute.xlu0 %3587
        %v3591 = vadd.f32 %v3571, %v3586
        %v3592 = vadd.f32 %v3572, %v3588
        %s3593 = sld [smem:[#allocation5 + $0x58]]
        %v3594 = vstv %s3593
        %v3595 = vmul.f32 %v3326, %v3594
        %v3596 = vmul.f32 %v3327, %v3594
        %3599 = vrot.lane.b32.xlu0 %v3595, 127
        %v3600 = vpop.permute.xlu0 %3599
        %3601 = vrot.lane.b32.xlu0 %v3596, 127
        %v3602 = vpop.permute.xlu0 %3601
        %v3605 = vadd.f32 %v3577, %v3600
        %v3606 = vadd.f32 %v3578, %v3602
        %s3607 = sld [smem:[#allocation2 + $0x59]]
        %v3608 = vstv %s3607
        %v3609 = vmul.f32 %v3326, %v3608
        %v3610 = vmul.f32 %v3327, %v3608
        %3613 = vrot.lane.b32.xlu0 %v3609, 126
        %v3614 = vpop.permute.xlu0 %3613
        %3615 = vrot.lane.b32.xlu0 %v3610, 126
        %v3616 = vpop.permute.xlu0 %3615
        %v3619 = vadd.f32 %v3591, %v3614
        %v3620 = vadd.f32 %v3592, %v3616
        %s3621 = sld [smem:[#allocation5 + $0x59]]
        %v3622 = vstv %s3621
        %v3623 = vmul.f32 %v3326, %v3622
        %v3624 = vmul.f32 %v3327, %v3622
        %3627 = vrot.lane.b32.xlu0 %v3623, 126
        %v3628 = vpop.permute.xlu0 %3627
        %3629 = vrot.lane.b32.xlu0 %v3624, 126
        %v3630 = vpop.permute.xlu0 %3629
        %v3633 = vadd.f32 %v3605, %v3628
        %v3634 = vadd.f32 %v3606, %v3630
        %v3635 = vadd.f32 %v3305, %v3619
        %v3636 = vadd.f32 %v3306, %v3620
        %s3637 = sld [smem:[#allocation8 + $0x4]]
        %v3638 = vstv %s3637
        %v3639 = vadd.f32 %v3635, %v3638
        %v3640 = vadd.f32 %v3636, %v3638
        %s3641 = scalar_lea.vmem %s406, 64 [#allocation13]
        %3642 = vst.msk [vmem:[%s3641] sm:$0xff] %vm536, %v3639
        %3643 = vst.msk [vmem:[%s3641 + $0x8] sm:$0xff] %vm536, %v3640
        %v3644 = vadd.f32 %v3319, %v3633
        %v3645 = vadd.f32 %v3320, %v3634
        %s3646 = sld [smem:[#allocation10 + $0x4]]
        %v3647 = vstv %s3646
        %v3648 = vadd.f32 %v3644, %v3647
        %v3649 = vadd.f32 %v3645, %v3647
        %s3650 = scalar_lea.vmem %s413, 64 [#allocation14]
        %3651 = vst.msk [vmem:[%s3650] sm:$0xff] %vm536, %v3648
        %3652 = vst.msk [vmem:[%s3650 + $0x8] sm:$0xff] %vm536, %v3649
        %s3653 = scalar_lea.vmem %s425, 240
        %v3654 = vld [vmem:[%s3653] sm:$0xff]
        %v3655 = vld [vmem:[%s3653 + $0x8] sm:$0xff]
        %v3656 = vld [vmem:[%s3653 + $0x1] sm:$0xff]
        %v3657 = vld [vmem:[%s3653 + $0x9] sm:$0xff]
        %v3658 = vld [vmem:[%s3653 + $0x2] sm:$0xff]
        %v3659 = vld [vmem:[%s3653 + $0xa] sm:$0xff]
        %s3660 = sld [smem:[#allocation7 + $0x5a]]
        %v3661 = vstv %s3660
        %v3662 = vmul.f32 %v3654, %v3661
        %v3663 = vmul.f32 %v3655, %v3661
        %s3664 = sld [smem:[#allocation7 + $0x5b]]
        %v3665 = vstv %s3664
        %v3666 = vmul.f32 %v3654, %v3665
        %v3667 = vmul.f32 %v3655, %v3665
        %3670 = vrot.lane.b32.xlu0 %v3666, 127
        %v3671 = vpop.permute.xlu0 %3670
        %3672 = vrot.lane.b32.xlu0 %v3667, 127
        %v3673 = vpop.permute.xlu0 %3672
        %v3676 = vadd.f32 %v3662, %v3671
        %v3677 = vadd.f32 %v3663, %v3673
        %s3678 = sld [smem:[#allocation7 + $0x5c]]
        %v3679 = vstv %s3678
        %v3680 = vmul.f32 %v3654, %v3679
        %v3681 = vmul.f32 %v3655, %v3679
        %3684 = vrot.lane.b32.xlu0 %v3680, 126
        %v3685 = vpop.permute.xlu0 %3684
        %3686 = vrot.lane.b32.xlu0 %v3681, 126
        %v3687 = vpop.permute.xlu0 %3686
        %v3690 = vadd.f32 %v3676, %v3685
        %v3691 = vadd.f32 %v3677, %v3687
        %s3692 = sld [smem:[#allocation7 + $0x5d]]
        %v3693 = vstv %s3692
        %v3694 = vmul.f32 %v3656, %v3693
        %v3695 = vmul.f32 %v3657, %v3693
        %v3696 = vadd.f32 %v3690, %v3694
        %v3697 = vadd.f32 %v3691, %v3695
        %s3698 = sld [smem:[#allocation7 + $0x5e]]
        %v3699 = vstv %s3698
        %v3700 = vmul.f32 %v3656, %v3699
        %v3701 = vmul.f32 %v3657, %v3699
        %3704 = vrot.lane.b32.xlu0 %v3700, 127
        %v3705 = vpop.permute.xlu0 %3704
        %3706 = vrot.lane.b32.xlu0 %v3701, 127
        %v3707 = vpop.permute.xlu0 %3706
        %v3710 = vadd.f32 %v3696, %v3705
        %v3711 = vadd.f32 %v3697, %v3707
        %s3712 = sld [smem:[#allocation7 + $0x5f]]
        %v3713 = vstv %s3712
        %v3714 = vmul.f32 %v3656, %v3713
        %v3715 = vmul.f32 %v3657, %v3713
        %3718 = vrot.lane.b32.xlu0 %v3714, 126
        %v3719 = vpop.permute.xlu0 %3718
        %3720 = vrot.lane.b32.xlu0 %v3715, 126
        %v3721 = vpop.permute.xlu0 %3720
        %v3724 = vadd.f32 %v3710, %v3719
        %v3725 = vadd.f32 %v3711, %v3721
        %s3726 = sld [smem:[#allocation7 + $0x60]]
        %v3727 = vstv %s3726
        %v3728 = vmul.f32 %v3658, %v3727
        %v3729 = vmul.f32 %v3659, %v3727
        %v3730 = vadd.f32 %v3724, %v3728
        %v3731 = vadd.f32 %v3725, %v3729
        %s3732 = sld [smem:[#allocation7 + $0x61]]
        %v3733 = vstv %s3732
        %v3734 = vmul.f32 %v3658, %v3733
        %v3735 = vmul.f32 %v3659, %v3733
        %3738 = vrot.lane.b32.xlu0 %v3734, 127
        %v3739 = vpop.permute.xlu0 %3738
        %3740 = vrot.lane.b32.xlu0 %v3735, 127
        %v3741 = vpop.permute.xlu0 %3740
        %v3744 = vadd.f32 %v3730, %v3739
        %v3745 = vadd.f32 %v3731, %v3741
        %s3746 = sld [smem:[#allocation7 + $0x62]]
        %v3747 = vstv %s3746
        %v3748 = vmul.f32 %v3658, %v3747
        %v3749 = vmul.f32 %v3659, %v3747
        %3752 = vrot.lane.b32.xlu0 %v3748, 126
        %v3753 = vpop.permute.xlu0 %3752
        %3754 = vrot.lane.b32.xlu0 %v3749, 126
        %v3755 = vpop.permute.xlu0 %3754
        %v3758 = vadd.f32 %v3744, %v3753
        %v3759 = vadd.f32 %v3745, %v3755
        %s3760 = sld [smem:[#allocation11 + $0xa]]
        %v3761 = vstv %s3760
        %v3762 = vadd.f32 %v3758, %v3761
        %v3763 = vadd.f32 %v3759, %v3761
        %s3764 = scalar_lea.vmem %s420, 160 [#allocation16]
        %3765 = vst.msk [vmem:[%s3764] sm:$0xff] %vm536, %v3762
        %3766 = vst.msk [vmem:[%s3764 + $0x8] sm:$0xff] %vm536, %v3763
        %s3767 = sld [smem:[#allocation2 + $0x5a]]
        %v3768 = vstv %s3767
        %v3769 = vmul.f32 %v3654, %v3768
        %v3770 = vmul.f32 %v3655, %v3768
        %s3771 = sld [smem:[#allocation5 + $0x5a]]
        %v3772 = vstv %s3771
        %v3773 = vmul.f32 %v3654, %v3772
        %v3774 = vmul.f32 %v3655, %v3772
        %s3775 = sld [smem:[#allocation2 + $0x5b]]
        %v3776 = vstv %s3775
        %v3777 = vmul.f32 %v3654, %v3776
        %v3778 = vmul.f32 %v3655, %v3776
        %3781 = vrot.lane.b32.xlu0 %v3777, 127
        %v3782 = vpop.permute.xlu0 %3781
        %3783 = vrot.lane.b32.xlu0 %v3778, 127
        %v3784 = vpop.permute.xlu0 %3783
        %v3787 = vadd.f32 %v3769, %v3782
        %v3788 = vadd.f32 %v3770, %v3784
        %s3789 = sld [smem:[#allocation5 + $0x5b]]
        %v3790 = vstv %s3789
        %v3791 = vmul.f32 %v3654, %v3790
        %v3792 = vmul.f32 %v3655, %v3790
        %3795 = vrot.lane.b32.xlu0 %v3791, 127
        %v3796 = vpop.permute.xlu0 %3795
        %3797 = vrot.lane.b32.xlu0 %v3792, 127
        %v3798 = vpop.permute.xlu0 %3797
        %v3801 = vadd.f32 %v3773, %v3796
        %v3802 = vadd.f32 %v3774, %v3798
        %s3803 = sld [smem:[#allocation2 + $0x5c]]
        %v3804 = vstv %s3803
        %v3805 = vmul.f32 %v3654, %v3804
        %v3806 = vmul.f32 %v3655, %v3804
        %3809 = vrot.lane.b32.xlu0 %v3805, 126
        %v3810 = vpop.permute.xlu0 %3809
        %3811 = vrot.lane.b32.xlu0 %v3806, 126
        %v3812 = vpop.permute.xlu0 %3811
        %v3815 = vadd.f32 %v3787, %v3810
        %v3816 = vadd.f32 %v3788, %v3812
        %s3817 = sld [smem:[#allocation5 + $0x5c]]
        %v3818 = vstv %s3817
        %v3819 = vmul.f32 %v3654, %v3818
        %v3820 = vmul.f32 %v3655, %v3818
        %3823 = vrot.lane.b32.xlu0 %v3819, 126
        %v3824 = vpop.permute.xlu0 %3823
        %3825 = vrot.lane.b32.xlu0 %v3820, 126
        %v3826 = vpop.permute.xlu0 %3825
        %v3829 = vadd.f32 %v3801, %v3824
        %v3830 = vadd.f32 %v3802, %v3826
        %s3831 = sld [smem:[#allocation2 + $0x5d]]
        %v3832 = vstv %s3831
        %v3833 = vmul.f32 %v3656, %v3832
        %v3834 = vmul.f32 %v3657, %v3832
        %v3835 = vadd.f32 %v3815, %v3833
        %v3836 = vadd.f32 %v3816, %v3834
        %s3837 = sld [smem:[#allocation5 + $0x5d]]
        %v3838 = vstv %s3837
        %v3839 = vmul.f32 %v3656, %v3838
        %v3840 = vmul.f32 %v3657, %v3838
        %v3841 = vadd.f32 %v3829, %v3839
        %v3842 = vadd.f32 %v3830, %v3840
        %s3843 = sld [smem:[#allocation2 + $0x5e]]
        %v3844 = vstv %s3843
        %v3845 = vmul.f32 %v3656, %v3844
        %v3846 = vmul.f32 %v3657, %v3844
        %3849 = vrot.lane.b32.xlu0 %v3845, 127
        %v3850 = vpop.permute.xlu0 %3849
        %3851 = vrot.lane.b32.xlu0 %v3846, 127
        %v3852 = vpop.permute.xlu0 %3851
        %v3855 = vadd.f32 %v3835, %v3850
        %v3856 = vadd.f32 %v3836, %v3852
        %s3857 = sld [smem:[#allocation5 + $0x5e]]
        %v3858 = vstv %s3857
        %v3859 = vmul.f32 %v3656, %v3858
        %v3860 = vmul.f32 %v3657, %v3858
        %3863 = vrot.lane.b32.xlu0 %v3859, 127
        %v3864 = vpop.permute.xlu0 %3863
        %3865 = vrot.lane.b32.xlu0 %v3860, 127
        %v3866 = vpop.permute.xlu0 %3865
        %v3869 = vadd.f32 %v3841, %v3864
        %v3870 = vadd.f32 %v3842, %v3866
        %s3871 = sld [smem:[#allocation2 + $0x5f]]
        %v3872 = vstv %s3871
        %v3873 = vmul.f32 %v3656, %v3872
        %v3874 = vmul.f32 %v3657, %v3872
        %3877 = vrot.lane.b32.xlu0 %v3873, 126
        %v3878 = vpop.permute.xlu0 %3877
        %3879 = vrot.lane.b32.xlu0 %v3874, 126
        %v3880 = vpop.permute.xlu0 %3879
        %v3883 = vadd.f32 %v3855, %v3878
        %v3884 = vadd.f32 %v3856, %v3880
        %s3885 = sld [smem:[#allocation5 + $0x5f]]
        %v3886 = vstv %s3885
        %v3887 = vmul.f32 %v3656, %v3886
        %v3888 = vmul.f32 %v3657, %v3886
        %3891 = vrot.lane.b32.xlu0 %v3887, 126
        %v3892 = vpop.permute.xlu0 %3891
        %3893 = vrot.lane.b32.xlu0 %v3888, 126
        %v3894 = vpop.permute.xlu0 %3893
        %v3897 = vadd.f32 %v3869, %v3892
        %v3898 = vadd.f32 %v3870, %v3894
        %s3899 = sld [smem:[#allocation2 + $0x60]]
        %v3900 = vstv %s3899
        %v3901 = vmul.f32 %v3658, %v3900
        %v3902 = vmul.f32 %v3659, %v3900
        %v3903 = vadd.f32 %v3883, %v3901
        %v3904 = vadd.f32 %v3884, %v3902
        %s3905 = sld [smem:[#allocation5 + $0x60]]
        %v3906 = vstv %s3905
        %v3907 = vmul.f32 %v3658, %v3906
        %v3908 = vmul.f32 %v3659, %v3906
        %v3909 = vadd.f32 %v3897, %v3907
        %v3910 = vadd.f32 %v3898, %v3908
        %s3911 = sld [smem:[#allocation2 + $0x61]]
        %v3912 = vstv %s3911
        %v3913 = vmul.f32 %v3658, %v3912
        %v3914 = vmul.f32 %v3659, %v3912
        %3917 = vrot.lane.b32.xlu0 %v3913, 127
        %v3918 = vpop.permute.xlu0 %3917
        %3919 = vrot.lane.b32.xlu0 %v3914, 127
        %v3920 = vpop.permute.xlu0 %3919
        %v3923 = vadd.f32 %v3903, %v3918
        %v3924 = vadd.f32 %v3904, %v3920
        %s3925 = sld [smem:[#allocation5 + $0x61]]
        %v3926 = vstv %s3925
        %v3927 = vmul.f32 %v3658, %v3926
        %v3928 = vmul.f32 %v3659, %v3926
        %3931 = vrot.lane.b32.xlu0 %v3927, 127
        %v3932 = vpop.permute.xlu0 %3931
        %3933 = vrot.lane.b32.xlu0 %v3928, 127
        %v3934 = vpop.permute.xlu0 %3933
        %v3937 = vadd.f32 %v3909, %v3932
        %v3938 = vadd.f32 %v3910, %v3934
        %s3939 = sld [smem:[#allocation2 + $0x62]]
        %v3940 = vstv %s3939
        %v3941 = vmul.f32 %v3658, %v3940
        %v3942 = vmul.f32 %v3659, %v3940
        %3945 = vrot.lane.b32.xlu0 %v3941, 126
        %v3946 = vpop.permute.xlu0 %3945
        %3947 = vrot.lane.b32.xlu0 %v3942, 126
        %v3948 = vpop.permute.xlu0 %3947
        %v3951 = vadd.f32 %v3923, %v3946
        %v3952 = vadd.f32 %v3924, %v3948
        %s3953 = sld [smem:[#allocation5 + $0x62]]
        %v3954 = vstv %s3953
        %v3955 = vmul.f32 %v3658, %v3954
        %v3956 = vmul.f32 %v3659, %v3954
        %3959 = vrot.lane.b32.xlu0 %v3955, 126
        %v3960 = vpop.permute.xlu0 %3959
        %3961 = vrot.lane.b32.xlu0 %v3956, 126
        %v3962 = vpop.permute.xlu0 %3961
        %v3965 = vadd.f32 %v3937, %v3960
        %v3966 = vadd.f32 %v3938, %v3962
        %s3967 = scalar_lea.vmem %s425, 264
        %v3968 = vld [vmem:[%s3967] sm:$0xff]
        %v3969 = vld [vmem:[%s3967 + $0x8] sm:$0xff]
        %v3970 = vld [vmem:[%s3967 + $0x1] sm:$0xff]
        %v3971 = vld [vmem:[%s3967 + $0x9] sm:$0xff]
        %v3972 = vld [vmem:[%s3967 + $0x2] sm:$0xff]
        %v3973 = vld [vmem:[%s3967 + $0xa] sm:$0xff]
        %s3974 = sld [smem:[#allocation7 + $0x63]]
        %v3975 = vstv %s3974
        %v3976 = vmul.f32 %v3968, %v3975
        %v3977 = vmul.f32 %v3969, %v3975
        %s3978 = sld [smem:[#allocation7 + $0x64]]
        %v3979 = vstv %s3978
        %v3980 = vmul.f32 %v3968, %v3979
        %v3981 = vmul.f32 %v3969, %v3979
        %3984 = vrot.lane.b32.xlu0 %v3980, 127
        %v3985 = vpop.permute.xlu0 %3984
        %3986 = vrot.lane.b32.xlu0 %v3981, 127
        %v3987 = vpop.permute.xlu0 %3986
        %v3990 = vadd.f32 %v3976, %v3985
        %v3991 = vadd.f32 %v3977, %v3987
        %s3992 = sld [smem:[#allocation7 + $0x65]]
        %v3993 = vstv %s3992
        %v3994 = vmul.f32 %v3968, %v3993
        %v3995 = vmul.f32 %v3969, %v3993
        %3998 = vrot.lane.b32.xlu0 %v3994, 126
        %v3999 = vpop.permute.xlu0 %3998
        %4000 = vrot.lane.b32.xlu0 %v3995, 126
        %v4001 = vpop.permute.xlu0 %4000
        %v4004 = vadd.f32 %v3990, %v3999
        %v4005 = vadd.f32 %v3991, %v4001
        %s4006 = sld [smem:[#allocation7 + $0x66]]
        %v4007 = vstv %s4006
        %v4008 = vmul.f32 %v3970, %v4007
        %v4009 = vmul.f32 %v3971, %v4007
        %v4010 = vadd.f32 %v4004, %v4008
        %v4011 = vadd.f32 %v4005, %v4009
        %s4012 = sld [smem:[#allocation7 + $0x67]]
        %v4013 = vstv %s4012
        %v4014 = vmul.f32 %v3970, %v4013
        %v4015 = vmul.f32 %v3971, %v4013
        %4018 = vrot.lane.b32.xlu0 %v4014, 127
        %v4019 = vpop.permute.xlu0 %4018
        %4020 = vrot.lane.b32.xlu0 %v4015, 127
        %v4021 = vpop.permute.xlu0 %4020
        %v4024 = vadd.f32 %v4010, %v4019
        %v4025 = vadd.f32 %v4011, %v4021
        %s4026 = sld [smem:[#allocation7 + $0x68]]
        %v4027 = vstv %s4026
        %v4028 = vmul.f32 %v3970, %v4027
        %v4029 = vmul.f32 %v3971, %v4027
        %4032 = vrot.lane.b32.xlu0 %v4028, 126
        %v4033 = vpop.permute.xlu0 %4032
        %4034 = vrot.lane.b32.xlu0 %v4029, 126
        %v4035 = vpop.permute.xlu0 %4034
        %v4038 = vadd.f32 %v4024, %v4033
        %v4039 = vadd.f32 %v4025, %v4035
        %s4040 = sld [smem:[#allocation7 + $0x69]]
        %v4041 = vstv %s4040
        %v4042 = vmul.f32 %v3972, %v4041
        %v4043 = vmul.f32 %v3973, %v4041
        %v4044 = vadd.f32 %v4038, %v4042
        %v4045 = vadd.f32 %v4039, %v4043
        %s4046 = sld [smem:[#allocation7 + $0x6a]]
        %v4047 = vstv %s4046
        %v4048 = vmul.f32 %v3972, %v4047
        %v4049 = vmul.f32 %v3973, %v4047
        %4052 = vrot.lane.b32.xlu0 %v4048, 127
        %v4053 = vpop.permute.xlu0 %4052
        %4054 = vrot.lane.b32.xlu0 %v4049, 127
        %v4055 = vpop.permute.xlu0 %4054
        %v4058 = vadd.f32 %v4044, %v4053
        %v4059 = vadd.f32 %v4045, %v4055
        %s4060 = sld [smem:[#allocation7 + $0x6b]]
        %v4061 = vstv %s4060
        %v4062 = vmul.f32 %v3972, %v4061
        %v4063 = vmul.f32 %v3973, %v4061
        %4066 = vrot.lane.b32.xlu0 %v4062, 126
        %v4067 = vpop.permute.xlu0 %4066
        %4068 = vrot.lane.b32.xlu0 %v4063, 126
        %v4069 = vpop.permute.xlu0 %4068
        %v4072 = vadd.f32 %v4058, %v4067
        %v4073 = vadd.f32 %v4059, %v4069
        %s4074 = sld [smem:[#allocation11 + $0xb]]
        %v4075 = vstv %s4074
        %v4076 = vadd.f32 %v4072, %v4075
        %v4077 = vadd.f32 %v4073, %v4075
        %s4078 = scalar_lea.vmem %s420, 176 [#allocation16]
        %4079 = vst.msk [vmem:[%s4078] sm:$0xff] %vm536, %v4076
        %4080 = vst.msk [vmem:[%s4078 + $0x8] sm:$0xff] %vm536, %v4077
        %s4081 = sld [smem:[#allocation2 + $0x63]]
        %v4082 = vstv %s4081
        %v4083 = vmul.f32 %v3968, %v4082
        %v4084 = vmul.f32 %v3969, %v4082
        %s4085 = sld [smem:[#allocation5 + $0x63]]
        %v4086 = vstv %s4085
        %v4087 = vmul.f32 %v3968, %v4086
        %v4088 = vmul.f32 %v3969, %v4086
        %s4089 = sld [smem:[#allocation2 + $0x64]]
        %v4090 = vstv %s4089
        %v4091 = vmul.f32 %v3968, %v4090
        %v4092 = vmul.f32 %v3969, %v4090
        %4095 = vrot.lane.b32.xlu0 %v4091, 127
        %v4096 = vpop.permute.xlu0 %4095
        %4097 = vrot.lane.b32.xlu0 %v4092, 127
        %v4098 = vpop.permute.xlu0 %4097
        %v4101 = vadd.f32 %v4083, %v4096
        %v4102 = vadd.f32 %v4084, %v4098
        %s4103 = sld [smem:[#allocation5 + $0x64]]
        %v4104 = vstv %s4103
        %v4105 = vmul.f32 %v3968, %v4104
        %v4106 = vmul.f32 %v3969, %v4104
        %4109 = vrot.lane.b32.xlu0 %v4105, 127
        %v4110 = vpop.permute.xlu0 %4109
        %4111 = vrot.lane.b32.xlu0 %v4106, 127
        %v4112 = vpop.permute.xlu0 %4111
        %v4115 = vadd.f32 %v4087, %v4110
        %v4116 = vadd.f32 %v4088, %v4112
        %s4117 = sld [smem:[#allocation2 + $0x65]]
        %v4118 = vstv %s4117
        %v4119 = vmul.f32 %v3968, %v4118
        %v4120 = vmul.f32 %v3969, %v4118
        %4123 = vrot.lane.b32.xlu0 %v4119, 126
        %v4124 = vpop.permute.xlu0 %4123
        %4125 = vrot.lane.b32.xlu0 %v4120, 126
        %v4126 = vpop.permute.xlu0 %4125
        %v4129 = vadd.f32 %v4101, %v4124
        %v4130 = vadd.f32 %v4102, %v4126
        %s4131 = sld [smem:[#allocation5 + $0x65]]
        %v4132 = vstv %s4131
        %v4133 = vmul.f32 %v3968, %v4132
        %v4134 = vmul.f32 %v3969, %v4132
        %4137 = vrot.lane.b32.xlu0 %v4133, 126
        %v4138 = vpop.permute.xlu0 %4137
        %4139 = vrot.lane.b32.xlu0 %v4134, 126
        %v4140 = vpop.permute.xlu0 %4139
        %v4143 = vadd.f32 %v4115, %v4138
        %v4144 = vadd.f32 %v4116, %v4140
        %s4145 = sld [smem:[#allocation2 + $0x66]]
        %v4146 = vstv %s4145
        %v4147 = vmul.f32 %v3970, %v4146
        %v4148 = vmul.f32 %v3971, %v4146
        %v4149 = vadd.f32 %v4129, %v4147
        %v4150 = vadd.f32 %v4130, %v4148
        %s4151 = sld [smem:[#allocation5 + $0x66]]
        %v4152 = vstv %s4151
        %v4153 = vmul.f32 %v3970, %v4152
        %v4154 = vmul.f32 %v3971, %v4152
        %v4155 = vadd.f32 %v4143, %v4153
        %v4156 = vadd.f32 %v4144, %v4154
        %s4157 = sld [smem:[#allocation2 + $0x67]]
        %v4158 = vstv %s4157
        %v4159 = vmul.f32 %v3970, %v4158
        %v4160 = vmul.f32 %v3971, %v4158
        %4163 = vrot.lane.b32.xlu0 %v4159, 127
        %v4164 = vpop.permute.xlu0 %4163
        %4165 = vrot.lane.b32.xlu0 %v4160, 127
        %v4166 = vpop.permute.xlu0 %4165
        %v4169 = vadd.f32 %v4149, %v4164
        %v4170 = vadd.f32 %v4150, %v4166
        %s4171 = sld [smem:[#allocation5 + $0x67]]
        %v4172 = vstv %s4171
        %v4173 = vmul.f32 %v3970, %v4172
        %v4174 = vmul.f32 %v3971, %v4172
        %4177 = vrot.lane.b32.xlu0 %v4173, 127
        %v4178 = vpop.permute.xlu0 %4177
        %4179 = vrot.lane.b32.xlu0 %v4174, 127
        %v4180 = vpop.permute.xlu0 %4179
        %v4183 = vadd.f32 %v4155, %v4178
        %v4184 = vadd.f32 %v4156, %v4180
        %s4185 = sld [smem:[#allocation2 + $0x68]]
        %v4186 = vstv %s4185
        %v4187 = vmul.f32 %v3970, %v4186
        %v4188 = vmul.f32 %v3971, %v4186
        %4191 = vrot.lane.b32.xlu0 %v4187, 126
        %v4192 = vpop.permute.xlu0 %4191
        %4193 = vrot.lane.b32.xlu0 %v4188, 126
        %v4194 = vpop.permute.xlu0 %4193
        %v4197 = vadd.f32 %v4169, %v4192
        %v4198 = vadd.f32 %v4170, %v4194
        %s4199 = sld [smem:[#allocation5 + $0x68]]
        %v4200 = vstv %s4199
        %v4201 = vmul.f32 %v3970, %v4200
        %v4202 = vmul.f32 %v3971, %v4200
        %4205 = vrot.lane.b32.xlu0 %v4201, 126
        %v4206 = vpop.permute.xlu0 %4205
        %4207 = vrot.lane.b32.xlu0 %v4202, 126
        %v4208 = vpop.permute.xlu0 %4207
        %v4211 = vadd.f32 %v4183, %v4206
        %v4212 = vadd.f32 %v4184, %v4208
        %s4213 = sld [smem:[#allocation2 + $0x69]]
        %v4214 = vstv %s4213
        %v4215 = vmul.f32 %v3972, %v4214
        %v4216 = vmul.f32 %v3973, %v4214
        %v4217 = vadd.f32 %v4197, %v4215
        %v4218 = vadd.f32 %v4198, %v4216
        %s4219 = sld [smem:[#allocation5 + $0x69]]
        %v4220 = vstv %s4219
        %v4221 = vmul.f32 %v3972, %v4220
        %v4222 = vmul.f32 %v3973, %v4220
        %v4223 = vadd.f32 %v4211, %v4221
        %v4224 = vadd.f32 %v4212, %v4222
        %s4225 = sld [smem:[#allocation2 + $0x6a]]
        %v4226 = vstv %s4225
        %v4227 = vmul.f32 %v3972, %v4226
        %v4228 = vmul.f32 %v3973, %v4226
        %4231 = vrot.lane.b32.xlu0 %v4227, 127
        %v4232 = vpop.permute.xlu0 %4231
        %4233 = vrot.lane.b32.xlu0 %v4228, 127
        %v4234 = vpop.permute.xlu0 %4233
        %v4237 = vadd.f32 %v4217, %v4232
        %v4238 = vadd.f32 %v4218, %v4234
        %s4239 = sld [smem:[#allocation5 + $0x6a]]
        %v4240 = vstv %s4239
        %v4241 = vmul.f32 %v3972, %v4240
        %v4242 = vmul.f32 %v3973, %v4240
        %4245 = vrot.lane.b32.xlu0 %v4241, 127
        %v4246 = vpop.permute.xlu0 %4245
        %4247 = vrot.lane.b32.xlu0 %v4242, 127
        %v4248 = vpop.permute.xlu0 %4247
        %v4251 = vadd.f32 %v4223, %v4246
        %v4252 = vadd.f32 %v4224, %v4248
        %s4253 = sld [smem:[#allocation2 + $0x6b]]
        %v4254 = vstv %s4253
        %v4255 = vmul.f32 %v3972, %v4254
        %v4256 = vmul.f32 %v3973, %v4254
        %4259 = vrot.lane.b32.xlu0 %v4255, 126
        %v4260 = vpop.permute.xlu0 %4259
        %4261 = vrot.lane.b32.xlu0 %v4256, 126
        %v4262 = vpop.permute.xlu0 %4261
        %v4265 = vadd.f32 %v4237, %v4260
        %v4266 = vadd.f32 %v4238, %v4262
        %s4267 = sld [smem:[#allocation5 + $0x6b]]
        %v4268 = vstv %s4267
        %v4269 = vmul.f32 %v3972, %v4268
        %v4270 = vmul.f32 %v3973, %v4268
        %4273 = vrot.lane.b32.xlu0 %v4269, 126
        %v4274 = vpop.permute.xlu0 %4273
        %4275 = vrot.lane.b32.xlu0 %v4270, 126
        %v4276 = vpop.permute.xlu0 %4275
        %v4279 = vadd.f32 %v4251, %v4274
        %v4280 = vadd.f32 %v4252, %v4276
        %v4281 = vadd.f32 %v3951, %v4265
        %v4282 = vadd.f32 %v3952, %v4266
        %s4283 = sld [smem:[#allocation8 + $0x5]]
        %v4284 = vstv %s4283
        %v4285 = vadd.f32 %v4281, %v4284
        %v4286 = vadd.f32 %v4282, %v4284
        %s4287 = scalar_lea.vmem %s406, 80 [#allocation13]
        %4288 = vst.msk [vmem:[%s4287] sm:$0xff] %vm536, %v4285
        %4289 = vst.msk [vmem:[%s4287 + $0x8] sm:$0xff] %vm536, %v4286
        %v4290 = vadd.f32 %v3965, %v4279
        %v4291 = vadd.f32 %v3966, %v4280
        %s4292 = sld [smem:[#allocation10 + $0x5]]
        %v4293 = vstv %s4292
        %v4294 = vadd.f32 %v4290, %v4293
        %v4295 = vadd.f32 %v4291, %v4293
        %s4296 = scalar_lea.vmem %s413, 80 [#allocation14]
        %4297 = vst.msk [vmem:[%s4296] sm:$0xff] %vm536, %v4294
        %4298 = vst.msk [vmem:[%s4296 + $0x8] sm:$0xff] %vm536, %v4295
        %s4299 = scalar_lea.vmem %s425, 288
        %v4300 = vld [vmem:[%s4299] sm:$0xff]
        %v4301 = vld [vmem:[%s4299 + $0x8] sm:$0xff]
        %v4302 = vld [vmem:[%s4299 + $0x1] sm:$0xff]
        %v4303 = vld [vmem:[%s4299 + $0x9] sm:$0xff]
        %v4304 = vld [vmem:[%s4299 + $0x2] sm:$0xff]
        %v4305 = vld [vmem:[%s4299 + $0xa] sm:$0xff]
        %s4306 = sld [smem:[#allocation7 + $0x6c]]
        %v4307 = vstv %s4306
        %v4308 = vmul.f32 %v4300, %v4307
        %v4309 = vmul.f32 %v4301, %v4307
        %s4310 = sld [smem:[#allocation7 + $0x6d]]
        %v4311 = vstv %s4310
        %v4312 = vmul.f32 %v4300, %v4311
        %v4313 = vmul.f32 %v4301, %v4311
        %4316 = vrot.lane.b32.xlu0 %v4312, 127
        %v4317 = vpop.permute.xlu0 %4316
        %4318 = vrot.lane.b32.xlu0 %v4313, 127
        %v4319 = vpop.permute.xlu0 %4318
        %v4322 = vadd.f32 %v4308, %v4317
        %v4323 = vadd.f32 %v4309, %v4319
        %s4324 = sld [smem:[#allocation7 + $0x6e]]
        %v4325 = vstv %s4324
        %v4326 = vmul.f32 %v4300, %v4325
        %v4327 = vmul.f32 %v4301, %v4325
        %4330 = vrot.lane.b32.xlu0 %v4326, 126
        %v4331 = vpop.permute.xlu0 %4330
        %4332 = vrot.lane.b32.xlu0 %v4327, 126
        %v4333 = vpop.permute.xlu0 %4332
        %v4336 = vadd.f32 %v4322, %v4331
        %v4337 = vadd.f32 %v4323, %v4333
        %s4338 = sld [smem:[#allocation7 + $0x6f]]
        %v4339 = vstv %s4338
        %v4340 = vmul.f32 %v4302, %v4339
        %v4341 = vmul.f32 %v4303, %v4339
        %v4342 = vadd.f32 %v4336, %v4340
        %v4343 = vadd.f32 %v4337, %v4341
        %s4344 = sld [smem:[#allocation7 + $0x70]]
        %v4345 = vstv %s4344
        %v4346 = vmul.f32 %v4302, %v4345
        %v4347 = vmul.f32 %v4303, %v4345
        %4350 = vrot.lane.b32.xlu0 %v4346, 127
        %v4351 = vpop.permute.xlu0 %4350
        %4352 = vrot.lane.b32.xlu0 %v4347, 127
        %v4353 = vpop.permute.xlu0 %4352
        %v4356 = vadd.f32 %v4342, %v4351
        %v4357 = vadd.f32 %v4343, %v4353
        %s4358 = sld [smem:[#allocation7 + $0x71]]
        %v4359 = vstv %s4358
        %v4360 = vmul.f32 %v4302, %v4359
        %v4361 = vmul.f32 %v4303, %v4359
        %4364 = vrot.lane.b32.xlu0 %v4360, 126
        %v4365 = vpop.permute.xlu0 %4364
        %4366 = vrot.lane.b32.xlu0 %v4361, 126
        %v4367 = vpop.permute.xlu0 %4366
        %v4370 = vadd.f32 %v4356, %v4365
        %v4371 = vadd.f32 %v4357, %v4367
        %s4372 = sld [smem:[#allocation7 + $0x72]]
        %v4373 = vstv %s4372
        %v4374 = vmul.f32 %v4304, %v4373
        %v4375 = vmul.f32 %v4305, %v4373
        %v4376 = vadd.f32 %v4370, %v4374
        %v4377 = vadd.f32 %v4371, %v4375
        %s4378 = sld [smem:[#allocation7 + $0x73]]
        %v4379 = vstv %s4378
        %v4380 = vmul.f32 %v4304, %v4379
        %v4381 = vmul.f32 %v4305, %v4379
        %4384 = vrot.lane.b32.xlu0 %v4380, 127
        %v4385 = vpop.permute.xlu0 %4384
        %4386 = vrot.lane.b32.xlu0 %v4381, 127
        %v4387 = vpop.permute.xlu0 %4386
        %v4390 = vadd.f32 %v4376, %v4385
        %v4391 = vadd.f32 %v4377, %v4387
        %s4392 = sld [smem:[#allocation7 + $0x74]]
        %v4393 = vstv %s4392
        %v4394 = vmul.f32 %v4304, %v4393
        %v4395 = vmul.f32 %v4305, %v4393
        %4398 = vrot.lane.b32.xlu0 %v4394, 126
        %v4399 = vpop.permute.xlu0 %4398
        %4400 = vrot.lane.b32.xlu0 %v4395, 126
        %v4401 = vpop.permute.xlu0 %4400
        %v4404 = vadd.f32 %v4390, %v4399
        %v4405 = vadd.f32 %v4391, %v4401
        %s4406 = sld [smem:[#allocation11 + $0xc]]
        %v4407 = vstv %s4406
        %v4408 = vadd.f32 %v4404, %v4407
        %v4409 = vadd.f32 %v4405, %v4407
        %s4410 = scalar_lea.vmem %s420, 192 [#allocation16]
        %4411 = vst.msk [vmem:[%s4410] sm:$0xff] %vm536, %v4408
        %4412 = vst.msk [vmem:[%s4410 + $0x8] sm:$0xff] %vm536, %v4409
        %s4413 = sld [smem:[#allocation2 + $0x6c]]
        %v4414 = vstv %s4413
        %v4415 = vmul.f32 %v4300, %v4414
        %v4416 = vmul.f32 %v4301, %v4414
        %s4417 = sld [smem:[#allocation5 + $0x6c]]
        %v4418 = vstv %s4417
        %v4419 = vmul.f32 %v4300, %v4418
        %v4420 = vmul.f32 %v4301, %v4418
        %s4421 = sld [smem:[#allocation2 + $0x6d]]
        %v4422 = vstv %s4421
        %v4423 = vmul.f32 %v4300, %v4422
        %v4424 = vmul.f32 %v4301, %v4422
        %4427 = vrot.lane.b32.xlu0 %v4423, 127
        %v4428 = vpop.permute.xlu0 %4427
        %4429 = vrot.lane.b32.xlu0 %v4424, 127
        %v4430 = vpop.permute.xlu0 %4429
        %v4433 = vadd.f32 %v4415, %v4428
        %v4434 = vadd.f32 %v4416, %v4430
        %s4435 = sld [smem:[#allocation5 + $0x6d]]
        %v4436 = vstv %s4435
        %v4437 = vmul.f32 %v4300, %v4436
        %v4438 = vmul.f32 %v4301, %v4436
        %4441 = vrot.lane.b32.xlu0 %v4437, 127
        %v4442 = vpop.permute.xlu0 %4441
        %4443 = vrot.lane.b32.xlu0 %v4438, 127
        %v4444 = vpop.permute.xlu0 %4443
        %v4447 = vadd.f32 %v4419, %v4442
        %v4448 = vadd.f32 %v4420, %v4444
        %s4449 = sld [smem:[#allocation2 + $0x6e]]
        %v4450 = vstv %s4449
        %v4451 = vmul.f32 %v4300, %v4450
        %v4452 = vmul.f32 %v4301, %v4450
        %4455 = vrot.lane.b32.xlu0 %v4451, 126
        %v4456 = vpop.permute.xlu0 %4455
        %4457 = vrot.lane.b32.xlu0 %v4452, 126
        %v4458 = vpop.permute.xlu0 %4457
        %v4461 = vadd.f32 %v4433, %v4456
        %v4462 = vadd.f32 %v4434, %v4458
        %s4463 = sld [smem:[#allocation5 + $0x6e]]
        %v4464 = vstv %s4463
        %v4465 = vmul.f32 %v4300, %v4464
        %v4466 = vmul.f32 %v4301, %v4464
        %4469 = vrot.lane.b32.xlu0 %v4465, 126
        %v4470 = vpop.permute.xlu0 %4469
        %4471 = vrot.lane.b32.xlu0 %v4466, 126
        %v4472 = vpop.permute.xlu0 %4471
        %v4475 = vadd.f32 %v4447, %v4470
        %v4476 = vadd.f32 %v4448, %v4472
        %s4477 = sld [smem:[#allocation2 + $0x6f]]
        %v4478 = vstv %s4477
        %v4479 = vmul.f32 %v4302, %v4478
        %v4480 = vmul.f32 %v4303, %v4478
        %v4481 = vadd.f32 %v4461, %v4479
        %v4482 = vadd.f32 %v4462, %v4480
        %s4483 = sld [smem:[#allocation5 + $0x6f]]
        %v4484 = vstv %s4483
        %v4485 = vmul.f32 %v4302, %v4484
        %v4486 = vmul.f32 %v4303, %v4484
        %v4487 = vadd.f32 %v4475, %v4485
        %v4488 = vadd.f32 %v4476, %v4486
        %s4489 = sld [smem:[#allocation2 + $0x70]]
        %v4490 = vstv %s4489
        %v4491 = vmul.f32 %v4302, %v4490
        %v4492 = vmul.f32 %v4303, %v4490
        %4495 = vrot.lane.b32.xlu0 %v4491, 127
        %v4496 = vpop.permute.xlu0 %4495
        %4497 = vrot.lane.b32.xlu0 %v4492, 127
        %v4498 = vpop.permute.xlu0 %4497
        %v4501 = vadd.f32 %v4481, %v4496
        %v4502 = vadd.f32 %v4482, %v4498
        %s4503 = sld [smem:[#allocation5 + $0x70]]
        %v4504 = vstv %s4503
        %v4505 = vmul.f32 %v4302, %v4504
        %v4506 = vmul.f32 %v4303, %v4504
        %4509 = vrot.lane.b32.xlu0 %v4505, 127
        %v4510 = vpop.permute.xlu0 %4509
        %4511 = vrot.lane.b32.xlu0 %v4506, 127
        %v4512 = vpop.permute.xlu0 %4511
        %v4515 = vadd.f32 %v4487, %v4510
        %v4516 = vadd.f32 %v4488, %v4512
        %s4517 = sld [smem:[#allocation2 + $0x71]]
        %v4518 = vstv %s4517
        %v4519 = vmul.f32 %v4302, %v4518
        %v4520 = vmul.f32 %v4303, %v4518
        %4523 = vrot.lane.b32.xlu0 %v4519, 126
        %v4524 = vpop.permute.xlu0 %4523
        %4525 = vrot.lane.b32.xlu0 %v4520, 126
        %v4526 = vpop.permute.xlu0 %4525
        %v4529 = vadd.f32 %v4501, %v4524
        %v4530 = vadd.f32 %v4502, %v4526
        %s4531 = sld [smem:[#allocation5 + $0x71]]
        %v4532 = vstv %s4531
        %v4533 = vmul.f32 %v4302, %v4532
        %v4534 = vmul.f32 %v4303, %v4532
        %4537 = vrot.lane.b32.xlu0 %v4533, 126
        %v4538 = vpop.permute.xlu0 %4537
        %4539 = vrot.lane.b32.xlu0 %v4534, 126
        %v4540 = vpop.permute.xlu0 %4539
        %v4543 = vadd.f32 %v4515, %v4538
        %v4544 = vadd.f32 %v4516, %v4540
        %s4545 = sld [smem:[#allocation2 + $0x72]]
        %v4546 = vstv %s4545
        %v4547 = vmul.f32 %v4304, %v4546
        %v4548 = vmul.f32 %v4305, %v4546
        %v4549 = vadd.f32 %v4529, %v4547
        %v4550 = vadd.f32 %v4530, %v4548
        %s4551 = sld [smem:[#allocation5 + $0x72]]
        %v4552 = vstv %s4551
        %v4553 = vmul.f32 %v4304, %v4552
        %v4554 = vmul.f32 %v4305, %v4552
        %v4555 = vadd.f32 %v4543, %v4553
        %v4556 = vadd.f32 %v4544, %v4554
        %s4557 = sld [smem:[#allocation2 + $0x73]]
        %v4558 = vstv %s4557
        %v4559 = vmul.f32 %v4304, %v4558
        %v4560 = vmul.f32 %v4305, %v4558
        %4563 = vrot.lane.b32.xlu0 %v4559, 127
        %v4564 = vpop.permute.xlu0 %4563
        %4565 = vrot.lane.b32.xlu0 %v4560, 127
        %v4566 = vpop.permute.xlu0 %4565
        %v4569 = vadd.f32 %v4549, %v4564
        %v4570 = vadd.f32 %v4550, %v4566
        %s4571 = sld [smem:[#allocation5 + $0x73]]
        %v4572 = vstv %s4571
        %v4573 = vmul.f32 %v4304, %v4572
        %v4574 = vmul.f32 %v4305, %v4572
        %4577 = vrot.lane.b32.xlu0 %v4573, 127
        %v4578 = vpop.permute.xlu0 %4577
        %4579 = vrot.lane.b32.xlu0 %v4574, 127
        %v4580 = vpop.permute.xlu0 %4579
        %v4583 = vadd.f32 %v4555, %v4578
        %v4584 = vadd.f32 %v4556, %v4580
        %s4585 = sld [smem:[#allocation2 + $0x74]]
        %v4586 = vstv %s4585
        %v4587 = vmul.f32 %v4304, %v4586
        %v4588 = vmul.f32 %v4305, %v4586
        %4591 = vrot.lane.b32.xlu0 %v4587, 126
        %v4592 = vpop.permute.xlu0 %4591
        %4593 = vrot.lane.b32.xlu0 %v4588, 126
        %v4594 = vpop.permute.xlu0 %4593
        %v4597 = vadd.f32 %v4569, %v4592
        %v4598 = vadd.f32 %v4570, %v4594
        %s4599 = sld [smem:[#allocation5 + $0x74]]
        %v4600 = vstv %s4599
        %v4601 = vmul.f32 %v4304, %v4600
        %v4602 = vmul.f32 %v4305, %v4600
        %4605 = vrot.lane.b32.xlu0 %v4601, 126
        %v4606 = vpop.permute.xlu0 %4605
        %4607 = vrot.lane.b32.xlu0 %v4602, 126
        %v4608 = vpop.permute.xlu0 %4607
        %v4611 = vadd.f32 %v4583, %v4606
        %v4612 = vadd.f32 %v4584, %v4608
        %s4613 = scalar_lea.vmem %s425, 312
        %v4614 = vld [vmem:[%s4613] sm:$0xff]
        %v4615 = vld [vmem:[%s4613 + $0x8] sm:$0xff]
        %v4616 = vld [vmem:[%s4613 + $0x1] sm:$0xff]
        %v4617 = vld [vmem:[%s4613 + $0x9] sm:$0xff]
        %v4618 = vld [vmem:[%s4613 + $0x2] sm:$0xff]
        %v4619 = vld [vmem:[%s4613 + $0xa] sm:$0xff]
        %s4620 = sld [smem:[#allocation7 + $0x75]]
        %v4621 = vstv %s4620
        %v4622 = vmul.f32 %v4614, %v4621
        %v4623 = vmul.f32 %v4615, %v4621
        %s4624 = sld [smem:[#allocation7 + $0x76]]
        %v4625 = vstv %s4624
        %v4626 = vmul.f32 %v4614, %v4625
        %v4627 = vmul.f32 %v4615, %v4625
        %4630 = vrot.lane.b32.xlu0 %v4626, 127
        %v4631 = vpop.permute.xlu0 %4630
        %4632 = vrot.lane.b32.xlu0 %v4627, 127
        %v4633 = vpop.permute.xlu0 %4632
        %v4636 = vadd.f32 %v4622, %v4631
        %v4637 = vadd.f32 %v4623, %v4633
        %s4638 = sld [smem:[#allocation7 + $0x77]]
        %v4639 = vstv %s4638
        %v4640 = vmul.f32 %v4614, %v4639
        %v4641 = vmul.f32 %v4615, %v4639
        %4644 = vrot.lane.b32.xlu0 %v4640, 126
        %v4645 = vpop.permute.xlu0 %4644
        %4646 = vrot.lane.b32.xlu0 %v4641, 126
        %v4647 = vpop.permute.xlu0 %4646
        %v4650 = vadd.f32 %v4636, %v4645
        %v4651 = vadd.f32 %v4637, %v4647
        %s4652 = sld [smem:[#allocation7 + $0x78]]
        %v4653 = vstv %s4652
        %v4654 = vmul.f32 %v4616, %v4653
        %v4655 = vmul.f32 %v4617, %v4653
        %v4656 = vadd.f32 %v4650, %v4654
        %v4657 = vadd.f32 %v4651, %v4655
        %s4658 = sld [smem:[#allocation7 + $0x79]]
        %v4659 = vstv %s4658
        %v4660 = vmul.f32 %v4616, %v4659
        %v4661 = vmul.f32 %v4617, %v4659
        %4664 = vrot.lane.b32.xlu0 %v4660, 127
        %v4665 = vpop.permute.xlu0 %4664
        %4666 = vrot.lane.b32.xlu0 %v4661, 127
        %v4667 = vpop.permute.xlu0 %4666
        %v4670 = vadd.f32 %v4656, %v4665
        %v4671 = vadd.f32 %v4657, %v4667
        %s4672 = sld [smem:[#allocation7 + $0x7a]]
        %v4673 = vstv %s4672
        %v4674 = vmul.f32 %v4616, %v4673
        %v4675 = vmul.f32 %v4617, %v4673
        %4678 = vrot.lane.b32.xlu0 %v4674, 126
        %v4679 = vpop.permute.xlu0 %4678
        %4680 = vrot.lane.b32.xlu0 %v4675, 126
        %v4681 = vpop.permute.xlu0 %4680
        %v4684 = vadd.f32 %v4670, %v4679
        %v4685 = vadd.f32 %v4671, %v4681
        %s4686 = sld [smem:[#allocation7 + $0x7b]]
        %v4687 = vstv %s4686
        %v4688 = vmul.f32 %v4618, %v4687
        %v4689 = vmul.f32 %v4619, %v4687
        %v4690 = vadd.f32 %v4684, %v4688
        %v4691 = vadd.f32 %v4685, %v4689
        %s4692 = sld [smem:[#allocation7 + $0x7c]]
        %v4693 = vstv %s4692
        %v4694 = vmul.f32 %v4618, %v4693
        %v4695 = vmul.f32 %v4619, %v4693
        %4698 = vrot.lane.b32.xlu0 %v4694, 127
        %v4699 = vpop.permute.xlu0 %4698
        %4700 = vrot.lane.b32.xlu0 %v4695, 127
        %v4701 = vpop.permute.xlu0 %4700
        %v4704 = vadd.f32 %v4690, %v4699
        %v4705 = vadd.f32 %v4691, %v4701
        %s4706 = sld [smem:[#allocation7 + $0x7d]]
        %v4707 = vstv %s4706
        %v4708 = vmul.f32 %v4618, %v4707
        %v4709 = vmul.f32 %v4619, %v4707
        %4712 = vrot.lane.b32.xlu0 %v4708, 126
        %v4713 = vpop.permute.xlu0 %4712
        %4714 = vrot.lane.b32.xlu0 %v4709, 126
        %v4715 = vpop.permute.xlu0 %4714
        %v4718 = vadd.f32 %v4704, %v4713
        %v4719 = vadd.f32 %v4705, %v4715
        %s4720 = sld [smem:[#allocation11 + $0xd]]
        %v4721 = vstv %s4720
        %v4722 = vadd.f32 %v4718, %v4721
        %v4723 = vadd.f32 %v4719, %v4721
        %s4724 = scalar_lea.vmem %s420, 208 [#allocation16]
        %4725 = vst.msk [vmem:[%s4724] sm:$0xff] %vm536, %v4722
        %4726 = vst.msk [vmem:[%s4724 + $0x8] sm:$0xff] %vm536, %v4723
        %s4727 = sld [smem:[#allocation2 + $0x75]]
        %v4728 = vstv %s4727
        %v4729 = vmul.f32 %v4614, %v4728
        %v4730 = vmul.f32 %v4615, %v4728
        %s4731 = sld [smem:[#allocation5 + $0x75]]
        %v4732 = vstv %s4731
        %v4733 = vmul.f32 %v4614, %v4732
        %v4734 = vmul.f32 %v4615, %v4732
        %s4735 = sld [smem:[#allocation2 + $0x76]]
        %v4736 = vstv %s4735
        %v4737 = vmul.f32 %v4614, %v4736
        %v4738 = vmul.f32 %v4615, %v4736
        %4741 = vrot.lane.b32.xlu0 %v4737, 127
        %v4742 = vpop.permute.xlu0 %4741
        %4743 = vrot.lane.b32.xlu0 %v4738, 127
        %v4744 = vpop.permute.xlu0 %4743
        %v4747 = vadd.f32 %v4729, %v4742
        %v4748 = vadd.f32 %v4730, %v4744
        %s4749 = sld [smem:[#allocation5 + $0x76]]
        %v4750 = vstv %s4749
        %v4751 = vmul.f32 %v4614, %v4750
        %v4752 = vmul.f32 %v4615, %v4750
        %4755 = vrot.lane.b32.xlu0 %v4751, 127
        %v4756 = vpop.permute.xlu0 %4755
        %4757 = vrot.lane.b32.xlu0 %v4752, 127
        %v4758 = vpop.permute.xlu0 %4757
        %v4761 = vadd.f32 %v4733, %v4756
        %v4762 = vadd.f32 %v4734, %v4758
        %s4763 = sld [smem:[#allocation2 + $0x77]]
        %v4764 = vstv %s4763
        %v4765 = vmul.f32 %v4614, %v4764
        %v4766 = vmul.f32 %v4615, %v4764
        %4769 = vrot.lane.b32.xlu0 %v4765, 126
        %v4770 = vpop.permute.xlu0 %4769
        %4771 = vrot.lane.b32.xlu0 %v4766, 126
        %v4772 = vpop.permute.xlu0 %4771
        %v4775 = vadd.f32 %v4747, %v4770
        %v4776 = vadd.f32 %v4748, %v4772
        %s4777 = sld [smem:[#allocation5 + $0x77]]
        %v4778 = vstv %s4777
        %v4779 = vmul.f32 %v4614, %v4778
        %v4780 = vmul.f32 %v4615, %v4778
        %4783 = vrot.lane.b32.xlu0 %v4779, 126
        %v4784 = vpop.permute.xlu0 %4783
        %4785 = vrot.lane.b32.xlu0 %v4780, 126
        %v4786 = vpop.permute.xlu0 %4785
        %v4789 = vadd.f32 %v4761, %v4784
        %v4790 = vadd.f32 %v4762, %v4786
        %s4791 = sld [smem:[#allocation2 + $0x78]]
        %v4792 = vstv %s4791
        %v4793 = vmul.f32 %v4616, %v4792
        %v4794 = vmul.f32 %v4617, %v4792
        %v4795 = vadd.f32 %v4775, %v4793
        %v4796 = vadd.f32 %v4776, %v4794
        %s4797 = sld [smem:[#allocation5 + $0x78]]
        %v4798 = vstv %s4797
        %v4799 = vmul.f32 %v4616, %v4798
        %v4800 = vmul.f32 %v4617, %v4798
        %v4801 = vadd.f32 %v4789, %v4799
        %v4802 = vadd.f32 %v4790, %v4800
        %s4803 = sld [smem:[#allocation2 + $0x79]]
        %v4804 = vstv %s4803
        %v4805 = vmul.f32 %v4616, %v4804
        %v4806 = vmul.f32 %v4617, %v4804
        %4809 = vrot.lane.b32.xlu0 %v4805, 127
        %v4810 = vpop.permute.xlu0 %4809
        %4811 = vrot.lane.b32.xlu0 %v4806, 127
        %v4812 = vpop.permute.xlu0 %4811
        %v4815 = vadd.f32 %v4795, %v4810
        %v4816 = vadd.f32 %v4796, %v4812
        %s4817 = sld [smem:[#allocation5 + $0x79]]
        %v4818 = vstv %s4817
        %v4819 = vmul.f32 %v4616, %v4818
        %v4820 = vmul.f32 %v4617, %v4818
        %4823 = vrot.lane.b32.xlu0 %v4819, 127
        %v4824 = vpop.permute.xlu0 %4823
        %4825 = vrot.lane.b32.xlu0 %v4820, 127
        %v4826 = vpop.permute.xlu0 %4825
        %v4829 = vadd.f32 %v4801, %v4824
        %v4830 = vadd.f32 %v4802, %v4826
        %s4831 = sld [smem:[#allocation2 + $0x7a]]
        %v4832 = vstv %s4831
        %v4833 = vmul.f32 %v4616, %v4832
        %v4834 = vmul.f32 %v4617, %v4832
        %4837 = vrot.lane.b32.xlu0 %v4833, 126
        %v4838 = vpop.permute.xlu0 %4837
        %4839 = vrot.lane.b32.xlu0 %v4834, 126
        %v4840 = vpop.permute.xlu0 %4839
        %v4843 = vadd.f32 %v4815, %v4838
        %v4844 = vadd.f32 %v4816, %v4840
        %s4845 = sld [smem:[#allocation5 + $0x7a]]
        %v4846 = vstv %s4845
        %v4847 = vmul.f32 %v4616, %v4846
        %v4848 = vmul.f32 %v4617, %v4846
        %4851 = vrot.lane.b32.xlu0 %v4847, 126
        %v4852 = vpop.permute.xlu0 %4851
        %4853 = vrot.lane.b32.xlu0 %v4848, 126
        %v4854 = vpop.permute.xlu0 %4853
        %v4857 = vadd.f32 %v4829, %v4852
        %v4858 = vadd.f32 %v4830, %v4854
        %s4859 = sld [smem:[#allocation2 + $0x7b]]
        %v4860 = vstv %s4859
        %v4861 = vmul.f32 %v4618, %v4860
        %v4862 = vmul.f32 %v4619, %v4860
        %v4863 = vadd.f32 %v4843, %v4861
        %v4864 = vadd.f32 %v4844, %v4862
        %s4865 = sld [smem:[#allocation5 + $0x7b]]
        %v4866 = vstv %s4865
        %v4867 = vmul.f32 %v4618, %v4866
        %v4868 = vmul.f32 %v4619, %v4866
        %v4869 = vadd.f32 %v4857, %v4867
        %v4870 = vadd.f32 %v4858, %v4868
        %s4871 = sld [smem:[#allocation2 + $0x7c]]
        %v4872 = vstv %s4871
        %v4873 = vmul.f32 %v4618, %v4872
        %v4874 = vmul.f32 %v4619, %v4872
        %4877 = vrot.lane.b32.xlu0 %v4873, 127
        %v4878 = vpop.permute.xlu0 %4877
        %4879 = vrot.lane.b32.xlu0 %v4874, 127
        %v4880 = vpop.permute.xlu0 %4879
        %v4883 = vadd.f32 %v4863, %v4878
        %v4884 = vadd.f32 %v4864, %v4880
        %s4885 = sld [smem:[#allocation5 + $0x7c]]
        %v4886 = vstv %s4885
        %v4887 = vmul.f32 %v4618, %v4886
        %v4888 = vmul.f32 %v4619, %v4886
        %4891 = vrot.lane.b32.xlu0 %v4887, 127
        %v4892 = vpop.permute.xlu0 %4891
        %4893 = vrot.lane.b32.xlu0 %v4888, 127
        %v4894 = vpop.permute.xlu0 %4893
        %v4897 = vadd.f32 %v4869, %v4892
        %v4898 = vadd.f32 %v4870, %v4894
        %s4899 = sld [smem:[#allocation2 + $0x7d]]
        %v4900 = vstv %s4899
        %v4901 = vmul.f32 %v4618, %v4900
        %v4902 = vmul.f32 %v4619, %v4900
        %4905 = vrot.lane.b32.xlu0 %v4901, 126
        %v4906 = vpop.permute.xlu0 %4905
        %4907 = vrot.lane.b32.xlu0 %v4902, 126
        %v4908 = vpop.permute.xlu0 %4907
        %v4911 = vadd.f32 %v4883, %v4906
        %v4912 = vadd.f32 %v4884, %v4908
        %s4913 = sld [smem:[#allocation5 + $0x7d]]
        %v4914 = vstv %s4913
        %v4915 = vmul.f32 %v4618, %v4914
        %v4916 = vmul.f32 %v4619, %v4914
        %4919 = vrot.lane.b32.xlu0 %v4915, 126
        %v4920 = vpop.permute.xlu0 %4919
        %4921 = vrot.lane.b32.xlu0 %v4916, 126
        %v4922 = vpop.permute.xlu0 %4921
        %v4925 = vadd.f32 %v4897, %v4920
        %v4926 = vadd.f32 %v4898, %v4922
        %v4927 = vadd.f32 %v4597, %v4911
        %v4928 = vadd.f32 %v4598, %v4912
        %s4929 = sld [smem:[#allocation8 + $0x6]]
        %v4930 = vstv %s4929
        %v4931 = vadd.f32 %v4927, %v4930
        %v4932 = vadd.f32 %v4928, %v4930
        %s4933 = scalar_lea.vmem %s406, 96 [#allocation13]
        %4934 = vst.msk [vmem:[%s4933] sm:$0xff] %vm536, %v4931
        %4935 = vst.msk [vmem:[%s4933 + $0x8] sm:$0xff] %vm536, %v4932
        %v4936 = vadd.f32 %v4611, %v4925
        %v4937 = vadd.f32 %v4612, %v4926
        %s4938 = sld [smem:[#allocation10 + $0x6]]
        %v4939 = vstv %s4938
        %v4940 = vadd.f32 %v4936, %v4939
        %v4941 = vadd.f32 %v4937, %v4939
        %s4942 = scalar_lea.vmem %s413, 96 [#allocation14]
        %4943 = vst.msk [vmem:[%s4942] sm:$0xff] %vm536, %v4940
        %4944 = vst.msk [vmem:[%s4942 + $0x8] sm:$0xff] %vm536, %v4941
        %s4945 = scalar_lea.vmem %s425, 336
        %v4946 = vld [vmem:[%s4945] sm:$0xff]
        %v4947 = vld [vmem:[%s4945 + $0x8] sm:$0xff]
        %v4948 = vld [vmem:[%s4945 + $0x1] sm:$0xff]
        %v4949 = vld [vmem:[%s4945 + $0x9] sm:$0xff]
        %v4950 = vld [vmem:[%s4945 + $0x2] sm:$0xff]
        %v4951 = vld [vmem:[%s4945 + $0xa] sm:$0xff]
        %s4952 = sld [smem:[#allocation7 + $0x7e]]
        %v4953 = vstv %s4952
        %v4954 = vmul.f32 %v4946, %v4953
        %v4955 = vmul.f32 %v4947, %v4953
        %s4956 = sld [smem:[#allocation7 + $0x7f]]
        %v4957 = vstv %s4956
        %v4958 = vmul.f32 %v4946, %v4957
        %v4959 = vmul.f32 %v4947, %v4957
        %4962 = vrot.lane.b32.xlu0 %v4958, 127
        %v4963 = vpop.permute.xlu0 %4962
        %4964 = vrot.lane.b32.xlu0 %v4959, 127
        %v4965 = vpop.permute.xlu0 %4964
        %v4968 = vadd.f32 %v4954, %v4963
        %v4969 = vadd.f32 %v4955, %v4965
        %s4970 = sld [smem:[#allocation7 + $0x80]]
        %v4971 = vstv %s4970
        %v4972 = vmul.f32 %v4946, %v4971
        %v4973 = vmul.f32 %v4947, %v4971
        %4976 = vrot.lane.b32.xlu0 %v4972, 126
        %v4977 = vpop.permute.xlu0 %4976
        %4978 = vrot.lane.b32.xlu0 %v4973, 126
        %v4979 = vpop.permute.xlu0 %4978
        %v4982 = vadd.f32 %v4968, %v4977
        %v4983 = vadd.f32 %v4969, %v4979
        %s4984 = sld [smem:[#allocation7 + $0x81]]
        %v4985 = vstv %s4984
        %v4986 = vmul.f32 %v4948, %v4985
        %v4987 = vmul.f32 %v4949, %v4985
        %v4988 = vadd.f32 %v4982, %v4986
        %v4989 = vadd.f32 %v4983, %v4987
        %s4990 = sld [smem:[#allocation7 + $0x82]]
        %v4991 = vstv %s4990
        %v4992 = vmul.f32 %v4948, %v4991
        %v4993 = vmul.f32 %v4949, %v4991
        %4996 = vrot.lane.b32.xlu0 %v4992, 127
        %v4997 = vpop.permute.xlu0 %4996
        %4998 = vrot.lane.b32.xlu0 %v4993, 127
        %v4999 = vpop.permute.xlu0 %4998
        %v5002 = vadd.f32 %v4988, %v4997
        %v5003 = vadd.f32 %v4989, %v4999
        %s5004 = sld [smem:[#allocation7 + $0x83]]
        %v5005 = vstv %s5004
        %v5006 = vmul.f32 %v4948, %v5005
        %v5007 = vmul.f32 %v4949, %v5005
        %5010 = vrot.lane.b32.xlu0 %v5006, 126
        %v5011 = vpop.permute.xlu0 %5010
        %5012 = vrot.lane.b32.xlu0 %v5007, 126
        %v5013 = vpop.permute.xlu0 %5012
        %v5016 = vadd.f32 %v5002, %v5011
        %v5017 = vadd.f32 %v5003, %v5013
        %s5018 = sld [smem:[#allocation7 + $0x84]]
        %v5019 = vstv %s5018
        %v5020 = vmul.f32 %v4950, %v5019
        %v5021 = vmul.f32 %v4951, %v5019
        %v5022 = vadd.f32 %v5016, %v5020
        %v5023 = vadd.f32 %v5017, %v5021
        %s5024 = sld [smem:[#allocation7 + $0x85]]
        %v5025 = vstv %s5024
        %v5026 = vmul.f32 %v4950, %v5025
        %v5027 = vmul.f32 %v4951, %v5025
        %5030 = vrot.lane.b32.xlu0 %v5026, 127
        %v5031 = vpop.permute.xlu0 %5030
        %5032 = vrot.lane.b32.xlu0 %v5027, 127
        %v5033 = vpop.permute.xlu0 %5032
        %v5036 = vadd.f32 %v5022, %v5031
        %v5037 = vadd.f32 %v5023, %v5033
        %s5038 = sld [smem:[#allocation7 + $0x86]]
        %v5039 = vstv %s5038
        %v5040 = vmul.f32 %v4950, %v5039
        %v5041 = vmul.f32 %v4951, %v5039
        %5044 = vrot.lane.b32.xlu0 %v5040, 126
        %v5045 = vpop.permute.xlu0 %5044
        %5046 = vrot.lane.b32.xlu0 %v5041, 126
        %v5047 = vpop.permute.xlu0 %5046
        %v5050 = vadd.f32 %v5036, %v5045
        %v5051 = vadd.f32 %v5037, %v5047
        %s5052 = sld [smem:[#allocation11 + $0xe]]
        %v5053 = vstv %s5052
        %v5054 = vadd.f32 %v5050, %v5053
        %v5055 = vadd.f32 %v5051, %v5053
        %s5056 = scalar_lea.vmem %s420, 224 [#allocation16]
        %5057 = vst.msk [vmem:[%s5056] sm:$0xff] %vm536, %v5054
        %5058 = vst.msk [vmem:[%s5056 + $0x8] sm:$0xff] %vm536, %v5055
        %s5059 = sld [smem:[#allocation2 + $0x7e]]
        %v5060 = vstv %s5059
        %v5061 = vmul.f32 %v4946, %v5060
        %v5062 = vmul.f32 %v4947, %v5060
        %s5063 = sld [smem:[#allocation5 + $0x7e]]
        %v5064 = vstv %s5063
        %v5065 = vmul.f32 %v4946, %v5064
        %v5066 = vmul.f32 %v4947, %v5064
        %s5067 = sld [smem:[#allocation2 + $0x7f]]
        %v5068 = vstv %s5067
        %v5069 = vmul.f32 %v4946, %v5068
        %v5070 = vmul.f32 %v4947, %v5068
        %5073 = vrot.lane.b32.xlu0 %v5069, 127
        %v5074 = vpop.permute.xlu0 %5073
        %5075 = vrot.lane.b32.xlu0 %v5070, 127
        %v5076 = vpop.permute.xlu0 %5075
        %v5079 = vadd.f32 %v5061, %v5074
        %v5080 = vadd.f32 %v5062, %v5076
        %s5081 = sld [smem:[#allocation5 + $0x7f]]
        %v5082 = vstv %s5081
        %v5083 = vmul.f32 %v4946, %v5082
        %v5084 = vmul.f32 %v4947, %v5082
        %5087 = vrot.lane.b32.xlu0 %v5083, 127
        %v5088 = vpop.permute.xlu0 %5087
        %5089 = vrot.lane.b32.xlu0 %v5084, 127
        %v5090 = vpop.permute.xlu0 %5089
        %v5093 = vadd.f32 %v5065, %v5088
        %v5094 = vadd.f32 %v5066, %v5090
        %s5095 = sld [smem:[#allocation2 + $0x80]]
        %v5096 = vstv %s5095
        %v5097 = vmul.f32 %v4946, %v5096
        %v5098 = vmul.f32 %v4947, %v5096
        %5101 = vrot.lane.b32.xlu0 %v5097, 126
        %v5102 = vpop.permute.xlu0 %5101
        %5103 = vrot.lane.b32.xlu0 %v5098, 126
        %v5104 = vpop.permute.xlu0 %5103
        %v5107 = vadd.f32 %v5079, %v5102
        %v5108 = vadd.f32 %v5080, %v5104
        %s5109 = sld [smem:[#allocation5 + $0x80]]
        %v5110 = vstv %s5109
        %v5111 = vmul.f32 %v4946, %v5110
        %v5112 = vmul.f32 %v4947, %v5110
        %5115 = vrot.lane.b32.xlu0 %v5111, 126
        %v5116 = vpop.permute.xlu0 %5115
        %5117 = vrot.lane.b32.xlu0 %v5112, 126
        %v5118 = vpop.permute.xlu0 %5117
        %v5121 = vadd.f32 %v5093, %v5116
        %v5122 = vadd.f32 %v5094, %v5118
        %s5123 = sld [smem:[#allocation2 + $0x81]]
        %v5124 = vstv %s5123
        %v5125 = vmul.f32 %v4948, %v5124
        %v5126 = vmul.f32 %v4949, %v5124
        %v5127 = vadd.f32 %v5107, %v5125
        %v5128 = vadd.f32 %v5108, %v5126
        %s5129 = sld [smem:[#allocation5 + $0x81]]
        %v5130 = vstv %s5129
        %v5131 = vmul.f32 %v4948, %v5130
        %v5132 = vmul.f32 %v4949, %v5130
        %v5133 = vadd.f32 %v5121, %v5131
        %v5134 = vadd.f32 %v5122, %v5132
        %s5135 = sld [smem:[#allocation2 + $0x82]]
        %v5136 = vstv %s5135
        %v5137 = vmul.f32 %v4948, %v5136
        %v5138 = vmul.f32 %v4949, %v5136
        %5141 = vrot.lane.b32.xlu0 %v5137, 127
        %v5142 = vpop.permute.xlu0 %5141
        %5143 = vrot.lane.b32.xlu0 %v5138, 127
        %v5144 = vpop.permute.xlu0 %5143
        %v5147 = vadd.f32 %v5127, %v5142
        %v5148 = vadd.f32 %v5128, %v5144
        %s5149 = sld [smem:[#allocation5 + $0x82]]
        %v5150 = vstv %s5149
        %v5151 = vmul.f32 %v4948, %v5150
        %v5152 = vmul.f32 %v4949, %v5150
        %5155 = vrot.lane.b32.xlu0 %v5151, 127
        %v5156 = vpop.permute.xlu0 %5155
        %5157 = vrot.lane.b32.xlu0 %v5152, 127
        %v5158 = vpop.permute.xlu0 %5157
        %v5161 = vadd.f32 %v5133, %v5156
        %v5162 = vadd.f32 %v5134, %v5158
        %s5163 = sld [smem:[#allocation2 + $0x83]]
        %v5164 = vstv %s5163
        %v5165 = vmul.f32 %v4948, %v5164
        %v5166 = vmul.f32 %v4949, %v5164
        %5169 = vrot.lane.b32.xlu0 %v5165, 126
        %v5170 = vpop.permute.xlu0 %5169
        %5171 = vrot.lane.b32.xlu0 %v5166, 126
        %v5172 = vpop.permute.xlu0 %5171
        %v5175 = vadd.f32 %v5147, %v5170
        %v5176 = vadd.f32 %v5148, %v5172
        %s5177 = sld [smem:[#allocation5 + $0x83]]
        %v5178 = vstv %s5177
        %v5179 = vmul.f32 %v4948, %v5178
        %v5180 = vmul.f32 %v4949, %v5178
        %5183 = vrot.lane.b32.xlu0 %v5179, 126
        %v5184 = vpop.permute.xlu0 %5183
        %5185 = vrot.lane.b32.xlu0 %v5180, 126
        %v5186 = vpop.permute.xlu0 %5185
        %v5189 = vadd.f32 %v5161, %v5184
        %v5190 = vadd.f32 %v5162, %v5186
        %s5191 = sld [smem:[#allocation2 + $0x84]]
        %v5192 = vstv %s5191
        %v5193 = vmul.f32 %v4950, %v5192
        %v5194 = vmul.f32 %v4951, %v5192
        %v5195 = vadd.f32 %v5175, %v5193
        %v5196 = vadd.f32 %v5176, %v5194
        %s5197 = sld [smem:[#allocation5 + $0x84]]
        %v5198 = vstv %s5197
        %v5199 = vmul.f32 %v4950, %v5198
        %v5200 = vmul.f32 %v4951, %v5198
        %v5201 = vadd.f32 %v5189, %v5199
        %v5202 = vadd.f32 %v5190, %v5200
        %s5203 = sld [smem:[#allocation2 + $0x85]]
        %v5204 = vstv %s5203
        %v5205 = vmul.f32 %v4950, %v5204
        %v5206 = vmul.f32 %v4951, %v5204
        %5209 = vrot.lane.b32.xlu0 %v5205, 127
        %v5210 = vpop.permute.xlu0 %5209
        %5211 = vrot.lane.b32.xlu0 %v5206, 127
        %v5212 = vpop.permute.xlu0 %5211
        %v5215 = vadd.f32 %v5195, %v5210
        %v5216 = vadd.f32 %v5196, %v5212
        %s5217 = sld [smem:[#allocation5 + $0x85]]
        %v5218 = vstv %s5217
        %v5219 = vmul.f32 %v4950, %v5218
        %v5220 = vmul.f32 %v4951, %v5218
        %5223 = vrot.lane.b32.xlu0 %v5219, 127
        %v5224 = vpop.permute.xlu0 %5223
        %5225 = vrot.lane.b32.xlu0 %v5220, 127
        %v5226 = vpop.permute.xlu0 %5225
        %v5229 = vadd.f32 %v5201, %v5224
        %v5230 = vadd.f32 %v5202, %v5226
        %s5231 = sld [smem:[#allocation2 + $0x86]]
        %v5232 = vstv %s5231
        %v5233 = vmul.f32 %v4950, %v5232
        %v5234 = vmul.f32 %v4951, %v5232
        %5237 = vrot.lane.b32.xlu0 %v5233, 126
        %v5238 = vpop.permute.xlu0 %5237
        %5239 = vrot.lane.b32.xlu0 %v5234, 126
        %v5240 = vpop.permute.xlu0 %5239
        %v5243 = vadd.f32 %v5215, %v5238
        %v5244 = vadd.f32 %v5216, %v5240
        %s5245 = sld [smem:[#allocation5 + $0x86]]
        %v5246 = vstv %s5245
        %v5247 = vmul.f32 %v4950, %v5246
        %v5248 = vmul.f32 %v4951, %v5246
        %5251 = vrot.lane.b32.xlu0 %v5247, 126
        %v5252 = vpop.permute.xlu0 %5251
        %5253 = vrot.lane.b32.xlu0 %v5248, 126
        %v5254 = vpop.permute.xlu0 %5253
        %v5257 = vadd.f32 %v5229, %v5252
        %v5258 = vadd.f32 %v5230, %v5254
        %s5259 = scalar_lea.vmem %s425, 360
        %v5260 = vld [vmem:[%s5259] sm:$0xff]
        %v5261 = vld [vmem:[%s5259 + $0x8] sm:$0xff]
        %v5262 = vld [vmem:[%s5259 + $0x1] sm:$0xff]
        %v5263 = vld [vmem:[%s5259 + $0x9] sm:$0xff]
        %v5264 = vld [vmem:[%s5259 + $0x2] sm:$0xff]
        %v5265 = vld [vmem:[%s5259 + $0xa] sm:$0xff]
        %s5266 = sld [smem:[#allocation7 + $0x87]]
        %v5267 = vstv %s5266
        %v5268 = vmul.f32 %v5260, %v5267
        %v5269 = vmul.f32 %v5261, %v5267
        %s5270 = sld [smem:[#allocation7 + $0x88]]
        %v5271 = vstv %s5270
        %v5272 = vmul.f32 %v5260, %v5271
        %v5273 = vmul.f32 %v5261, %v5271
        %5276 = vrot.lane.b32.xlu0 %v5272, 127
        %v5277 = vpop.permute.xlu0 %5276
        %5278 = vrot.lane.b32.xlu0 %v5273, 127
        %v5279 = vpop.permute.xlu0 %5278
        %v5282 = vadd.f32 %v5268, %v5277
        %v5283 = vadd.f32 %v5269, %v5279
        %s5284 = sld [smem:[#allocation7 + $0x89]]
        %v5285 = vstv %s5284
        %v5286 = vmul.f32 %v5260, %v5285
        %v5287 = vmul.f32 %v5261, %v5285
        %5290 = vrot.lane.b32.xlu0 %v5286, 126
        %v5291 = vpop.permute.xlu0 %5290
        %5292 = vrot.lane.b32.xlu0 %v5287, 126
        %v5293 = vpop.permute.xlu0 %5292
        %v5296 = vadd.f32 %v5282, %v5291
        %v5297 = vadd.f32 %v5283, %v5293
        %s5298 = sld [smem:[#allocation7 + $0x8a]]
        %v5299 = vstv %s5298
        %v5300 = vmul.f32 %v5262, %v5299
        %v5301 = vmul.f32 %v5263, %v5299
        %v5302 = vadd.f32 %v5296, %v5300
        %v5303 = vadd.f32 %v5297, %v5301
        %s5304 = sld [smem:[#allocation7 + $0x8b]]
        %v5305 = vstv %s5304
        %v5306 = vmul.f32 %v5262, %v5305
        %v5307 = vmul.f32 %v5263, %v5305
        %5310 = vrot.lane.b32.xlu0 %v5306, 127
        %v5311 = vpop.permute.xlu0 %5310
        %5312 = vrot.lane.b32.xlu0 %v5307, 127
        %v5313 = vpop.permute.xlu0 %5312
        %v5316 = vadd.f32 %v5302, %v5311
        %v5317 = vadd.f32 %v5303, %v5313
        %s5318 = sld [smem:[#allocation7 + $0x8c]]
        %v5319 = vstv %s5318
        %v5320 = vmul.f32 %v5262, %v5319
        %v5321 = vmul.f32 %v5263, %v5319
        %5324 = vrot.lane.b32.xlu0 %v5320, 126
        %v5325 = vpop.permute.xlu0 %5324
        %5326 = vrot.lane.b32.xlu0 %v5321, 126
        %v5327 = vpop.permute.xlu0 %5326
        %v5330 = vadd.f32 %v5316, %v5325
        %v5331 = vadd.f32 %v5317, %v5327
        %s5332 = sld [smem:[#allocation7 + $0x8d]]
        %v5333 = vstv %s5332
        %v5334 = vmul.f32 %v5264, %v5333
        %v5335 = vmul.f32 %v5265, %v5333
        %v5336 = vadd.f32 %v5330, %v5334
        %v5337 = vadd.f32 %v5331, %v5335
        %s5338 = sld [smem:[#allocation7 + $0x8e]]
        %v5339 = vstv %s5338
        %v5340 = vmul.f32 %v5264, %v5339
        %v5341 = vmul.f32 %v5265, %v5339
        %5344 = vrot.lane.b32.xlu0 %v5340, 127
        %v5345 = vpop.permute.xlu0 %5344
        %5346 = vrot.lane.b32.xlu0 %v5341, 127
        %v5347 = vpop.permute.xlu0 %5346
        %v5350 = vadd.f32 %v5336, %v5345
        %v5351 = vadd.f32 %v5337, %v5347
        %s5352 = sld [smem:[#allocation7 + $0x8f]]
        %v5353 = vstv %s5352
        %v5354 = vmul.f32 %v5264, %v5353
        %v5355 = vmul.f32 %v5265, %v5353
        %5358 = vrot.lane.b32.xlu0 %v5354, 126
        %v5359 = vpop.permute.xlu0 %5358
        %5360 = vrot.lane.b32.xlu0 %v5355, 126
        %v5361 = vpop.permute.xlu0 %5360
        %v5364 = vadd.f32 %v5350, %v5359
        %v5365 = vadd.f32 %v5351, %v5361
        %s5366 = sld [smem:[#allocation11 + $0xf]]
        %v5367 = vstv %s5366
        %v5368 = vadd.f32 %v5364, %v5367
        %v5369 = vadd.f32 %v5365, %v5367
        %s5370 = scalar_lea.vmem %s420, 240 [#allocation16]
        %5371 = vst.msk [vmem:[%s5370] sm:$0xff] %vm536, %v5368
        %5372 = vst.msk [vmem:[%s5370 + $0x8] sm:$0xff] %vm536, %v5369
        %s5373 = sld [smem:[#allocation2 + $0x87]]
        %v5374 = vstv %s5373
        %v5375 = vmul.f32 %v5260, %v5374
        %v5376 = vmul.f32 %v5261, %v5374
        %s5377 = sld [smem:[#allocation5 + $0x87]]
        %v5378 = vstv %s5377
        %v5379 = vmul.f32 %v5260, %v5378
        %v5380 = vmul.f32 %v5261, %v5378
        %s5381 = sld [smem:[#allocation2 + $0x88]]
        %v5382 = vstv %s5381
        %v5383 = vmul.f32 %v5260, %v5382
        %v5384 = vmul.f32 %v5261, %v5382
        %5387 = vrot.lane.b32.xlu0 %v5383, 127
        %v5388 = vpop.permute.xlu0 %5387
        %5389 = vrot.lane.b32.xlu0 %v5384, 127
        %v5390 = vpop.permute.xlu0 %5389
        %v5393 = vadd.f32 %v5375, %v5388
        %v5394 = vadd.f32 %v5376, %v5390
        %s5395 = sld [smem:[#allocation5 + $0x88]]
        %v5396 = vstv %s5395
        %v5397 = vmul.f32 %v5260, %v5396
        %v5398 = vmul.f32 %v5261, %v5396
        %5401 = vrot.lane.b32.xlu0 %v5397, 127
        %v5402 = vpop.permute.xlu0 %5401
        %5403 = vrot.lane.b32.xlu0 %v5398, 127
        %v5404 = vpop.permute.xlu0 %5403
        %v5407 = vadd.f32 %v5379, %v5402
        %v5408 = vadd.f32 %v5380, %v5404
        %s5409 = sld [smem:[#allocation2 + $0x89]]
        %v5410 = vstv %s5409
        %v5411 = vmul.f32 %v5260, %v5410
        %v5412 = vmul.f32 %v5261, %v5410
        %5415 = vrot.lane.b32.xlu0 %v5411, 126
        %v5416 = vpop.permute.xlu0 %5415
        %5417 = vrot.lane.b32.xlu0 %v5412, 126
        %v5418 = vpop.permute.xlu0 %5417
        %v5421 = vadd.f32 %v5393, %v5416
        %v5422 = vadd.f32 %v5394, %v5418
        %s5423 = sld [smem:[#allocation5 + $0x89]]
        %v5424 = vstv %s5423
        %v5425 = vmul.f32 %v5260, %v5424
        %v5426 = vmul.f32 %v5261, %v5424
        %5429 = vrot.lane.b32.xlu0 %v5425, 126
        %v5430 = vpop.permute.xlu0 %5429
        %5431 = vrot.lane.b32.xlu0 %v5426, 126
        %v5432 = vpop.permute.xlu0 %5431
        %v5435 = vadd.f32 %v5407, %v5430
        %v5436 = vadd.f32 %v5408, %v5432
        %s5437 = sld [smem:[#allocation2 + $0x8a]]
        %v5438 = vstv %s5437
        %v5439 = vmul.f32 %v5262, %v5438
        %v5440 = vmul.f32 %v5263, %v5438
        %v5441 = vadd.f32 %v5421, %v5439
        %v5442 = vadd.f32 %v5422, %v5440
        %s5443 = sld [smem:[#allocation5 + $0x8a]]
        %v5444 = vstv %s5443
        %v5445 = vmul.f32 %v5262, %v5444
        %v5446 = vmul.f32 %v5263, %v5444
        %v5447 = vadd.f32 %v5435, %v5445
        %v5448 = vadd.f32 %v5436, %v5446
        %s5449 = sld [smem:[#allocation2 + $0x8b]]
        %v5450 = vstv %s5449
        %v5451 = vmul.f32 %v5262, %v5450
        %v5452 = vmul.f32 %v5263, %v5450
        %5455 = vrot.lane.b32.xlu0 %v5451, 127
        %v5456 = vpop.permute.xlu0 %5455
        %5457 = vrot.lane.b32.xlu0 %v5452, 127
        %v5458 = vpop.permute.xlu0 %5457
        %v5461 = vadd.f32 %v5441, %v5456
        %v5462 = vadd.f32 %v5442, %v5458
        %s5463 = sld [smem:[#allocation5 + $0x8b]]
        %v5464 = vstv %s5463
        %v5465 = vmul.f32 %v5262, %v5464
        %v5466 = vmul.f32 %v5263, %v5464
        %5469 = vrot.lane.b32.xlu0 %v5465, 127
        %v5470 = vpop.permute.xlu0 %5469
        %5471 = vrot.lane.b32.xlu0 %v5466, 127
        %v5472 = vpop.permute.xlu0 %5471
        %v5475 = vadd.f32 %v5447, %v5470
        %v5476 = vadd.f32 %v5448, %v5472
        %s5477 = sld [smem:[#allocation2 + $0x8c]]
        %v5478 = vstv %s5477
        %v5479 = vmul.f32 %v5262, %v5478
        %v5480 = vmul.f32 %v5263, %v5478
        %5483 = vrot.lane.b32.xlu0 %v5479, 126
        %v5484 = vpop.permute.xlu0 %5483
        %5485 = vrot.lane.b32.xlu0 %v5480, 126
        %v5486 = vpop.permute.xlu0 %5485
        %v5489 = vadd.f32 %v5461, %v5484
        %v5490 = vadd.f32 %v5462, %v5486
        %s5491 = sld [smem:[#allocation5 + $0x8c]]
        %v5492 = vstv %s5491
        %v5493 = vmul.f32 %v5262, %v5492
        %v5494 = vmul.f32 %v5263, %v5492
        %5497 = vrot.lane.b32.xlu0 %v5493, 126
        %v5498 = vpop.permute.xlu0 %5497
        %5499 = vrot.lane.b32.xlu0 %v5494, 126
        %v5500 = vpop.permute.xlu0 %5499
        %v5503 = vadd.f32 %v5475, %v5498
        %v5504 = vadd.f32 %v5476, %v5500
        %s5505 = sld [smem:[#allocation2 + $0x8d]]
        %v5506 = vstv %s5505
        %v5507 = vmul.f32 %v5264, %v5506
        %v5508 = vmul.f32 %v5265, %v5506
        %v5509 = vadd.f32 %v5489, %v5507
        %v5510 = vadd.f32 %v5490, %v5508
        %s5511 = sld [smem:[#allocation5 + $0x8d]]
        %v5512 = vstv %s5511
        %v5513 = vmul.f32 %v5264, %v5512
        %v5514 = vmul.f32 %v5265, %v5512
        %v5515 = vadd.f32 %v5503, %v5513
        %v5516 = vadd.f32 %v5504, %v5514
        %s5517 = sld [smem:[#allocation2 + $0x8e]]
        %v5518 = vstv %s5517
        %v5519 = vmul.f32 %v5264, %v5518
        %v5520 = vmul.f32 %v5265, %v5518
        %5523 = vrot.lane.b32.xlu0 %v5519, 127
        %v5524 = vpop.permute.xlu0 %5523
        %5525 = vrot.lane.b32.xlu0 %v5520, 127
        %v5526 = vpop.permute.xlu0 %5525
        %v5529 = vadd.f32 %v5509, %v5524
        %v5530 = vadd.f32 %v5510, %v5526
        %s5531 = sld [smem:[#allocation5 + $0x8e]]
        %v5532 = vstv %s5531
        %v5533 = vmul.f32 %v5264, %v5532
        %v5534 = vmul.f32 %v5265, %v5532
        %5537 = vrot.lane.b32.xlu0 %v5533, 127
        %v5538 = vpop.permute.xlu0 %5537
        %5539 = vrot.lane.b32.xlu0 %v5534, 127
        %v5540 = vpop.permute.xlu0 %5539
        %v5543 = vadd.f32 %v5515, %v5538
        %v5544 = vadd.f32 %v5516, %v5540
        %s5545 = sld [smem:[#allocation2 + $0x8f]]
        %v5546 = vstv %s5545
        %v5547 = vmul.f32 %v5264, %v5546
        %v5548 = vmul.f32 %v5265, %v5546
        %5551 = vrot.lane.b32.xlu0 %v5547, 126
        %v5552 = vpop.permute.xlu0 %5551
        %5553 = vrot.lane.b32.xlu0 %v5548, 126
        %v5554 = vpop.permute.xlu0 %5553
        %v5557 = vadd.f32 %v5529, %v5552
        %v5558 = vadd.f32 %v5530, %v5554
        %s5559 = sld [smem:[#allocation5 + $0x8f]]
        %v5560 = vstv %s5559
        %v5561 = vmul.f32 %v5264, %v5560
        %v5562 = vmul.f32 %v5265, %v5560
        %5565 = vrot.lane.b32.xlu0 %v5561, 126
        %v5566 = vpop.permute.xlu0 %5565
        %5567 = vrot.lane.b32.xlu0 %v5562, 126
        %v5568 = vpop.permute.xlu0 %5567
        %v5571 = vadd.f32 %v5543, %v5566
        %v5572 = vadd.f32 %v5544, %v5568
        %v5573 = vadd.f32 %v5243, %v5557
        %v5574 = vadd.f32 %v5244, %v5558
        %s5575 = sld [smem:[#allocation8 + $0x7]]
        %v5576 = vstv %s5575
        %v5577 = vadd.f32 %v5573, %v5576
        %v5578 = vadd.f32 %v5574, %v5576
        %s5579 = scalar_lea.vmem %s406, 112 [#allocation13]
        %5580 = vst.msk [vmem:[%s5579] sm:$0xff] %vm536, %v5577
        %5581 = vst.msk [vmem:[%s5579 + $0x8] sm:$0xff] %vm536, %v5578
        %v5582 = vadd.f32 %v5257, %v5571
        %v5583 = vadd.f32 %v5258, %v5572
        %s5584 = sld [smem:[#allocation10 + $0x7]]
        %v5585 = vstv %s5584
        %v5586 = vadd.f32 %v5582, %v5585
        %v5587 = vadd.f32 %v5583, %v5585
        %s5588 = scalar_lea.vmem %s413, 112 [#allocation14]
        %5589 = vst.msk [vmem:[%s5588] sm:$0xff] %vm536, %v5586
        %5590 = vst.msk [vmem:[%s5588 + $0x8] sm:$0xff] %vm536, %v5587
        %s5591 = sand.u32 %s191, 1
        %s5592 = scalar_lea.sflag [#allocation3], %s5591
        %s5593 = sand.u32 %s191, 1
        %s5594 = smul.addr %s5593, 128
        %s5595 = scalar_lea.vmem [#allocation13], %s5594
        %s5596 = sand.u32 %s31, 1
        %s5597 = scalar_lea.sflag [#allocation15], %s5596
        %s5598 = sand.u32 %s217, 1
        %s5599 = smul.addr %s5598, 128
        %s5600 = scalar_lea.vmem [#allocation14], %s5599
        %s5601 = sand.u32 %s31, 1
        %s5602 = scalar_lea.sflag [#allocation15], %s5601
        %s5603 = sand.u32 %s243, 1
        %s5604 = smul.addr %s5603, 256
        %s5605 = scalar_lea.vmem [#allocation16], %s5604
        // Predicated region
        $region73: #{tpu_custom_call.1} parent=47 // pred_check
          %p5606 = pneg %p201
        $region74: #{tpu_custom_call.1} parent=47 // pred_check_branch
          %5608 = sbr.rel (%p5606) target = $region76
        $region75: #{tpu_custom_call.1} parent=47 // pred_region
          %5610 = vsyncadd %s5592, 0
          %s5611 = smul.addr %s31, 16
          %s5612 = smul.addr %s5611, 8
          %s5613 = scalar_lea.hbm %s7, %s5612
          %s5614 = sshll.u32 %s5595, 4
          %s5615 = int_to_ptr.vmem [resolvable:$true] %s5614
          %s5616 = sshll.u32 %s5613, 4
          %s5617 = int_to_ptr.hbm [resolvable:$true] %s5616
          %5622 = dma.vmem_to_hbm [thread:$0]  %s5615, 2048, %s5617, %s5592, 128, 128, 8
        $region76: #{tpu_custom_call.1} parent=47 // pred_fallthru
          _
        // Predicated region
        $region77: #{tpu_custom_call.1} parent=47 // pred_check
          %p5623 = pneg %p227
        $region78: #{tpu_custom_call.1} parent=47 // pred_check_branch
          %5625 = sbr.rel (%p5623) target = $region80
        $region79: #{tpu_custom_call.1} parent=47 // pred_region
          %5627 = vsyncadd %s5597, 0
          %s5628 = smul.addr %s31, 16
          %s5629 = smul.addr %s5628, 8
          %s5630 = scalar_lea.hbm %s8, %s5629
          %s5631 = sshll.u32 %s5600, 4
          %s5632 = int_to_ptr.vmem [resolvable:$true] %s5631
          %s5633 = sshll.u32 %s5630, 4
          %s5634 = int_to_ptr.hbm [resolvable:$true] %s5633
          %5639 = dma.vmem_to_hbm [thread:$0]  %s5632, 2048, %s5634, %s5597, 128, 128, 8
        $region80: #{tpu_custom_call.1} parent=47 // pred_fallthru
          _
        // Predicated region
        $region81: #{tpu_custom_call.1} parent=47 // pred_check
          %p5640 = pneg %p253
        $region82: #{tpu_custom_call.1} parent=47 // pred_check_branch
          %5642 = sbr.rel (%p5640) target = $region84
        $region83: #{tpu_custom_call.1} parent=47 // pred_region
          %5644 = vsyncadd %s5602, 0
          %s5645 = smul.addr %s31, 32
          %s5646 = smul.addr %s5645, 8
          %s5647 = scalar_lea.hbm %s9, %s5646
          %s5648 = sshll.u32 %s5605, 4
          %s5649 = int_to_ptr.vmem [resolvable:$true] %s5648
          %s5650 = sshll.u32 %s5647, 4
          %s5651 = int_to_ptr.hbm [resolvable:$true] %s5650
          %5656 = dma.vmem_to_hbm [thread:$0]  %s5649, 4096, %s5651, %s5602, 128, 128, 8
        $region84: #{tpu_custom_call.1} parent=47 // pred_fallthru
          _
      $region48: #{tpu_custom_call.1} parent=5 // pred_fallthru
        _
      %p5657 = scmp.le.s32.totalorder 2, %s26
      // Predicated region
      $region85: #{tpu_custom_call.1} parent=5 // pred_check
        %p5658 = pneg %p5657
      $region86: #{tpu_custom_call.1} parent=5 // pred_check_branch
        %5660 = sbr.rel (%p5658) target = $region88
      $region87: #{tpu_custom_call.1} parent=5 // pred_region
        %s5661 = ssub.s32 %s26, 2
        // Predicated region
        $region89: #{tpu_custom_call.1} parent=87 // pred_check
          %p5662 = pneg %p207
        $region90: #{tpu_custom_call.1} parent=87 // pred_check_branch
          %5664 = sbr.rel (%p5662) target = $region92
        $region91: #{tpu_custom_call.1} parent=87 // pred_region
          %s5665 = sand.u32 %s192, 1
          %s5666 = scalar_lea.sflag [#allocation3], %s5665
          %s5667 = sand.u32 %s192, 1
          %s5668 = smul.addr %s5667, 128
          %s5669 = scalar_lea.vmem [#allocation13], %s5668
          %5671 = dma.done %s5666, 2048
        $region92: #{tpu_custom_call.1} parent=87 // pred_fallthru
          _
        // Predicated region
        $region93: #{tpu_custom_call.1} parent=87 // pred_check
          %p5672 = pneg %p233
        $region94: #{tpu_custom_call.1} parent=87 // pred_check_branch
          %5674 = sbr.rel (%p5672) target = $region96
        $region95: #{tpu_custom_call.1} parent=87 // pred_region
          %s5675 = sand.u32 %s32, 1
          %s5676 = scalar_lea.sflag [#allocation15], %s5675
          %s5677 = sand.u32 %s218, 1
          %s5678 = smul.addr %s5677, 128
          %s5679 = scalar_lea.vmem [#allocation14], %s5678
          %5681 = dma.done %s5676, 2048
        $region96: #{tpu_custom_call.1} parent=87 // pred_fallthru
          _
        // Predicated region
        $region97: #{tpu_custom_call.1} parent=87 // pred_check
          %p5682 = pneg %p259
        $region98: #{tpu_custom_call.1} parent=87 // pred_check_branch
          %5684 = sbr.rel (%p5682) target = $region100
        $region99: #{tpu_custom_call.1} parent=87 // pred_region
          %s5685 = sand.u32 %s32, 1
          %s5686 = scalar_lea.sflag [#allocation15], %s5685
          %s5687 = sand.u32 %s244, 1
          %s5688 = smul.addr %s5687, 256
          %s5689 = scalar_lea.vmem [#allocation16], %s5688
          %5691 = dma.done %s5686, 4096
        $region100: #{tpu_custom_call.1} parent=87 // pred_fallthru
          _
      $region88: #{tpu_custom_call.1} parent=5 // pred_fallthru
        _
    $region6: #{tpu_custom_call.1} parent=1 // loop_footer
      %s30 = sadd.s32 1, %s26
    $region7: #{tpu_custom_call.1} parent=1 // loop_footer_branch
      %25 = sbr.rel target = $region3
    $region8: #{tpu_custom_call.1} parent=1 // loop_exit
      _
    %5692 = vsyncpa [#allocation3], 1
    %s5693 = scalar_lea.sflag [#allocation3], 1
    %5694 = vsyncpa %s5693, 1
    %5695 = vsyncpa [#allocation15], 1
    %s5696 = scalar_lea.sflag [#allocation15], 1
    %5697 = vsyncpa %s5696, 1
    %5698 = vsyncpa [#allocation4], 1
    %s5699 = scalar_lea.sflag [#allocation4], 1
    %5700 = vsyncpa %s5699, 1
    %5701 = vsyncpa [#allocation6], 1
    %5702 = vsyncpa [#allocation9], 1
    %5703 = vsyncpa [#allocation12], 1

</llo_original>
